<compile_context>
chip_gen: v6e
topology: v6e:2x2x1
jax: 0.10.0
libtpu: 0.0.40
codegen_flags: <defaults>
</compile_context>

<pallas_src>
import functools

import jax
import jax.numpy as jnp
from jax import lax
from jax.experimental import pallas as pl
from jax.experimental.pallas import tpu as pltpu

EPS = 1e-5  # torch.nn.InstanceNorm3d default


def _round_up(x, m):
    return (x + m - 1) // m * m


def conv_in_prelu_kernel(x_ref, w_ref, params_ref, mask_ref, o_ref,
                         *, D, H, W, Cin, Cout, Lout, TL):
    """One grid step == one batch sample.

    Layout: channels on sublanes, flattened padded spatial volume on lanes.

    x_ref:      (1, Cin, Lin)    flat zero-padded input, bf16
    w_ref:      (27, Cout, Cin)  conv taps (tap-major), bf16
    params_ref: (Cout, 3)        columns = [gamma, beta, alpha], f32
    mask_ref:   (1, Lout)        1.0 at valid output lanes, bf16
    o_ref:      (1, Cout, Lout)  output, bf16 (also stages raw conv results)
    """
    P = (H + 2) * (W + 2)
    W2 = W + 2
    inv_n = 1.0 / float(D * H * W)

    # ---- pass A: conv (27 accumulating tiny-K MXU dots) + masked sum/sumsq --
    s1 = jnp.zeros((Cout, 1), jnp.float32)
    s2 = jnp.zeros((Cout, 1), jnp.float32)
    for ts in range(0, Lout, TL):                      # static, lane-aligned tiles
        tl = min(TL, Lout - ts)
        acc = jnp.zeros((Cout, tl), jnp.float32)
        for kd in range(3):
            for kh in range(3):
                for kw in range(3):
                    t = (kd * 3 + kh) * 3 + kw
                    off = kd * P + kh * W2 + kw
                    acc = acc + jnp.dot(
                        w_ref[t], x_ref[0, :, ts + off:ts + off + tl],
                        preferred_element_type=jnp.float32)
        m = mask_ref[:, ts:ts + tl].astype(jnp.float32)          # (1, tl)
        am = acc * m                                             # reused for s1/s2
        s1 = s1 + jnp.sum(am, axis=1, keepdims=True)
        s2 = s2 + jnp.sum(am * acc, axis=1, keepdims=True)
        o_ref[0, :, ts:ts + tl] = acc.astype(o_ref.dtype)        # stage conv (bf16)

    # ---- InstanceNorm stats (f32) folded with the affine params -------------
    mean = s1 * inv_n
    var = jnp.maximum(s2 * inv_n - mean * mean, 0.0)             # biased variance
    gamma = params_ref[:, 0:1]
    beta = params_ref[:, 1:2]
    alpha = params_ref[:, 2:3]
    scale = gamma * lax.rsqrt(var + EPS)
    shift = beta - mean * scale
    scale_b = scale.astype(jnp.bfloat16)
    shift_b = shift.astype(jnp.bfloat16)
    alpha_b = alpha.astype(jnp.bfloat16)

    # ---- pass B: normalize + PReLU, bf16 apply (VMEM-resident re-read) ------
    for ts in range(0, Lout, TL):
        tl = min(TL, Lout - ts)
        y = o_ref[0, :, ts:ts + tl]                              # bf16 (Cout, tl)
        y = y * scale_b + shift_b
        y = jnp.where(y >= 0, y, alpha_b * y)                    # per-channel PReLU
        o_ref[0, :, ts:ts + tl] = y


def conv3d_block(x_ncdhw, weight_oikkk, gamma, beta, alpha, *, tile_lanes=None):
    """Conv3d(k=3, pad=1, s=1, bias=False) + InstanceNorm3d(affine) + PReLU.

    x_ncdhw:      (N, Cin, D, H, W)  float32
    weight_oikkk: (Cout, Cin, 3, 3, 3) float32
    gamma, beta, alpha: (Cout,) float32
    returns:      (N, Cout, D, H, W) float32
    """
    N, Cin, D, H, W = x_ncdhw.shape
    Cout = weight_oikkk.shape[0]
    P = (H + 2) * (W + 2)
    W2 = W + 2
    LP = (D + 2) * P
    Lout = _round_up(D * P, 128)                 # lane-dense, 128-multiple output
    off_max = 2 * P + 2 * W2 + 2                 # largest tap offset
    Lin = Lout + off_max                         # input lanes the kernel may read

    if tile_lanes is None:
        tile_lanes = 16384                       # ~0.5 MiB f32 acc per tile
    TL = min(_round_up(tile_lanes, 128), Lout)

    # --- layout plumbing (no transposes of the big activation tensor) -------
    x_pad = jnp.pad(x_ncdhw, ((0, 0), (0, 0), (1, 1), (1, 1), (1, 1)))
    x_flat = jnp.pad(x_pad.reshape(N, Cin, LP), ((0, 0), (0, 0), (0, Lin - LP)))
    x_flat = x_flat.astype(jnp.bfloat16)

    # (Cout, Cin, kd, kh, kw) -> (kd, kh, kw, Cout, Cin) -> (27, Cout, Cin)
    w_taps = jnp.transpose(weight_oikkk, (2, 3, 4, 0, 1)).reshape(27, Cout, Cin)
    w_taps = w_taps.astype(jnp.bfloat16)

    params = jnp.stack([gamma, beta, alpha], axis=1).astype(jnp.float32)  # (Cout,3)

    # Valid-output-lane mask for the full-correlation layout (bf16: 0/1 exact).
    j = jnp.arange(Lout, dtype=jnp.int32)
    valid = (j < D * P) & (((j % P) // W2) < H) & ((j % W2) < W)
    mask = valid.astype(jnp.bfloat16)[None, :]                            # (1, Lout)

    kernel = functools.partial(conv_in_prelu_kernel, D=D, H=H, W=W,
                               Cin=Cin, Cout=Cout, Lout=Lout, TL=TL)

    flops = 2 * N * Cout * 27 * Cin * Lout + 10 * N * Cout * Lout
    bytes_accessed = (x_flat.size * 2 + w_taps.size * 2 + params.size * 4
                      + mask.size * 2 + N * Cout * Lout * 2)

    # VMEM budget: 2x-buffered blocks + per-tile transients + slack,
    # capped from the actual device capacity (v7x has only 64 MiB).
    cap = 64 << 20
    try:
        cap = int(getattr(pltpu.get_tpu_info(), "vmem_capacity_bytes", cap))
    except Exception:
        pass
    need = (2 * Cin * Lin * 2 + 2 * Cout * Lout * 2 + 2 * Lout * 2
            + 2 * (27 * Cout * Cin * 2 + Cout * 3 * 4)
            + 6 * Cout * TL * 4 + (8 << 20))
    vmem_limit = int(min(max(need, 16 << 20), int(cap * 0.85)))

    out_full = pl.pallas_call(
        kernel,
        out_shape=jax.ShapeDtypeStruct((N, Cout, Lout), jnp.bfloat16),
        grid=(N,),
        in_specs=[
            pl.BlockSpec((1, Cin, Lin), lambda n: (n, 0, 0)),
            pl.BlockSpec((27, Cout, Cin), lambda n: (0, 0, 0)),
            pl.BlockSpec((Cout, 3), lambda n: (0, 0)),
            pl.BlockSpec((1, Lout), lambda n: (0, 0)),
        ],
        out_specs=pl.BlockSpec((1, Cout, Lout), lambda n: (n, 0, 0)),
        compiler_params=pltpu.CompilerParams(
            dimension_semantics=("parallel",),
            vmem_limit_bytes=vmem_limit),
        cost_estimate=pl.CostEstimate(flops=int(flops),
                                      transcendentals=int(N * Cout),
                                      bytes_accessed=int(bytes_accessed)),
    )(x_flat, w_taps, params, mask)

    # Valid-lane extraction: reshape + static slice only (no jnp.pad pass).
    # TODO(synk): fuse this slice (and the f32 cast) into the consumer and keep
    #             the activations in bf16 between BRNet blocks.
    out = out_full[:, :, :D * P].reshape(N, Cout, D, H + 2, W + 2)
    out = out[:, :, :, :H, :W].astype(jnp.float32)
    return out


def reference(x_ncdhw, weight_oikkk, gamma, beta, alpha):
    """Pure-JAX reference matching PyTorch semantics (f32 math)."""
    y = lax.conv_general_dilated(
        x_ncdhw, weight_oikkk, window_strides=(1, 1, 1),
        padding=((1, 1), (1, 1), (1, 1)),
        dimension_numbers=("NCDHW", "OIDHW", "NCDHW"))
    mean = jnp.mean(y, axis=(2, 3, 4), keepdims=True)
    var = jnp.mean((y - mean) ** 2, axis=(2, 3, 4), keepdims=True)
    y = (y - mean) * lax.rsqrt(var + EPS)
    y = y * gamma[None, :, None, None, None] + beta[None, :, None, None, None]
    return jnp.where(y >= 0, y, alpha[None, :, None, None, None] * y)


if __name__ == "__main__":
    key = jax.random.PRNGKey(0)
    N, Cin, Cout = 2, 4, 8
    D = H = W = 8

    kx, kw, kg, kb = jax.random.split(key, 4)
    x = jax.random.normal(kx, (N, Cin, D, H, W), dtype=jnp.float32)
    fan_in = Cin * 27
    weight = jax.random.normal(kw, (Cout, Cin, 3, 3, 3),
                               dtype=jnp.float32) * (2.0 / fan_in) ** 0.5
    # InstanceNorm3d affine params (perturbed from defaults to exercise them).
    gamma = 1.0 + 0.1 * jax.random.normal(kg, (Cout,), dtype=jnp.float32)
    beta = 0.1 * jax.random.normal(kb, (Cout,), dtype=jnp.float32)
    # PReLU(num_parameters=Cout) default slope 0.25.
    alpha = jnp.full((Cout,), 0.25, dtype=jnp.float32)

    # tile_lanes=256 exercises the multi-tile in-kernel path at this small size.
    out = jax.block_until_ready(
        conv3d_block(x, weight, gamma, beta, alpha, tile_lanes=256))
    assert out.shape == (N, Cout, D, H, W)

    # The kernel uses bf16 MXU operands, stages the conv result in bf16, does
    # the normalize/PReLU apply in bf16 and stores bf16, so compare against the
    # f32 reference on bf16-rounded conv operands with a matching tolerance.
    x_q = x.astype(jnp.bfloat16).astype(jnp.float32)
    w_q = weight.astype(jnp.bfloat16).astype(jnp.float32)
    ref = reference(x_q, w_q, gamma, beta, alpha)
    max_err = float(jnp.max(jnp.abs(out - ref)))
    assert jnp.allclose(out, ref, atol=2e-2, rtol=3e-2), max_err

    print("KERNEL_OK")
</pallas_src>

<mosaic_0001>
module attributes {stable_mosaic.version = 11 : i64} {
  func.func @conv_in_prelu_kernel(%arg0: i32, %arg1: memref<1x4x1118xbf16, #tpu.memory_space<vmem>>, %arg2: memref<27x8x4xbf16, #tpu.memory_space<vmem>>, %arg3: memref<8x3xf32, #tpu.memory_space<vmem>>, %arg4: memref<1x896xbf16, #tpu.memory_space<vmem>>, %arg5: memref<1x8x896xbf16, #tpu.memory_space<vmem>>) attributes {dimension_semantics = [#tpu.dimension_semantics<parallel>], iteration_bounds = array<i64: 2>, scalar_prefetch = 0 : i64, scratch_operands = 0 : i64, tpu.core_type = #tpu.core_type<tc>, window_params = [{transform_indices = @transform_0, window_bounds = array<i64: 1, 4, 1118>}, {pipeline_mode = #tpu.pipeline_mode<synchronous>, transform_indices = @transform_1, window_bounds = array<i64: 27, 8, 4>}, {pipeline_mode = #tpu.pipeline_mode<synchronous>, transform_indices = @transform_2, window_bounds = array<i64: 8, 3>}, {pipeline_mode = #tpu.pipeline_mode<synchronous>, transform_indices = @transform_3, window_bounds = array<i64: 1, 896>}, {transform_indices = @transform_4, window_bounds = array<i64: 1, 8, 896>}]} {
    %cst = arith.constant 0.000000e+00 : f32
    %0 = vector.broadcast %cst : f32 to vector<8x1xf32>
    %cst_0 = arith.constant 0.000000e+00 : f32
    %1 = vector.broadcast %cst_0 : f32 to vector<8x1xf32>
    %cst_1 = arith.constant 0.000000e+00 : f32
    %2 = vector.broadcast %cst_1 : f32 to vector<8x256xf32>
    %c0 = arith.constant 0 : index
    %c0_2 = arith.constant 0 : index
    %c0_3 = arith.constant 0 : index
    %3 = vector.load %arg2[%c0, %c0_2, %c0_3] : memref<27x8x4xbf16, #tpu.memory_space<vmem>>, vector<1x8x4xbf16>
    %4 = vector.shape_cast %3 : vector<1x8x4xbf16> to vector<8x4xbf16>
    %c0_4 = arith.constant 0 : index
    %c0_5 = arith.constant 0 : index
    %c0_6 = arith.constant 0 : index
    %5 = vector.load %arg1[%c0_4, %c0_5, %c0_6] : memref<1x4x1118xbf16, #tpu.memory_space<vmem>>, vector<1x4x256xbf16>
    %6 = vector.shape_cast %5 : vector<1x4x256xbf16> to vector<4x256xbf16>
    %cst_7 = arith.constant dense<0.000000e+00> : vector<8x256xf32>
    %7 = tpu.matmul %4, %6, %cst_7 {dimension_numbers = #tpu.dot_dimension_numbers<[1], [0], [0], [1], [0, 0, 1, 1], [], []>} : vector<8x4xbf16>, vector<4x256xbf16>, vector<8x256xf32> -> vector<8x256xf32>
    %8 = arith.addf %2, %7 : vector<8x256xf32>
    %c1 = arith.constant 1 : index
    %c0_8 = arith.constant 0 : index
    %c0_9 = arith.constant 0 : index
    %9 = vector.load %arg2[%c1, %c0_8, %c0_9] : memref<27x8x4xbf16, #tpu.memory_space<vmem>>, vector<1x8x4xbf16>
    %10 = vector.shape_cast %9 : vector<1x8x4xbf16> to vector<8x4xbf16>
    %c0_10 = arith.constant 0 : index
    %c0_11 = arith.constant 0 : index
    %c1_12 = arith.constant 1 : index
    %11 = vector.load %arg1[%c0_10, %c0_11, %c1_12] : memref<1x4x1118xbf16, #tpu.memory_space<vmem>>, vector<1x4x256xbf16>
    %12 = vector.shape_cast %11 : vector<1x4x256xbf16> to vector<4x256xbf16>
    %cst_13 = arith.constant dense<0.000000e+00> : vector<8x256xf32>
    %13 = tpu.matmul %10, %12, %cst_13 {dimension_numbers = #tpu.dot_dimension_numbers<[1], [0], [0], [1], [0, 0, 1, 1], [], []>} : vector<8x4xbf16>, vector<4x256xbf16>, vector<8x256xf32> -> vector<8x256xf32>
    %14 = arith.addf %8, %13 : vector<8x256xf32>
    %c2 = arith.constant 2 : index
    %c0_14 = arith.constant 0 : index
    %c0_15 = arith.constant 0 : index
    %15 = vector.load %arg2[%c2, %c0_14, %c0_15] : memref<27x8x4xbf16, #tpu.memory_space<vmem>>, vector<1x8x4xbf16>
    %16 = vector.shape_cast %15 : vector<1x8x4xbf16> to vector<8x4xbf16>
    %c0_16 = arith.constant 0 : index
    %c0_17 = arith.constant 0 : index
    %c2_18 = arith.constant 2 : index
    %17 = vector.load %arg1[%c0_16, %c0_17, %c2_18] : memref<1x4x1118xbf16, #tpu.memory_space<vmem>>, vector<1x4x256xbf16>
    %18 = vector.shape_cast %17 : vector<1x4x256xbf16> to vector<4x256xbf16>
    %cst_19 = arith.constant dense<0.000000e+00> : vector<8x256xf32>
    %19 = tpu.matmul %16, %18, %cst_19 {dimension_numbers = #tpu.dot_dimension_numbers<[1], [0], [0], [1], [0, 0, 1, 1], [], []>} : vector<8x4xbf16>, vector<4x256xbf16>, vector<8x256xf32> -> vector<8x256xf32>
    %20 = arith.addf %14, %19 : vector<8x256xf32>
    %c3 = arith.constant 3 : index
    %c0_20 = arith.constant 0 : index
    %c0_21 = arith.constant 0 : index
    %21 = vector.load %arg2[%c3, %c0_20, %c0_21] : memref<27x8x4xbf16, #tpu.memory_space<vmem>>, vector<1x8x4xbf16>
    %22 = vector.shape_cast %21 : vector<1x8x4xbf16> to vector<8x4xbf16>
    %c0_22 = arith.constant 0 : index
    %c0_23 = arith.constant 0 : index
    %c10 = arith.constant 10 : index
    %23 = vector.load %arg1[%c0_22, %c0_23, %c10] : memref<1x4x1118xbf16, #tpu.memory_space<vmem>>, vector<1x4x256xbf16>
    %24 = vector.shape_cast %23 : vector<1x4x256xbf16> to vector<4x256xbf16>
    %cst_24 = arith.constant dense<0.000000e+00> : vector<8x256xf32>
    %25 = tpu.matmul %22, %24, %cst_24 {dimension_numbers = #tpu.dot_dimension_numbers<[1], [0], [0], [1], [0, 0, 1, 1], [], []>} : vector<8x4xbf16>, vector<4x256xbf16>, vector<8x256xf32> -> vector<8x256xf32>
    %26 = arith.addf %20, %25 : vector<8x256xf32>
    %c4 = arith.constant 4 : index
    %c0_25 = arith.constant 0 : index
    %c0_26 = arith.constant 0 : index
    %27 = vector.load %arg2[%c4, %c0_25, %c0_26] : memref<27x8x4xbf16, #tpu.memory_space<vmem>>, vector<1x8x4xbf16>
    %28 = vector.shape_cast %27 : vector<1x8x4xbf16> to vector<8x4xbf16>
    %c0_27 = arith.constant 0 : index
    %c0_28 = arith.constant 0 : index
    %c11 = arith.constant 11 : index
    %29 = vector.load %arg1[%c0_27, %c0_28, %c11] : memref<1x4x1118xbf16, #tpu.memory_space<vmem>>, vector<1x4x256xbf16>
    %30 = vector.shape_cast %29 : vector<1x4x256xbf16> to vector<4x256xbf16>
    %cst_29 = arith.constant dense<0.000000e+00> : vector<8x256xf32>
    %31 = tpu.matmul %28, %30, %cst_29 {dimension_numbers = #tpu.dot_dimension_numbers<[1], [0], [0], [1], [0, 0, 1, 1], [], []>} : vector<8x4xbf16>, vector<4x256xbf16>, vector<8x256xf32> -> vector<8x256xf32>
    %32 = arith.addf %26, %31 : vector<8x256xf32>
    %c5 = arith.constant 5 : index
    %c0_30 = arith.constant 0 : index
    %c0_31 = arith.constant 0 : index
    %33 = vector.load %arg2[%c5, %c0_30, %c0_31] : memref<27x8x4xbf16, #tpu.memory_space<vmem>>, vector<1x8x4xbf16>
    %34 = vector.shape_cast %33 : vector<1x8x4xbf16> to vector<8x4xbf16>
    %c0_32 = arith.constant 0 : index
    %c0_33 = arith.constant 0 : index
    %c12 = arith.constant 12 : index
    %35 = vector.load %arg1[%c0_32, %c0_33, %c12] : memref<1x4x1118xbf16, #tpu.memory_space<vmem>>, vector<1x4x256xbf16>
    %36 = vector.shape_cast %35 : vector<1x4x256xbf16> to vector<4x256xbf16>
    %cst_34 = arith.constant dense<0.000000e+00> : vector<8x256xf32>
    %37 = tpu.matmul %34, %36, %cst_34 {dimension_numbers = #tpu.dot_dimension_numbers<[1], [0], [0], [1], [0, 0, 1, 1], [], []>} : vector<8x4xbf16>, vector<4x256xbf16>, vector<8x256xf32> -> vector<8x256xf32>
    %38 = arith.addf %32, %37 : vector<8x256xf32>
    %c6 = arith.constant 6 : index
    %c0_35 = arith.constant 0 : index
    %c0_36 = arith.constant 0 : index
    %39 = vector.load %arg2[%c6, %c0_35, %c0_36] : memref<27x8x4xbf16, #tpu.memory_space<vmem>>, vector<1x8x4xbf16>
    %40 = vector.shape_cast %39 : vector<1x8x4xbf16> to vector<8x4xbf16>
    %c0_37 = arith.constant 0 : index
    %c0_38 = arith.constant 0 : index
    %c20 = arith.constant 20 : index
    %41 = vector.load %arg1[%c0_37, %c0_38, %c20] : memref<1x4x1118xbf16, #tpu.memory_space<vmem>>, vector<1x4x256xbf16>
    %42 = vector.shape_cast %41 : vector<1x4x256xbf16> to vector<4x256xbf16>
    %cst_39 = arith.constant dense<0.000000e+00> : vector<8x256xf32>
    %43 = tpu.matmul %40, %42, %cst_39 {dimension_numbers = #tpu.dot_dimension_numbers<[1], [0], [0], [1], [0, 0, 1, 1], [], []>} : vector<8x4xbf16>, vector<4x256xbf16>, vector<8x256xf32> -> vector<8x256xf32>
    %44 = arith.addf %38, %43 : vector<8x256xf32>
    %c7 = arith.constant 7 : index
    %c0_40 = arith.constant 0 : index
    %c0_41 = arith.constant 0 : index
    %45 = vector.load %arg2[%c7, %c0_40, %c0_41] : memref<27x8x4xbf16, #tpu.memory_space<vmem>>, vector<1x8x4xbf16>
    %46 = vector.shape_cast %45 : vector<1x8x4xbf16> to vector<8x4xbf16>
    %c0_42 = arith.constant 0 : index
    %c0_43 = arith.constant 0 : index
    %c21 = arith.constant 21 : index
    %47 = vector.load %arg1[%c0_42, %c0_43, %c21] : memref<1x4x1118xbf16, #tpu.memory_space<vmem>>, vector<1x4x256xbf16>
    %48 = vector.shape_cast %47 : vector<1x4x256xbf16> to vector<4x256xbf16>
    %cst_44 = arith.constant dense<0.000000e+00> : vector<8x256xf32>
    %49 = tpu.matmul %46, %48, %cst_44 {dimension_numbers = #tpu.dot_dimension_numbers<[1], [0], [0], [1], [0, 0, 1, 1], [], []>} : vector<8x4xbf16>, vector<4x256xbf16>, vector<8x256xf32> -> vector<8x256xf32>
    %50 = arith.addf %44, %49 : vector<8x256xf32>
    %c8 = arith.constant 8 : index
    %c0_45 = arith.constant 0 : index
    %c0_46 = arith.constant 0 : index
    %51 = vector.load %arg2[%c8, %c0_45, %c0_46] : memref<27x8x4xbf16, #tpu.memory_space<vmem>>, vector<1x8x4xbf16>
    %52 = vector.shape_cast %51 : vector<1x8x4xbf16> to vector<8x4xbf16>
    %c0_47 = arith.constant 0 : index
    %c0_48 = arith.constant 0 : index
    %c22 = arith.constant 22 : index
    %53 = vector.load %arg1[%c0_47, %c0_48, %c22] : memref<1x4x1118xbf16, #tpu.memory_space<vmem>>, vector<1x4x256xbf16>
    %54 = vector.shape_cast %53 : vector<1x4x256xbf16> to vector<4x256xbf16>
    %cst_49 = arith.constant dense<0.000000e+00> : vector<8x256xf32>
    %55 = tpu.matmul %52, %54, %cst_49 {dimension_numbers = #tpu.dot_dimension_numbers<[1], [0], [0], [1], [0, 0, 1, 1], [], []>} : vector<8x4xbf16>, vector<4x256xbf16>, vector<8x256xf32> -> vector<8x256xf32>
    %56 = arith.addf %50, %55 : vector<8x256xf32>
    %c9 = arith.constant 9 : index
    %c0_50 = arith.constant 0 : index
    %c0_51 = arith.constant 0 : index
    %57 = vector.load %arg2[%c9, %c0_50, %c0_51] : memref<27x8x4xbf16, #tpu.memory_space<vmem>>, vector<1x8x4xbf16>
    %58 = vector.shape_cast %57 : vector<1x8x4xbf16> to vector<8x4xbf16>
    %c0_52 = arith.constant 0 : index
    %c0_53 = arith.constant 0 : index
    %c100 = arith.constant 100 : index
    %59 = vector.load %arg1[%c0_52, %c0_53, %c100] : memref<1x4x1118xbf16, #tpu.memory_space<vmem>>, vector<1x4x256xbf16>
    %60 = vector.shape_cast %59 : vector<1x4x256xbf16> to vector<4x256xbf16>
    %cst_54 = arith.constant dense<0.000000e+00> : vector<8x256xf32>
    %61 = tpu.matmul %58, %60, %cst_54 {dimension_numbers = #tpu.dot_dimension_numbers<[1], [0], [0], [1], [0, 0, 1, 1], [], []>} : vector<8x4xbf16>, vector<4x256xbf16>, vector<8x256xf32> -> vector<8x256xf32>
    %62 = arith.addf %56, %61 : vector<8x256xf32>
    %c10_55 = arith.constant 10 : index
    %c0_56 = arith.constant 0 : index
    %c0_57 = arith.constant 0 : index
    %63 = vector.load %arg2[%c10_55, %c0_56, %c0_57] : memref<27x8x4xbf16, #tpu.memory_space<vmem>>, vector<1x8x4xbf16>
    %64 = vector.shape_cast %63 : vector<1x8x4xbf16> to vector<8x4xbf16>
    %c0_58 = arith.constant 0 : index
    %c0_59 = arith.constant 0 : index
    %c101 = arith.constant 101 : index
    %65 = vector.load %arg1[%c0_58, %c0_59, %c101] : memref<1x4x1118xbf16, #tpu.memory_space<vmem>>, vector<1x4x256xbf16>
    %66 = vector.shape_cast %65 : vector<1x4x256xbf16> to vector<4x256xbf16>
    %cst_60 = arith.constant dense<0.000000e+00> : vector<8x256xf32>
    %67 = tpu.matmul %64, %66, %cst_60 {dimension_numbers = #tpu.dot_dimension_numbers<[1], [0], [0], [1], [0, 0, 1, 1], [], []>} : vector<8x4xbf16>, vector<4x256xbf16>, vector<8x256xf32> -> vector<8x256xf32>
    %68 = arith.addf %62, %67 : vector<8x256xf32>
    %c11_61 = arith.constant 11 : index
    %c0_62 = arith.constant 0 : index
    %c0_63 = arith.constant 0 : index
    %69 = vector.load %arg2[%c11_61, %c0_62, %c0_63] : memref<27x8x4xbf16, #tpu.memory_space<vmem>>, vector<1x8x4xbf16>
    %70 = vector.shape_cast %69 : vector<1x8x4xbf16> to vector<8x4xbf16>
    %c0_64 = arith.constant 0 : index
    %c0_65 = arith.constant 0 : index
    %c102 = arith.constant 102 : index
    %71 = vector.load %arg1[%c0_64, %c0_65, %c102] : memref<1x4x1118xbf16, #tpu.memory_space<vmem>>, vector<1x4x256xbf16>
    %72 = vector.shape_cast %71 : vector<1x4x256xbf16> to vector<4x256xbf16>
    %cst_66 = arith.constant dense<0.000000e+00> : vector<8x256xf32>
    %73 = tpu.matmul %70, %72, %cst_66 {dimension_numbers = #tpu.dot_dimension_numbers<[1], [0], [0], [1], [0, 0, 1, 1], [], []>} : vector<8x4xbf16>, vector<4x256xbf16>, vector<8x256xf32> -> vector<8x256xf32>
    %74 = arith.addf %68, %73 : vector<8x256xf32>
    %c12_67 = arith.constant 12 : index
    %c0_68 = arith.constant 0 : index
    %c0_69 = arith.constant 0 : index
    %75 = vector.load %arg2[%c12_67, %c0_68, %c0_69] : memref<27x8x4xbf16, #tpu.memory_space<vmem>>, vector<1x8x4xbf16>
    %76 = vector.shape_cast %75 : vector<1x8x4xbf16> to vector<8x4xbf16>
    %c0_70 = arith.constant 0 : index
    %c0_71 = arith.constant 0 : index
    %c110 = arith.constant 110 : index
    %77 = vector.load %arg1[%c0_70, %c0_71, %c110] : memref<1x4x1118xbf16, #tpu.memory_space<vmem>>, vector<1x4x256xbf16>
    %78 = vector.shape_cast %77 : vector<1x4x256xbf16> to vector<4x256xbf16>
    %cst_72 = arith.constant dense<0.000000e+00> : vector<8x256xf32>
    %79 = tpu.matmul %76, %78, %cst_72 {dimension_numbers = #tpu.dot_dimension_numbers<[1], [0], [0], [1], [0, 0, 1, 1], [], []>} : vector<8x4xbf16>, vector<4x256xbf16>, vector<8x256xf32> -> vector<8x256xf32>
    %80 = arith.addf %74, %79 : vector<8x256xf32>
    %c13 = arith.constant 13 : index
    %c0_73 = arith.constant 0 : index
    %c0_74 = arith.constant 0 : index
    %81 = vector.load %arg2[%c13, %c0_73, %c0_74] : memref<27x8x4xbf16, #tpu.memory_space<vmem>>, vector<1x8x4xbf16>
    %82 = vector.shape_cast %81 : vector<1x8x4xbf16> to vector<8x4xbf16>
    %c0_75 = arith.constant 0 : index
    %c0_76 = arith.constant 0 : index
    %c111 = arith.constant 111 : index
    %83 = vector.load %arg1[%c0_75, %c0_76, %c111] : memref<1x4x1118xbf16, #tpu.memory_space<vmem>>, vector<1x4x256xbf16>
    %84 = vector.shape_cast %83 : vector<1x4x256xbf16> to vector<4x256xbf16>
    %cst_77 = arith.constant dense<0.000000e+00> : vector<8x256xf32>
    %85 = tpu.matmul %82, %84, %cst_77 {dimension_numbers = #tpu.dot_dimension_numbers<[1], [0], [0], [1], [0, 0, 1, 1], [], []>} : vector<8x4xbf16>, vector<4x256xbf16>, vector<8x256xf32> -> vector<8x256xf32>
    %86 = arith.addf %80, %85 : vector<8x256xf32>
    %c14 = arith.constant 14 : index
    %c0_78 = arith.constant 0 : index
    %c0_79 = arith.constant 0 : index
    %87 = vector.load %arg2[%c14, %c0_78, %c0_79] : memref<27x8x4xbf16, #tpu.memory_space<vmem>>, vector<1x8x4xbf16>
    %88 = vector.shape_cast %87 : vector<1x8x4xbf16> to vector<8x4xbf16>
    %c0_80 = arith.constant 0 : index
    %c0_81 = arith.constant 0 : index
    %c112 = arith.constant 112 : index
    %89 = vector.load %arg1[%c0_80, %c0_81, %c112] : memref<1x4x1118xbf16, #tpu.memory_space<vmem>>, vector<1x4x256xbf16>
    %90 = vector.shape_cast %89 : vector<1x4x256xbf16> to vector<4x256xbf16>
    %cst_82 = arith.constant dense<0.000000e+00> : vector<8x256xf32>
    %91 = tpu.matmul %88, %90, %cst_82 {dimension_numbers = #tpu.dot_dimension_numbers<[1], [0], [0], [1], [0, 0, 1, 1], [], []>} : vector<8x4xbf16>, vector<4x256xbf16>, vector<8x256xf32> -> vector<8x256xf32>
    %92 = arith.addf %86, %91 : vector<8x256xf32>
    %c15 = arith.constant 15 : index
    %c0_83 = arith.constant 0 : index
    %c0_84 = arith.constant 0 : index
    %93 = vector.load %arg2[%c15, %c0_83, %c0_84] : memref<27x8x4xbf16, #tpu.memory_space<vmem>>, vector<1x8x4xbf16>
    %94 = vector.shape_cast %93 : vector<1x8x4xbf16> to vector<8x4xbf16>
    %c0_85 = arith.constant 0 : index
    %c0_86 = arith.constant 0 : index
    %c120 = arith.constant 120 : index
    %95 = vector.load %arg1[%c0_85, %c0_86, %c120] : memref<1x4x1118xbf16, #tpu.memory_space<vmem>>, vector<1x4x256xbf16>
    %96 = vector.shape_cast %95 : vector<1x4x256xbf16> to vector<4x256xbf16>
    %cst_87 = arith.constant dense<0.000000e+00> : vector<8x256xf32>
    %97 = tpu.matmul %94, %96, %cst_87 {dimension_numbers = #tpu.dot_dimension_numbers<[1], [0], [0], [1], [0, 0, 1, 1], [], []>} : vector<8x4xbf16>, vector<4x256xbf16>, vector<8x256xf32> -> vector<8x256xf32>
    %98 = arith.addf %92, %97 : vector<8x256xf32>
    %c16 = arith.constant 16 : index
    %c0_88 = arith.constant 0 : index
    %c0_89 = arith.constant 0 : index
    %99 = vector.load %arg2[%c16, %c0_88, %c0_89] : memref<27x8x4xbf16, #tpu.memory_space<vmem>>, vector<1x8x4xbf16>
    %100 = vector.shape_cast %99 : vector<1x8x4xbf16> to vector<8x4xbf16>
    %c0_90 = arith.constant 0 : index
    %c0_91 = arith.constant 0 : index
    %c121 = arith.constant 121 : index
    %101 = vector.load %arg1[%c0_90, %c0_91, %c121] : memref<1x4x1118xbf16, #tpu.memory_space<vmem>>, vector<1x4x256xbf16>
    %102 = vector.shape_cast %101 : vector<1x4x256xbf16> to vector<4x256xbf16>
    %cst_92 = arith.constant dense<0.000000e+00> : vector<8x256xf32>
    %103 = tpu.matmul %100, %102, %cst_92 {dimension_numbers = #tpu.dot_dimension_numbers<[1], [0], [0], [1], [0, 0, 1, 1], [], []>} : vector<8x4xbf16>, vector<4x256xbf16>, vector<8x256xf32> -> vector<8x256xf32>
    %104 = arith.addf %98, %103 : vector<8x256xf32>
    %c17 = arith.constant 17 : index
    %c0_93 = arith.constant 0 : index
    %c0_94 = arith.constant 0 : index
    %105 = vector.load %arg2[%c17, %c0_93, %c0_94] : memref<27x8x4xbf16, #tpu.memory_space<vmem>>, vector<1x8x4xbf16>
    %106 = vector.shape_cast %105 : vector<1x8x4xbf16> to vector<8x4xbf16>
    %c0_95 = arith.constant 0 : index
    %c0_96 = arith.constant 0 : index
    %c122 = arith.constant 122 : index
    %107 = vector.load %arg1[%c0_95, %c0_96, %c122] : memref<1x4x1118xbf16, #tpu.memory_space<vmem>>, vector<1x4x256xbf16>
    %108 = vector.shape_cast %107 : vector<1x4x256xbf16> to vector<4x256xbf16>
    %cst_97 = arith.constant dense<0.000000e+00> : vector<8x256xf32>
    %109 = tpu.matmul %106, %108, %cst_97 {dimension_numbers = #tpu.dot_dimension_numbers<[1], [0], [0], [1], [0, 0, 1, 1], [], []>} : vector<8x4xbf16>, vector<4x256xbf16>, vector<8x256xf32> -> vector<8x256xf32>
    %110 = arith.addf %104, %109 : vector<8x256xf32>
    %c18 = arith.constant 18 : index
    %c0_98 = arith.constant 0 : index
    %c0_99 = arith.constant 0 : index
    %111 = vector.load %arg2[%c18, %c0_98, %c0_99] : memref<27x8x4xbf16, #tpu.memory_space<vmem>>, vector<1x8x4xbf16>
    %112 = vector.shape_cast %111 : vector<1x8x4xbf16> to vector<8x4xbf16>
    %c0_100 = arith.constant 0 : index
    %c0_101 = arith.constant 0 : index
    %c200 = arith.constant 200 : index
    %113 = vector.load %arg1[%c0_100, %c0_101, %c200] : memref<1x4x1118xbf16, #tpu.memory_space<vmem>>, vector<1x4x256xbf16>
    %114 = vector.shape_cast %113 : vector<1x4x256xbf16> to vector<4x256xbf16>
    %cst_102 = arith.constant dense<0.000000e+00> : vector<8x256xf32>
    %115 = tpu.matmul %112, %114, %cst_102 {dimension_numbers = #tpu.dot_dimension_numbers<[1], [0], [0], [1], [0, 0, 1, 1], [], []>} : vector<8x4xbf16>, vector<4x256xbf16>, vector<8x256xf32> -> vector<8x256xf32>
    %116 = arith.addf %110, %115 : vector<8x256xf32>
    %c19 = arith.constant 19 : index
    %c0_103 = arith.constant 0 : index
    %c0_104 = arith.constant 0 : index
    %117 = vector.load %arg2[%c19, %c0_103, %c0_104] : memref<27x8x4xbf16, #tpu.memory_space<vmem>>, vector<1x8x4xbf16>
    %118 = vector.shape_cast %117 : vector<1x8x4xbf16> to vector<8x4xbf16>
    %c0_105 = arith.constant 0 : index
    %c0_106 = arith.constant 0 : index
    %c201 = arith.constant 201 : index
    %119 = vector.load %arg1[%c0_105, %c0_106, %c201] : memref<1x4x1118xbf16, #tpu.memory_space<vmem>>, vector<1x4x256xbf16>
    %120 = vector.shape_cast %119 : vector<1x4x256xbf16> to vector<4x256xbf16>
    %cst_107 = arith.constant dense<0.000000e+00> : vector<8x256xf32>
    %121 = tpu.matmul %118, %120, %cst_107 {dimension_numbers = #tpu.dot_dimension_numbers<[1], [0], [0], [1], [0, 0, 1, 1], [], []>} : vector<8x4xbf16>, vector<4x256xbf16>, vector<8x256xf32> -> vector<8x256xf32>
    %122 = arith.addf %116, %121 : vector<8x256xf32>
    %c20_108 = arith.constant 20 : index
    %c0_109 = arith.constant 0 : index
    %c0_110 = arith.constant 0 : index
    %123 = vector.load %arg2[%c20_108, %c0_109, %c0_110] : memref<27x8x4xbf16, #tpu.memory_space<vmem>>, vector<1x8x4xbf16>
    %124 = vector.shape_cast %123 : vector<1x8x4xbf16> to vector<8x4xbf16>
    %c0_111 = arith.constant 0 : index
    %c0_112 = arith.constant 0 : index
    %c202 = arith.constant 202 : index
    %125 = vector.load %arg1[%c0_111, %c0_112, %c202] : memref<1x4x1118xbf16, #tpu.memory_space<vmem>>, vector<1x4x256xbf16>
    %126 = vector.shape_cast %125 : vector<1x4x256xbf16> to vector<4x256xbf16>
    %cst_113 = arith.constant dense<0.000000e+00> : vector<8x256xf32>
    %127 = tpu.matmul %124, %126, %cst_113 {dimension_numbers = #tpu.dot_dimension_numbers<[1], [0], [0], [1], [0, 0, 1, 1], [], []>} : vector<8x4xbf16>, vector<4x256xbf16>, vector<8x256xf32> -> vector<8x256xf32>
    %128 = arith.addf %122, %127 : vector<8x256xf32>
    %c21_114 = arith.constant 21 : index
    %c0_115 = arith.constant 0 : index
    %c0_116 = arith.constant 0 : index
    %129 = vector.load %arg2[%c21_114, %c0_115, %c0_116] : memref<27x8x4xbf16, #tpu.memory_space<vmem>>, vector<1x8x4xbf16>
    %130 = vector.shape_cast %129 : vector<1x8x4xbf16> to vector<8x4xbf16>
    %c0_117 = arith.constant 0 : index
    %c0_118 = arith.constant 0 : index
    %c210 = arith.constant 210 : index
    %131 = vector.load %arg1[%c0_117, %c0_118, %c210] : memref<1x4x1118xbf16, #tpu.memory_space<vmem>>, vector<1x4x256xbf16>
    %132 = vector.shape_cast %131 : vector<1x4x256xbf16> to vector<4x256xbf16>
    %cst_119 = arith.constant dense<0.000000e+00> : vector<8x256xf32>
    %133 = tpu.matmul %130, %132, %cst_119 {dimension_numbers = #tpu.dot_dimension_numbers<[1], [0], [0], [1], [0, 0, 1, 1], [], []>} : vector<8x4xbf16>, vector<4x256xbf16>, vector<8x256xf32> -> vector<8x256xf32>
    %134 = arith.addf %128, %133 : vector<8x256xf32>
    %c22_120 = arith.constant 22 : index
    %c0_121 = arith.constant 0 : index
    %c0_122 = arith.constant 0 : index
    %135 = vector.load %arg2[%c22_120, %c0_121, %c0_122] : memref<27x8x4xbf16, #tpu.memory_space<vmem>>, vector<1x8x4xbf16>
    %136 = vector.shape_cast %135 : vector<1x8x4xbf16> to vector<8x4xbf16>
    %c0_123 = arith.constant 0 : index
    %c0_124 = arith.constant 0 : index
    %c211 = arith.constant 211 : index
    %137 = vector.load %arg1[%c0_123, %c0_124, %c211] : memref<1x4x1118xbf16, #tpu.memory_space<vmem>>, vector<1x4x256xbf16>
    %138 = vector.shape_cast %137 : vector<1x4x256xbf16> to vector<4x256xbf16>
    %cst_125 = arith.constant dense<0.000000e+00> : vector<8x256xf32>
    %139 = tpu.matmul %136, %138, %cst_125 {dimension_numbers = #tpu.dot_dimension_numbers<[1], [0], [0], [1], [0, 0, 1, 1], [], []>} : vector<8x4xbf16>, vector<4x256xbf16>, vector<8x256xf32> -> vector<8x256xf32>
    %140 = arith.addf %134, %139 : vector<8x256xf32>
    %c23 = arith.constant 23 : index
    %c0_126 = arith.constant 0 : index
    %c0_127 = arith.constant 0 : index
    %141 = vector.load %arg2[%c23, %c0_126, %c0_127] : memref<27x8x4xbf16, #tpu.memory_space<vmem>>, vector<1x8x4xbf16>
    %142 = vector.shape_cast %141 : vector<1x8x4xbf16> to vector<8x4xbf16>
    %c0_128 = arith.constant 0 : index
    %c0_129 = arith.constant 0 : index
    %c212 = arith.constant 212 : index
    %143 = vector.load %arg1[%c0_128, %c0_129, %c212] : memref<1x4x1118xbf16, #tpu.memory_space<vmem>>, vector<1x4x256xbf16>
    %144 = vector.shape_cast %143 : vector<1x4x256xbf16> to vector<4x256xbf16>
    %cst_130 = arith.constant dense<0.000000e+00> : vector<8x256xf32>
    %145 = tpu.matmul %142, %144, %cst_130 {dimension_numbers = #tpu.dot_dimension_numbers<[1], [0], [0], [1], [0, 0, 1, 1], [], []>} : vector<8x4xbf16>, vector<4x256xbf16>, vector<8x256xf32> -> vector<8x256xf32>
    %146 = arith.addf %140, %145 : vector<8x256xf32>
    %c24 = arith.constant 24 : index
    %c0_131 = arith.constant 0 : index
    %c0_132 = arith.constant 0 : index
    %147 = vector.load %arg2[%c24, %c0_131, %c0_132] : memref<27x8x4xbf16, #tpu.memory_space<vmem>>, vector<1x8x4xbf16>
    %148 = vector.shape_cast %147 : vector<1x8x4xbf16> to vector<8x4xbf16>
    %c0_133 = arith.constant 0 : index
    %c0_134 = arith.constant 0 : index
    %c220 = arith.constant 220 : index
    %149 = vector.load %arg1[%c0_133, %c0_134, %c220] : memref<1x4x1118xbf16, #tpu.memory_space<vmem>>, vector<1x4x256xbf16>
    %150 = vector.shape_cast %149 : vector<1x4x256xbf16> to vector<4x256xbf16>
    %cst_135 = arith.constant dense<0.000000e+00> : vector<8x256xf32>
    %151 = tpu.matmul %148, %150, %cst_135 {dimension_numbers = #tpu.dot_dimension_numbers<[1], [0], [0], [1], [0, 0, 1, 1], [], []>} : vector<8x4xbf16>, vector<4x256xbf16>, vector<8x256xf32> -> vector<8x256xf32>
    %152 = arith.addf %146, %151 : vector<8x256xf32>
    %c25 = arith.constant 25 : index
    %c0_136 = arith.constant 0 : index
    %c0_137 = arith.constant 0 : index
    %153 = vector.load %arg2[%c25, %c0_136, %c0_137] : memref<27x8x4xbf16, #tpu.memory_space<vmem>>, vector<1x8x4xbf16>
    %154 = vector.shape_cast %153 : vector<1x8x4xbf16> to vector<8x4xbf16>
    %c0_138 = arith.constant 0 : index
    %c0_139 = arith.constant 0 : index
    %c221 = arith.constant 221 : index
    %155 = vector.load %arg1[%c0_138, %c0_139, %c221] : memref<1x4x1118xbf16, #tpu.memory_space<vmem>>, vector<1x4x256xbf16>
    %156 = vector.shape_cast %155 : vector<1x4x256xbf16> to vector<4x256xbf16>
    %cst_140 = arith.constant dense<0.000000e+00> : vector<8x256xf32>
    %157 = tpu.matmul %154, %156, %cst_140 {dimension_numbers = #tpu.dot_dimension_numbers<[1], [0], [0], [1], [0, 0, 1, 1], [], []>} : vector<8x4xbf16>, vector<4x256xbf16>, vector<8x256xf32> -> vector<8x256xf32>
    %158 = arith.addf %152, %157 : vector<8x256xf32>
    %c26 = arith.constant 26 : index
    %c0_141 = arith.constant 0 : index
    %c0_142 = arith.constant 0 : index
    %159 = vector.load %arg2[%c26, %c0_141, %c0_142] : memref<27x8x4xbf16, #tpu.memory_space<vmem>>, vector<1x8x4xbf16>
    %160 = vector.shape_cast %159 : vector<1x8x4xbf16> to vector<8x4xbf16>
    %c0_143 = arith.constant 0 : index
    %c0_144 = arith.constant 0 : index
    %c222 = arith.constant 222 : index
    %161 = vector.load %arg1[%c0_143, %c0_144, %c222] : memref<1x4x1118xbf16, #tpu.memory_space<vmem>>, vector<1x4x256xbf16>
    %162 = vector.shape_cast %161 : vector<1x4x256xbf16> to vector<4x256xbf16>
    %cst_145 = arith.constant dense<0.000000e+00> : vector<8x256xf32>
    %163 = tpu.matmul %160, %162, %cst_145 {dimension_numbers = #tpu.dot_dimension_numbers<[1], [0], [0], [1], [0, 0, 1, 1], [], []>} : vector<8x4xbf16>, vector<4x256xbf16>, vector<8x256xf32> -> vector<8x256xf32>
    %164 = arith.addf %158, %163 : vector<8x256xf32>
    %c0_146 = arith.constant 0 : index
    %c0_147 = arith.constant 0 : index
    %165 = vector.load %arg4[%c0_146, %c0_147] : memref<1x896xbf16, #tpu.memory_space<vmem>>, vector<1x256xbf16>
    %166 = arith.extf %165 : vector<1x256xbf16> to vector<1x256xf32>
    %167 = vector.broadcast %166 : vector<1x256xf32> to vector<8x256xf32>
    %168 = arith.mulf %164, %167 : vector<8x256xf32>
    %cst_148 = arith.constant dense<0.000000e+00> : vector<8xf32>
    %169 = vector.multi_reduction <add>, %168, %cst_148 [1] : vector<8x256xf32> to vector<8xf32>
    %170 = vector.shape_cast %169 : vector<8xf32> to vector<8x1xf32>
    %171 = arith.addf %0, %170 : vector<8x1xf32>
    %172 = arith.mulf %168, %164 : vector<8x256xf32>
    %cst_149 = arith.constant dense<0.000000e+00> : vector<8xf32>
    %173 = vector.multi_reduction <add>, %172, %cst_149 [1] : vector<8x256xf32> to vector<8xf32>
    %174 = vector.shape_cast %173 : vector<8xf32> to vector<8x1xf32>
    %175 = arith.addf %1, %174 : vector<8x1xf32>
    %176 = arith.truncf %164 : vector<8x256xf32> to vector<8x256xbf16>
    %c0_150 = arith.constant 0 : index
    %c0_151 = arith.constant 0 : index
    %c0_152 = arith.constant 0 : index
    %177 = vector.load %arg5[%c0_150, %c0_151, %c0_152] : memref<1x8x896xbf16, #tpu.memory_space<vmem>>, vector<1x8x256xbf16>
    %178 = vector.shape_cast %177 : vector<1x8x256xbf16> to vector<8x256xbf16>
    %179 = vector.shape_cast %176 : vector<8x256xbf16> to vector<1x8x256xbf16>
    tpu.vector_store %arg5[%c0_150, %c0_151, %c0_152], %179 {strides = array<i32>} : memref<1x8x896xbf16, #tpu.memory_space<vmem>>, vector<1x8x256xbf16>,
    %cst_153 = arith.constant 0.000000e+00 : f32
    %180 = vector.broadcast %cst_153 : f32 to vector<8x256xf32>
    %c0_154 = arith.constant 0 : index
    %c0_155 = arith.constant 0 : index
    %c0_156 = arith.constant 0 : index
    %181 = vector.load %arg2[%c0_154, %c0_155, %c0_156] : memref<27x8x4xbf16, #tpu.memory_space<vmem>>, vector<1x8x4xbf16>
    %182 = vector.shape_cast %181 : vector<1x8x4xbf16> to vector<8x4xbf16>
    %c0_157 = arith.constant 0 : index
    %c0_158 = arith.constant 0 : index
    %c256 = arith.constant 256 : index
    %183 = vector.load %arg1[%c0_157, %c0_158, %c256] : memref<1x4x1118xbf16, #tpu.memory_space<vmem>>, vector<1x4x256xbf16>
    %184 = vector.shape_cast %183 : vector<1x4x256xbf16> to vector<4x256xbf16>
    %cst_159 = arith.constant dense<0.000000e+00> : vector<8x256xf32>
    %185 = tpu.matmul %182, %184, %cst_159 {dimension_numbers = #tpu.dot_dimension_numbers<[1], [0], [0], [1], [0, 0, 1, 1], [], []>} : vector<8x4xbf16>, vector<4x256xbf16>, vector<8x256xf32> -> vector<8x256xf32>
    %186 = arith.addf %180, %185 : vector<8x256xf32>
    %c1_160 = arith.constant 1 : index
    %c0_161 = arith.constant 0 : index
    %c0_162 = arith.constant 0 : index
    %187 = vector.load %arg2[%c1_160, %c0_161, %c0_162] : memref<27x8x4xbf16, #tpu.memory_space<vmem>>, vector<1x8x4xbf16>
    %188 = vector.shape_cast %187 : vector<1x8x4xbf16> to vector<8x4xbf16>
    %c0_163 = arith.constant 0 : index
    %c0_164 = arith.constant 0 : index
    %c257 = arith.constant 257 : index
    %189 = vector.load %arg1[%c0_163, %c0_164, %c257] : memref<1x4x1118xbf16, #tpu.memory_space<vmem>>, vector<1x4x256xbf16>
    %190 = vector.shape_cast %189 : vector<1x4x256xbf16> to vector<4x256xbf16>
    %cst_165 = arith.constant dense<0.000000e+00> : vector<8x256xf32>
    %191 = tpu.matmul %188, %190, %cst_165 {dimension_numbers = #tpu.dot_dimension_numbers<[1], [0], [0], [1], [0, 0, 1, 1], [], []>} : vector<8x4xbf16>, vector<4x256xbf16>, vector<8x256xf32> -> vector<8x256xf32>
    %192 = arith.addf %186, %191 : vector<8x256xf32>
    %c2_166 = arith.constant 2 : index
    %c0_167 = arith.constant 0 : index
    %c0_168 = arith.constant 0 : index
    %193 = vector.load %arg2[%c2_166, %c0_167, %c0_168] : memref<27x8x4xbf16, #tpu.memory_space<vmem>>, vector<1x8x4xbf16>
    %194 = vector.shape_cast %193 : vector<1x8x4xbf16> to vector<8x4xbf16>
    %c0_169 = arith.constant 0 : index
    %c0_170 = arith.constant 0 : index
    %c258 = arith.constant 258 : index
    %195 = vector.load %arg1[%c0_169, %c0_170, %c258] : memref<1x4x1118xbf16, #tpu.memory_space<vmem>>, vector<1x4x256xbf16>
    %196 = vector.shape_cast %195 : vector<1x4x256xbf16> to vector<4x256xbf16>
    %cst_171 = arith.constant dense<0.000000e+00> : vector<8x256xf32>
    %197 = tpu.matmul %194, %196, %cst_171 {dimension_numbers = #tpu.dot_dimension_numbers<[1], [0], [0], [1], [0, 0, 1, 1], [], []>} : vector<8x4xbf16>, vector<4x256xbf16>, vector<8x256xf32> -> vector<8x256xf32>
    %198 = arith.addf %192, %197 : vector<8x256xf32>
    %c3_172 = arith.constant 3 : index
    %c0_173 = arith.constant 0 : index
    %c0_174 = arith.constant 0 : index
    %199 = vector.load %arg2[%c3_172, %c0_173, %c0_174] : memref<27x8x4xbf16, #tpu.memory_space<vmem>>, vector<1x8x4xbf16>
    %200 = vector.shape_cast %199 : vector<1x8x4xbf16> to vector<8x4xbf16>
    %c0_175 = arith.constant 0 : index
    %c0_176 = arith.constant 0 : index
    %c266 = arith.constant 266 : index
    %201 = vector.load %arg1[%c0_175, %c0_176, %c266] : memref<1x4x1118xbf16, #tpu.memory_space<vmem>>, vector<1x4x256xbf16>
    %202 = vector.shape_cast %201 : vector<1x4x256xbf16> to vector<4x256xbf16>
    %cst_177 = arith.constant dense<0.000000e+00> : vector<8x256xf32>
    %203 = tpu.matmul %200, %202, %cst_177 {dimension_numbers = #tpu.dot_dimension_numbers<[1], [0], [0], [1], [0, 0, 1, 1], [], []>} : vector<8x4xbf16>, vector<4x256xbf16>, vector<8x256xf32> -> vector<8x256xf32>
    %204 = arith.addf %198, %203 : vector<8x256xf32>
    %c4_178 = arith.constant 4 : index
    %c0_179 = arith.constant 0 : index
    %c0_180 = arith.constant 0 : index
    %205 = vector.load %arg2[%c4_178, %c0_179, %c0_180] : memref<27x8x4xbf16, #tpu.memory_space<vmem>>, vector<1x8x4xbf16>
    %206 = vector.shape_cast %205 : vector<1x8x4xbf16> to vector<8x4xbf16>
    %c0_181 = arith.constant 0 : index
    %c0_182 = arith.constant 0 : index
    %c267 = arith.constant 267 : index
    %207 = vector.load %arg1[%c0_181, %c0_182, %c267] : memref<1x4x1118xbf16, #tpu.memory_space<vmem>>, vector<1x4x256xbf16>
    %208 = vector.shape_cast %207 : vector<1x4x256xbf16> to vector<4x256xbf16>
    %cst_183 = arith.constant dense<0.000000e+00> : vector<8x256xf32>
    %209 = tpu.matmul %206, %208, %cst_183 {dimension_numbers = #tpu.dot_dimension_numbers<[1], [0], [0], [1], [0, 0, 1, 1], [], []>} : vector<8x4xbf16>, vector<4x256xbf16>, vector<8x256xf32> -> vector<8x256xf32>
    %210 = arith.addf %204, %209 : vector<8x256xf32>
    %c5_184 = arith.constant 5 : index
    %c0_185 = arith.constant 0 : index
    %c0_186 = arith.constant 0 : index
    %211 = vector.load %arg2[%c5_184, %c0_185, %c0_186] : memref<27x8x4xbf16, #tpu.memory_space<vmem>>, vector<1x8x4xbf16>
    %212 = vector.shape_cast %211 : vector<1x8x4xbf16> to vector<8x4xbf16>
    %c0_187 = arith.constant 0 : index
    %c0_188 = arith.constant 0 : index
    %c268 = arith.constant 268 : index
    %213 = vector.load %arg1[%c0_187, %c0_188, %c268] : memref<1x4x1118xbf16, #tpu.memory_space<vmem>>, vector<1x4x256xbf16>
    %214 = vector.shape_cast %213 : vector<1x4x256xbf16> to vector<4x256xbf16>
    %cst_189 = arith.constant dense<0.000000e+00> : vector<8x256xf32>
    %215 = tpu.matmul %212, %214, %cst_189 {dimension_numbers = #tpu.dot_dimension_numbers<[1], [0], [0], [1], [0, 0, 1, 1], [], []>} : vector<8x4xbf16>, vector<4x256xbf16>, vector<8x256xf32> -> vector<8x256xf32>
    %216 = arith.addf %210, %215 : vector<8x256xf32>
    %c6_190 = arith.constant 6 : index
    %c0_191 = arith.constant 0 : index
    %c0_192 = arith.constant 0 : index
    %217 = vector.load %arg2[%c6_190, %c0_191, %c0_192] : memref<27x8x4xbf16, #tpu.memory_space<vmem>>, vector<1x8x4xbf16>
    %218 = vector.shape_cast %217 : vector<1x8x4xbf16> to vector<8x4xbf16>
    %c0_193 = arith.constant 0 : index
    %c0_194 = arith.constant 0 : index
    %c276 = arith.constant 276 : index
    %219 = vector.load %arg1[%c0_193, %c0_194, %c276] : memref<1x4x1118xbf16, #tpu.memory_space<vmem>>, vector<1x4x256xbf16>
    %220 = vector.shape_cast %219 : vector<1x4x256xbf16> to vector<4x256xbf16>
    %cst_195 = arith.constant dense<0.000000e+00> : vector<8x256xf32>
    %221 = tpu.matmul %218, %220, %cst_195 {dimension_numbers = #tpu.dot_dimension_numbers<[1], [0], [0], [1], [0, 0, 1, 1], [], []>} : vector<8x4xbf16>, vector<4x256xbf16>, vector<8x256xf32> -> vector<8x256xf32>
    %222 = arith.addf %216, %221 : vector<8x256xf32>
    %c7_196 = arith.constant 7 : index
    %c0_197 = arith.constant 0 : index
    %c0_198 = arith.constant 0 : index
    %223 = vector.load %arg2[%c7_196, %c0_197, %c0_198] : memref<27x8x4xbf16, #tpu.memory_space<vmem>>, vector<1x8x4xbf16>
    %224 = vector.shape_cast %223 : vector<1x8x4xbf16> to vector<8x4xbf16>
    %c0_199 = arith.constant 0 : index
    %c0_200 = arith.constant 0 : index
    %c277 = arith.constant 277 : index
    %225 = vector.load %arg1[%c0_199, %c0_200, %c277] : memref<1x4x1118xbf16, #tpu.memory_space<vmem>>, vector<1x4x256xbf16>
    %226 = vector.shape_cast %225 : vector<1x4x256xbf16> to vector<4x256xbf16>
    %cst_201 = arith.constant dense<0.000000e+00> : vector<8x256xf32>
    %227 = tpu.matmul %224, %226, %cst_201 {dimension_numbers = #tpu.dot_dimension_numbers<[1], [0], [0], [1], [0, 0, 1, 1], [], []>} : vector<8x4xbf16>, vector<4x256xbf16>, vector<8x256xf32> -> vector<8x256xf32>
    %228 = arith.addf %222, %227 : vector<8x256xf32>
    %c8_202 = arith.constant 8 : index
    %c0_203 = arith.constant 0 : index
    %c0_204 = arith.constant 0 : index
    %229 = vector.load %arg2[%c8_202, %c0_203, %c0_204] : memref<27x8x4xbf16, #tpu.memory_space<vmem>>, vector<1x8x4xbf16>
    %230 = vector.shape_cast %229 : vector<1x8x4xbf16> to vector<8x4xbf16>
    %c0_205 = arith.constant 0 : index
    %c0_206 = arith.constant 0 : index
    %c278 = arith.constant 278 : index
    %231 = vector.load %arg1[%c0_205, %c0_206, %c278] : memref<1x4x1118xbf16, #tpu.memory_space<vmem>>, vector<1x4x256xbf16>
    %232 = vector.shape_cast %231 : vector<1x4x256xbf16> to vector<4x256xbf16>
    %cst_207 = arith.constant dense<0.000000e+00> : vector<8x256xf32>
    %233 = tpu.matmul %230, %232, %cst_207 {dimension_numbers = #tpu.dot_dimension_numbers<[1], [0], [0], [1], [0, 0, 1, 1], [], []>} : vector<8x4xbf16>, vector<4x256xbf16>, vector<8x256xf32> -> vector<8x256xf32>
    %234 = arith.addf %228, %233 : vector<8x256xf32>
    %c9_208 = arith.constant 9 : index
    %c0_209 = arith.constant 0 : index
    %c0_210 = arith.constant 0 : index
    %235 = vector.load %arg2[%c9_208, %c0_209, %c0_210] : memref<27x8x4xbf16, #tpu.memory_space<vmem>>, vector<1x8x4xbf16>
    %236 = vector.shape_cast %235 : vector<1x8x4xbf16> to vector<8x4xbf16>
    %c0_211 = arith.constant 0 : index
    %c0_212 = arith.constant 0 : index
    %c356 = arith.constant 356 : index
    %237 = vector.load %arg1[%c0_211, %c0_212, %c356] : memref<1x4x1118xbf16, #tpu.memory_space<vmem>>, vector<1x4x256xbf16>
    %238 = vector.shape_cast %237 : vector<1x4x256xbf16> to vector<4x256xbf16>
    %cst_213 = arith.constant dense<0.000000e+00> : vector<8x256xf32>
    %239 = tpu.matmul %236, %238, %cst_213 {dimension_numbers = #tpu.dot_dimension_numbers<[1], [0], [0], [1], [0, 0, 1, 1], [], []>} : vector<8x4xbf16>, vector<4x256xbf16>, vector<8x256xf32> -> vector<8x256xf32>
    %240 = arith.addf %234, %239 : vector<8x256xf32>
    %c10_214 = arith.constant 10 : index
    %c0_215 = arith.constant 0 : index
    %c0_216 = arith.constant 0 : index
    %241 = vector.load %arg2[%c10_214, %c0_215, %c0_216] : memref<27x8x4xbf16, #tpu.memory_space<vmem>>, vector<1x8x4xbf16>
    %242 = vector.shape_cast %241 : vector<1x8x4xbf16> to vector<8x4xbf16>
    %c0_217 = arith.constant 0 : index
    %c0_218 = arith.constant 0 : index
    %c357 = arith.constant 357 : index
    %243 = vector.load %arg1[%c0_217, %c0_218, %c357] : memref<1x4x1118xbf16, #tpu.memory_space<vmem>>, vector<1x4x256xbf16>
    %244 = vector.shape_cast %243 : vector<1x4x256xbf16> to vector<4x256xbf16>
    %cst_219 = arith.constant dense<0.000000e+00> : vector<8x256xf32>
    %245 = tpu.matmul %242, %244, %cst_219 {dimension_numbers = #tpu.dot_dimension_numbers<[1], [0], [0], [1], [0, 0, 1, 1], [], []>} : vector<8x4xbf16>, vector<4x256xbf16>, vector<8x256xf32> -> vector<8x256xf32>
    %246 = arith.addf %240, %245 : vector<8x256xf32>
    %c11_220 = arith.constant 11 : index
    %c0_221 = arith.constant 0 : index
    %c0_222 = arith.constant 0 : index
    %247 = vector.load %arg2[%c11_220, %c0_221, %c0_222] : memref<27x8x4xbf16, #tpu.memory_space<vmem>>, vector<1x8x4xbf16>
    %248 = vector.shape_cast %247 : vector<1x8x4xbf16> to vector<8x4xbf16>
    %c0_223 = arith.constant 0 : index
    %c0_224 = arith.constant 0 : index
    %c358 = arith.constant 358 : index
    %249 = vector.load %arg1[%c0_223, %c0_224, %c358] : memref<1x4x1118xbf16, #tpu.memory_space<vmem>>, vector<1x4x256xbf16>
    %250 = vector.shape_cast %249 : vector<1x4x256xbf16> to vector<4x256xbf16>
    %cst_225 = arith.constant dense<0.000000e+00> : vector<8x256xf32>
    %251 = tpu.matmul %248, %250, %cst_225 {dimension_numbers = #tpu.dot_dimension_numbers<[1], [0], [0], [1], [0, 0, 1, 1], [], []>} : vector<8x4xbf16>, vector<4x256xbf16>, vector<8x256xf32> -> vector<8x256xf32>
    %252 = arith.addf %246, %251 : vector<8x256xf32>
    %c12_226 = arith.constant 12 : index
    %c0_227 = arith.constant 0 : index
    %c0_228 = arith.constant 0 : index
    %253 = vector.load %arg2[%c12_226, %c0_227, %c0_228] : memref<27x8x4xbf16, #tpu.memory_space<vmem>>, vector<1x8x4xbf16>
    %254 = vector.shape_cast %253 : vector<1x8x4xbf16> to vector<8x4xbf16>
    %c0_229 = arith.constant 0 : index
    %c0_230 = arith.constant 0 : index
    %c366 = arith.constant 366 : index
    %255 = vector.load %arg1[%c0_229, %c0_230, %c366] : memref<1x4x1118xbf16, #tpu.memory_space<vmem>>, vector<1x4x256xbf16>
    %256 = vector.shape_cast %255 : vector<1x4x256xbf16> to vector<4x256xbf16>
    %cst_231 = arith.constant dense<0.000000e+00> : vector<8x256xf32>
    %257 = tpu.matmul %254, %256, %cst_231 {dimension_numbers = #tpu.dot_dimension_numbers<[1], [0], [0], [1], [0, 0, 1, 1], [], []>} : vector<8x4xbf16>, vector<4x256xbf16>, vector<8x256xf32> -> vector<8x256xf32>
    %258 = arith.addf %252, %257 : vector<8x256xf32>
    %c13_232 = arith.constant 13 : index
    %c0_233 = arith.constant 0 : index
    %c0_234 = arith.constant 0 : index
    %259 = vector.load %arg2[%c13_232, %c0_233, %c0_234] : memref<27x8x4xbf16, #tpu.memory_space<vmem>>, vector<1x8x4xbf16>
    %260 = vector.shape_cast %259 : vector<1x8x4xbf16> to vector<8x4xbf16>
    %c0_235 = arith.constant 0 : index
    %c0_236 = arith.constant 0 : index
    %c367 = arith.constant 367 : index
    %261 = vector.load %arg1[%c0_235, %c0_236, %c367] : memref<1x4x1118xbf16, #tpu.memory_space<vmem>>, vector<1x4x256xbf16>
    %262 = vector.shape_cast %261 : vector<1x4x256xbf16> to vector<4x256xbf16>
    %cst_237 = arith.constant dense<0.000000e+00> : vector<8x256xf32>
    %263 = tpu.matmul %260, %262, %cst_237 {dimension_numbers = #tpu.dot_dimension_numbers<[1], [0], [0], [1], [0, 0, 1, 1], [], []>} : vector<8x4xbf16>, vector<4x256xbf16>, vector<8x256xf32> -> vector<8x256xf32>
    %264 = arith.addf %258, %263 : vector<8x256xf32>
    %c14_238 = arith.constant 14 : index
    %c0_239 = arith.constant 0 : index
    %c0_240 = arith.constant 0 : index
    %265 = vector.load %arg2[%c14_238, %c0_239, %c0_240] : memref<27x8x4xbf16, #tpu.memory_space<vmem>>, vector<1x8x4xbf16>
    %266 = vector.shape_cast %265 : vector<1x8x4xbf16> to vector<8x4xbf16>
    %c0_241 = arith.constant 0 : index
    %c0_242 = arith.constant 0 : index
    %c368 = arith.constant 368 : index
    %267 = vector.load %arg1[%c0_241, %c0_242, %c368] : memref<1x4x1118xbf16, #tpu.memory_space<vmem>>, vector<1x4x256xbf16>
    %268 = vector.shape_cast %267 : vector<1x4x256xbf16> to vector<4x256xbf16>
    %cst_243 = arith.constant dense<0.000000e+00> : vector<8x256xf32>
    %269 = tpu.matmul %266, %268, %cst_243 {dimension_numbers = #tpu.dot_dimension_numbers<[1], [0], [0], [1], [0, 0, 1, 1], [], []>} : vector<8x4xbf16>, vector<4x256xbf16>, vector<8x256xf32> -> vector<8x256xf32>
    %270 = arith.addf %264, %269 : vector<8x256xf32>
    %c15_244 = arith.constant 15 : index
    %c0_245 = arith.constant 0 : index
    %c0_246 = arith.constant 0 : index
    %271 = vector.load %arg2[%c15_244, %c0_245, %c0_246] : memref<27x8x4xbf16, #tpu.memory_space<vmem>>, vector<1x8x4xbf16>
    %272 = vector.shape_cast %271 : vector<1x8x4xbf16> to vector<8x4xbf16>
    %c0_247 = arith.constant 0 : index
    %c0_248 = arith.constant 0 : index
    %c376 = arith.constant 376 : index
    %273 = vector.load %arg1[%c0_247, %c0_248, %c376] : memref<1x4x1118xbf16, #tpu.memory_space<vmem>>, vector<1x4x256xbf16>
    %274 = vector.shape_cast %273 : vector<1x4x256xbf16> to vector<4x256xbf16>
    %cst_249 = arith.constant dense<0.000000e+00> : vector<8x256xf32>
    %275 = tpu.matmul %272, %274, %cst_249 {dimension_numbers = #tpu.dot_dimension_numbers<[1], [0], [0], [1], [0, 0, 1, 1], [], []>} : vector<8x4xbf16>, vector<4x256xbf16>, vector<8x256xf32> -> vector<8x256xf32>
    %276 = arith.addf %270, %275 : vector<8x256xf32>
    %c16_250 = arith.constant 16 : index
    %c0_251 = arith.constant 0 : index
    %c0_252 = arith.constant 0 : index
    %277 = vector.load %arg2[%c16_250, %c0_251, %c0_252] : memref<27x8x4xbf16, #tpu.memory_space<vmem>>, vector<1x8x4xbf16>
    %278 = vector.shape_cast %277 : vector<1x8x4xbf16> to vector<8x4xbf16>
    %c0_253 = arith.constant 0 : index
    %c0_254 = arith.constant 0 : index
    %c377 = arith.constant 377 : index
    %279 = vector.load %arg1[%c0_253, %c0_254, %c377] : memref<1x4x1118xbf16, #tpu.memory_space<vmem>>, vector<1x4x256xbf16>
    %280 = vector.shape_cast %279 : vector<1x4x256xbf16> to vector<4x256xbf16>
    %cst_255 = arith.constant dense<0.000000e+00> : vector<8x256xf32>
    %281 = tpu.matmul %278, %280, %cst_255 {dimension_numbers = #tpu.dot_dimension_numbers<[1], [0], [0], [1], [0, 0, 1, 1], [], []>} : vector<8x4xbf16>, vector<4x256xbf16>, vector<8x256xf32> -> vector<8x256xf32>
    %282 = arith.addf %276, %281 : vector<8x256xf32>
    %c17_256 = arith.constant 17 : index
    %c0_257 = arith.constant 0 : index
    %c0_258 = arith.constant 0 : index
    %283 = vector.load %arg2[%c17_256, %c0_257, %c0_258] : memref<27x8x4xbf16, #tpu.memory_space<vmem>>, vector<1x8x4xbf16>
    %284 = vector.shape_cast %283 : vector<1x8x4xbf16> to vector<8x4xbf16>
    %c0_259 = arith.constant 0 : index
    %c0_260 = arith.constant 0 : index
    %c378 = arith.constant 378 : index
    %285 = vector.load %arg1[%c0_259, %c0_260, %c378] : memref<1x4x1118xbf16, #tpu.memory_space<vmem>>, vector<1x4x256xbf16>
    %286 = vector.shape_cast %285 : vector<1x4x256xbf16> to vector<4x256xbf16>
    %cst_261 = arith.constant dense<0.000000e+00> : vector<8x256xf32>
    %287 = tpu.matmul %284, %286, %cst_261 {dimension_numbers = #tpu.dot_dimension_numbers<[1], [0], [0], [1], [0, 0, 1, 1], [], []>} : vector<8x4xbf16>, vector<4x256xbf16>, vector<8x256xf32> -> vector<8x256xf32>
    %288 = arith.addf %282, %287 : vector<8x256xf32>
    %c18_262 = arith.constant 18 : index
    %c0_263 = arith.constant 0 : index
    %c0_264 = arith.constant 0 : index
    %289 = vector.load %arg2[%c18_262, %c0_263, %c0_264] : memref<27x8x4xbf16, #tpu.memory_space<vmem>>, vector<1x8x4xbf16>
    %290 = vector.shape_cast %289 : vector<1x8x4xbf16> to vector<8x4xbf16>
    %c0_265 = arith.constant 0 : index
    %c0_266 = arith.constant 0 : index
    %c456 = arith.constant 456 : index
    %291 = vector.load %arg1[%c0_265, %c0_266, %c456] : memref<1x4x1118xbf16, #tpu.memory_space<vmem>>, vector<1x4x256xbf16>
    %292 = vector.shape_cast %291 : vector<1x4x256xbf16> to vector<4x256xbf16>
    %cst_267 = arith.constant dense<0.000000e+00> : vector<8x256xf32>
    %293 = tpu.matmul %290, %292, %cst_267 {dimension_numbers = #tpu.dot_dimension_numbers<[1], [0], [0], [1], [0, 0, 1, 1], [], []>} : vector<8x4xbf16>, vector<4x256xbf16>, vector<8x256xf32> -> vector<8x256xf32>
    %294 = arith.addf %288, %293 : vector<8x256xf32>
    %c19_268 = arith.constant 19 : index
    %c0_269 = arith.constant 0 : index
    %c0_270 = arith.constant 0 : index
    %295 = vector.load %arg2[%c19_268, %c0_269, %c0_270] : memref<27x8x4xbf16, #tpu.memory_space<vmem>>, vector<1x8x4xbf16>
    %296 = vector.shape_cast %295 : vector<1x8x4xbf16> to vector<8x4xbf16>
    %c0_271 = arith.constant 0 : index
    %c0_272 = arith.constant 0 : index
    %c457 = arith.constant 457 : index
    %297 = vector.load %arg1[%c0_271, %c0_272, %c457] : memref<1x4x1118xbf16, #tpu.memory_space<vmem>>, vector<1x4x256xbf16>
    %298 = vector.shape_cast %297 : vector<1x4x256xbf16> to vector<4x256xbf16>
    %cst_273 = arith.constant dense<0.000000e+00> : vector<8x256xf32>
    %299 = tpu.matmul %296, %298, %cst_273 {dimension_numbers = #tpu.dot_dimension_numbers<[1], [0], [0], [1], [0, 0, 1, 1], [], []>} : vector<8x4xbf16>, vector<4x256xbf16>, vector<8x256xf32> -> vector<8x256xf32>
    %300 = arith.addf %294, %299 : vector<8x256xf32>
    %c20_274 = arith.constant 20 : index
    %c0_275 = arith.constant 0 : index
    %c0_276 = arith.constant 0 : index
    %301 = vector.load %arg2[%c20_274, %c0_275, %c0_276] : memref<27x8x4xbf16, #tpu.memory_space<vmem>>, vector<1x8x4xbf16>
    %302 = vector.shape_cast %301 : vector<1x8x4xbf16> to vector<8x4xbf16>
    %c0_277 = arith.constant 0 : index
    %c0_278 = arith.constant 0 : index
    %c458 = arith.constant 458 : index
    %303 = vector.load %arg1[%c0_277, %c0_278, %c458] : memref<1x4x1118xbf16, #tpu.memory_space<vmem>>, vector<1x4x256xbf16>
    %304 = vector.shape_cast %303 : vector<1x4x256xbf16> to vector<4x256xbf16>
    %cst_279 = arith.constant dense<0.000000e+00> : vector<8x256xf32>
    %305 = tpu.matmul %302, %304, %cst_279 {dimension_numbers = #tpu.dot_dimension_numbers<[1], [0], [0], [1], [0, 0, 1, 1], [], []>} : vector<8x4xbf16>, vector<4x256xbf16>, vector<8x256xf32> -> vector<8x256xf32>
    %306 = arith.addf %300, %305 : vector<8x256xf32>
    %c21_280 = arith.constant 21 : index
    %c0_281 = arith.constant 0 : index
    %c0_282 = arith.constant 0 : index
    %307 = vector.load %arg2[%c21_280, %c0_281, %c0_282] : memref<27x8x4xbf16, #tpu.memory_space<vmem>>, vector<1x8x4xbf16>
    %308 = vector.shape_cast %307 : vector<1x8x4xbf16> to vector<8x4xbf16>
    %c0_283 = arith.constant 0 : index
    %c0_284 = arith.constant 0 : index
    %c466 = arith.constant 466 : index
    %309 = vector.load %arg1[%c0_283, %c0_284, %c466] : memref<1x4x1118xbf16, #tpu.memory_space<vmem>>, vector<1x4x256xbf16>
    %310 = vector.shape_cast %309 : vector<1x4x256xbf16> to vector<4x256xbf16>
    %cst_285 = arith.constant dense<0.000000e+00> : vector<8x256xf32>
    %311 = tpu.matmul %308, %310, %cst_285 {dimension_numbers = #tpu.dot_dimension_numbers<[1], [0], [0], [1], [0, 0, 1, 1], [], []>} : vector<8x4xbf16>, vector<4x256xbf16>, vector<8x256xf32> -> vector<8x256xf32>
    %312 = arith.addf %306, %311 : vector<8x256xf32>
    %c22_286 = arith.constant 22 : index
    %c0_287 = arith.constant 0 : index
    %c0_288 = arith.constant 0 : index
    %313 = vector.load %arg2[%c22_286, %c0_287, %c0_288] : memref<27x8x4xbf16, #tpu.memory_space<vmem>>, vector<1x8x4xbf16>
    %314 = vector.shape_cast %313 : vector<1x8x4xbf16> to vector<8x4xbf16>
    %c0_289 = arith.constant 0 : index
    %c0_290 = arith.constant 0 : index
    %c467 = arith.constant 467 : index
    %315 = vector.load %arg1[%c0_289, %c0_290, %c467] : memref<1x4x1118xbf16, #tpu.memory_space<vmem>>, vector<1x4x256xbf16>
    %316 = vector.shape_cast %315 : vector<1x4x256xbf16> to vector<4x256xbf16>
    %cst_291 = arith.constant dense<0.000000e+00> : vector<8x256xf32>
    %317 = tpu.matmul %314, %316, %cst_291 {dimension_numbers = #tpu.dot_dimension_numbers<[1], [0], [0], [1], [0, 0, 1, 1], [], []>} : vector<8x4xbf16>, vector<4x256xbf16>, vector<8x256xf32> -> vector<8x256xf32>
    %318 = arith.addf %312, %317 : vector<8x256xf32>
    %c23_292 = arith.constant 23 : index
    %c0_293 = arith.constant 0 : index
    %c0_294 = arith.constant 0 : index
    %319 = vector.load %arg2[%c23_292, %c0_293, %c0_294] : memref<27x8x4xbf16, #tpu.memory_space<vmem>>, vector<1x8x4xbf16>
    %320 = vector.shape_cast %319 : vector<1x8x4xbf16> to vector<8x4xbf16>
    %c0_295 = arith.constant 0 : index
    %c0_296 = arith.constant 0 : index
    %c468 = arith.constant 468 : index
    %321 = vector.load %arg1[%c0_295, %c0_296, %c468] : memref<1x4x1118xbf16, #tpu.memory_space<vmem>>, vector<1x4x256xbf16>
    %322 = vector.shape_cast %321 : vector<1x4x256xbf16> to vector<4x256xbf16>
    %cst_297 = arith.constant dense<0.000000e+00> : vector<8x256xf32>
    %323 = tpu.matmul %320, %322, %cst_297 {dimension_numbers = #tpu.dot_dimension_numbers<[1], [0], [0], [1], [0, 0, 1, 1], [], []>} : vector<8x4xbf16>, vector<4x256xbf16>, vector<8x256xf32> -> vector<8x256xf32>
    %324 = arith.addf %318, %323 : vector<8x256xf32>
    %c24_298 = arith.constant 24 : index
    %c0_299 = arith.constant 0 : index
    %c0_300 = arith.constant 0 : index
    %325 = vector.load %arg2[%c24_298, %c0_299, %c0_300] : memref<27x8x4xbf16, #tpu.memory_space<vmem>>, vector<1x8x4xbf16>
    %326 = vector.shape_cast %325 : vector<1x8x4xbf16> to vector<8x4xbf16>
    %c0_301 = arith.constant 0 : index
    %c0_302 = arith.constant 0 : index
    %c476 = arith.constant 476 : index
    %327 = vector.load %arg1[%c0_301, %c0_302, %c476] : memref<1x4x1118xbf16, #tpu.memory_space<vmem>>, vector<1x4x256xbf16>
    %328 = vector.shape_cast %327 : vector<1x4x256xbf16> to vector<4x256xbf16>
    %cst_303 = arith.constant dense<0.000000e+00> : vector<8x256xf32>
    %329 = tpu.matmul %326, %328, %cst_303 {dimension_numbers = #tpu.dot_dimension_numbers<[1], [0], [0], [1], [0, 0, 1, 1], [], []>} : vector<8x4xbf16>, vector<4x256xbf16>, vector<8x256xf32> -> vector<8x256xf32>
    %330 = arith.addf %324, %329 : vector<8x256xf32>
    %c25_304 = arith.constant 25 : index
    %c0_305 = arith.constant 0 : index
    %c0_306 = arith.constant 0 : index
    %331 = vector.load %arg2[%c25_304, %c0_305, %c0_306] : memref<27x8x4xbf16, #tpu.memory_space<vmem>>, vector<1x8x4xbf16>
    %332 = vector.shape_cast %331 : vector<1x8x4xbf16> to vector<8x4xbf16>
    %c0_307 = arith.constant 0 : index
    %c0_308 = arith.constant 0 : index
    %c477 = arith.constant 477 : index
    %333 = vector.load %arg1[%c0_307, %c0_308, %c477] : memref<1x4x1118xbf16, #tpu.memory_space<vmem>>, vector<1x4x256xbf16>
    %334 = vector.shape_cast %333 : vector<1x4x256xbf16> to vector<4x256xbf16>
    %cst_309 = arith.constant dense<0.000000e+00> : vector<8x256xf32>
    %335 = tpu.matmul %332, %334, %cst_309 {dimension_numbers = #tpu.dot_dimension_numbers<[1], [0], [0], [1], [0, 0, 1, 1], [], []>} : vector<8x4xbf16>, vector<4x256xbf16>, vector<8x256xf32> -> vector<8x256xf32>
    %336 = arith.addf %330, %335 : vector<8x256xf32>
    %c26_310 = arith.constant 26 : index
    %c0_311 = arith.constant 0 : index
    %c0_312 = arith.constant 0 : index
    %337 = vector.load %arg2[%c26_310, %c0_311, %c0_312] : memref<27x8x4xbf16, #tpu.memory_space<vmem>>, vector<1x8x4xbf16>
    %338 = vector.shape_cast %337 : vector<1x8x4xbf16> to vector<8x4xbf16>
    %c0_313 = arith.constant 0 : index
    %c0_314 = arith.constant 0 : index
    %c478 = arith.constant 478 : index
    %339 = vector.load %arg1[%c0_313, %c0_314, %c478] : memref<1x4x1118xbf16, #tpu.memory_space<vmem>>, vector<1x4x256xbf16>
    %340 = vector.shape_cast %339 : vector<1x4x256xbf16> to vector<4x256xbf16>
    %cst_315 = arith.constant dense<0.000000e+00> : vector<8x256xf32>
    %341 = tpu.matmul %338, %340, %cst_315 {dimension_numbers = #tpu.dot_dimension_numbers<[1], [0], [0], [1], [0, 0, 1, 1], [], []>} : vector<8x4xbf16>, vector<4x256xbf16>, vector<8x256xf32> -> vector<8x256xf32>
    %342 = arith.addf %336, %341 : vector<8x256xf32>
    %c0_316 = arith.constant 0 : index
    %c256_317 = arith.constant 256 : index
    %343 = vector.load %arg4[%c0_316, %c256_317] : memref<1x896xbf16, #tpu.memory_space<vmem>>, vector<1x256xbf16>
    %344 = arith.extf %343 : vector<1x256xbf16> to vector<1x256xf32>
    %345 = vector.broadcast %344 : vector<1x256xf32> to vector<8x256xf32>
    %346 = arith.mulf %342, %345 : vector<8x256xf32>
    %cst_318 = arith.constant dense<0.000000e+00> : vector<8xf32>
    %347 = vector.multi_reduction <add>, %346, %cst_318 [1] : vector<8x256xf32> to vector<8xf32>
    %348 = vector.shape_cast %347 : vector<8xf32> to vector<8x1xf32>
    %349 = arith.addf %171, %348 : vector<8x1xf32>
    %350 = arith.mulf %346, %342 : vector<8x256xf32>
    %cst_319 = arith.constant dense<0.000000e+00> : vector<8xf32>
    %351 = vector.multi_reduction <add>, %350, %cst_319 [1] : vector<8x256xf32> to vector<8xf32>
    %352 = vector.shape_cast %351 : vector<8xf32> to vector<8x1xf32>
    %353 = arith.addf %175, %352 : vector<8x1xf32>
    %354 = arith.truncf %342 : vector<8x256xf32> to vector<8x256xbf16>
    %c0_320 = arith.constant 0 : index
    %c0_321 = arith.constant 0 : index
    %c256_322 = arith.constant 256 : index
    %355 = vector.load %arg5[%c0_320, %c0_321, %c256_322] : memref<1x8x896xbf16, #tpu.memory_space<vmem>>, vector<1x8x256xbf16>
    %356 = vector.shape_cast %355 : vector<1x8x256xbf16> to vector<8x256xbf16>
    %357 = vector.shape_cast %354 : vector<8x256xbf16> to vector<1x8x256xbf16>
    tpu.vector_store %arg5[%c0_320, %c0_321, %c256_322], %357 {strides = array<i32>} : memref<1x8x896xbf16, #tpu.memory_space<vmem>>, vector<1x8x256xbf16>,
    %cst_323 = arith.constant 0.000000e+00 : f32
    %358 = vector.broadcast %cst_323 : f32 to vector<8x256xf32>
    %c0_324 = arith.constant 0 : index
    %c0_325 = arith.constant 0 : index
    %c0_326 = arith.constant 0 : index
    %359 = vector.load %arg2[%c0_324, %c0_325, %c0_326] : memref<27x8x4xbf16, #tpu.memory_space<vmem>>, vector<1x8x4xbf16>
    %360 = vector.shape_cast %359 : vector<1x8x4xbf16> to vector<8x4xbf16>
    %c0_327 = arith.constant 0 : index
    %c0_328 = arith.constant 0 : index
    %c512 = arith.constant 512 : index
    %361 = vector.load %arg1[%c0_327, %c0_328, %c512] : memref<1x4x1118xbf16, #tpu.memory_space<vmem>>, vector<1x4x256xbf16>
    %362 = vector.shape_cast %361 : vector<1x4x256xbf16> to vector<4x256xbf16>
    %cst_329 = arith.constant dense<0.000000e+00> : vector<8x256xf32>
    %363 = tpu.matmul %360, %362, %cst_329 {dimension_numbers = #tpu.dot_dimension_numbers<[1], [0], [0], [1], [0, 0, 1, 1], [], []>} : vector<8x4xbf16>, vector<4x256xbf16>, vector<8x256xf32> -> vector<8x256xf32>
    %364 = arith.addf %358, %363 : vector<8x256xf32>
    %c1_330 = arith.constant 1 : index
    %c0_331 = arith.constant 0 : index
    %c0_332 = arith.constant 0 : index
    %365 = vector.load %arg2[%c1_330, %c0_331, %c0_332] : memref<27x8x4xbf16, #tpu.memory_space<vmem>>, vector<1x8x4xbf16>
    %366 = vector.shape_cast %365 : vector<1x8x4xbf16> to vector<8x4xbf16>
    %c0_333 = arith.constant 0 : index
    %c0_334 = arith.constant 0 : index
    %c513 = arith.constant 513 : index
    %367 = vector.load %arg1[%c0_333, %c0_334, %c513] : memref<1x4x1118xbf16, #tpu.memory_space<vmem>>, vector<1x4x256xbf16>
    %368 = vector.shape_cast %367 : vector<1x4x256xbf16> to vector<4x256xbf16>
    %cst_335 = arith.constant dense<0.000000e+00> : vector<8x256xf32>
    %369 = tpu.matmul %366, %368, %cst_335 {dimension_numbers = #tpu.dot_dimension_numbers<[1], [0], [0], [1], [0, 0, 1, 1], [], []>} : vector<8x4xbf16>, vector<4x256xbf16>, vector<8x256xf32> -> vector<8x256xf32>
    %370 = arith.addf %364, %369 : vector<8x256xf32>
    %c2_336 = arith.constant 2 : index
    %c0_337 = arith.constant 0 : index
    %c0_338 = arith.constant 0 : index
    %371 = vector.load %arg2[%c2_336, %c0_337, %c0_338] : memref<27x8x4xbf16, #tpu.memory_space<vmem>>, vector<1x8x4xbf16>
    %372 = vector.shape_cast %371 : vector<1x8x4xbf16> to vector<8x4xbf16>
    %c0_339 = arith.constant 0 : index
    %c0_340 = arith.constant 0 : index
    %c514 = arith.constant 514 : index
    %373 = vector.load %arg1[%c0_339, %c0_340, %c514] : memref<1x4x1118xbf16, #tpu.memory_space<vmem>>, vector<1x4x256xbf16>
    %374 = vector.shape_cast %373 : vector<1x4x256xbf16> to vector<4x256xbf16>
    %cst_341 = arith.constant dense<0.000000e+00> : vector<8x256xf32>
    %375 = tpu.matmul %372, %374, %cst_341 {dimension_numbers = #tpu.dot_dimension_numbers<[1], [0], [0], [1], [0, 0, 1, 1], [], []>} : vector<8x4xbf16>, vector<4x256xbf16>, vector<8x256xf32> -> vector<8x256xf32>
    %376 = arith.addf %370, %375 : vector<8x256xf32>
    %c3_342 = arith.constant 3 : index
    %c0_343 = arith.constant 0 : index
    %c0_344 = arith.constant 0 : index
    %377 = vector.load %arg2[%c3_342, %c0_343, %c0_344] : memref<27x8x4xbf16, #tpu.memory_space<vmem>>, vector<1x8x4xbf16>
    %378 = vector.shape_cast %377 : vector<1x8x4xbf16> to vector<8x4xbf16>
    %c0_345 = arith.constant 0 : index
    %c0_346 = arith.constant 0 : index
    %c522 = arith.constant 522 : index
    %379 = vector.load %arg1[%c0_345, %c0_346, %c522] : memref<1x4x1118xbf16, #tpu.memory_space<vmem>>, vector<1x4x256xbf16>
    %380 = vector.shape_cast %379 : vector<1x4x256xbf16> to vector<4x256xbf16>
    %cst_347 = arith.constant dense<0.000000e+00> : vector<8x256xf32>
    %381 = tpu.matmul %378, %380, %cst_347 {dimension_numbers = #tpu.dot_dimension_numbers<[1], [0], [0], [1], [0, 0, 1, 1], [], []>} : vector<8x4xbf16>, vector<4x256xbf16>, vector<8x256xf32> -> vector<8x256xf32>
    %382 = arith.addf %376, %381 : vector<8x256xf32>
    %c4_348 = arith.constant 4 : index
    %c0_349 = arith.constant 0 : index
    %c0_350 = arith.constant 0 : index
    %383 = vector.load %arg2[%c4_348, %c0_349, %c0_350] : memref<27x8x4xbf16, #tpu.memory_space<vmem>>, vector<1x8x4xbf16>
    %384 = vector.shape_cast %383 : vector<1x8x4xbf16> to vector<8x4xbf16>
    %c0_351 = arith.constant 0 : index
    %c0_352 = arith.constant 0 : index
    %c523 = arith.constant 523 : index
    %385 = vector.load %arg1[%c0_351, %c0_352, %c523] : memref<1x4x1118xbf16, #tpu.memory_space<vmem>>, vector<1x4x256xbf16>
    %386 = vector.shape_cast %385 : vector<1x4x256xbf16> to vector<4x256xbf16>
    %cst_353 = arith.constant dense<0.000000e+00> : vector<8x256xf32>
    %387 = tpu.matmul %384, %386, %cst_353 {dimension_numbers = #tpu.dot_dimension_numbers<[1], [0], [0], [1], [0, 0, 1, 1], [], []>} : vector<8x4xbf16>, vector<4x256xbf16>, vector<8x256xf32> -> vector<8x256xf32>
    %388 = arith.addf %382, %387 : vector<8x256xf32>
    %c5_354 = arith.constant 5 : index
    %c0_355 = arith.constant 0 : index
    %c0_356 = arith.constant 0 : index
    %389 = vector.load %arg2[%c5_354, %c0_355, %c0_356] : memref<27x8x4xbf16, #tpu.memory_space<vmem>>, vector<1x8x4xbf16>
    %390 = vector.shape_cast %389 : vector<1x8x4xbf16> to vector<8x4xbf16>
    %c0_357 = arith.constant 0 : index
    %c0_358 = arith.constant 0 : index
    %c524 = arith.constant 524 : index
    %391 = vector.load %arg1[%c0_357, %c0_358, %c524] : memref<1x4x1118xbf16, #tpu.memory_space<vmem>>, vector<1x4x256xbf16>
    %392 = vector.shape_cast %391 : vector<1x4x256xbf16> to vector<4x256xbf16>
    %cst_359 = arith.constant dense<0.000000e+00> : vector<8x256xf32>
    %393 = tpu.matmul %390, %392, %cst_359 {dimension_numbers = #tpu.dot_dimension_numbers<[1], [0], [0], [1], [0, 0, 1, 1], [], []>} : vector<8x4xbf16>, vector<4x256xbf16>, vector<8x256xf32> -> vector<8x256xf32>
    %394 = arith.addf %388, %393 : vector<8x256xf32>
    %c6_360 = arith.constant 6 : index
    %c0_361 = arith.constant 0 : index
    %c0_362 = arith.constant 0 : index
    %395 = vector.load %arg2[%c6_360, %c0_361, %c0_362] : memref<27x8x4xbf16, #tpu.memory_space<vmem>>, vector<1x8x4xbf16>
    %396 = vector.shape_cast %395 : vector<1x8x4xbf16> to vector<8x4xbf16>
    %c0_363 = arith.constant 0 : index
    %c0_364 = arith.constant 0 : index
    %c532 = arith.constant 532 : index
    %397 = vector.load %arg1[%c0_363, %c0_364, %c532] : memref<1x4x1118xbf16, #tpu.memory_space<vmem>>, vector<1x4x256xbf16>
    %398 = vector.shape_cast %397 : vector<1x4x256xbf16> to vector<4x256xbf16>
    %cst_365 = arith.constant dense<0.000000e+00> : vector<8x256xf32>
    %399 = tpu.matmul %396, %398, %cst_365 {dimension_numbers = #tpu.dot_dimension_numbers<[1], [0], [0], [1], [0, 0, 1, 1], [], []>} : vector<8x4xbf16>, vector<4x256xbf16>, vector<8x256xf32> -> vector<8x256xf32>
    %400 = arith.addf %394, %399 : vector<8x256xf32>
    %c7_366 = arith.constant 7 : index
    %c0_367 = arith.constant 0 : index
    %c0_368 = arith.constant 0 : index
    %401 = vector.load %arg2[%c7_366, %c0_367, %c0_368] : memref<27x8x4xbf16, #tpu.memory_space<vmem>>, vector<1x8x4xbf16>
    %402 = vector.shape_cast %401 : vector<1x8x4xbf16> to vector<8x4xbf16>
    %c0_369 = arith.constant 0 : index
    %c0_370 = arith.constant 0 : index
    %c533 = arith.constant 533 : index
    %403 = vector.load %arg1[%c0_369, %c0_370, %c533] : memref<1x4x1118xbf16, #tpu.memory_space<vmem>>, vector<1x4x256xbf16>
    %404 = vector.shape_cast %403 : vector<1x4x256xbf16> to vector<4x256xbf16>
    %cst_371 = arith.constant dense<0.000000e+00> : vector<8x256xf32>
    %405 = tpu.matmul %402, %404, %cst_371 {dimension_numbers = #tpu.dot_dimension_numbers<[1], [0], [0], [1], [0, 0, 1, 1], [], []>} : vector<8x4xbf16>, vector<4x256xbf16>, vector<8x256xf32> -> vector<8x256xf32>
    %406 = arith.addf %400, %405 : vector<8x256xf32>
    %c8_372 = arith.constant 8 : index
    %c0_373 = arith.constant 0 : index
    %c0_374 = arith.constant 0 : index
    %407 = vector.load %arg2[%c8_372, %c0_373, %c0_374] : memref<27x8x4xbf16, #tpu.memory_space<vmem>>, vector<1x8x4xbf16>
    %408 = vector.shape_cast %407 : vector<1x8x4xbf16> to vector<8x4xbf16>
    %c0_375 = arith.constant 0 : index
    %c0_376 = arith.constant 0 : index
    %c534 = arith.constant 534 : index
    %409 = vector.load %arg1[%c0_375, %c0_376, %c534] : memref<1x4x1118xbf16, #tpu.memory_space<vmem>>, vector<1x4x256xbf16>
    %410 = vector.shape_cast %409 : vector<1x4x256xbf16> to vector<4x256xbf16>
    %cst_377 = arith.constant dense<0.000000e+00> : vector<8x256xf32>
    %411 = tpu.matmul %408, %410, %cst_377 {dimension_numbers = #tpu.dot_dimension_numbers<[1], [0], [0], [1], [0, 0, 1, 1], [], []>} : vector<8x4xbf16>, vector<4x256xbf16>, vector<8x256xf32> -> vector<8x256xf32>
    %412 = arith.addf %406, %411 : vector<8x256xf32>
    %c9_378 = arith.constant 9 : index
    %c0_379 = arith.constant 0 : index
    %c0_380 = arith.constant 0 : index
    %413 = vector.load %arg2[%c9_378, %c0_379, %c0_380] : memref<27x8x4xbf16, #tpu.memory_space<vmem>>, vector<1x8x4xbf16>
    %414 = vector.shape_cast %413 : vector<1x8x4xbf16> to vector<8x4xbf16>
    %c0_381 = arith.constant 0 : index
    %c0_382 = arith.constant 0 : index
    %c612 = arith.constant 612 : index
    %415 = vector.load %arg1[%c0_381, %c0_382, %c612] : memref<1x4x1118xbf16, #tpu.memory_space<vmem>>, vector<1x4x256xbf16>
    %416 = vector.shape_cast %415 : vector<1x4x256xbf16> to vector<4x256xbf16>
    %cst_383 = arith.constant dense<0.000000e+00> : vector<8x256xf32>
    %417 = tpu.matmul %414, %416, %cst_383 {dimension_numbers = #tpu.dot_dimension_numbers<[1], [0], [0], [1], [0, 0, 1, 1], [], []>} : vector<8x4xbf16>, vector<4x256xbf16>, vector<8x256xf32> -> vector<8x256xf32>
    %418 = arith.addf %412, %417 : vector<8x256xf32>
    %c10_384 = arith.constant 10 : index
    %c0_385 = arith.constant 0 : index
    %c0_386 = arith.constant 0 : index
    %419 = vector.load %arg2[%c10_384, %c0_385, %c0_386] : memref<27x8x4xbf16, #tpu.memory_space<vmem>>, vector<1x8x4xbf16>
    %420 = vector.shape_cast %419 : vector<1x8x4xbf16> to vector<8x4xbf16>
    %c0_387 = arith.constant 0 : index
    %c0_388 = arith.constant 0 : index
    %c613 = arith.constant 613 : index
    %421 = vector.load %arg1[%c0_387, %c0_388, %c613] : memref<1x4x1118xbf16, #tpu.memory_space<vmem>>, vector<1x4x256xbf16>
    %422 = vector.shape_cast %421 : vector<1x4x256xbf16> to vector<4x256xbf16>
    %cst_389 = arith.constant dense<0.000000e+00> : vector<8x256xf32>
    %423 = tpu.matmul %420, %422, %cst_389 {dimension_numbers = #tpu.dot_dimension_numbers<[1], [0], [0], [1], [0, 0, 1, 1], [], []>} : vector<8x4xbf16>, vector<4x256xbf16>, vector<8x256xf32> -> vector<8x256xf32>
    %424 = arith.addf %418, %423 : vector<8x256xf32>
    %c11_390 = arith.constant 11 : index
    %c0_391 = arith.constant 0 : index
    %c0_392 = arith.constant 0 : index
    %425 = vector.load %arg2[%c11_390, %c0_391, %c0_392] : memref<27x8x4xbf16, #tpu.memory_space<vmem>>, vector<1x8x4xbf16>
    %426 = vector.shape_cast %425 : vector<1x8x4xbf16> to vector<8x4xbf16>
    %c0_393 = arith.constant 0 : index
    %c0_394 = arith.constant 0 : index
    %c614 = arith.constant 614 : index
    %427 = vector.load %arg1[%c0_393, %c0_394, %c614] : memref<1x4x1118xbf16, #tpu.memory_space<vmem>>, vector<1x4x256xbf16>
    %428 = vector.shape_cast %427 : vector<1x4x256xbf16> to vector<4x256xbf16>
    %cst_395 = arith.constant dense<0.000000e+00> : vector<8x256xf32>
    %429 = tpu.matmul %426, %428, %cst_395 {dimension_numbers = #tpu.dot_dimension_numbers<[1], [0], [0], [1], [0, 0, 1, 1], [], []>} : vector<8x4xbf16>, vector<4x256xbf16>, vector<8x256xf32> -> vector<8x256xf32>
    %430 = arith.addf %424, %429 : vector<8x256xf32>
    %c12_396 = arith.constant 12 : index
    %c0_397 = arith.constant 0 : index
    %c0_398 = arith.constant 0 : index
    %431 = vector.load %arg2[%c12_396, %c0_397, %c0_398] : memref<27x8x4xbf16, #tpu.memory_space<vmem>>, vector<1x8x4xbf16>
    %432 = vector.shape_cast %431 : vector<1x8x4xbf16> to vector<8x4xbf16>
    %c0_399 = arith.constant 0 : index
    %c0_400 = arith.constant 0 : index
    %c622 = arith.constant 622 : index
    %433 = vector.load %arg1[%c0_399, %c0_400, %c622] : memref<1x4x1118xbf16, #tpu.memory_space<vmem>>, vector<1x4x256xbf16>
    %434 = vector.shape_cast %433 : vector<1x4x256xbf16> to vector<4x256xbf16>
    %cst_401 = arith.constant dense<0.000000e+00> : vector<8x256xf32>
    %435 = tpu.matmul %432, %434, %cst_401 {dimension_numbers = #tpu.dot_dimension_numbers<[1], [0], [0], [1], [0, 0, 1, 1], [], []>} : vector<8x4xbf16>, vector<4x256xbf16>, vector<8x256xf32> -> vector<8x256xf32>
    %436 = arith.addf %430, %435 : vector<8x256xf32>
    %c13_402 = arith.constant 13 : index
    %c0_403 = arith.constant 0 : index
    %c0_404 = arith.constant 0 : index
    %437 = vector.load %arg2[%c13_402, %c0_403, %c0_404] : memref<27x8x4xbf16, #tpu.memory_space<vmem>>, vector<1x8x4xbf16>
    %438 = vector.shape_cast %437 : vector<1x8x4xbf16> to vector<8x4xbf16>
    %c0_405 = arith.constant 0 : index
    %c0_406 = arith.constant 0 : index
    %c623 = arith.constant 623 : index
    %439 = vector.load %arg1[%c0_405, %c0_406, %c623] : memref<1x4x1118xbf16, #tpu.memory_space<vmem>>, vector<1x4x256xbf16>
    %440 = vector.shape_cast %439 : vector<1x4x256xbf16> to vector<4x256xbf16>
    %cst_407 = arith.constant dense<0.000000e+00> : vector<8x256xf32>
    %441 = tpu.matmul %438, %440, %cst_407 {dimension_numbers = #tpu.dot_dimension_numbers<[1], [0], [0], [1], [0, 0, 1, 1], [], []>} : vector<8x4xbf16>, vector<4x256xbf16>, vector<8x256xf32> -> vector<8x256xf32>
    %442 = arith.addf %436, %441 : vector<8x256xf32>
    %c14_408 = arith.constant 14 : index
    %c0_409 = arith.constant 0 : index
    %c0_410 = arith.constant 0 : index
    %443 = vector.load %arg2[%c14_408, %c0_409, %c0_410] : memref<27x8x4xbf16, #tpu.memory_space<vmem>>, vector<1x8x4xbf16>
    %444 = vector.shape_cast %443 : vector<1x8x4xbf16> to vector<8x4xbf16>
    %c0_411 = arith.constant 0 : index
    %c0_412 = arith.constant 0 : index
    %c624 = arith.constant 624 : index
    %445 = vector.load %arg1[%c0_411, %c0_412, %c624] : memref<1x4x1118xbf16, #tpu.memory_space<vmem>>, vector<1x4x256xbf16>
    %446 = vector.shape_cast %445 : vector<1x4x256xbf16> to vector<4x256xbf16>
    %cst_413 = arith.constant dense<0.000000e+00> : vector<8x256xf32>
    %447 = tpu.matmul %444, %446, %cst_413 {dimension_numbers = #tpu.dot_dimension_numbers<[1], [0], [0], [1], [0, 0, 1, 1], [], []>} : vector<8x4xbf16>, vector<4x256xbf16>, vector<8x256xf32> -> vector<8x256xf32>
    %448 = arith.addf %442, %447 : vector<8x256xf32>
    %c15_414 = arith.constant 15 : index
    %c0_415 = arith.constant 0 : index
    %c0_416 = arith.constant 0 : index
    %449 = vector.load %arg2[%c15_414, %c0_415, %c0_416] : memref<27x8x4xbf16, #tpu.memory_space<vmem>>, vector<1x8x4xbf16>
    %450 = vector.shape_cast %449 : vector<1x8x4xbf16> to vector<8x4xbf16>
    %c0_417 = arith.constant 0 : index
    %c0_418 = arith.constant 0 : index
    %c632 = arith.constant 632 : index
    %451 = vector.load %arg1[%c0_417, %c0_418, %c632] : memref<1x4x1118xbf16, #tpu.memory_space<vmem>>, vector<1x4x256xbf16>
    %452 = vector.shape_cast %451 : vector<1x4x256xbf16> to vector<4x256xbf16>
    %cst_419 = arith.constant dense<0.000000e+00> : vector<8x256xf32>
    %453 = tpu.matmul %450, %452, %cst_419 {dimension_numbers = #tpu.dot_dimension_numbers<[1], [0], [0], [1], [0, 0, 1, 1], [], []>} : vector<8x4xbf16>, vector<4x256xbf16>, vector<8x256xf32> -> vector<8x256xf32>
    %454 = arith.addf %448, %453 : vector<8x256xf32>
    %c16_420 = arith.constant 16 : index
    %c0_421 = arith.constant 0 : index
    %c0_422 = arith.constant 0 : index
    %455 = vector.load %arg2[%c16_420, %c0_421, %c0_422] : memref<27x8x4xbf16, #tpu.memory_space<vmem>>, vector<1x8x4xbf16>
    %456 = vector.shape_cast %455 : vector<1x8x4xbf16> to vector<8x4xbf16>
    %c0_423 = arith.constant 0 : index
    %c0_424 = arith.constant 0 : index
    %c633 = arith.constant 633 : index
    %457 = vector.load %arg1[%c0_423, %c0_424, %c633] : memref<1x4x1118xbf16, #tpu.memory_space<vmem>>, vector<1x4x256xbf16>
    %458 = vector.shape_cast %457 : vector<1x4x256xbf16> to vector<4x256xbf16>
    %cst_425 = arith.constant dense<0.000000e+00> : vector<8x256xf32>
    %459 = tpu.matmul %456, %458, %cst_425 {dimension_numbers = #tpu.dot_dimension_numbers<[1], [0], [0], [1], [0, 0, 1, 1], [], []>} : vector<8x4xbf16>, vector<4x256xbf16>, vector<8x256xf32> -> vector<8x256xf32>
    %460 = arith.addf %454, %459 : vector<8x256xf32>
    %c17_426 = arith.constant 17 : index
    %c0_427 = arith.constant 0 : index
    %c0_428 = arith.constant 0 : index
    %461 = vector.load %arg2[%c17_426, %c0_427, %c0_428] : memref<27x8x4xbf16, #tpu.memory_space<vmem>>, vector<1x8x4xbf16>
    %462 = vector.shape_cast %461 : vector<1x8x4xbf16> to vector<8x4xbf16>
    %c0_429 = arith.constant 0 : index
    %c0_430 = arith.constant 0 : index
    %c634 = arith.constant 634 : index
    %463 = vector.load %arg1[%c0_429, %c0_430, %c634] : memref<1x4x1118xbf16, #tpu.memory_space<vmem>>, vector<1x4x256xbf16>
    %464 = vector.shape_cast %463 : vector<1x4x256xbf16> to vector<4x256xbf16>
    %cst_431 = arith.constant dense<0.000000e+00> : vector<8x256xf32>
    %465 = tpu.matmul %462, %464, %cst_431 {dimension_numbers = #tpu.dot_dimension_numbers<[1], [0], [0], [1], [0, 0, 1, 1], [], []>} : vector<8x4xbf16>, vector<4x256xbf16>, vector<8x256xf32> -> vector<8x256xf32>
    %466 = arith.addf %460, %465 : vector<8x256xf32>
    %c18_432 = arith.constant 18 : index
    %c0_433 = arith.constant 0 : index
    %c0_434 = arith.constant 0 : index
    %467 = vector.load %arg2[%c18_432, %c0_433, %c0_434] : memref<27x8x4xbf16, #tpu.memory_space<vmem>>, vector<1x8x4xbf16>
    %468 = vector.shape_cast %467 : vector<1x8x4xbf16> to vector<8x4xbf16>
    %c0_435 = arith.constant 0 : index
    %c0_436 = arith.constant 0 : index
    %c712 = arith.constant 712 : index
    %469 = vector.load %arg1[%c0_435, %c0_436, %c712] : memref<1x4x1118xbf16, #tpu.memory_space<vmem>>, vector<1x4x256xbf16>
    %470 = vector.shape_cast %469 : vector<1x4x256xbf16> to vector<4x256xbf16>
    %cst_437 = arith.constant dense<0.000000e+00> : vector<8x256xf32>
    %471 = tpu.matmul %468, %470, %cst_437 {dimension_numbers = #tpu.dot_dimension_numbers<[1], [0], [0], [1], [0, 0, 1, 1], [], []>} : vector<8x4xbf16>, vector<4x256xbf16>, vector<8x256xf32> -> vector<8x256xf32>
    %472 = arith.addf %466, %471 : vector<8x256xf32>
    %c19_438 = arith.constant 19 : index
    %c0_439 = arith.constant 0 : index
    %c0_440 = arith.constant 0 : index
    %473 = vector.load %arg2[%c19_438, %c0_439, %c0_440] : memref<27x8x4xbf16, #tpu.memory_space<vmem>>, vector<1x8x4xbf16>
    %474 = vector.shape_cast %473 : vector<1x8x4xbf16> to vector<8x4xbf16>
    %c0_441 = arith.constant 0 : index
    %c0_442 = arith.constant 0 : index
    %c713 = arith.constant 713 : index
    %475 = vector.load %arg1[%c0_441, %c0_442, %c713] : memref<1x4x1118xbf16, #tpu.memory_space<vmem>>, vector<1x4x256xbf16>
    %476 = vector.shape_cast %475 : vector<1x4x256xbf16> to vector<4x256xbf16>
    %cst_443 = arith.constant dense<0.000000e+00> : vector<8x256xf32>
    %477 = tpu.matmul %474, %476, %cst_443 {dimension_numbers = #tpu.dot_dimension_numbers<[1], [0], [0], [1], [0, 0, 1, 1], [], []>} : vector<8x4xbf16>, vector<4x256xbf16>, vector<8x256xf32> -> vector<8x256xf32>
    %478 = arith.addf %472, %477 : vector<8x256xf32>
    %c20_444 = arith.constant 20 : index
    %c0_445 = arith.constant 0 : index
    %c0_446 = arith.constant 0 : index
    %479 = vector.load %arg2[%c20_444, %c0_445, %c0_446] : memref<27x8x4xbf16, #tpu.memory_space<vmem>>, vector<1x8x4xbf16>
    %480 = vector.shape_cast %479 : vector<1x8x4xbf16> to vector<8x4xbf16>
    %c0_447 = arith.constant 0 : index
    %c0_448 = arith.constant 0 : index
    %c714 = arith.constant 714 : index
    %481 = vector.load %arg1[%c0_447, %c0_448, %c714] : memref<1x4x1118xbf16, #tpu.memory_space<vmem>>, vector<1x4x256xbf16>
    %482 = vector.shape_cast %481 : vector<1x4x256xbf16> to vector<4x256xbf16>
    %cst_449 = arith.constant dense<0.000000e+00> : vector<8x256xf32>
    %483 = tpu.matmul %480, %482, %cst_449 {dimension_numbers = #tpu.dot_dimension_numbers<[1], [0], [0], [1], [0, 0, 1, 1], [], []>} : vector<8x4xbf16>, vector<4x256xbf16>, vector<8x256xf32> -> vector<8x256xf32>
    %484 = arith.addf %478, %483 : vector<8x256xf32>
    %c21_450 = arith.constant 21 : index
    %c0_451 = arith.constant 0 : index
    %c0_452 = arith.constant 0 : index
    %485 = vector.load %arg2[%c21_450, %c0_451, %c0_452] : memref<27x8x4xbf16, #tpu.memory_space<vmem>>, vector<1x8x4xbf16>
    %486 = vector.shape_cast %485 : vector<1x8x4xbf16> to vector<8x4xbf16>
    %c0_453 = arith.constant 0 : index
    %c0_454 = arith.constant 0 : index
    %c722 = arith.constant 722 : index
    %487 = vector.load %arg1[%c0_453, %c0_454, %c722] : memref<1x4x1118xbf16, #tpu.memory_space<vmem>>, vector<1x4x256xbf16>
    %488 = vector.shape_cast %487 : vector<1x4x256xbf16> to vector<4x256xbf16>
    %cst_455 = arith.constant dense<0.000000e+00> : vector<8x256xf32>
    %489 = tpu.matmul %486, %488, %cst_455 {dimension_numbers = #tpu.dot_dimension_numbers<[1], [0], [0], [1], [0, 0, 1, 1], [], []>} : vector<8x4xbf16>, vector<4x256xbf16>, vector<8x256xf32> -> vector<8x256xf32>
    %490 = arith.addf %484, %489 : vector<8x256xf32>
    %c22_456 = arith.constant 22 : index
    %c0_457 = arith.constant 0 : index
    %c0_458 = arith.constant 0 : index
    %491 = vector.load %arg2[%c22_456, %c0_457, %c0_458] : memref<27x8x4xbf16, #tpu.memory_space<vmem>>, vector<1x8x4xbf16>
    %492 = vector.shape_cast %491 : vector<1x8x4xbf16> to vector<8x4xbf16>
    %c0_459 = arith.constant 0 : index
    %c0_460 = arith.constant 0 : index
    %c723 = arith.constant 723 : index
    %493 = vector.load %arg1[%c0_459, %c0_460, %c723] : memref<1x4x1118xbf16, #tpu.memory_space<vmem>>, vector<1x4x256xbf16>
    %494 = vector.shape_cast %493 : vector<1x4x256xbf16> to vector<4x256xbf16>
    %cst_461 = arith.constant dense<0.000000e+00> : vector<8x256xf32>
    %495 = tpu.matmul %492, %494, %cst_461 {dimension_numbers = #tpu.dot_dimension_numbers<[1], [0], [0], [1], [0, 0, 1, 1], [], []>} : vector<8x4xbf16>, vector<4x256xbf16>, vector<8x256xf32> -> vector<8x256xf32>
    %496 = arith.addf %490, %495 : vector<8x256xf32>
    %c23_462 = arith.constant 23 : index
    %c0_463 = arith.constant 0 : index
    %c0_464 = arith.constant 0 : index
    %497 = vector.load %arg2[%c23_462, %c0_463, %c0_464] : memref<27x8x4xbf16, #tpu.memory_space<vmem>>, vector<1x8x4xbf16>
    %498 = vector.shape_cast %497 : vector<1x8x4xbf16> to vector<8x4xbf16>
    %c0_465 = arith.constant 0 : index
    %c0_466 = arith.constant 0 : index
    %c724 = arith.constant 724 : index
    %499 = vector.load %arg1[%c0_465, %c0_466, %c724] : memref<1x4x1118xbf16, #tpu.memory_space<vmem>>, vector<1x4x256xbf16>
    %500 = vector.shape_cast %499 : vector<1x4x256xbf16> to vector<4x256xbf16>
    %cst_467 = arith.constant dense<0.000000e+00> : vector<8x256xf32>
    %501 = tpu.matmul %498, %500, %cst_467 {dimension_numbers = #tpu.dot_dimension_numbers<[1], [0], [0], [1], [0, 0, 1, 1], [], []>} : vector<8x4xbf16>, vector<4x256xbf16>, vector<8x256xf32> -> vector<8x256xf32>
    %502 = arith.addf %496, %501 : vector<8x256xf32>
    %c24_468 = arith.constant 24 : index
    %c0_469 = arith.constant 0 : index
    %c0_470 = arith.constant 0 : index
    %503 = vector.load %arg2[%c24_468, %c0_469, %c0_470] : memref<27x8x4xbf16, #tpu.memory_space<vmem>>, vector<1x8x4xbf16>
    %504 = vector.shape_cast %503 : vector<1x8x4xbf16> to vector<8x4xbf16>
    %c0_471 = arith.constant 0 : index
    %c0_472 = arith.constant 0 : index
    %c732 = arith.constant 732 : index
    %505 = vector.load %arg1[%c0_471, %c0_472, %c732] : memref<1x4x1118xbf16, #tpu.memory_space<vmem>>, vector<1x4x256xbf16>
    %506 = vector.shape_cast %505 : vector<1x4x256xbf16> to vector<4x256xbf16>
    %cst_473 = arith.constant dense<0.000000e+00> : vector<8x256xf32>
    %507 = tpu.matmul %504, %506, %cst_473 {dimension_numbers = #tpu.dot_dimension_numbers<[1], [0], [0], [1], [0, 0, 1, 1], [], []>} : vector<8x4xbf16>, vector<4x256xbf16>, vector<8x256xf32> -> vector<8x256xf32>
    %508 = arith.addf %502, %507 : vector<8x256xf32>
    %c25_474 = arith.constant 25 : index
    %c0_475 = arith.constant 0 : index
    %c0_476 = arith.constant 0 : index
    %509 = vector.load %arg2[%c25_474, %c0_475, %c0_476] : memref<27x8x4xbf16, #tpu.memory_space<vmem>>, vector<1x8x4xbf16>
    %510 = vector.shape_cast %509 : vector<1x8x4xbf16> to vector<8x4xbf16>
    %c0_477 = arith.constant 0 : index
    %c0_478 = arith.constant 0 : index
    %c733 = arith.constant 733 : index
    %511 = vector.load %arg1[%c0_477, %c0_478, %c733] : memref<1x4x1118xbf16, #tpu.memory_space<vmem>>, vector<1x4x256xbf16>
    %512 = vector.shape_cast %511 : vector<1x4x256xbf16> to vector<4x256xbf16>
    %cst_479 = arith.constant dense<0.000000e+00> : vector<8x256xf32>
    %513 = tpu.matmul %510, %512, %cst_479 {dimension_numbers = #tpu.dot_dimension_numbers<[1], [0], [0], [1], [0, 0, 1, 1], [], []>} : vector<8x4xbf16>, vector<4x256xbf16>, vector<8x256xf32> -> vector<8x256xf32>
    %514 = arith.addf %508, %513 : vector<8x256xf32>
    %c26_480 = arith.constant 26 : index
    %c0_481 = arith.constant 0 : index
    %c0_482 = arith.constant 0 : index
    %515 = vector.load %arg2[%c26_480, %c0_481, %c0_482] : memref<27x8x4xbf16, #tpu.memory_space<vmem>>, vector<1x8x4xbf16>
    %516 = vector.shape_cast %515 : vector<1x8x4xbf16> to vector<8x4xbf16>
    %c0_483 = arith.constant 0 : index
    %c0_484 = arith.constant 0 : index
    %c734 = arith.constant 734 : index
    %517 = vector.load %arg1[%c0_483, %c0_484, %c734] : memref<1x4x1118xbf16, #tpu.memory_space<vmem>>, vector<1x4x256xbf16>
    %518 = vector.shape_cast %517 : vector<1x4x256xbf16> to vector<4x256xbf16>
    %cst_485 = arith.constant dense<0.000000e+00> : vector<8x256xf32>
    %519 = tpu.matmul %516, %518, %cst_485 {dimension_numbers = #tpu.dot_dimension_numbers<[1], [0], [0], [1], [0, 0, 1, 1], [], []>} : vector<8x4xbf16>, vector<4x256xbf16>, vector<8x256xf32> -> vector<8x256xf32>
    %520 = arith.addf %514, %519 : vector<8x256xf32>
    %c0_486 = arith.constant 0 : index
    %c512_487 = arith.constant 512 : index
    %521 = vector.load %arg4[%c0_486, %c512_487] : memref<1x896xbf16, #tpu.memory_space<vmem>>, vector<1x256xbf16>
    %522 = arith.extf %521 : vector<1x256xbf16> to vector<1x256xf32>
    %523 = vector.broadcast %522 : vector<1x256xf32> to vector<8x256xf32>
    %524 = arith.mulf %520, %523 : vector<8x256xf32>
    %cst_488 = arith.constant dense<0.000000e+00> : vector<8xf32>
    %525 = vector.multi_reduction <add>, %524, %cst_488 [1] : vector<8x256xf32> to vector<8xf32>
    %526 = vector.shape_cast %525 : vector<8xf32> to vector<8x1xf32>
    %527 = arith.addf %349, %526 : vector<8x1xf32>
    %528 = arith.mulf %524, %520 : vector<8x256xf32>
    %cst_489 = arith.constant dense<0.000000e+00> : vector<8xf32>
    %529 = vector.multi_reduction <add>, %528, %cst_489 [1] : vector<8x256xf32> to vector<8xf32>
    %530 = vector.shape_cast %529 : vector<8xf32> to vector<8x1xf32>
    %531 = arith.addf %353, %530 : vector<8x1xf32>
    %532 = arith.truncf %520 : vector<8x256xf32> to vector<8x256xbf16>
    %c0_490 = arith.constant 0 : index
    %c0_491 = arith.constant 0 : index
    %c512_492 = arith.constant 512 : index
    %533 = vector.load %arg5[%c0_490, %c0_491, %c512_492] : memref<1x8x896xbf16, #tpu.memory_space<vmem>>, vector<1x8x256xbf16>
    %534 = vector.shape_cast %533 : vector<1x8x256xbf16> to vector<8x256xbf16>
    %535 = vector.shape_cast %532 : vector<8x256xbf16> to vector<1x8x256xbf16>
    tpu.vector_store %arg5[%c0_490, %c0_491, %c512_492], %535 {strides = array<i32>} : memref<1x8x896xbf16, #tpu.memory_space<vmem>>, vector<1x8x256xbf16>,
    %cst_493 = arith.constant 0.000000e+00 : f32
    %536 = vector.broadcast %cst_493 : f32 to vector<8x128xf32>
    %c0_494 = arith.constant 0 : index
    %c0_495 = arith.constant 0 : index
    %c0_496 = arith.constant 0 : index
    %537 = vector.load %arg2[%c0_494, %c0_495, %c0_496] : memref<27x8x4xbf16, #tpu.memory_space<vmem>>, vector<1x8x4xbf16>
    %538 = vector.shape_cast %537 : vector<1x8x4xbf16> to vector<8x4xbf16>
    %c0_497 = arith.constant 0 : index
    %c0_498 = arith.constant 0 : index
    %c768 = arith.constant 768 : index
    %539 = vector.load %arg1[%c0_497, %c0_498, %c768] : memref<1x4x1118xbf16, #tpu.memory_space<vmem>>, vector<1x4x128xbf16>
    %540 = vector.shape_cast %539 : vector<1x4x128xbf16> to vector<4x128xbf16>
    %cst_499 = arith.constant dense<0.000000e+00> : vector<8x128xf32>
    %541 = tpu.matmul %538, %540, %cst_499 {dimension_numbers = #tpu.dot_dimension_numbers<[1], [0], [0], [1], [0, 0, 1, 1], [], []>} : vector<8x4xbf16>, vector<4x128xbf16>, vector<8x128xf32> -> vector<8x128xf32>
    %542 = arith.addf %536, %541 : vector<8x128xf32>
    %c1_500 = arith.constant 1 : index
    %c0_501 = arith.constant 0 : index
    %c0_502 = arith.constant 0 : index
    %543 = vector.load %arg2[%c1_500, %c0_501, %c0_502] : memref<27x8x4xbf16, #tpu.memory_space<vmem>>, vector<1x8x4xbf16>
    %544 = vector.shape_cast %543 : vector<1x8x4xbf16> to vector<8x4xbf16>
    %c0_503 = arith.constant 0 : index
    %c0_504 = arith.constant 0 : index
    %c769 = arith.constant 769 : index
    %545 = vector.load %arg1[%c0_503, %c0_504, %c769] : memref<1x4x1118xbf16, #tpu.memory_space<vmem>>, vector<1x4x128xbf16>
    %546 = vector.shape_cast %545 : vector<1x4x128xbf16> to vector<4x128xbf16>
    %cst_505 = arith.constant dense<0.000000e+00> : vector<8x128xf32>
    %547 = tpu.matmul %544, %546, %cst_505 {dimension_numbers = #tpu.dot_dimension_numbers<[1], [0], [0], [1], [0, 0, 1, 1], [], []>} : vector<8x4xbf16>, vector<4x128xbf16>, vector<8x128xf32> -> vector<8x128xf32>
    %548 = arith.addf %542, %547 : vector<8x128xf32>
    %c2_506 = arith.constant 2 : index
    %c0_507 = arith.constant 0 : index
    %c0_508 = arith.constant 0 : index
    %549 = vector.load %arg2[%c2_506, %c0_507, %c0_508] : memref<27x8x4xbf16, #tpu.memory_space<vmem>>, vector<1x8x4xbf16>
    %550 = vector.shape_cast %549 : vector<1x8x4xbf16> to vector<8x4xbf16>
    %c0_509 = arith.constant 0 : index
    %c0_510 = arith.constant 0 : index
    %c770 = arith.constant 770 : index
    %551 = vector.load %arg1[%c0_509, %c0_510, %c770] : memref<1x4x1118xbf16, #tpu.memory_space<vmem>>, vector<1x4x128xbf16>
    %552 = vector.shape_cast %551 : vector<1x4x128xbf16> to vector<4x128xbf16>
    %cst_511 = arith.constant dense<0.000000e+00> : vector<8x128xf32>
    %553 = tpu.matmul %550, %552, %cst_511 {dimension_numbers = #tpu.dot_dimension_numbers<[1], [0], [0], [1], [0, 0, 1, 1], [], []>} : vector<8x4xbf16>, vector<4x128xbf16>, vector<8x128xf32> -> vector<8x128xf32>
    %554 = arith.addf %548, %553 : vector<8x128xf32>
    %c3_512 = arith.constant 3 : index
    %c0_513 = arith.constant 0 : index
    %c0_514 = arith.constant 0 : index
    %555 = vector.load %arg2[%c3_512, %c0_513, %c0_514] : memref<27x8x4xbf16, #tpu.memory_space<vmem>>, vector<1x8x4xbf16>
    %556 = vector.shape_cast %555 : vector<1x8x4xbf16> to vector<8x4xbf16>
    %c0_515 = arith.constant 0 : index
    %c0_516 = arith.constant 0 : index
    %c778 = arith.constant 778 : index
    %557 = vector.load %arg1[%c0_515, %c0_516, %c778] : memref<1x4x1118xbf16, #tpu.memory_space<vmem>>, vector<1x4x128xbf16>
    %558 = vector.shape_cast %557 : vector<1x4x128xbf16> to vector<4x128xbf16>
    %cst_517 = arith.constant dense<0.000000e+00> : vector<8x128xf32>
    %559 = tpu.matmul %556, %558, %cst_517 {dimension_numbers = #tpu.dot_dimension_numbers<[1], [0], [0], [1], [0, 0, 1, 1], [], []>} : vector<8x4xbf16>, vector<4x128xbf16>, vector<8x128xf32> -> vector<8x128xf32>
    %560 = arith.addf %554, %559 : vector<8x128xf32>
    %c4_518 = arith.constant 4 : index
    %c0_519 = arith.constant 0 : index
    %c0_520 = arith.constant 0 : index
    %561 = vector.load %arg2[%c4_518, %c0_519, %c0_520] : memref<27x8x4xbf16, #tpu.memory_space<vmem>>, vector<1x8x4xbf16>
    %562 = vector.shape_cast %561 : vector<1x8x4xbf16> to vector<8x4xbf16>
    %c0_521 = arith.constant 0 : index
    %c0_522 = arith.constant 0 : index
    %c779 = arith.constant 779 : index
    %563 = vector.load %arg1[%c0_521, %c0_522, %c779] : memref<1x4x1118xbf16, #tpu.memory_space<vmem>>, vector<1x4x128xbf16>
    %564 = vector.shape_cast %563 : vector<1x4x128xbf16> to vector<4x128xbf16>
    %cst_523 = arith.constant dense<0.000000e+00> : vector<8x128xf32>
    %565 = tpu.matmul %562, %564, %cst_523 {dimension_numbers = #tpu.dot_dimension_numbers<[1], [0], [0], [1], [0, 0, 1, 1], [], []>} : vector<8x4xbf16>, vector<4x128xbf16>, vector<8x128xf32> -> vector<8x128xf32>
    %566 = arith.addf %560, %565 : vector<8x128xf32>
    %c5_524 = arith.constant 5 : index
    %c0_525 = arith.constant 0 : index
    %c0_526 = arith.constant 0 : index
    %567 = vector.load %arg2[%c5_524, %c0_525, %c0_526] : memref<27x8x4xbf16, #tpu.memory_space<vmem>>, vector<1x8x4xbf16>
    %568 = vector.shape_cast %567 : vector<1x8x4xbf16> to vector<8x4xbf16>
    %c0_527 = arith.constant 0 : index
    %c0_528 = arith.constant 0 : index
    %c780 = arith.constant 780 : index
    %569 = vector.load %arg1[%c0_527, %c0_528, %c780] : memref<1x4x1118xbf16, #tpu.memory_space<vmem>>, vector<1x4x128xbf16>
    %570 = vector.shape_cast %569 : vector<1x4x128xbf16> to vector<4x128xbf16>
    %cst_529 = arith.constant dense<0.000000e+00> : vector<8x128xf32>
    %571 = tpu.matmul %568, %570, %cst_529 {dimension_numbers = #tpu.dot_dimension_numbers<[1], [0], [0], [1], [0, 0, 1, 1], [], []>} : vector<8x4xbf16>, vector<4x128xbf16>, vector<8x128xf32> -> vector<8x128xf32>
    %572 = arith.addf %566, %571 : vector<8x128xf32>
    %c6_530 = arith.constant 6 : index
    %c0_531 = arith.constant 0 : index
    %c0_532 = arith.constant 0 : index
    %573 = vector.load %arg2[%c6_530, %c0_531, %c0_532] : memref<27x8x4xbf16, #tpu.memory_space<vmem>>, vector<1x8x4xbf16>
    %574 = vector.shape_cast %573 : vector<1x8x4xbf16> to vector<8x4xbf16>
    %c0_533 = arith.constant 0 : index
    %c0_534 = arith.constant 0 : index
    %c788 = arith.constant 788 : index
    %575 = vector.load %arg1[%c0_533, %c0_534, %c788] : memref<1x4x1118xbf16, #tpu.memory_space<vmem>>, vector<1x4x128xbf16>
    %576 = vector.shape_cast %575 : vector<1x4x128xbf16> to vector<4x128xbf16>
    %cst_535 = arith.constant dense<0.000000e+00> : vector<8x128xf32>
    %577 = tpu.matmul %574, %576, %cst_535 {dimension_numbers = #tpu.dot_dimension_numbers<[1], [0], [0], [1], [0, 0, 1, 1], [], []>} : vector<8x4xbf16>, vector<4x128xbf16>, vector<8x128xf32> -> vector<8x128xf32>
    %578 = arith.addf %572, %577 : vector<8x128xf32>
    %c7_536 = arith.constant 7 : index
    %c0_537 = arith.constant 0 : index
    %c0_538 = arith.constant 0 : index
    %579 = vector.load %arg2[%c7_536, %c0_537, %c0_538] : memref<27x8x4xbf16, #tpu.memory_space<vmem>>, vector<1x8x4xbf16>
    %580 = vector.shape_cast %579 : vector<1x8x4xbf16> to vector<8x4xbf16>
    %c0_539 = arith.constant 0 : index
    %c0_540 = arith.constant 0 : index
    %c789 = arith.constant 789 : index
    %581 = vector.load %arg1[%c0_539, %c0_540, %c789] : memref<1x4x1118xbf16, #tpu.memory_space<vmem>>, vector<1x4x128xbf16>
    %582 = vector.shape_cast %581 : vector<1x4x128xbf16> to vector<4x128xbf16>
    %cst_541 = arith.constant dense<0.000000e+00> : vector<8x128xf32>
    %583 = tpu.matmul %580, %582, %cst_541 {dimension_numbers = #tpu.dot_dimension_numbers<[1], [0], [0], [1], [0, 0, 1, 1], [], []>} : vector<8x4xbf16>, vector<4x128xbf16>, vector<8x128xf32> -> vector<8x128xf32>
    %584 = arith.addf %578, %583 : vector<8x128xf32>
    %c8_542 = arith.constant 8 : index
    %c0_543 = arith.constant 0 : index
    %c0_544 = arith.constant 0 : index
    %585 = vector.load %arg2[%c8_542, %c0_543, %c0_544] : memref<27x8x4xbf16, #tpu.memory_space<vmem>>, vector<1x8x4xbf16>
    %586 = vector.shape_cast %585 : vector<1x8x4xbf16> to vector<8x4xbf16>
    %c0_545 = arith.constant 0 : index
    %c0_546 = arith.constant 0 : index
    %c790 = arith.constant 790 : index
    %587 = vector.load %arg1[%c0_545, %c0_546, %c790] : memref<1x4x1118xbf16, #tpu.memory_space<vmem>>, vector<1x4x128xbf16>
    %588 = vector.shape_cast %587 : vector<1x4x128xbf16> to vector<4x128xbf16>
    %cst_547 = arith.constant dense<0.000000e+00> : vector<8x128xf32>
    %589 = tpu.matmul %586, %588, %cst_547 {dimension_numbers = #tpu.dot_dimension_numbers<[1], [0], [0], [1], [0, 0, 1, 1], [], []>} : vector<8x4xbf16>, vector<4x128xbf16>, vector<8x128xf32> -> vector<8x128xf32>
    %590 = arith.addf %584, %589 : vector<8x128xf32>
    %c9_548 = arith.constant 9 : index
    %c0_549 = arith.constant 0 : index
    %c0_550 = arith.constant 0 : index
    %591 = vector.load %arg2[%c9_548, %c0_549, %c0_550] : memref<27x8x4xbf16, #tpu.memory_space<vmem>>, vector<1x8x4xbf16>
    %592 = vector.shape_cast %591 : vector<1x8x4xbf16> to vector<8x4xbf16>
    %c0_551 = arith.constant 0 : index
    %c0_552 = arith.constant 0 : index
    %c868 = arith.constant 868 : index
    %593 = vector.load %arg1[%c0_551, %c0_552, %c868] : memref<1x4x1118xbf16, #tpu.memory_space<vmem>>, vector<1x4x128xbf16>
    %594 = vector.shape_cast %593 : vector<1x4x128xbf16> to vector<4x128xbf16>
    %cst_553 = arith.constant dense<0.000000e+00> : vector<8x128xf32>
    %595 = tpu.matmul %592, %594, %cst_553 {dimension_numbers = #tpu.dot_dimension_numbers<[1], [0], [0], [1], [0, 0, 1, 1], [], []>} : vector<8x4xbf16>, vector<4x128xbf16>, vector<8x128xf32> -> vector<8x128xf32>
    %596 = arith.addf %590, %595 : vector<8x128xf32>
    %c10_554 = arith.constant 10 : index
    %c0_555 = arith.constant 0 : index
    %c0_556 = arith.constant 0 : index
    %597 = vector.load %arg2[%c10_554, %c0_555, %c0_556] : memref<27x8x4xbf16, #tpu.memory_space<vmem>>, vector<1x8x4xbf16>
    %598 = vector.shape_cast %597 : vector<1x8x4xbf16> to vector<8x4xbf16>
    %c0_557 = arith.constant 0 : index
    %c0_558 = arith.constant 0 : index
    %c869 = arith.constant 869 : index
    %599 = vector.load %arg1[%c0_557, %c0_558, %c869] : memref<1x4x1118xbf16, #tpu.memory_space<vmem>>, vector<1x4x128xbf16>
    %600 = vector.shape_cast %599 : vector<1x4x128xbf16> to vector<4x128xbf16>
    %cst_559 = arith.constant dense<0.000000e+00> : vector<8x128xf32>
    %601 = tpu.matmul %598, %600, %cst_559 {dimension_numbers = #tpu.dot_dimension_numbers<[1], [0], [0], [1], [0, 0, 1, 1], [], []>} : vector<8x4xbf16>, vector<4x128xbf16>, vector<8x128xf32> -> vector<8x128xf32>
    %602 = arith.addf %596, %601 : vector<8x128xf32>
    %c11_560 = arith.constant 11 : index
    %c0_561 = arith.constant 0 : index
    %c0_562 = arith.constant 0 : index
    %603 = vector.load %arg2[%c11_560, %c0_561, %c0_562] : memref<27x8x4xbf16, #tpu.memory_space<vmem>>, vector<1x8x4xbf16>
    %604 = vector.shape_cast %603 : vector<1x8x4xbf16> to vector<8x4xbf16>
    %c0_563 = arith.constant 0 : index
    %c0_564 = arith.constant 0 : index
    %c870 = arith.constant 870 : index
    %605 = vector.load %arg1[%c0_563, %c0_564, %c870] : memref<1x4x1118xbf16, #tpu.memory_space<vmem>>, vector<1x4x128xbf16>
    %606 = vector.shape_cast %605 : vector<1x4x128xbf16> to vector<4x128xbf16>
    %cst_565 = arith.constant dense<0.000000e+00> : vector<8x128xf32>
    %607 = tpu.matmul %604, %606, %cst_565 {dimension_numbers = #tpu.dot_dimension_numbers<[1], [0], [0], [1], [0, 0, 1, 1], [], []>} : vector<8x4xbf16>, vector<4x128xbf16>, vector<8x128xf32> -> vector<8x128xf32>
    %608 = arith.addf %602, %607 : vector<8x128xf32>
    %c12_566 = arith.constant 12 : index
    %c0_567 = arith.constant 0 : index
    %c0_568 = arith.constant 0 : index
    %609 = vector.load %arg2[%c12_566, %c0_567, %c0_568] : memref<27x8x4xbf16, #tpu.memory_space<vmem>>, vector<1x8x4xbf16>
    %610 = vector.shape_cast %609 : vector<1x8x4xbf16> to vector<8x4xbf16>
    %c0_569 = arith.constant 0 : index
    %c0_570 = arith.constant 0 : index
    %c878 = arith.constant 878 : index
    %611 = vector.load %arg1[%c0_569, %c0_570, %c878] : memref<1x4x1118xbf16, #tpu.memory_space<vmem>>, vector<1x4x128xbf16>
    %612 = vector.shape_cast %611 : vector<1x4x128xbf16> to vector<4x128xbf16>
    %cst_571 = arith.constant dense<0.000000e+00> : vector<8x128xf32>
    %613 = tpu.matmul %610, %612, %cst_571 {dimension_numbers = #tpu.dot_dimension_numbers<[1], [0], [0], [1], [0, 0, 1, 1], [], []>} : vector<8x4xbf16>, vector<4x128xbf16>, vector<8x128xf32> -> vector<8x128xf32>
    %614 = arith.addf %608, %613 : vector<8x128xf32>
    %c13_572 = arith.constant 13 : index
    %c0_573 = arith.constant 0 : index
    %c0_574 = arith.constant 0 : index
    %615 = vector.load %arg2[%c13_572, %c0_573, %c0_574] : memref<27x8x4xbf16, #tpu.memory_space<vmem>>, vector<1x8x4xbf16>
    %616 = vector.shape_cast %615 : vector<1x8x4xbf16> to vector<8x4xbf16>
    %c0_575 = arith.constant 0 : index
    %c0_576 = arith.constant 0 : index
    %c879 = arith.constant 879 : index
    %617 = vector.load %arg1[%c0_575, %c0_576, %c879] : memref<1x4x1118xbf16, #tpu.memory_space<vmem>>, vector<1x4x128xbf16>
    %618 = vector.shape_cast %617 : vector<1x4x128xbf16> to vector<4x128xbf16>
    %cst_577 = arith.constant dense<0.000000e+00> : vector<8x128xf32>
    %619 = tpu.matmul %616, %618, %cst_577 {dimension_numbers = #tpu.dot_dimension_numbers<[1], [0], [0], [1], [0, 0, 1, 1], [], []>} : vector<8x4xbf16>, vector<4x128xbf16>, vector<8x128xf32> -> vector<8x128xf32>
    %620 = arith.addf %614, %619 : vector<8x128xf32>
    %c14_578 = arith.constant 14 : index
    %c0_579 = arith.constant 0 : index
    %c0_580 = arith.constant 0 : index
    %621 = vector.load %arg2[%c14_578, %c0_579, %c0_580] : memref<27x8x4xbf16, #tpu.memory_space<vmem>>, vector<1x8x4xbf16>
    %622 = vector.shape_cast %621 : vector<1x8x4xbf16> to vector<8x4xbf16>
    %c0_581 = arith.constant 0 : index
    %c0_582 = arith.constant 0 : index
    %c880 = arith.constant 880 : index
    %623 = vector.load %arg1[%c0_581, %c0_582, %c880] : memref<1x4x1118xbf16, #tpu.memory_space<vmem>>, vector<1x4x128xbf16>
    %624 = vector.shape_cast %623 : vector<1x4x128xbf16> to vector<4x128xbf16>
    %cst_583 = arith.constant dense<0.000000e+00> : vector<8x128xf32>
    %625 = tpu.matmul %622, %624, %cst_583 {dimension_numbers = #tpu.dot_dimension_numbers<[1], [0], [0], [1], [0, 0, 1, 1], [], []>} : vector<8x4xbf16>, vector<4x128xbf16>, vector<8x128xf32> -> vector<8x128xf32>
    %626 = arith.addf %620, %625 : vector<8x128xf32>
    %c15_584 = arith.constant 15 : index
    %c0_585 = arith.constant 0 : index
    %c0_586 = arith.constant 0 : index
    %627 = vector.load %arg2[%c15_584, %c0_585, %c0_586] : memref<27x8x4xbf16, #tpu.memory_space<vmem>>, vector<1x8x4xbf16>
    %628 = vector.shape_cast %627 : vector<1x8x4xbf16> to vector<8x4xbf16>
    %c0_587 = arith.constant 0 : index
    %c0_588 = arith.constant 0 : index
    %c888 = arith.constant 888 : index
    %629 = vector.load %arg1[%c0_587, %c0_588, %c888] : memref<1x4x1118xbf16, #tpu.memory_space<vmem>>, vector<1x4x128xbf16>
    %630 = vector.shape_cast %629 : vector<1x4x128xbf16> to vector<4x128xbf16>
    %cst_589 = arith.constant dense<0.000000e+00> : vector<8x128xf32>
    %631 = tpu.matmul %628, %630, %cst_589 {dimension_numbers = #tpu.dot_dimension_numbers<[1], [0], [0], [1], [0, 0, 1, 1], [], []>} : vector<8x4xbf16>, vector<4x128xbf16>, vector<8x128xf32> -> vector<8x128xf32>
    %632 = arith.addf %626, %631 : vector<8x128xf32>
    %c16_590 = arith.constant 16 : index
    %c0_591 = arith.constant 0 : index
    %c0_592 = arith.constant 0 : index
    %633 = vector.load %arg2[%c16_590, %c0_591, %c0_592] : memref<27x8x4xbf16, #tpu.memory_space<vmem>>, vector<1x8x4xbf16>
    %634 = vector.shape_cast %633 : vector<1x8x4xbf16> to vector<8x4xbf16>
    %c0_593 = arith.constant 0 : index
    %c0_594 = arith.constant 0 : index
    %c889 = arith.constant 889 : index
    %635 = vector.load %arg1[%c0_593, %c0_594, %c889] : memref<1x4x1118xbf16, #tpu.memory_space<vmem>>, vector<1x4x128xbf16>
    %636 = vector.shape_cast %635 : vector<1x4x128xbf16> to vector<4x128xbf16>
    %cst_595 = arith.constant dense<0.000000e+00> : vector<8x128xf32>
    %637 = tpu.matmul %634, %636, %cst_595 {dimension_numbers = #tpu.dot_dimension_numbers<[1], [0], [0], [1], [0, 0, 1, 1], [], []>} : vector<8x4xbf16>, vector<4x128xbf16>, vector<8x128xf32> -> vector<8x128xf32>
    %638 = arith.addf %632, %637 : vector<8x128xf32>
    %c17_596 = arith.constant 17 : index
    %c0_597 = arith.constant 0 : index
    %c0_598 = arith.constant 0 : index
    %639 = vector.load %arg2[%c17_596, %c0_597, %c0_598] : memref<27x8x4xbf16, #tpu.memory_space<vmem>>, vector<1x8x4xbf16>
    %640 = vector.shape_cast %639 : vector<1x8x4xbf16> to vector<8x4xbf16>
    %c0_599 = arith.constant 0 : index
    %c0_600 = arith.constant 0 : index
    %c890 = arith.constant 890 : index
    %641 = vector.load %arg1[%c0_599, %c0_600, %c890] : memref<1x4x1118xbf16, #tpu.memory_space<vmem>>, vector<1x4x128xbf16>
    %642 = vector.shape_cast %641 : vector<1x4x128xbf16> to vector<4x128xbf16>
    %cst_601 = arith.constant dense<0.000000e+00> : vector<8x128xf32>
    %643 = tpu.matmul %640, %642, %cst_601 {dimension_numbers = #tpu.dot_dimension_numbers<[1], [0], [0], [1], [0, 0, 1, 1], [], []>} : vector<8x4xbf16>, vector<4x128xbf16>, vector<8x128xf32> -> vector<8x128xf32>
    %644 = arith.addf %638, %643 : vector<8x128xf32>
    %c18_602 = arith.constant 18 : index
    %c0_603 = arith.constant 0 : index
    %c0_604 = arith.constant 0 : index
    %645 = vector.load %arg2[%c18_602, %c0_603, %c0_604] : memref<27x8x4xbf16, #tpu.memory_space<vmem>>, vector<1x8x4xbf16>
    %646 = vector.shape_cast %645 : vector<1x8x4xbf16> to vector<8x4xbf16>
    %c0_605 = arith.constant 0 : index
    %c0_606 = arith.constant 0 : index
    %c968 = arith.constant 968 : index
    %647 = vector.load %arg1[%c0_605, %c0_606, %c968] : memref<1x4x1118xbf16, #tpu.memory_space<vmem>>, vector<1x4x128xbf16>
    %648 = vector.shape_cast %647 : vector<1x4x128xbf16> to vector<4x128xbf16>
    %cst_607 = arith.constant dense<0.000000e+00> : vector<8x128xf32>
    %649 = tpu.matmul %646, %648, %cst_607 {dimension_numbers = #tpu.dot_dimension_numbers<[1], [0], [0], [1], [0, 0, 1, 1], [], []>} : vector<8x4xbf16>, vector<4x128xbf16>, vector<8x128xf32> -> vector<8x128xf32>
    %650 = arith.addf %644, %649 : vector<8x128xf32>
    %c19_608 = arith.constant 19 : index
    %c0_609 = arith.constant 0 : index
    %c0_610 = arith.constant 0 : index
    %651 = vector.load %arg2[%c19_608, %c0_609, %c0_610] : memref<27x8x4xbf16, #tpu.memory_space<vmem>>, vector<1x8x4xbf16>
    %652 = vector.shape_cast %651 : vector<1x8x4xbf16> to vector<8x4xbf16>
    %c0_611 = arith.constant 0 : index
    %c0_612 = arith.constant 0 : index
    %c969 = arith.constant 969 : index
    %653 = vector.load %arg1[%c0_611, %c0_612, %c969] : memref<1x4x1118xbf16, #tpu.memory_space<vmem>>, vector<1x4x128xbf16>
    %654 = vector.shape_cast %653 : vector<1x4x128xbf16> to vector<4x128xbf16>
    %cst_613 = arith.constant dense<0.000000e+00> : vector<8x128xf32>
    %655 = tpu.matmul %652, %654, %cst_613 {dimension_numbers = #tpu.dot_dimension_numbers<[1], [0], [0], [1], [0, 0, 1, 1], [], []>} : vector<8x4xbf16>, vector<4x128xbf16>, vector<8x128xf32> -> vector<8x128xf32>
    %656 = arith.addf %650, %655 : vector<8x128xf32>
    %c20_614 = arith.constant 20 : index
    %c0_615 = arith.constant 0 : index
    %c0_616 = arith.constant 0 : index
    %657 = vector.load %arg2[%c20_614, %c0_615, %c0_616] : memref<27x8x4xbf16, #tpu.memory_space<vmem>>, vector<1x8x4xbf16>
    %658 = vector.shape_cast %657 : vector<1x8x4xbf16> to vector<8x4xbf16>
    %c0_617 = arith.constant 0 : index
    %c0_618 = arith.constant 0 : index
    %c970 = arith.constant 970 : index
    %659 = vector.load %arg1[%c0_617, %c0_618, %c970] : memref<1x4x1118xbf16, #tpu.memory_space<vmem>>, vector<1x4x128xbf16>
    %660 = vector.shape_cast %659 : vector<1x4x128xbf16> to vector<4x128xbf16>
    %cst_619 = arith.constant dense<0.000000e+00> : vector<8x128xf32>
    %661 = tpu.matmul %658, %660, %cst_619 {dimension_numbers = #tpu.dot_dimension_numbers<[1], [0], [0], [1], [0, 0, 1, 1], [], []>} : vector<8x4xbf16>, vector<4x128xbf16>, vector<8x128xf32> -> vector<8x128xf32>
    %662 = arith.addf %656, %661 : vector<8x128xf32>
    %c21_620 = arith.constant 21 : index
    %c0_621 = arith.constant 0 : index
    %c0_622 = arith.constant 0 : index
    %663 = vector.load %arg2[%c21_620, %c0_621, %c0_622] : memref<27x8x4xbf16, #tpu.memory_space<vmem>>, vector<1x8x4xbf16>
    %664 = vector.shape_cast %663 : vector<1x8x4xbf16> to vector<8x4xbf16>
    %c0_623 = arith.constant 0 : index
    %c0_624 = arith.constant 0 : index
    %c978 = arith.constant 978 : index
    %665 = vector.load %arg1[%c0_623, %c0_624, %c978] : memref<1x4x1118xbf16, #tpu.memory_space<vmem>>, vector<1x4x128xbf16>
    %666 = vector.shape_cast %665 : vector<1x4x128xbf16> to vector<4x128xbf16>
    %cst_625 = arith.constant dense<0.000000e+00> : vector<8x128xf32>
    %667 = tpu.matmul %664, %666, %cst_625 {dimension_numbers = #tpu.dot_dimension_numbers<[1], [0], [0], [1], [0, 0, 1, 1], [], []>} : vector<8x4xbf16>, vector<4x128xbf16>, vector<8x128xf32> -> vector<8x128xf32>
    %668 = arith.addf %662, %667 : vector<8x128xf32>
    %c22_626 = arith.constant 22 : index
    %c0_627 = arith.constant 0 : index
    %c0_628 = arith.constant 0 : index
    %669 = vector.load %arg2[%c22_626, %c0_627, %c0_628] : memref<27x8x4xbf16, #tpu.memory_space<vmem>>, vector<1x8x4xbf16>
    %670 = vector.shape_cast %669 : vector<1x8x4xbf16> to vector<8x4xbf16>
    %c0_629 = arith.constant 0 : index
    %c0_630 = arith.constant 0 : index
    %c979 = arith.constant 979 : index
    %671 = vector.load %arg1[%c0_629, %c0_630, %c979] : memref<1x4x1118xbf16, #tpu.memory_space<vmem>>, vector<1x4x128xbf16>
    %672 = vector.shape_cast %671 : vector<1x4x128xbf16> to vector<4x128xbf16>
    %cst_631 = arith.constant dense<0.000000e+00> : vector<8x128xf32>
    %673 = tpu.matmul %670, %672, %cst_631 {dimension_numbers = #tpu.dot_dimension_numbers<[1], [0], [0], [1], [0, 0, 1, 1], [], []>} : vector<8x4xbf16>, vector<4x128xbf16>, vector<8x128xf32> -> vector<8x128xf32>
    %674 = arith.addf %668, %673 : vector<8x128xf32>
    %c23_632 = arith.constant 23 : index
    %c0_633 = arith.constant 0 : index
    %c0_634 = arith.constant 0 : index
    %675 = vector.load %arg2[%c23_632, %c0_633, %c0_634] : memref<27x8x4xbf16, #tpu.memory_space<vmem>>, vector<1x8x4xbf16>
    %676 = vector.shape_cast %675 : vector<1x8x4xbf16> to vector<8x4xbf16>
    %c0_635 = arith.constant 0 : index
    %c0_636 = arith.constant 0 : index
    %c980 = arith.constant 980 : index
    %677 = vector.load %arg1[%c0_635, %c0_636, %c980] : memref<1x4x1118xbf16, #tpu.memory_space<vmem>>, vector<1x4x128xbf16>
    %678 = vector.shape_cast %677 : vector<1x4x128xbf16> to vector<4x128xbf16>
    %cst_637 = arith.constant dense<0.000000e+00> : vector<8x128xf32>
    %679 = tpu.matmul %676, %678, %cst_637 {dimension_numbers = #tpu.dot_dimension_numbers<[1], [0], [0], [1], [0, 0, 1, 1], [], []>} : vector<8x4xbf16>, vector<4x128xbf16>, vector<8x128xf32> -> vector<8x128xf32>
    %680 = arith.addf %674, %679 : vector<8x128xf32>
    %c24_638 = arith.constant 24 : index
    %c0_639 = arith.constant 0 : index
    %c0_640 = arith.constant 0 : index
    %681 = vector.load %arg2[%c24_638, %c0_639, %c0_640] : memref<27x8x4xbf16, #tpu.memory_space<vmem>>, vector<1x8x4xbf16>
    %682 = vector.shape_cast %681 : vector<1x8x4xbf16> to vector<8x4xbf16>
    %c0_641 = arith.constant 0 : index
    %c0_642 = arith.constant 0 : index
    %c988 = arith.constant 988 : index
    %683 = vector.load %arg1[%c0_641, %c0_642, %c988] : memref<1x4x1118xbf16, #tpu.memory_space<vmem>>, vector<1x4x128xbf16>
    %684 = vector.shape_cast %683 : vector<1x4x128xbf16> to vector<4x128xbf16>
    %cst_643 = arith.constant dense<0.000000e+00> : vector<8x128xf32>
    %685 = tpu.matmul %682, %684, %cst_643 {dimension_numbers = #tpu.dot_dimension_numbers<[1], [0], [0], [1], [0, 0, 1, 1], [], []>} : vector<8x4xbf16>, vector<4x128xbf16>, vector<8x128xf32> -> vector<8x128xf32>
    %686 = arith.addf %680, %685 : vector<8x128xf32>
    %c25_644 = arith.constant 25 : index
    %c0_645 = arith.constant 0 : index
    %c0_646 = arith.constant 0 : index
    %687 = vector.load %arg2[%c25_644, %c0_645, %c0_646] : memref<27x8x4xbf16, #tpu.memory_space<vmem>>, vector<1x8x4xbf16>
    %688 = vector.shape_cast %687 : vector<1x8x4xbf16> to vector<8x4xbf16>
    %c0_647 = arith.constant 0 : index
    %c0_648 = arith.constant 0 : index
    %c989 = arith.constant 989 : index
    %689 = vector.load %arg1[%c0_647, %c0_648, %c989] : memref<1x4x1118xbf16, #tpu.memory_space<vmem>>, vector<1x4x128xbf16>
    %690 = vector.shape_cast %689 : vector<1x4x128xbf16> to vector<4x128xbf16>
    %cst_649 = arith.constant dense<0.000000e+00> : vector<8x128xf32>
    %691 = tpu.matmul %688, %690, %cst_649 {dimension_numbers = #tpu.dot_dimension_numbers<[1], [0], [0], [1], [0, 0, 1, 1], [], []>} : vector<8x4xbf16>, vector<4x128xbf16>, vector<8x128xf32> -> vector<8x128xf32>
    %692 = arith.addf %686, %691 : vector<8x128xf32>
    %c26_650 = arith.constant 26 : index
    %c0_651 = arith.constant 0 : index
    %c0_652 = arith.constant 0 : index
    %693 = vector.load %arg2[%c26_650, %c0_651, %c0_652] : memref<27x8x4xbf16, #tpu.memory_space<vmem>>, vector<1x8x4xbf16>
    %694 = vector.shape_cast %693 : vector<1x8x4xbf16> to vector<8x4xbf16>
    %c0_653 = arith.constant 0 : index
    %c0_654 = arith.constant 0 : index
    %c990 = arith.constant 990 : index
    %695 = vector.load %arg1[%c0_653, %c0_654, %c990] : memref<1x4x1118xbf16, #tpu.memory_space<vmem>>, vector<1x4x128xbf16>
    %696 = vector.shape_cast %695 : vector<1x4x128xbf16> to vector<4x128xbf16>
    %cst_655 = arith.constant dense<0.000000e+00> : vector<8x128xf32>
    %697 = tpu.matmul %694, %696, %cst_655 {dimension_numbers = #tpu.dot_dimension_numbers<[1], [0], [0], [1], [0, 0, 1, 1], [], []>} : vector<8x4xbf16>, vector<4x128xbf16>, vector<8x128xf32> -> vector<8x128xf32>
    %698 = arith.addf %692, %697 : vector<8x128xf32>
    %c0_656 = arith.constant 0 : index
    %c768_657 = arith.constant 768 : index
    %699 = vector.load %arg4[%c0_656, %c768_657] : memref<1x896xbf16, #tpu.memory_space<vmem>>, vector<1x128xbf16>
    %700 = arith.extf %699 : vector<1x128xbf16> to vector<1x128xf32>
    %701 = vector.broadcast %700 : vector<1x128xf32> to vector<8x128xf32>
    %702 = arith.mulf %698, %701 : vector<8x128xf32>
    %cst_658 = arith.constant dense<0.000000e+00> : vector<8xf32>
    %703 = vector.multi_reduction <add>, %702, %cst_658 [1] : vector<8x128xf32> to vector<8xf32>
    %704 = vector.shape_cast %703 : vector<8xf32> to vector<8x1xf32>
    %705 = arith.addf %527, %704 : vector<8x1xf32>
    %706 = arith.mulf %702, %698 : vector<8x128xf32>
    %cst_659 = arith.constant dense<0.000000e+00> : vector<8xf32>
    %707 = vector.multi_reduction <add>, %706, %cst_659 [1] : vector<8x128xf32> to vector<8xf32>
    %708 = vector.shape_cast %707 : vector<8xf32> to vector<8x1xf32>
    %709 = arith.addf %531, %708 : vector<8x1xf32>
    %710 = arith.truncf %698 : vector<8x128xf32> to vector<8x128xbf16>
    %c0_660 = arith.constant 0 : index
    %c0_661 = arith.constant 0 : index
    %c768_662 = arith.constant 768 : index
    %711 = vector.load %arg5[%c0_660, %c0_661, %c768_662] : memref<1x8x896xbf16, #tpu.memory_space<vmem>>, vector<1x8x128xbf16>
    %712 = vector.shape_cast %711 : vector<1x8x128xbf16> to vector<8x128xbf16>
    %713 = vector.shape_cast %710 : vector<8x128xbf16> to vector<1x8x128xbf16>
    tpu.vector_store %arg5[%c0_660, %c0_661, %c768_662], %713 {strides = array<i32>} : memref<1x8x896xbf16, #tpu.memory_space<vmem>>, vector<1x8x128xbf16>,
    %cst_663 = arith.constant 0.001953125 : f32
    %714 = vector.broadcast %cst_663 : f32 to vector<8x1xf32>
    %715 = arith.mulf %705, %714 : vector<8x1xf32>
    %cst_664 = arith.constant 0.001953125 : f32
    %716 = vector.broadcast %cst_664 : f32 to vector<8x1xf32>
    %717 = arith.mulf %709, %716 : vector<8x1xf32>
    %718 = arith.mulf %715, %715 : vector<8x1xf32>
    %719 = arith.subf %717, %718 : vector<8x1xf32>
    %cst_665 = arith.constant 0.000000e+00 : f32
    %720 = vector.broadcast %cst_665 : f32 to vector<8x1xf32>
    %721 = arith.maximumf %719, %720 : vector<8x1xf32>
    %c0_666 = arith.constant 0 : index
    %c0_667 = arith.constant 0 : index
    %722 = vector.load %arg3[%c0_666, %c0_667] : memref<8x3xf32, #tpu.memory_space<vmem>>, vector<8x1xf32>
    %c0_668 = arith.constant 0 : index
    %c1_669 = arith.constant 1 : index
    %723 = vector.load %arg3[%c0_668, %c1_669] : memref<8x3xf32, #tpu.memory_space<vmem>>, vector<8x1xf32>
    %c0_670 = arith.constant 0 : index
    %c2_671 = arith.constant 2 : index
    %724 = vector.load %arg3[%c0_670, %c2_671] : memref<8x3xf32, #tpu.memory_space<vmem>>, vector<8x1xf32>
    %cst_672 = arith.constant 9.99999974E-6 : f32
    %725 = vector.broadcast %cst_672 : f32 to vector<8x1xf32>
    %726 = arith.addf %721, %725 : vector<8x1xf32>
    %727 = math.rsqrt %726 : vector<8x1xf32>
    %728 = arith.mulf %722, %727 : vector<8x1xf32>
    %729 = arith.mulf %715, %728 : vector<8x1xf32>
    %730 = arith.subf %723, %729 : vector<8x1xf32>
    %731 = arith.truncf %728 : vector<8x1xf32> to vector<8x1xbf16>
    %732 = arith.truncf %730 : vector<8x1xf32> to vector<8x1xbf16>
    %733 = arith.truncf %724 : vector<8x1xf32> to vector<8x1xbf16>
    %c0_673 = arith.constant 0 : index
    %c0_674 = arith.constant 0 : index
    %c0_675 = arith.constant 0 : index
    %734 = vector.load %arg5[%c0_673, %c0_674, %c0_675] : memref<1x8x896xbf16, #tpu.memory_space<vmem>>, vector<1x8x256xbf16>
    %735 = vector.shape_cast %734 : vector<1x8x256xbf16> to vector<8x256xbf16>
    %736 = vector.broadcast %731 : vector<8x1xbf16> to vector<8x256xbf16>
    %737 = arith.mulf %735, %736 : vector<8x256xbf16>
    %738 = vector.broadcast %732 : vector<8x1xbf16> to vector<8x256xbf16>
    %739 = arith.addf %737, %738 : vector<8x256xbf16>
    %cst_676 = arith.constant 0.000000e+00 : bf16
    %740 = vector.broadcast %cst_676 : bf16 to vector<8x256xbf16>
    %741 = arith.cmpf oge, %739, %740 : vector<8x256xbf16>
    %742 = vector.broadcast %733 : vector<8x1xbf16> to vector<8x256xbf16>
    %743 = arith.mulf %742, %739 : vector<8x256xbf16>
    %744 = arith.select %741, %739, %743 : vector<8x256xi1>, vector<8x256xbf16>
    %c0_677 = arith.constant 0 : index
    %c0_678 = arith.constant 0 : index
    %c0_679 = arith.constant 0 : index
    %745 = vector.load %arg5[%c0_677, %c0_678, %c0_679] : memref<1x8x896xbf16, #tpu.memory_space<vmem>>, vector<1x8x256xbf16>
    %746 = vector.shape_cast %745 : vector<1x8x256xbf16> to vector<8x256xbf16>
    %747 = vector.shape_cast %744 : vector<8x256xbf16> to vector<1x8x256xbf16>
    tpu.vector_store %arg5[%c0_677, %c0_678, %c0_679], %747 {strides = array<i32>} : memref<1x8x896xbf16, #tpu.memory_space<vmem>>, vector<1x8x256xbf16>,
    %c0_680 = arith.constant 0 : index
    %c0_681 = arith.constant 0 : index
    %c256_682 = arith.constant 256 : index
    %748 = vector.load %arg5[%c0_680, %c0_681, %c256_682] : memref<1x8x896xbf16, #tpu.memory_space<vmem>>, vector<1x8x256xbf16>
    %749 = vector.shape_cast %748 : vector<1x8x256xbf16> to vector<8x256xbf16>
    %750 = vector.broadcast %731 : vector<8x1xbf16> to vector<8x256xbf16>
    %751 = arith.mulf %749, %750 : vector<8x256xbf16>
    %752 = vector.broadcast %732 : vector<8x1xbf16> to vector<8x256xbf16>
    %753 = arith.addf %751, %752 : vector<8x256xbf16>
    %cst_683 = arith.constant 0.000000e+00 : bf16
    %754 = vector.broadcast %cst_683 : bf16 to vector<8x256xbf16>
    %755 = arith.cmpf oge, %753, %754 : vector<8x256xbf16>
    %756 = vector.broadcast %733 : vector<8x1xbf16> to vector<8x256xbf16>
    %757 = arith.mulf %756, %753 : vector<8x256xbf16>
    %758 = arith.select %755, %753, %757 : vector<8x256xi1>, vector<8x256xbf16>
    %c0_684 = arith.constant 0 : index
    %c0_685 = arith.constant 0 : index
    %c256_686 = arith.constant 256 : index
    %759 = vector.load %arg5[%c0_684, %c0_685, %c256_686] : memref<1x8x896xbf16, #tpu.memory_space<vmem>>, vector<1x8x256xbf16>
    %760 = vector.shape_cast %759 : vector<1x8x256xbf16> to vector<8x256xbf16>
    %761 = vector.shape_cast %758 : vector<8x256xbf16> to vector<1x8x256xbf16>
    tpu.vector_store %arg5[%c0_684, %c0_685, %c256_686], %761 {strides = array<i32>} : memref<1x8x896xbf16, #tpu.memory_space<vmem>>, vector<1x8x256xbf16>,
    %c0_687 = arith.constant 0 : index
    %c0_688 = arith.constant 0 : index
    %c512_689 = arith.constant 512 : index
    %762 = vector.load %arg5[%c0_687, %c0_688, %c512_689] : memref<1x8x896xbf16, #tpu.memory_space<vmem>>, vector<1x8x256xbf16>
    %763 = vector.shape_cast %762 : vector<1x8x256xbf16> to vector<8x256xbf16>
    %764 = vector.broadcast %731 : vector<8x1xbf16> to vector<8x256xbf16>
    %765 = arith.mulf %763, %764 : vector<8x256xbf16>
    %766 = vector.broadcast %732 : vector<8x1xbf16> to vector<8x256xbf16>
    %767 = arith.addf %765, %766 : vector<8x256xbf16>
    %cst_690 = arith.constant 0.000000e+00 : bf16
    %768 = vector.broadcast %cst_690 : bf16 to vector<8x256xbf16>
    %769 = arith.cmpf oge, %767, %768 : vector<8x256xbf16>
    %770 = vector.broadcast %733 : vector<8x1xbf16> to vector<8x256xbf16>
    %771 = arith.mulf %770, %767 : vector<8x256xbf16>
    %772 = arith.select %769, %767, %771 : vector<8x256xi1>, vector<8x256xbf16>
    %c0_691 = arith.constant 0 : index
    %c0_692 = arith.constant 0 : index
    %c512_693 = arith.constant 512 : index
    %773 = vector.load %arg5[%c0_691, %c0_692, %c512_693] : memref<1x8x896xbf16, #tpu.memory_space<vmem>>, vector<1x8x256xbf16>
    %774 = vector.shape_cast %773 : vector<1x8x256xbf16> to vector<8x256xbf16>
    %775 = vector.shape_cast %772 : vector<8x256xbf16> to vector<1x8x256xbf16>
    tpu.vector_store %arg5[%c0_691, %c0_692, %c512_693], %775 {strides = array<i32>} : memref<1x8x896xbf16, #tpu.memory_space<vmem>>, vector<1x8x256xbf16>,
    %c0_694 = arith.constant 0 : index
    %c0_695 = arith.constant 0 : index
    %c768_696 = arith.constant 768 : index
    %776 = vector.load %arg5[%c0_694, %c0_695, %c768_696] : memref<1x8x896xbf16, #tpu.memory_space<vmem>>, vector<1x8x128xbf16>
    %777 = vector.shape_cast %776 : vector<1x8x128xbf16> to vector<8x128xbf16>
    %778 = vector.broadcast %731 : vector<8x1xbf16> to vector<8x128xbf16>
    %779 = arith.mulf %777, %778 : vector<8x128xbf16>
    %780 = vector.broadcast %732 : vector<8x1xbf16> to vector<8x128xbf16>
    %781 = arith.addf %779, %780 : vector<8x128xbf16>
    %cst_697 = arith.constant 0.000000e+00 : bf16
    %782 = vector.broadcast %cst_697 : bf16 to vector<8x128xbf16>
    %783 = arith.cmpf oge, %781, %782 : vector<8x128xbf16>
    %784 = vector.broadcast %733 : vector<8x1xbf16> to vector<8x128xbf16>
    %785 = arith.mulf %784, %781 : vector<8x128xbf16>
    %786 = arith.select %783, %781, %785 : vector<8x128xi1>, vector<8x128xbf16>
    %c0_698 = arith.constant 0 : index
    %c0_699 = arith.constant 0 : index
    %c768_700 = arith.constant 768 : index
    %787 = vector.load %arg5[%c0_698, %c0_699, %c768_700] : memref<1x8x896xbf16, #tpu.memory_space<vmem>>, vector<1x8x128xbf16>
    %788 = vector.shape_cast %787 : vector<1x8x128xbf16> to vector<8x128xbf16>
    %789 = vector.shape_cast %786 : vector<8x128xbf16> to vector<1x8x128xbf16>
    tpu.vector_store %arg5[%c0_698, %c0_699, %c768_700], %789 {strides = array<i32>} : memref<1x8x896xbf16, #tpu.memory_space<vmem>>, vector<1x8x128xbf16>,
    return
  }
  func.func @transform_0(%arg0: i32) -> (i32, i32, i32) {
    %c0_i32 = arith.constant 0 : i32
    %c0_i32_0 = arith.constant 0 : i32
    %c0_i32_1 = arith.constant 0 : i32
    return %arg0, %c0_i32, %c0_i32_0 : i32, i32, i32
  }
  func.func @transform_1(%arg0: i32) -> (i32, i32, i32) {
    %c0_i32 = arith.constant 0 : i32
    %c0_i32_0 = arith.constant 0 : i32
    %c0_i32_1 = arith.constant 0 : i32
    %c0_i32_2 = arith.constant 0 : i32
    return %c0_i32, %c0_i32_0, %c0_i32_1 : i32, i32, i32
  }
  func.func @transform_2(%arg0: i32) -> (i32, i32) {
    %c0_i32 = arith.constant 0 : i32
    %c0_i32_0 = arith.constant 0 : i32
    %c0_i32_1 = arith.constant 0 : i32
    return %c0_i32, %c0_i32_0 : i32, i32
  }
  func.func @transform_3(%arg0: i32) -> (i32, i32) {
    %c0_i32 = arith.constant 0 : i32
    %c0_i32_0 = arith.constant 0 : i32
    %c0_i32_1 = arith.constant 0 : i32
    return %c0_i32, %c0_i32_0 : i32, i32
  }
  func.func @transform_4(%arg0: i32) -> (i32, i32, i32) {
    %c0_i32 = arith.constant 0 : i32
    %c0_i32_0 = arith.constant 0 : i32
    %c0_i32_1 = arith.constant 0 : i32
    return %arg0, %c0_i32, %c0_i32_0 : i32, i32, i32
  }
}

</mosaic_0001>

<llo_original>
// kernel: tpu_custom_call.1
$region0: #{tpu_custom_call.1}
  #allocation0 [shape = 'u32[]', space=smem, size = 0x4, offset = 0x4, fixed_abs, tag = 'smem constant byte address 0x4 - core index']
  #allocation1 [shape = 'u32[144,128]{1,0:T(1,128)}', space=vmem, size = 0x12000, scoped, tag = 'internal scratch']
  %s0 = inlined_call_operand.vmem [shape: bf16[2,4,1118], index: 0, kind: input, shape index: {}]
  %s1 = inlined_call_operand.vmem [shape: bf16[27,8,4], index: 1, kind: input, shape index: {}]
  %s2 = inlined_call_operand.vmem [shape: f32[8,3], index: 2, kind: input, shape index: {}]
  %s3 = inlined_call_operand.vmem [shape: bf16[1,896], index: 3, kind: input, shape index: {}]
  %s4 = inlined_call_operand.hbm [shape: bf16[2,8,896], index: 4, kind: output, shape index: {}]
  %s5 = sld [smem:[#allocation0]]
  $region49: #{tpu_custom_call.1} parent=0
    _
  %s7 = ssub.s32 1, %s5
  %s8 = scalar_select 0, %s7, %s5
  $region1: #{tpu_custom_call.1} parent=0
    #allocation2 [shape = 'u8[28672]{0}', space=vmem, size = 0x7000, scoped, tag = 'output window, operand 0']
    #allocation3 [shape = 's32[2]{0}', space=sflag, size = 0x8, scoped, tag = 'scoped memory for tpu_custom_call.1']
    %9 = vsyncpa [#allocation3], 0
    %s10 = scalar_lea.sflag [#allocation3], 1
    %11 = vsyncpa %s10, 0
    loop: start=0, step=1, limit=4
    $region2: #{tpu_custom_call.1} parent=1 // loop_pre_header
      _
    $region3: #{tpu_custom_call.1} parent=1 // loop_header
      %s13 = sphi 0, %s17
      %p14 = scmp.ge.s32.totalorder %s13, 4
      %s23 = sphi 0, %s25
      %s26 = sphi 0, %s23
      %s27 = sphi 0, %s26
      %s43 = sphi 0, %s27
      %s47 = sphi 0, %s47
      %s49 = sphi 0, %s47
      %s50 = sphi 0, %s49
      %s64 = sphi 0, %s50
      %s68 = sphi 0, %s68
      %s70 = sphi 0, %s68
      %s71 = sphi 0, %s70
      %s85 = sphi 0, %s71
      %s89 = sphi 0, %s89
      %s91 = sphi 0, %s89
      %s92 = sphi 0, %s91
      %s106 = sphi 0, %s92
      %s112 = sphi 0, %s114
      %s115 = sphi 0, %s112
      %s116 = sphi 0, %s115
      %s132 = sphi 0, %s116
    $region4: #{tpu_custom_call.1} parent=1 // loop_header_branch
      %16 = sbr.rel (%p14) target = $region8
    $region5: #{tpu_custom_call.1} parent=1 // loop_body
      %s18 = ssub.s32 %s13, 1
      %s19 = ssub.s32 %s13, 2
      %s20 = sadd.s32 %s13, 1
      %s21 = ssub.s32 %s13, %s20
      %p22 = scmp.eq.s32.totalorder %s21, 0
      %s24 = sadd.s32 %s23, 1
      %s25 = scalar_select %p22, %s23, %s24
      %p28 = pneg %p22
      %p29 = scmp.eq.s32.totalorder %s13, 1
      %p30 = por %p28, %p29
      %p31 = scmp.ne.s32.totalorder %s23, %s26
      %p32 = scmp.eq.s32.totalorder %s13, 0
      %p33 = por %p31, %p32
      %p34 = scmp.ne.s32.totalorder %s23, %s26
      %p35 = scmp.eq.s32.totalorder %s18, 1
      %p36 = por %p34, %p35
      %p37 = scmp.ne.s32.totalorder %s26, %s27
      %p38 = scmp.eq.s32.totalorder %s18, 0
      %p39 = por %p37, %p38
      %p40 = scmp.ne.s32.totalorder %s26, %s27
      %p41 = scmp.eq.s32.totalorder %s19, 1
      %p42 = por %p40, %p41
      %p44 = scmp.ne.s32.totalorder %s27, %s43
      %p45 = scmp.eq.s32.totalorder %s19, 0
      %p46 = por %p44, %p45
      %s48 = sadd.s32 %s47, 1
      %p51 = scmp.eq.s32.totalorder %s13, 1
      %p52 = scmp.ne.s32.totalorder %s47, %s49
      %p53 = scmp.eq.s32.totalorder %s13, 0
      %p54 = por %p52, %p53
      %p55 = scmp.ne.s32.totalorder %s47, %s49
      %p56 = scmp.eq.s32.totalorder %s18, 1
      %p57 = por %p55, %p56
      %p58 = scmp.ne.s32.totalorder %s49, %s50
      %p59 = scmp.eq.s32.totalorder %s18, 0
      %p60 = por %p58, %p59
      %p61 = scmp.ne.s32.totalorder %s49, %s50
      %p62 = scmp.eq.s32.totalorder %s19, 1
      %p63 = por %p61, %p62
      %p65 = scmp.ne.s32.totalorder %s50, %s64
      %p66 = scmp.eq.s32.totalorder %s19, 0
      %p67 = por %p65, %p66
      %s69 = sadd.s32 %s68, 1
      %p72 = scmp.eq.s32.totalorder %s13, 1
      %p73 = scmp.ne.s32.totalorder %s68, %s70
      %p74 = scmp.eq.s32.totalorder %s13, 0
      %p75 = por %p73, %p74
      %p76 = scmp.ne.s32.totalorder %s68, %s70
      %p77 = scmp.eq.s32.totalorder %s18, 1
      %p78 = por %p76, %p77
      %p79 = scmp.ne.s32.totalorder %s70, %s71
      %p80 = scmp.eq.s32.totalorder %s18, 0
      %p81 = por %p79, %p80
      %p82 = scmp.ne.s32.totalorder %s70, %s71
      %p83 = scmp.eq.s32.totalorder %s19, 1
      %p84 = por %p82, %p83
      %p86 = scmp.ne.s32.totalorder %s71, %s85
      %p87 = scmp.eq.s32.totalorder %s19, 0
      %p88 = por %p86, %p87
      %s90 = sadd.s32 %s89, 1
      %p93 = scmp.eq.s32.totalorder %s13, 1
      %p94 = scmp.ne.s32.totalorder %s89, %s91
      %p95 = scmp.eq.s32.totalorder %s13, 0
      %p96 = por %p94, %p95
      %p97 = scmp.ne.s32.totalorder %s89, %s91
      %p98 = scmp.eq.s32.totalorder %s18, 1
      %p99 = por %p97, %p98
      %p100 = scmp.ne.s32.totalorder %s91, %s92
      %p101 = scmp.eq.s32.totalorder %s18, 0
      %p102 = por %p100, %p101
      %p103 = scmp.ne.s32.totalorder %s91, %s92
      %p104 = scmp.eq.s32.totalorder %s19, 1
      %p105 = por %p103, %p104
      %p107 = scmp.ne.s32.totalorder %s92, %s106
      %p108 = scmp.eq.s32.totalorder %s19, 0
      %p109 = por %p107, %p108
      %s110 = ssub.s32 %s13, %s20
      %p111 = scmp.eq.s32.totalorder %s110, 0
      %s113 = sadd.s32 %s112, 1
      %s114 = scalar_select %p111, %s112, %s113
      %p117 = pneg %p111
      %p118 = scmp.eq.s32.totalorder %s13, 1
      %p119 = por %p117, %p118
      %p120 = scmp.ne.s32.totalorder %s112, %s115
      %p121 = scmp.eq.s32.totalorder %s13, 0
      %p122 = por %p120, %p121
      %p123 = scmp.ne.s32.totalorder %s112, %s115
      %p124 = scmp.eq.s32.totalorder %s18, 1
      %p125 = por %p123, %p124
      %p126 = scmp.ne.s32.totalorder %s115, %s116
      %p127 = scmp.eq.s32.totalorder %s18, 0
      %p128 = por %p126, %p127
      %p129 = scmp.ne.s32.totalorder %s115, %s116
      %p130 = scmp.eq.s32.totalorder %s19, 1
      %p131 = por %p129, %p130
      %p133 = scmp.ne.s32.totalorder %s116, %s132
      %p134 = scmp.eq.s32.totalorder %s19, 0
      %p135 = por %p133, %p134
      %p136 = scmp.le.s32.totalorder 1, %s13
      %p137 = scmp.lt.s32.totalorder %s13, 3
      %p138 = pnand %p136, %p137
      %p139 = pneg %p138
      // Predicated region
      $region9: #{tpu_custom_call.1} parent=5 // pred_check
        _
      $region10: #{tpu_custom_call.1} parent=5 // pred_check_branch
        %141 = sbr.rel (%p138) target = $region12
      $region11: #{tpu_custom_call.1} parent=5 // pred_region
        %s142 = ssub.s32 %s13, 1
        // Predicated region
        $region13: #{tpu_custom_call.1} parent=11 // pred_check
          %p143 = pneg %p60
        $region14: #{tpu_custom_call.1} parent=11 // pred_check_branch
          %145 = sbr.rel (%p143) target = $region16
        $region15: #{tpu_custom_call.1} parent=11 // pred_region
          _
        $region16: #{tpu_custom_call.1} parent=11 // pred_fallthru
          _
        // Predicated region
        $region17: #{tpu_custom_call.1} parent=11 // pred_check
          %p146 = pneg %p81
        $region18: #{tpu_custom_call.1} parent=11 // pred_check_branch
          %148 = sbr.rel (%p146) target = $region20
        $region19: #{tpu_custom_call.1} parent=11 // pred_region
          _
        $region20: #{tpu_custom_call.1} parent=11 // pred_fallthru
          _
        // Predicated region
        $region21: #{tpu_custom_call.1} parent=11 // pred_check
          %p149 = pneg %p102
        $region22: #{tpu_custom_call.1} parent=11 // pred_check_branch
          %151 = sbr.rel (%p149) target = $region24
        $region23: #{tpu_custom_call.1} parent=11 // pred_region
          _
        $region24: #{tpu_custom_call.1} parent=11 // pred_fallthru
          _
      $region12: #{tpu_custom_call.1} parent=5 // pred_fallthru
        _
      %p152 = scmp.lt.s32.totalorder %s13, 2
      // Predicated region
      $region25: #{tpu_custom_call.1} parent=5 // pred_check
        %p153 = pneg %p152
      $region26: #{tpu_custom_call.1} parent=5 // pred_check_branch
        %155 = sbr.rel (%p153) target = $region28
      $region27: #{tpu_custom_call.1} parent=5 // pred_region
        // Predicated region
        $region29: #{tpu_custom_call.1} parent=27 // pred_check
          %p156 = pneg %p33
        $region30: #{tpu_custom_call.1} parent=27 // pred_check_branch
          %158 = sbr.rel (%p156) target = $region32
        $region31: #{tpu_custom_call.1} parent=27 // pred_region
          %p159 = scmp.lt.s32.totalorder %s13, 1
          %s160 = scalar_select %p159, %s13, 1
          %s161 = smul.addr %s160, 9
          %s162 = smul.addr %s161, 2
          %s163 = scalar_lea.vmem %s0, %s162
        $region32: #{tpu_custom_call.1} parent=27 // pred_fallthru
          _
      $region28: #{tpu_custom_call.1} parent=5 // pred_fallthru
        _
      %p164 = scmp.le.s32.totalorder 1, %s13
      %p165 = scmp.lt.s32.totalorder %s13, 3
      %p166 = pnand %p164, %p165
      %p167 = pneg %p166
      // Predicated region
      $region33: #{tpu_custom_call.1} parent=5 // pred_check
        _
      $region34: #{tpu_custom_call.1} parent=5 // pred_check_branch
        %169 = sbr.rel (%p166) target = $region36
      $region35: #{tpu_custom_call.1} parent=5 // pred_region
        %s170 = ssub.s32 %s13, 1
        %p171 = scmp.lt.s32.totalorder %s18, 1
        %s172 = scalar_select %p171, %s18, 1
        %s173 = smul.addr %s172, 9
        %s174 = smul.addr %s173, 2
        %s175 = scalar_lea.vmem %s0, %s174
        %p176 = pneg %p39
        %p177 = pneg %p36
        %p178 = pneg %p60
        %p179 = pneg %p57
        %p180 = pneg %p81
        %p181 = pneg %p78
        %p182 = pneg %p102
        %p183 = pneg %p99
        %p184 = pneg %p128
        %p185 = pneg %p125
        %s186 = sand.u32 %s115, 1
        %s187 = scalar_lea.sflag [#allocation3], %s186
        %s188 = sand.u32 %s115, 1
        %s189 = smul.addr %s188, 28
        %s190 = scalar_lea.vmem [#allocation2], %s189
        %p191 = scmp.lt.s32.totalorder %s18, 1
        %s192 = scalar_select %p191, %s18, 1
        %s193 = smul.addr %s192, 9
        %s194 = smul.addr %s193, 2
        %s195 = scalar_lea.vmem %s0, %s194
        %v197 = vld [vmem:[%s1] sm:$0xf]
        %v198 = vld [vmem:[%s195] sm:$0xf]
        %s199 = scalar_lea.vmem %s1, 4
        %v200 = vld [vmem:[%s199] sm:$0xf]
        %v201 = vld [vmem:[%s195] sm:$0x3f]
        %v203 = vcombine.high %v201, %v201
        %v205 = vunpack.c.l.s4 1983009808
        %v206 = vunpack.c.0.s8 %v205
        %v207 = vlaneseq
        %v208 = vshrl.u32 %v207, 7
        %v209 = vsub.s32 %v206, %v208
        %v210 = vrot.slane %v201, %v209
        %v212 = vunpack.c.l.s4 1983009808
        %v213 = vunpack.c.0.s8 %v212
        %v214 = vlaneseq
        %v215 = vshrl.u32 %v214, 7
        %v216 = vsub.s32 %v213, %v215
        %v217 = vrot.slane %v203, %v216
        %v218 = vcombine.high %v210, %v210
        %219 = vrot.lane.b32.xlu0 %v210, 127
        %v220 = vpop.permute.xlu0 %219
        %221 = vrot.lane.b32.xlu0 %v218, 127
        %v222 = vpop.permute.xlu0 %221
        %223 = vrot.lane.b32.xlu0 %v217, 127
        %v224 = vpop.permute.xlu0 %223
        %vm225 = vcmask 1039360
        %v226 = vsel %vm225, %v220, %v222
        %v227 = vsel %vm225, %v222, %v224
        %vm228 = vcmask 31744
        %v230 = vsel %vm228, %v200, 0
        %vm232 = vcmask 1041408
        %v234 = vsel %vm232, %v226, 0
        %v237 = vsel %vm232, %v227, 0
        %239 = vmatprep.subr.bf16.mxu0 0
        %240 = vmatpush1.bf16.msra.mxu0 0
        %241 = vmatprep.subr.bf16.mxu0 0
        %242 = vmatpush1.bf16.msra.mxu0 0
        %243 = vmatprep.subr.bf16.mxu0 0
        %244 = vmatpush1.bf16.msra.mxu0 0
        %245 = vmatprep.subr.bf16.mxu0 0
        %246 = vmatpush1.bf16.msra.mxu0 0
        %247 = vmatprep.subr.bf16.mxu0 0
        %248 = vmatpush1.bf16.msra.mxu0 0
        %249 = vmatprep.subr.bf16.mxu0 0
        %250 = vmatpush1.bf16.msra.mxu0 0
        %251 = vmatprep.subr.bf16.mxu0 0
        %252 = vmatpush1.bf16.msra.mxu0 0
        %253 = vmatprep.subr.bf16.mxu0 %v237
        %254 = vmatpush1.bf16.msra.mxu0 %v234
        %255 = vmatprep.subr.bf16.mxu0 0
        %256 = vmatpush2.bf16.msra.mxu0 0
        %257 = vmatprep.subr.bf16.mxu0 0
        %258 = vmatpush2.bf16.msra.mxu0 0
        %259 = vmatprep.subr.bf16.mxu0 0
        %260 = vmatpush2.bf16.msra.mxu0 0
        %261 = vmatprep.subr.bf16.mxu0 0
        %262 = vmatpush2.bf16.msra.mxu0 0
        %263 = vmatprep.subr.bf16.mxu0 0
        %264 = vmatpush2.bf16.msra.mxu0 0
        %265 = vmatprep.subr.bf16.mxu0 0
        %266 = vmatpush2.bf16.msra.mxu0 0
        %267 = vmatprep.subr.bf16.mxu0 0
        %268 = vmatpush2.bf16.msra.mxu0 0
        %269 = vmatprep.subr.bf16.mxu0 0
        %270 = vmatpush2.bf16.msra.mxu0 0
        %271 = vmatprep.mubr.bf16.mxu0 0
        %272 = vmatmul.mubr.bf16.gmra.mxu0 %v230
        %v273 = vpop.f32.mrf.mxu0
        %v274 = vadd.f32 0.0, %v273
        %v275 = vpop.f32.mrf.mxu0
        %v276 = vadd.f32 0.0, %v275
        %v277 = vpop.f32.mrf.mxu0
        %v278 = vpop.f32.mrf.mxu0
        %279 = vdwg.mxu0
        %v282 = vunpack.c.l.s4 1983009808
        %v283 = vunpack.c.0.s8 %v282
        %v284 = vlaneseq
        %v285 = vshrl.u32 %v284, 7
        %v286 = vsub.s32 %v283, %v285
        %v287 = vrot.slane %v198, %v286
        %v288 = vcombine.high %v287, %v287
        %v290 = vsel %vm228, %v197, 0
        %v293 = vsel %vm232, %v287, 0
        %v296 = vsel %vm232, %v288, 0
        %298 = vmatprep.subr.bf16.mxu0 0
        %299 = vmatpush1.bf16.msra.mxu0 0
        %300 = vmatprep.subr.bf16.mxu0 0
        %301 = vmatpush1.bf16.msra.mxu0 0
        %302 = vmatprep.subr.bf16.mxu0 0
        %303 = vmatpush1.bf16.msra.mxu0 0
        %304 = vmatprep.subr.bf16.mxu0 0
        %305 = vmatpush1.bf16.msra.mxu0 0
        %306 = vmatprep.subr.bf16.mxu0 0
        %307 = vmatpush1.bf16.msra.mxu0 0
        %308 = vmatprep.subr.bf16.mxu0 0
        %309 = vmatpush1.bf16.msra.mxu0 0
        %310 = vmatprep.subr.bf16.mxu0 0
        %311 = vmatpush1.bf16.msra.mxu0 0
        %312 = vmatprep.subr.bf16.mxu0 %v296
        %313 = vmatpush1.bf16.msra.mxu0 %v293
        %314 = vmatprep.subr.bf16.mxu0 0
        %315 = vmatpush2.bf16.msra.mxu0 0
        %316 = vmatprep.subr.bf16.mxu0 0
        %317 = vmatpush2.bf16.msra.mxu0 0
        %318 = vmatprep.subr.bf16.mxu0 0
        %319 = vmatpush2.bf16.msra.mxu0 0
        %320 = vmatprep.subr.bf16.mxu0 0
        %321 = vmatpush2.bf16.msra.mxu0 0
        %322 = vmatprep.subr.bf16.mxu0 0
        %323 = vmatpush2.bf16.msra.mxu0 0
        %324 = vmatprep.subr.bf16.mxu0 0
        %325 = vmatpush2.bf16.msra.mxu0 0
        %326 = vmatprep.subr.bf16.mxu0 0
        %327 = vmatpush2.bf16.msra.mxu0 0
        %328 = vmatprep.subr.bf16.mxu0 0
        %329 = vmatpush2.bf16.msra.mxu0 0
        %330 = vmatprep.mubr.bf16.mxu0 0
        %331 = vmatmul.mubr.bf16.gmra.mxu0 %v290
        %v332 = vpop.f32.mrf.mxu0
        %v333 = vadd.f32 %v274, %v332
        %v334 = vpop.f32.mrf.mxu0
        %v335 = vadd.f32 %v276, %v334
        %v336 = vpop.f32.mrf.mxu0
        %v337 = vpop.f32.mrf.mxu0
        %338 = vdwg.mxu0
        %s339 = scalar_lea.vmem %s1, 8
        %v340 = vld [vmem:[%s339] sm:$0xf]
        %v341 = vld [vmem:[%s195] sm:$0x3f]
        %v343 = vcombine.high %v341, %v341
        %v345 = vunpack.c.l.s4 1983009808
        %v346 = vunpack.c.0.s8 %v345
        %v347 = vlaneseq
        %v348 = vshrl.u32 %v347, 7
        %v349 = vsub.s32 %v346, %v348
        %v350 = vrot.slane %v341, %v349
        %v352 = vunpack.c.l.s4 1983009808
        %v353 = vunpack.c.0.s8 %v352
        %v354 = vlaneseq
        %v355 = vshrl.u32 %v354, 7
        %v356 = vsub.s32 %v353, %v355
        %v357 = vrot.slane %v343, %v356
        %v358 = vcombine.high %v350, %v350
        %359 = vrot.lane.b32.xlu0 %v350, 126
        %v360 = vpop.permute.xlu0 %359
        %361 = vrot.lane.b32.xlu0 %v358, 126
        %v362 = vpop.permute.xlu0 %361
        %363 = vrot.lane.b32.xlu0 %v357, 126
        %v364 = vpop.permute.xlu0 %363
        %vm365 = vcmask 1031168
        %v366 = vsel %vm365, %v360, %v362
        %v367 = vsel %vm365, %v362, %v364
        %v369 = vsel %vm228, %v340, 0
        %v372 = vsel %vm232, %v366, 0
        %v375 = vsel %vm232, %v367, 0
        %377 = vmatprep.subr.bf16.mxu0 0
        %378 = vmatpush1.bf16.msra.mxu0 0
        %379 = vmatprep.subr.bf16.mxu0 0
        %380 = vmatpush1.bf16.msra.mxu0 0
        %381 = vmatprep.subr.bf16.mxu0 0
        %382 = vmatpush1.bf16.msra.mxu0 0
        %383 = vmatprep.subr.bf16.mxu0 0
        %384 = vmatpush1.bf16.msra.mxu0 0
        %385 = vmatprep.subr.bf16.mxu0 0
        %386 = vmatpush1.bf16.msra.mxu0 0
        %387 = vmatprep.subr.bf16.mxu0 0
        %388 = vmatpush1.bf16.msra.mxu0 0
        %389 = vmatprep.subr.bf16.mxu0 0
        %390 = vmatpush1.bf16.msra.mxu0 0
        %391 = vmatprep.subr.bf16.mxu0 %v375
        %392 = vmatpush1.bf16.msra.mxu0 %v372
        %393 = vmatprep.subr.bf16.mxu0 0
        %394 = vmatpush2.bf16.msra.mxu0 0
        %395 = vmatprep.subr.bf16.mxu0 0
        %396 = vmatpush2.bf16.msra.mxu0 0
        %397 = vmatprep.subr.bf16.mxu0 0
        %398 = vmatpush2.bf16.msra.mxu0 0
        %399 = vmatprep.subr.bf16.mxu0 0
        %400 = vmatpush2.bf16.msra.mxu0 0
        %401 = vmatprep.subr.bf16.mxu0 0
        %402 = vmatpush2.bf16.msra.mxu0 0
        %403 = vmatprep.subr.bf16.mxu0 0
        %404 = vmatpush2.bf16.msra.mxu0 0
        %405 = vmatprep.subr.bf16.mxu0 0
        %406 = vmatpush2.bf16.msra.mxu0 0
        %407 = vmatprep.subr.bf16.mxu0 0
        %408 = vmatpush2.bf16.msra.mxu0 0
        %409 = vmatprep.mubr.bf16.mxu0 0
        %410 = vmatmul.mubr.bf16.gmra.mxu0 %v369
        %v411 = vpop.f32.mrf.mxu0
        %v412 = vadd.f32 0.0, %v411
        %v413 = vpop.f32.mrf.mxu0
        %v414 = vadd.f32 0.0, %v413
        %v415 = vpop.f32.mrf.mxu0
        %v416 = vpop.f32.mrf.mxu0
        %417 = vdwg.mxu0
        %v418 = vadd.f32 %v333, %v412
        %v419 = vadd.f32 %v335, %v414
        %s420 = scalar_lea.vmem %s1, 12
        %v421 = vld [vmem:[%s420] sm:$0xf]
        %v422 = vld [vmem:[%s195] sm:$0x3f]
        %v424 = vcombine.high %v422, %v422
        %v426 = vunpack.c.l.s4 1983009808
        %v427 = vunpack.c.0.s8 %v426
        %v428 = vlaneseq
        %v429 = vshrl.u32 %v428, 7
        %v430 = vsub.s32 %v427, %v429
        %v431 = vrot.slane %v422, %v430
        %v433 = vunpack.c.l.s4 1983009808
        %v434 = vunpack.c.0.s8 %v433
        %v435 = vlaneseq
        %v436 = vshrl.u32 %v435, 7
        %v437 = vsub.s32 %v434, %v436
        %v438 = vrot.slane %v424, %v437
        %v439 = vcombine.high %v431, %v431
        %440 = vrot.lane.b32.xlu0 %v431, 118
        %v441 = vpop.permute.xlu0 %440
        %442 = vrot.lane.b32.xlu0 %v439, 118
        %v443 = vpop.permute.xlu0 %442
        %444 = vrot.lane.b32.xlu0 %v438, 118
        %v445 = vpop.permute.xlu0 %444
        %vm446 = vcmask 965632
        %v447 = vsel %vm446, %v441, %v443
        %v448 = vsel %vm446, %v443, %v445
        %v450 = vsel %vm228, %v421, 0
        %v453 = vsel %vm232, %v447, 0
        %v456 = vsel %vm232, %v448, 0
        %458 = vmatprep.subr.bf16.mxu0 0
        %459 = vmatpush1.bf16.msra.mxu0 0
        %460 = vmatprep.subr.bf16.mxu0 0
        %461 = vmatpush1.bf16.msra.mxu0 0
        %462 = vmatprep.subr.bf16.mxu0 0
        %463 = vmatpush1.bf16.msra.mxu0 0
        %464 = vmatprep.subr.bf16.mxu0 0
        %465 = vmatpush1.bf16.msra.mxu0 0
        %466 = vmatprep.subr.bf16.mxu0 0
        %467 = vmatpush1.bf16.msra.mxu0 0
        %468 = vmatprep.subr.bf16.mxu0 0
        %469 = vmatpush1.bf16.msra.mxu0 0
        %470 = vmatprep.subr.bf16.mxu0 0
        %471 = vmatpush1.bf16.msra.mxu0 0
        %472 = vmatprep.subr.bf16.mxu0 %v456
        %473 = vmatpush1.bf16.msra.mxu0 %v453
        %474 = vmatprep.subr.bf16.mxu0 0
        %475 = vmatpush2.bf16.msra.mxu0 0
        %476 = vmatprep.subr.bf16.mxu0 0
        %477 = vmatpush2.bf16.msra.mxu0 0
        %478 = vmatprep.subr.bf16.mxu0 0
        %479 = vmatpush2.bf16.msra.mxu0 0
        %480 = vmatprep.subr.bf16.mxu0 0
        %481 = vmatpush2.bf16.msra.mxu0 0
        %482 = vmatprep.subr.bf16.mxu0 0
        %483 = vmatpush2.bf16.msra.mxu0 0
        %484 = vmatprep.subr.bf16.mxu0 0
        %485 = vmatpush2.bf16.msra.mxu0 0
        %486 = vmatprep.subr.bf16.mxu0 0
        %487 = vmatpush2.bf16.msra.mxu0 0
        %488 = vmatprep.subr.bf16.mxu0 0
        %489 = vmatpush2.bf16.msra.mxu0 0
        %490 = vmatprep.mubr.bf16.mxu0 0
        %491 = vmatmul.mubr.bf16.gmra.mxu0 %v450
        %v492 = vpop.f32.mrf.mxu0
        %v493 = vadd.f32 0.0, %v492
        %v494 = vpop.f32.mrf.mxu0
        %v495 = vadd.f32 0.0, %v494
        %v496 = vpop.f32.mrf.mxu0
        %v497 = vpop.f32.mrf.mxu0
        %498 = vdwg.mxu0
        %v499 = vadd.f32 %v418, %v493
        %v500 = vadd.f32 %v419, %v495
        %s501 = scalar_lea.vmem %s1, 16
        %v502 = vld [vmem:[%s501] sm:$0xf]
        %v503 = vld [vmem:[%s195] sm:$0x3f]
        %v505 = vcombine.high %v503, %v503
        %v507 = vunpack.c.l.s4 1983009808
        %v508 = vunpack.c.0.s8 %v507
        %v509 = vlaneseq
        %v510 = vshrl.u32 %v509, 7
        %v511 = vsub.s32 %v508, %v510
        %v512 = vrot.slane %v503, %v511
        %v514 = vunpack.c.l.s4 1983009808
        %v515 = vunpack.c.0.s8 %v514
        %v516 = vlaneseq
        %v517 = vshrl.u32 %v516, 7
        %v518 = vsub.s32 %v515, %v517
        %v519 = vrot.slane %v505, %v518
        %v520 = vcombine.high %v512, %v512
        %521 = vrot.lane.b32.xlu0 %v512, 117
        %v522 = vpop.permute.xlu0 %521
        %523 = vrot.lane.b32.xlu0 %v520, 117
        %v524 = vpop.permute.xlu0 %523
        %525 = vrot.lane.b32.xlu0 %v519, 117
        %v526 = vpop.permute.xlu0 %525
        %vm527 = vcmask 957440
        %v528 = vsel %vm527, %v522, %v524
        %v529 = vsel %vm527, %v524, %v526
        %v531 = vsel %vm228, %v502, 0
        %v534 = vsel %vm232, %v528, 0
        %v537 = vsel %vm232, %v529, 0
        %539 = vmatprep.subr.bf16.mxu0 0
        %540 = vmatpush1.bf16.msra.mxu0 0
        %541 = vmatprep.subr.bf16.mxu0 0
        %542 = vmatpush1.bf16.msra.mxu0 0
        %543 = vmatprep.subr.bf16.mxu0 0
        %544 = vmatpush1.bf16.msra.mxu0 0
        %545 = vmatprep.subr.bf16.mxu0 0
        %546 = vmatpush1.bf16.msra.mxu0 0
        %547 = vmatprep.subr.bf16.mxu0 0
        %548 = vmatpush1.bf16.msra.mxu0 0
        %549 = vmatprep.subr.bf16.mxu0 0
        %550 = vmatpush1.bf16.msra.mxu0 0
        %551 = vmatprep.subr.bf16.mxu0 0
        %552 = vmatpush1.bf16.msra.mxu0 0
        %553 = vmatprep.subr.bf16.mxu0 %v537
        %554 = vmatpush1.bf16.msra.mxu0 %v534
        %555 = vmatprep.subr.bf16.mxu0 0
        %556 = vmatpush2.bf16.msra.mxu0 0
        %557 = vmatprep.subr.bf16.mxu0 0
        %558 = vmatpush2.bf16.msra.mxu0 0
        %559 = vmatprep.subr.bf16.mxu0 0
        %560 = vmatpush2.bf16.msra.mxu0 0
        %561 = vmatprep.subr.bf16.mxu0 0
        %562 = vmatpush2.bf16.msra.mxu0 0
        %563 = vmatprep.subr.bf16.mxu0 0
        %564 = vmatpush2.bf16.msra.mxu0 0
        %565 = vmatprep.subr.bf16.mxu0 0
        %566 = vmatpush2.bf16.msra.mxu0 0
        %567 = vmatprep.subr.bf16.mxu0 0
        %568 = vmatpush2.bf16.msra.mxu0 0
        %569 = vmatprep.subr.bf16.mxu0 0
        %570 = vmatpush2.bf16.msra.mxu0 0
        %571 = vmatprep.mubr.bf16.mxu0 0
        %572 = vmatmul.mubr.bf16.gmra.mxu0 %v531
        %v573 = vpop.f32.mrf.mxu0
        %v574 = vadd.f32 0.0, %v573
        %v575 = vpop.f32.mrf.mxu0
        %v576 = vadd.f32 0.0, %v575
        %v577 = vpop.f32.mrf.mxu0
        %v578 = vpop.f32.mrf.mxu0
        %579 = vdwg.mxu0
        %v580 = vadd.f32 %v499, %v574
        %v581 = vadd.f32 %v500, %v576
        %s582 = scalar_lea.vmem %s1, 20
        %v583 = vld [vmem:[%s582] sm:$0xf]
        %v584 = vld [vmem:[%s195] sm:$0x3f]
        %v586 = vcombine.high %v584, %v584
        %v588 = vunpack.c.l.s4 1983009808
        %v589 = vunpack.c.0.s8 %v588
        %v590 = vlaneseq
        %v591 = vshrl.u32 %v590, 7
        %v592 = vsub.s32 %v589, %v591
        %v593 = vrot.slane %v584, %v592
        %v595 = vunpack.c.l.s4 1983009808
        %v596 = vunpack.c.0.s8 %v595
        %v597 = vlaneseq
        %v598 = vshrl.u32 %v597, 7
        %v599 = vsub.s32 %v596, %v598
        %v600 = vrot.slane %v586, %v599
        %v601 = vcombine.high %v593, %v593
        %602 = vrot.lane.b32.xlu0 %v593, 116
        %v603 = vpop.permute.xlu0 %602
        %604 = vrot.lane.b32.xlu0 %v601, 116
        %v605 = vpop.permute.xlu0 %604
        %606 = vrot.lane.b32.xlu0 %v600, 116
        %v607 = vpop.permute.xlu0 %606
        %vm608 = vcmask 949248
        %v609 = vsel %vm608, %v603, %v605
        %v610 = vsel %vm608, %v605, %v607
        %v612 = vsel %vm228, %v583, 0
        %v615 = vsel %vm232, %v609, 0
        %v618 = vsel %vm232, %v610, 0
        %620 = vmatprep.subr.bf16.mxu0 0
        %621 = vmatpush1.bf16.msra.mxu0 0
        %622 = vmatprep.subr.bf16.mxu0 0
        %623 = vmatpush1.bf16.msra.mxu0 0
        %624 = vmatprep.subr.bf16.mxu0 0
        %625 = vmatpush1.bf16.msra.mxu0 0
        %626 = vmatprep.subr.bf16.mxu0 0
        %627 = vmatpush1.bf16.msra.mxu0 0
        %628 = vmatprep.subr.bf16.mxu0 0
        %629 = vmatpush1.bf16.msra.mxu0 0
        %630 = vmatprep.subr.bf16.mxu0 0
        %631 = vmatpush1.bf16.msra.mxu0 0
        %632 = vmatprep.subr.bf16.mxu0 0
        %633 = vmatpush1.bf16.msra.mxu0 0
        %634 = vmatprep.subr.bf16.mxu0 %v618
        %635 = vmatpush1.bf16.msra.mxu0 %v615
        %636 = vmatprep.subr.bf16.mxu0 0
        %637 = vmatpush2.bf16.msra.mxu0 0
        %638 = vmatprep.subr.bf16.mxu0 0
        %639 = vmatpush2.bf16.msra.mxu0 0
        %640 = vmatprep.subr.bf16.mxu0 0
        %641 = vmatpush2.bf16.msra.mxu0 0
        %642 = vmatprep.subr.bf16.mxu0 0
        %643 = vmatpush2.bf16.msra.mxu0 0
        %644 = vmatprep.subr.bf16.mxu0 0
        %645 = vmatpush2.bf16.msra.mxu0 0
        %646 = vmatprep.subr.bf16.mxu0 0
        %647 = vmatpush2.bf16.msra.mxu0 0
        %648 = vmatprep.subr.bf16.mxu0 0
        %649 = vmatpush2.bf16.msra.mxu0 0
        %650 = vmatprep.subr.bf16.mxu0 0
        %651 = vmatpush2.bf16.msra.mxu0 0
        %652 = vmatprep.mubr.bf16.mxu0 0
        %653 = vmatmul.mubr.bf16.gmra.mxu0 %v612
        %v654 = vpop.f32.mrf.mxu0
        %v655 = vadd.f32 0.0, %v654
        %v656 = vpop.f32.mrf.mxu0
        %v657 = vadd.f32 0.0, %v656
        %v658 = vpop.f32.mrf.mxu0
        %v659 = vpop.f32.mrf.mxu0
        %660 = vdwg.mxu0
        %v661 = vadd.f32 %v580, %v655
        %v662 = vadd.f32 %v581, %v657
        %s663 = scalar_lea.vmem %s1, 24
        %v664 = vld [vmem:[%s663] sm:$0xf]
        %v665 = vld [vmem:[%s195] sm:$0x3f]
        %v667 = vcombine.high %v665, %v665
        %v669 = vunpack.c.l.s4 1983009808
        %v670 = vunpack.c.0.s8 %v669
        %v671 = vlaneseq
        %v672 = vshrl.u32 %v671, 7
        %v673 = vsub.s32 %v670, %v672
        %v674 = vrot.slane %v665, %v673
        %v676 = vunpack.c.l.s4 1983009808
        %v677 = vunpack.c.0.s8 %v676
        %v678 = vlaneseq
        %v679 = vshrl.u32 %v678, 7
        %v680 = vsub.s32 %v677, %v679
        %v681 = vrot.slane %v667, %v680
        %v682 = vcombine.high %v674, %v674
        %683 = vrot.lane.b32.xlu0 %v674, 108
        %v684 = vpop.permute.xlu0 %683
        %685 = vrot.lane.b32.xlu0 %v682, 108
        %v686 = vpop.permute.xlu0 %685
        %687 = vrot.lane.b32.xlu0 %v681, 108
        %v688 = vpop.permute.xlu0 %687
        %vm689 = vcmask 883712
        %v690 = vsel %vm689, %v684, %v686
        %v691 = vsel %vm689, %v686, %v688
        %v693 = vsel %vm228, %v664, 0
        %v696 = vsel %vm232, %v690, 0
        %v699 = vsel %vm232, %v691, 0
        %701 = vmatprep.subr.bf16.mxu0 0
        %702 = vmatpush1.bf16.msra.mxu0 0
        %703 = vmatprep.subr.bf16.mxu0 0
        %704 = vmatpush1.bf16.msra.mxu0 0
        %705 = vmatprep.subr.bf16.mxu0 0
        %706 = vmatpush1.bf16.msra.mxu0 0
        %707 = vmatprep.subr.bf16.mxu0 0
        %708 = vmatpush1.bf16.msra.mxu0 0
        %709 = vmatprep.subr.bf16.mxu0 0
        %710 = vmatpush1.bf16.msra.mxu0 0
        %711 = vmatprep.subr.bf16.mxu0 0
        %712 = vmatpush1.bf16.msra.mxu0 0
        %713 = vmatprep.subr.bf16.mxu0 0
        %714 = vmatpush1.bf16.msra.mxu0 0
        %715 = vmatprep.subr.bf16.mxu0 %v699
        %716 = vmatpush1.bf16.msra.mxu0 %v696
        %717 = vmatprep.subr.bf16.mxu0 0
        %718 = vmatpush2.bf16.msra.mxu0 0
        %719 = vmatprep.subr.bf16.mxu0 0
        %720 = vmatpush2.bf16.msra.mxu0 0
        %721 = vmatprep.subr.bf16.mxu0 0
        %722 = vmatpush2.bf16.msra.mxu0 0
        %723 = vmatprep.subr.bf16.mxu0 0
        %724 = vmatpush2.bf16.msra.mxu0 0
        %725 = vmatprep.subr.bf16.mxu0 0
        %726 = vmatpush2.bf16.msra.mxu0 0
        %727 = vmatprep.subr.bf16.mxu0 0
        %728 = vmatpush2.bf16.msra.mxu0 0
        %729 = vmatprep.subr.bf16.mxu0 0
        %730 = vmatpush2.bf16.msra.mxu0 0
        %731 = vmatprep.subr.bf16.mxu0 0
        %732 = vmatpush2.bf16.msra.mxu0 0
        %733 = vmatprep.mubr.bf16.mxu0 0
        %734 = vmatmul.mubr.bf16.gmra.mxu0 %v693
        %v735 = vpop.f32.mrf.mxu0
        %v736 = vadd.f32 0.0, %v735
        %v737 = vpop.f32.mrf.mxu0
        %v738 = vadd.f32 0.0, %v737
        %v739 = vpop.f32.mrf.mxu0
        %v740 = vpop.f32.mrf.mxu0
        %741 = vdwg.mxu0
        %v742 = vadd.f32 %v661, %v736
        %v743 = vadd.f32 %v662, %v738
        %s744 = scalar_lea.vmem %s1, 28
        %v745 = vld [vmem:[%s744] sm:$0xf]
        %v746 = vld [vmem:[%s195] sm:$0x3f]
        %v748 = vcombine.high %v746, %v746
        %v750 = vunpack.c.l.s4 1983009808
        %v751 = vunpack.c.0.s8 %v750
        %v752 = vlaneseq
        %v753 = vshrl.u32 %v752, 7
        %v754 = vsub.s32 %v751, %v753
        %v755 = vrot.slane %v746, %v754
        %v757 = vunpack.c.l.s4 1983009808
        %v758 = vunpack.c.0.s8 %v757
        %v759 = vlaneseq
        %v760 = vshrl.u32 %v759, 7
        %v761 = vsub.s32 %v758, %v760
        %v762 = vrot.slane %v748, %v761
        %v763 = vcombine.high %v755, %v755
        %764 = vrot.lane.b32.xlu0 %v755, 107
        %v765 = vpop.permute.xlu0 %764
        %766 = vrot.lane.b32.xlu0 %v763, 107
        %v767 = vpop.permute.xlu0 %766
        %768 = vrot.lane.b32.xlu0 %v762, 107
        %v769 = vpop.permute.xlu0 %768
        %vm770 = vcmask 875520
        %v771 = vsel %vm770, %v765, %v767
        %v772 = vsel %vm770, %v767, %v769
        %v774 = vsel %vm228, %v745, 0
        %v777 = vsel %vm232, %v771, 0
        %v780 = vsel %vm232, %v772, 0
        %782 = vmatprep.subr.bf16.mxu0 0
        %783 = vmatpush1.bf16.msra.mxu0 0
        %784 = vmatprep.subr.bf16.mxu0 0
        %785 = vmatpush1.bf16.msra.mxu0 0
        %786 = vmatprep.subr.bf16.mxu0 0
        %787 = vmatpush1.bf16.msra.mxu0 0
        %788 = vmatprep.subr.bf16.mxu0 0
        %789 = vmatpush1.bf16.msra.mxu0 0
        %790 = vmatprep.subr.bf16.mxu0 0
        %791 = vmatpush1.bf16.msra.mxu0 0
        %792 = vmatprep.subr.bf16.mxu0 0
        %793 = vmatpush1.bf16.msra.mxu0 0
        %794 = vmatprep.subr.bf16.mxu0 0
        %795 = vmatpush1.bf16.msra.mxu0 0
        %796 = vmatprep.subr.bf16.mxu0 %v780
        %797 = vmatpush1.bf16.msra.mxu0 %v777
        %798 = vmatprep.subr.bf16.mxu0 0
        %799 = vmatpush2.bf16.msra.mxu0 0
        %800 = vmatprep.subr.bf16.mxu0 0
        %801 = vmatpush2.bf16.msra.mxu0 0
        %802 = vmatprep.subr.bf16.mxu0 0
        %803 = vmatpush2.bf16.msra.mxu0 0
        %804 = vmatprep.subr.bf16.mxu0 0
        %805 = vmatpush2.bf16.msra.mxu0 0
        %806 = vmatprep.subr.bf16.mxu0 0
        %807 = vmatpush2.bf16.msra.mxu0 0
        %808 = vmatprep.subr.bf16.mxu0 0
        %809 = vmatpush2.bf16.msra.mxu0 0
        %810 = vmatprep.subr.bf16.mxu0 0
        %811 = vmatpush2.bf16.msra.mxu0 0
        %812 = vmatprep.subr.bf16.mxu0 0
        %813 = vmatpush2.bf16.msra.mxu0 0
        %814 = vmatprep.mubr.bf16.mxu0 0
        %815 = vmatmul.mubr.bf16.gmra.mxu0 %v774
        %v816 = vpop.f32.mrf.mxu0
        %v817 = vadd.f32 0.0, %v816
        %v818 = vpop.f32.mrf.mxu0
        %v819 = vadd.f32 0.0, %v818
        %v820 = vpop.f32.mrf.mxu0
        %v821 = vpop.f32.mrf.mxu0
        %822 = vdwg.mxu0
        %v823 = vadd.f32 %v742, %v817
        %v824 = vadd.f32 %v743, %v819
        %s825 = scalar_lea.vmem %s1, 32
        %v826 = vld [vmem:[%s825] sm:$0xf]
        %v827 = vld [vmem:[%s195] sm:$0x3f]
        %v829 = vcombine.high %v827, %v827
        %v831 = vunpack.c.l.s4 1983009808
        %v832 = vunpack.c.0.s8 %v831
        %v833 = vlaneseq
        %v834 = vshrl.u32 %v833, 7
        %v835 = vsub.s32 %v832, %v834
        %v836 = vrot.slane %v827, %v835
        %v838 = vunpack.c.l.s4 1983009808
        %v839 = vunpack.c.0.s8 %v838
        %v840 = vlaneseq
        %v841 = vshrl.u32 %v840, 7
        %v842 = vsub.s32 %v839, %v841
        %v843 = vrot.slane %v829, %v842
        %v844 = vcombine.high %v836, %v836
        %845 = vrot.lane.b32.xlu0 %v836, 106
        %v846 = vpop.permute.xlu0 %845
        %847 = vrot.lane.b32.xlu0 %v844, 106
        %v848 = vpop.permute.xlu0 %847
        %849 = vrot.lane.b32.xlu0 %v843, 106
        %v850 = vpop.permute.xlu0 %849
        %vm851 = vcmask 867328
        %v852 = vsel %vm851, %v846, %v848
        %v853 = vsel %vm851, %v848, %v850
        %v855 = vsel %vm228, %v826, 0
        %v858 = vsel %vm232, %v852, 0
        %v861 = vsel %vm232, %v853, 0
        %863 = vmatprep.subr.bf16.mxu0 0
        %864 = vmatpush1.bf16.msra.mxu0 0
        %865 = vmatprep.subr.bf16.mxu0 0
        %866 = vmatpush1.bf16.msra.mxu0 0
        %867 = vmatprep.subr.bf16.mxu0 0
        %868 = vmatpush1.bf16.msra.mxu0 0
        %869 = vmatprep.subr.bf16.mxu0 0
        %870 = vmatpush1.bf16.msra.mxu0 0
        %871 = vmatprep.subr.bf16.mxu0 0
        %872 = vmatpush1.bf16.msra.mxu0 0
        %873 = vmatprep.subr.bf16.mxu0 0
        %874 = vmatpush1.bf16.msra.mxu0 0
        %875 = vmatprep.subr.bf16.mxu0 0
        %876 = vmatpush1.bf16.msra.mxu0 0
        %877 = vmatprep.subr.bf16.mxu0 %v861
        %878 = vmatpush1.bf16.msra.mxu0 %v858
        %879 = vmatprep.subr.bf16.mxu0 0
        %880 = vmatpush2.bf16.msra.mxu0 0
        %881 = vmatprep.subr.bf16.mxu0 0
        %882 = vmatpush2.bf16.msra.mxu0 0
        %883 = vmatprep.subr.bf16.mxu0 0
        %884 = vmatpush2.bf16.msra.mxu0 0
        %885 = vmatprep.subr.bf16.mxu0 0
        %886 = vmatpush2.bf16.msra.mxu0 0
        %887 = vmatprep.subr.bf16.mxu0 0
        %888 = vmatpush2.bf16.msra.mxu0 0
        %889 = vmatprep.subr.bf16.mxu0 0
        %890 = vmatpush2.bf16.msra.mxu0 0
        %891 = vmatprep.subr.bf16.mxu0 0
        %892 = vmatpush2.bf16.msra.mxu0 0
        %893 = vmatprep.subr.bf16.mxu0 0
        %894 = vmatpush2.bf16.msra.mxu0 0
        %895 = vmatprep.mubr.bf16.mxu0 0
        %896 = vmatmul.mubr.bf16.gmra.mxu0 %v855
        %v897 = vpop.f32.mrf.mxu0
        %v898 = vadd.f32 0.0, %v897
        %v899 = vpop.f32.mrf.mxu0
        %v900 = vadd.f32 0.0, %v899
        %v901 = vpop.f32.mrf.mxu0
        %v902 = vpop.f32.mrf.mxu0
        %903 = vdwg.mxu0
        %v904 = vadd.f32 %v823, %v898
        %v905 = vadd.f32 %v824, %v900
        %s906 = scalar_lea.vmem %s1, 36
        %v907 = vld [vmem:[%s906] sm:$0xf]
        %v908 = vld [vmem:[%s195] sm:$0x3f]
        %v910 = vcombine.high %v908, %v908
        %v912 = vunpack.c.l.s4 1983009808
        %v913 = vunpack.c.0.s8 %v912
        %v914 = vlaneseq
        %v915 = vshrl.u32 %v914, 7
        %v916 = vsub.s32 %v913, %v915
        %v917 = vrot.slane %v908, %v916
        %v919 = vunpack.c.l.s4 1983009808
        %v920 = vunpack.c.0.s8 %v919
        %v921 = vlaneseq
        %v922 = vshrl.u32 %v921, 7
        %v923 = vsub.s32 %v920, %v922
        %v924 = vrot.slane %v910, %v923
        %v925 = vcombine.high %v917, %v917
        %926 = vrot.lane.b32.xlu0 %v917, 28
        %v927 = vpop.permute.xlu0 %926
        %928 = vrot.lane.b32.xlu0 %v925, 28
        %v929 = vpop.permute.xlu0 %928
        %930 = vrot.lane.b32.xlu0 %v924, 28
        %v931 = vpop.permute.xlu0 %930
        %vm932 = vcmask 228352
        %v933 = vsel %vm932, %v927, %v929
        %v934 = vsel %vm932, %v929, %v931
        %v936 = vsel %vm228, %v907, 0
        %v939 = vsel %vm232, %v933, 0
        %v942 = vsel %vm232, %v934, 0
        %944 = vmatprep.subr.bf16.mxu0 0
        %945 = vmatpush1.bf16.msra.mxu0 0
        %946 = vmatprep.subr.bf16.mxu0 0
        %947 = vmatpush1.bf16.msra.mxu0 0
        %948 = vmatprep.subr.bf16.mxu0 0
        %949 = vmatpush1.bf16.msra.mxu0 0
        %950 = vmatprep.subr.bf16.mxu0 0
        %951 = vmatpush1.bf16.msra.mxu0 0
        %952 = vmatprep.subr.bf16.mxu0 0
        %953 = vmatpush1.bf16.msra.mxu0 0
        %954 = vmatprep.subr.bf16.mxu0 0
        %955 = vmatpush1.bf16.msra.mxu0 0
        %956 = vmatprep.subr.bf16.mxu0 0
        %957 = vmatpush1.bf16.msra.mxu0 0
        %958 = vmatprep.subr.bf16.mxu0 %v942
        %959 = vmatpush1.bf16.msra.mxu0 %v939
        %960 = vmatprep.subr.bf16.mxu0 0
        %961 = vmatpush2.bf16.msra.mxu0 0
        %962 = vmatprep.subr.bf16.mxu0 0
        %963 = vmatpush2.bf16.msra.mxu0 0
        %964 = vmatprep.subr.bf16.mxu0 0
        %965 = vmatpush2.bf16.msra.mxu0 0
        %966 = vmatprep.subr.bf16.mxu0 0
        %967 = vmatpush2.bf16.msra.mxu0 0
        %968 = vmatprep.subr.bf16.mxu0 0
        %969 = vmatpush2.bf16.msra.mxu0 0
        %970 = vmatprep.subr.bf16.mxu0 0
        %971 = vmatpush2.bf16.msra.mxu0 0
        %972 = vmatprep.subr.bf16.mxu0 0
        %973 = vmatpush2.bf16.msra.mxu0 0
        %974 = vmatprep.subr.bf16.mxu0 0
        %975 = vmatpush2.bf16.msra.mxu0 0
        %976 = vmatprep.mubr.bf16.mxu0 0
        %977 = vmatmul.mubr.bf16.gmra.mxu0 %v936
        %v978 = vpop.f32.mrf.mxu0
        %v979 = vadd.f32 0.0, %v978
        %v980 = vpop.f32.mrf.mxu0
        %v981 = vadd.f32 0.0, %v980
        %v982 = vpop.f32.mrf.mxu0
        %v983 = vpop.f32.mrf.mxu0
        %984 = vdwg.mxu0
        %v985 = vadd.f32 %v904, %v979
        %v986 = vadd.f32 %v905, %v981
        %s987 = scalar_lea.vmem %s1, 40
        %v988 = vld [vmem:[%s987] sm:$0xf]
        %v989 = vld [vmem:[%s195] sm:$0x3f]
        %v991 = vcombine.high %v989, %v989
        %v993 = vunpack.c.l.s4 1983009808
        %v994 = vunpack.c.0.s8 %v993
        %v995 = vlaneseq
        %v996 = vshrl.u32 %v995, 7
        %v997 = vsub.s32 %v994, %v996
        %v998 = vrot.slane %v989, %v997
        %v1000 = vunpack.c.l.s4 1983009808
        %v1001 = vunpack.c.0.s8 %v1000
        %v1002 = vlaneseq
        %v1003 = vshrl.u32 %v1002, 7
        %v1004 = vsub.s32 %v1001, %v1003
        %v1005 = vrot.slane %v991, %v1004
        %v1006 = vcombine.high %v998, %v998
        %1007 = vrot.lane.b32.xlu0 %v998, 27
        %v1008 = vpop.permute.xlu0 %1007
        %1009 = vrot.lane.b32.xlu0 %v1006, 27
        %v1010 = vpop.permute.xlu0 %1009
        %1011 = vrot.lane.b32.xlu0 %v1005, 27
        %v1012 = vpop.permute.xlu0 %1011
        %vm1013 = vcmask 220160
        %v1014 = vsel %vm1013, %v1008, %v1010
        %v1015 = vsel %vm1013, %v1010, %v1012
        %v1017 = vsel %vm228, %v988, 0
        %v1020 = vsel %vm232, %v1014, 0
        %v1023 = vsel %vm232, %v1015, 0
        %1025 = vmatprep.subr.bf16.mxu0 0
        %1026 = vmatpush1.bf16.msra.mxu0 0
        %1027 = vmatprep.subr.bf16.mxu0 0
        %1028 = vmatpush1.bf16.msra.mxu0 0
        %1029 = vmatprep.subr.bf16.mxu0 0
        %1030 = vmatpush1.bf16.msra.mxu0 0
        %1031 = vmatprep.subr.bf16.mxu0 0
        %1032 = vmatpush1.bf16.msra.mxu0 0
        %1033 = vmatprep.subr.bf16.mxu0 0
        %1034 = vmatpush1.bf16.msra.mxu0 0
        %1035 = vmatprep.subr.bf16.mxu0 0
        %1036 = vmatpush1.bf16.msra.mxu0 0
        %1037 = vmatprep.subr.bf16.mxu0 0
        %1038 = vmatpush1.bf16.msra.mxu0 0
        %1039 = vmatprep.subr.bf16.mxu0 %v1023
        %1040 = vmatpush1.bf16.msra.mxu0 %v1020
        %1041 = vmatprep.subr.bf16.mxu0 0
        %1042 = vmatpush2.bf16.msra.mxu0 0
        %1043 = vmatprep.subr.bf16.mxu0 0
        %1044 = vmatpush2.bf16.msra.mxu0 0
        %1045 = vmatprep.subr.bf16.mxu0 0
        %1046 = vmatpush2.bf16.msra.mxu0 0
        %1047 = vmatprep.subr.bf16.mxu0 0
        %1048 = vmatpush2.bf16.msra.mxu0 0
        %1049 = vmatprep.subr.bf16.mxu0 0
        %1050 = vmatpush2.bf16.msra.mxu0 0
        %1051 = vmatprep.subr.bf16.mxu0 0
        %1052 = vmatpush2.bf16.msra.mxu0 0
        %1053 = vmatprep.subr.bf16.mxu0 0
        %1054 = vmatpush2.bf16.msra.mxu0 0
        %1055 = vmatprep.subr.bf16.mxu0 0
        %1056 = vmatpush2.bf16.msra.mxu0 0
        %1057 = vmatprep.mubr.bf16.mxu0 0
        %1058 = vmatmul.mubr.bf16.gmra.mxu0 %v1017
        %v1059 = vpop.f32.mrf.mxu0
        %v1060 = vadd.f32 0.0, %v1059
        %v1061 = vpop.f32.mrf.mxu0
        %v1062 = vadd.f32 0.0, %v1061
        %v1063 = vpop.f32.mrf.mxu0
        %v1064 = vpop.f32.mrf.mxu0
        %1065 = vdwg.mxu0
        %v1066 = vadd.f32 %v985, %v1060
        %v1067 = vadd.f32 %v986, %v1062
        %s1068 = scalar_lea.vmem %s1, 44
        %v1069 = vld [vmem:[%s1068] sm:$0xf]
        %v1070 = vld [vmem:[%s195] sm:$0x3f]
        %v1072 = vcombine.high %v1070, %v1070
        %v1074 = vunpack.c.l.s4 1983009808
        %v1075 = vunpack.c.0.s8 %v1074
        %v1076 = vlaneseq
        %v1077 = vshrl.u32 %v1076, 7
        %v1078 = vsub.s32 %v1075, %v1077
        %v1079 = vrot.slane %v1070, %v1078
        %v1081 = vunpack.c.l.s4 1983009808
        %v1082 = vunpack.c.0.s8 %v1081
        %v1083 = vlaneseq
        %v1084 = vshrl.u32 %v1083, 7
        %v1085 = vsub.s32 %v1082, %v1084
        %v1086 = vrot.slane %v1072, %v1085
        %v1087 = vcombine.high %v1079, %v1079
        %1088 = vrot.lane.b32.xlu0 %v1079, 26
        %v1089 = vpop.permute.xlu0 %1088
        %1090 = vrot.lane.b32.xlu0 %v1087, 26
        %v1091 = vpop.permute.xlu0 %1090
        %1092 = vrot.lane.b32.xlu0 %v1086, 26
        %v1093 = vpop.permute.xlu0 %1092
        %vm1094 = vcmask 211968
        %v1095 = vsel %vm1094, %v1089, %v1091
        %v1096 = vsel %vm1094, %v1091, %v1093
        %v1098 = vsel %vm228, %v1069, 0
        %v1101 = vsel %vm232, %v1095, 0
        %v1104 = vsel %vm232, %v1096, 0
        %1106 = vmatprep.subr.bf16.mxu0 0
        %1107 = vmatpush1.bf16.msra.mxu0 0
        %1108 = vmatprep.subr.bf16.mxu0 0
        %1109 = vmatpush1.bf16.msra.mxu0 0
        %1110 = vmatprep.subr.bf16.mxu0 0
        %1111 = vmatpush1.bf16.msra.mxu0 0
        %1112 = vmatprep.subr.bf16.mxu0 0
        %1113 = vmatpush1.bf16.msra.mxu0 0
        %1114 = vmatprep.subr.bf16.mxu0 0
        %1115 = vmatpush1.bf16.msra.mxu0 0
        %1116 = vmatprep.subr.bf16.mxu0 0
        %1117 = vmatpush1.bf16.msra.mxu0 0
        %1118 = vmatprep.subr.bf16.mxu0 0
        %1119 = vmatpush1.bf16.msra.mxu0 0
        %1120 = vmatprep.subr.bf16.mxu0 %v1104
        %1121 = vmatpush1.bf16.msra.mxu0 %v1101
        %1122 = vmatprep.subr.bf16.mxu0 0
        %1123 = vmatpush2.bf16.msra.mxu0 0
        %1124 = vmatprep.subr.bf16.mxu0 0
        %1125 = vmatpush2.bf16.msra.mxu0 0
        %1126 = vmatprep.subr.bf16.mxu0 0
        %1127 = vmatpush2.bf16.msra.mxu0 0
        %1128 = vmatprep.subr.bf16.mxu0 0
        %1129 = vmatpush2.bf16.msra.mxu0 0
        %1130 = vmatprep.subr.bf16.mxu0 0
        %1131 = vmatpush2.bf16.msra.mxu0 0
        %1132 = vmatprep.subr.bf16.mxu0 0
        %1133 = vmatpush2.bf16.msra.mxu0 0
        %1134 = vmatprep.subr.bf16.mxu0 0
        %1135 = vmatpush2.bf16.msra.mxu0 0
        %1136 = vmatprep.subr.bf16.mxu0 0
        %1137 = vmatpush2.bf16.msra.mxu0 0
        %1138 = vmatprep.mubr.bf16.mxu0 0
        %1139 = vmatmul.mubr.bf16.gmra.mxu0 %v1098
        %v1140 = vpop.f32.mrf.mxu0
        %v1141 = vadd.f32 0.0, %v1140
        %v1142 = vpop.f32.mrf.mxu0
        %v1143 = vadd.f32 0.0, %v1142
        %v1144 = vpop.f32.mrf.mxu0
        %v1145 = vpop.f32.mrf.mxu0
        %1146 = vdwg.mxu0
        %v1147 = vadd.f32 %v1066, %v1141
        %v1148 = vadd.f32 %v1067, %v1143
        %s1149 = scalar_lea.vmem %s1, 48
        %v1150 = vld [vmem:[%s1149] sm:$0xf]
        %v1151 = vld [vmem:[%s195] sm:$0x3f]
        %v1153 = vcombine.high %v1151, %v1151
        %v1155 = vunpack.c.l.s4 1983009808
        %v1156 = vunpack.c.0.s8 %v1155
        %v1157 = vlaneseq
        %v1158 = vshrl.u32 %v1157, 7
        %v1159 = vsub.s32 %v1156, %v1158
        %v1160 = vrot.slane %v1151, %v1159
        %v1162 = vunpack.c.l.s4 1983009808
        %v1163 = vunpack.c.0.s8 %v1162
        %v1164 = vlaneseq
        %v1165 = vshrl.u32 %v1164, 7
        %v1166 = vsub.s32 %v1163, %v1165
        %v1167 = vrot.slane %v1153, %v1166
        %v1168 = vcombine.high %v1160, %v1160
        %1169 = vrot.lane.b32.xlu0 %v1160, 18
        %v1170 = vpop.permute.xlu0 %1169
        %1171 = vrot.lane.b32.xlu0 %v1168, 18
        %v1172 = vpop.permute.xlu0 %1171
        %1173 = vrot.lane.b32.xlu0 %v1167, 18
        %v1174 = vpop.permute.xlu0 %1173
        %vm1175 = vcmask 146432
        %v1176 = vsel %vm1175, %v1170, %v1172
        %v1177 = vsel %vm1175, %v1172, %v1174
        %v1179 = vsel %vm228, %v1150, 0
        %v1182 = vsel %vm232, %v1176, 0
        %v1185 = vsel %vm232, %v1177, 0
        %1187 = vmatprep.subr.bf16.mxu0 0
        %1188 = vmatpush1.bf16.msra.mxu0 0
        %1189 = vmatprep.subr.bf16.mxu0 0
        %1190 = vmatpush1.bf16.msra.mxu0 0
        %1191 = vmatprep.subr.bf16.mxu0 0
        %1192 = vmatpush1.bf16.msra.mxu0 0
        %1193 = vmatprep.subr.bf16.mxu0 0
        %1194 = vmatpush1.bf16.msra.mxu0 0
        %1195 = vmatprep.subr.bf16.mxu0 0
        %1196 = vmatpush1.bf16.msra.mxu0 0
        %1197 = vmatprep.subr.bf16.mxu0 0
        %1198 = vmatpush1.bf16.msra.mxu0 0
        %1199 = vmatprep.subr.bf16.mxu0 0
        %1200 = vmatpush1.bf16.msra.mxu0 0
        %1201 = vmatprep.subr.bf16.mxu0 %v1185
        %1202 = vmatpush1.bf16.msra.mxu0 %v1182
        %1203 = vmatprep.subr.bf16.mxu0 0
        %1204 = vmatpush2.bf16.msra.mxu0 0
        %1205 = vmatprep.subr.bf16.mxu0 0
        %1206 = vmatpush2.bf16.msra.mxu0 0
        %1207 = vmatprep.subr.bf16.mxu0 0
        %1208 = vmatpush2.bf16.msra.mxu0 0
        %1209 = vmatprep.subr.bf16.mxu0 0
        %1210 = vmatpush2.bf16.msra.mxu0 0
        %1211 = vmatprep.subr.bf16.mxu0 0
        %1212 = vmatpush2.bf16.msra.mxu0 0
        %1213 = vmatprep.subr.bf16.mxu0 0
        %1214 = vmatpush2.bf16.msra.mxu0 0
        %1215 = vmatprep.subr.bf16.mxu0 0
        %1216 = vmatpush2.bf16.msra.mxu0 0
        %1217 = vmatprep.subr.bf16.mxu0 0
        %1218 = vmatpush2.bf16.msra.mxu0 0
        %1219 = vmatprep.mubr.bf16.mxu0 0
        %1220 = vmatmul.mubr.bf16.gmra.mxu0 %v1179
        %v1221 = vpop.f32.mrf.mxu0
        %v1222 = vadd.f32 0.0, %v1221
        %v1223 = vpop.f32.mrf.mxu0
        %v1224 = vadd.f32 0.0, %v1223
        %v1225 = vpop.f32.mrf.mxu0
        %v1226 = vpop.f32.mrf.mxu0
        %1227 = vdwg.mxu0
        %v1228 = vadd.f32 %v1147, %v1222
        %v1229 = vadd.f32 %v1148, %v1224
        %s1230 = scalar_lea.vmem %s1, 52
        %v1231 = vld [vmem:[%s1230] sm:$0xf]
        %v1232 = vld [vmem:[%s195] sm:$0x3f]
        %v1234 = vcombine.high %v1232, %v1232
        %v1236 = vunpack.c.l.s4 1983009808
        %v1237 = vunpack.c.0.s8 %v1236
        %v1238 = vlaneseq
        %v1239 = vshrl.u32 %v1238, 7
        %v1240 = vsub.s32 %v1237, %v1239
        %v1241 = vrot.slane %v1232, %v1240
        %v1243 = vunpack.c.l.s4 1983009808
        %v1244 = vunpack.c.0.s8 %v1243
        %v1245 = vlaneseq
        %v1246 = vshrl.u32 %v1245, 7
        %v1247 = vsub.s32 %v1244, %v1246
        %v1248 = vrot.slane %v1234, %v1247
        %v1249 = vcombine.high %v1241, %v1241
        %1250 = vrot.lane.b32.xlu0 %v1241, 17
        %v1251 = vpop.permute.xlu0 %1250
        %1252 = vrot.lane.b32.xlu0 %v1249, 17
        %v1253 = vpop.permute.xlu0 %1252
        %1254 = vrot.lane.b32.xlu0 %v1248, 17
        %v1255 = vpop.permute.xlu0 %1254
        %vm1256 = vcmask 138240
        %v1257 = vsel %vm1256, %v1251, %v1253
        %v1258 = vsel %vm1256, %v1253, %v1255
        %v1260 = vsel %vm228, %v1231, 0
        %v1263 = vsel %vm232, %v1257, 0
        %v1266 = vsel %vm232, %v1258, 0
        %1268 = vmatprep.subr.bf16.mxu0 0
        %1269 = vmatpush1.bf16.msra.mxu0 0
        %1270 = vmatprep.subr.bf16.mxu0 0
        %1271 = vmatpush1.bf16.msra.mxu0 0
        %1272 = vmatprep.subr.bf16.mxu0 0
        %1273 = vmatpush1.bf16.msra.mxu0 0
        %1274 = vmatprep.subr.bf16.mxu0 0
        %1275 = vmatpush1.bf16.msra.mxu0 0
        %1276 = vmatprep.subr.bf16.mxu0 0
        %1277 = vmatpush1.bf16.msra.mxu0 0
        %1278 = vmatprep.subr.bf16.mxu0 0
        %1279 = vmatpush1.bf16.msra.mxu0 0
        %1280 = vmatprep.subr.bf16.mxu0 0
        %1281 = vmatpush1.bf16.msra.mxu0 0
        %1282 = vmatprep.subr.bf16.mxu0 %v1266
        %1283 = vmatpush1.bf16.msra.mxu0 %v1263
        %1284 = vmatprep.subr.bf16.mxu0 0
        %1285 = vmatpush2.bf16.msra.mxu0 0
        %1286 = vmatprep.subr.bf16.mxu0 0
        %1287 = vmatpush2.bf16.msra.mxu0 0
        %1288 = vmatprep.subr.bf16.mxu0 0
        %1289 = vmatpush2.bf16.msra.mxu0 0
        %1290 = vmatprep.subr.bf16.mxu0 0
        %1291 = vmatpush2.bf16.msra.mxu0 0
        %1292 = vmatprep.subr.bf16.mxu0 0
        %1293 = vmatpush2.bf16.msra.mxu0 0
        %1294 = vmatprep.subr.bf16.mxu0 0
        %1295 = vmatpush2.bf16.msra.mxu0 0
        %1296 = vmatprep.subr.bf16.mxu0 0
        %1297 = vmatpush2.bf16.msra.mxu0 0
        %1298 = vmatprep.subr.bf16.mxu0 0
        %1299 = vmatpush2.bf16.msra.mxu0 0
        %1300 = vmatprep.mubr.bf16.mxu0 0
        %1301 = vmatmul.mubr.bf16.gmra.mxu0 %v1260
        %v1302 = vpop.f32.mrf.mxu0
        %v1303 = vadd.f32 0.0, %v1302
        %v1304 = vpop.f32.mrf.mxu0
        %v1305 = vadd.f32 0.0, %v1304
        %v1306 = vpop.f32.mrf.mxu0
        %v1307 = vpop.f32.mrf.mxu0
        %1308 = vdwg.mxu0
        %v1309 = vadd.f32 %v1228, %v1303
        %v1310 = vadd.f32 %v1229, %v1305
        %s1311 = scalar_lea.vmem %s1, 56
        %v1312 = vld [vmem:[%s1311] sm:$0xf]
        %v1313 = vld [vmem:[%s195] sm:$0x3f]
        %v1315 = vcombine.high %v1313, %v1313
        %v1317 = vunpack.c.l.s4 1983009808
        %v1318 = vunpack.c.0.s8 %v1317
        %v1319 = vlaneseq
        %v1320 = vshrl.u32 %v1319, 7
        %v1321 = vsub.s32 %v1318, %v1320
        %v1322 = vrot.slane %v1313, %v1321
        %v1324 = vunpack.c.l.s4 1983009808
        %v1325 = vunpack.c.0.s8 %v1324
        %v1326 = vlaneseq
        %v1327 = vshrl.u32 %v1326, 7
        %v1328 = vsub.s32 %v1325, %v1327
        %v1329 = vrot.slane %v1315, %v1328
        %v1330 = vcombine.high %v1322, %v1322
        %1331 = vrot.lane.b32.xlu0 %v1322, 16
        %v1332 = vpop.permute.xlu0 %1331
        %1333 = vrot.lane.b32.xlu0 %v1330, 16
        %v1334 = vpop.permute.xlu0 %1333
        %1335 = vrot.lane.b32.xlu0 %v1329, 16
        %v1336 = vpop.permute.xlu0 %1335
        %vm1337 = vcmask 130048
        %v1338 = vsel %vm1337, %v1332, %v1334
        %v1339 = vsel %vm1337, %v1334, %v1336
        %v1341 = vsel %vm228, %v1312, 0
        %v1344 = vsel %vm232, %v1338, 0
        %v1347 = vsel %vm232, %v1339, 0
        %1349 = vmatprep.subr.bf16.mxu0 0
        %1350 = vmatpush1.bf16.msra.mxu0 0
        %1351 = vmatprep.subr.bf16.mxu0 0
        %1352 = vmatpush1.bf16.msra.mxu0 0
        %1353 = vmatprep.subr.bf16.mxu0 0
        %1354 = vmatpush1.bf16.msra.mxu0 0
        %1355 = vmatprep.subr.bf16.mxu0 0
        %1356 = vmatpush1.bf16.msra.mxu0 0
        %1357 = vmatprep.subr.bf16.mxu0 0
        %1358 = vmatpush1.bf16.msra.mxu0 0
        %1359 = vmatprep.subr.bf16.mxu0 0
        %1360 = vmatpush1.bf16.msra.mxu0 0
        %1361 = vmatprep.subr.bf16.mxu0 0
        %1362 = vmatpush1.bf16.msra.mxu0 0
        %1363 = vmatprep.subr.bf16.mxu0 %v1347
        %1364 = vmatpush1.bf16.msra.mxu0 %v1344
        %1365 = vmatprep.subr.bf16.mxu0 0
        %1366 = vmatpush2.bf16.msra.mxu0 0
        %1367 = vmatprep.subr.bf16.mxu0 0
        %1368 = vmatpush2.bf16.msra.mxu0 0
        %1369 = vmatprep.subr.bf16.mxu0 0
        %1370 = vmatpush2.bf16.msra.mxu0 0
        %1371 = vmatprep.subr.bf16.mxu0 0
        %1372 = vmatpush2.bf16.msra.mxu0 0
        %1373 = vmatprep.subr.bf16.mxu0 0
        %1374 = vmatpush2.bf16.msra.mxu0 0
        %1375 = vmatprep.subr.bf16.mxu0 0
        %1376 = vmatpush2.bf16.msra.mxu0 0
        %1377 = vmatprep.subr.bf16.mxu0 0
        %1378 = vmatpush2.bf16.msra.mxu0 0
        %1379 = vmatprep.subr.bf16.mxu0 0
        %1380 = vmatpush2.bf16.msra.mxu0 0
        %1381 = vmatprep.mubr.bf16.mxu0 0
        %1382 = vmatmul.mubr.bf16.gmra.mxu0 %v1341
        %v1383 = vpop.f32.mrf.mxu0
        %v1384 = vadd.f32 0.0, %v1383
        %v1385 = vpop.f32.mrf.mxu0
        %v1386 = vadd.f32 0.0, %v1385
        %v1387 = vpop.f32.mrf.mxu0
        %v1388 = vpop.f32.mrf.mxu0
        %1389 = vdwg.mxu0
        %v1390 = vadd.f32 %v1309, %v1384
        %v1391 = vadd.f32 %v1310, %v1386
        %s1392 = scalar_lea.vmem %s1, 60
        %v1393 = vld [vmem:[%s1392] sm:$0xf]
        %v1394 = vld [vmem:[%s195] sm:$0x3f]
        %v1396 = vcombine.high %v1394, %v1394
        %v1398 = vunpack.c.l.s4 1983009808
        %v1399 = vunpack.c.0.s8 %v1398
        %v1400 = vlaneseq
        %v1401 = vshrl.u32 %v1400, 7
        %v1402 = vsub.s32 %v1399, %v1401
        %v1403 = vrot.slane %v1394, %v1402
        %v1405 = vunpack.c.l.s4 1983009808
        %v1406 = vunpack.c.0.s8 %v1405
        %v1407 = vlaneseq
        %v1408 = vshrl.u32 %v1407, 7
        %v1409 = vsub.s32 %v1406, %v1408
        %v1410 = vrot.slane %v1396, %v1409
        %v1411 = vcombine.high %v1403, %v1403
        %1412 = vrot.lane.b32.xlu0 %v1403, 8
        %v1413 = vpop.permute.xlu0 %1412
        %1414 = vrot.lane.b32.xlu0 %v1411, 8
        %v1415 = vpop.permute.xlu0 %1414
        %1416 = vrot.lane.b32.xlu0 %v1410, 8
        %v1417 = vpop.permute.xlu0 %1416
        %vm1418 = vcmask 64512
        %v1419 = vsel %vm1418, %v1413, %v1415
        %v1420 = vsel %vm1418, %v1415, %v1417
        %v1422 = vsel %vm228, %v1393, 0
        %v1425 = vsel %vm232, %v1419, 0
        %v1428 = vsel %vm232, %v1420, 0
        %1430 = vmatprep.subr.bf16.mxu0 0
        %1431 = vmatpush1.bf16.msra.mxu0 0
        %1432 = vmatprep.subr.bf16.mxu0 0
        %1433 = vmatpush1.bf16.msra.mxu0 0
        %1434 = vmatprep.subr.bf16.mxu0 0
        %1435 = vmatpush1.bf16.msra.mxu0 0
        %1436 = vmatprep.subr.bf16.mxu0 0
        %1437 = vmatpush1.bf16.msra.mxu0 0
        %1438 = vmatprep.subr.bf16.mxu0 0
        %1439 = vmatpush1.bf16.msra.mxu0 0
        %1440 = vmatprep.subr.bf16.mxu0 0
        %1441 = vmatpush1.bf16.msra.mxu0 0
        %1442 = vmatprep.subr.bf16.mxu0 0
        %1443 = vmatpush1.bf16.msra.mxu0 0
        %1444 = vmatprep.subr.bf16.mxu0 %v1428
        %1445 = vmatpush1.bf16.msra.mxu0 %v1425
        %1446 = vmatprep.subr.bf16.mxu0 0
        %1447 = vmatpush2.bf16.msra.mxu0 0
        %1448 = vmatprep.subr.bf16.mxu0 0
        %1449 = vmatpush2.bf16.msra.mxu0 0
        %1450 = vmatprep.subr.bf16.mxu0 0
        %1451 = vmatpush2.bf16.msra.mxu0 0
        %1452 = vmatprep.subr.bf16.mxu0 0
        %1453 = vmatpush2.bf16.msra.mxu0 0
        %1454 = vmatprep.subr.bf16.mxu0 0
        %1455 = vmatpush2.bf16.msra.mxu0 0
        %1456 = vmatprep.subr.bf16.mxu0 0
        %1457 = vmatpush2.bf16.msra.mxu0 0
        %1458 = vmatprep.subr.bf16.mxu0 0
        %1459 = vmatpush2.bf16.msra.mxu0 0
        %1460 = vmatprep.subr.bf16.mxu0 0
        %1461 = vmatpush2.bf16.msra.mxu0 0
        %1462 = vmatprep.mubr.bf16.mxu0 0
        %1463 = vmatmul.mubr.bf16.gmra.mxu0 %v1422
        %v1464 = vpop.f32.mrf.mxu0
        %v1465 = vadd.f32 0.0, %v1464
        %v1466 = vpop.f32.mrf.mxu0
        %v1467 = vadd.f32 0.0, %v1466
        %v1468 = vpop.f32.mrf.mxu0
        %v1469 = vpop.f32.mrf.mxu0
        %1470 = vdwg.mxu0
        %v1471 = vadd.f32 %v1390, %v1465
        %v1472 = vadd.f32 %v1391, %v1467
        %s1473 = scalar_lea.vmem %s1, 64
        %v1474 = vld [vmem:[%s1473] sm:$0xf]
        %v1475 = vld [vmem:[%s195] sm:$0x3f]
        %v1477 = vcombine.high %v1475, %v1475
        %v1479 = vunpack.c.l.s4 1983009808
        %v1480 = vunpack.c.0.s8 %v1479
        %v1481 = vlaneseq
        %v1482 = vshrl.u32 %v1481, 7
        %v1483 = vsub.s32 %v1480, %v1482
        %v1484 = vrot.slane %v1475, %v1483
        %v1486 = vunpack.c.l.s4 1983009808
        %v1487 = vunpack.c.0.s8 %v1486
        %v1488 = vlaneseq
        %v1489 = vshrl.u32 %v1488, 7
        %v1490 = vsub.s32 %v1487, %v1489
        %v1491 = vrot.slane %v1477, %v1490
        %v1492 = vcombine.high %v1484, %v1484
        %1493 = vrot.lane.b32.xlu0 %v1484, 7
        %v1494 = vpop.permute.xlu0 %1493
        %1495 = vrot.lane.b32.xlu0 %v1492, 7
        %v1496 = vpop.permute.xlu0 %1495
        %1497 = vrot.lane.b32.xlu0 %v1491, 7
        %v1498 = vpop.permute.xlu0 %1497
        %vm1499 = vcmask 56320
        %v1500 = vsel %vm1499, %v1494, %v1496
        %v1501 = vsel %vm1499, %v1496, %v1498
        %v1503 = vsel %vm228, %v1474, 0
        %v1506 = vsel %vm232, %v1500, 0
        %v1509 = vsel %vm232, %v1501, 0
        %1511 = vmatprep.subr.bf16.mxu0 0
        %1512 = vmatpush1.bf16.msra.mxu0 0
        %1513 = vmatprep.subr.bf16.mxu0 0
        %1514 = vmatpush1.bf16.msra.mxu0 0
        %1515 = vmatprep.subr.bf16.mxu0 0
        %1516 = vmatpush1.bf16.msra.mxu0 0
        %1517 = vmatprep.subr.bf16.mxu0 0
        %1518 = vmatpush1.bf16.msra.mxu0 0
        %1519 = vmatprep.subr.bf16.mxu0 0
        %1520 = vmatpush1.bf16.msra.mxu0 0
        %1521 = vmatprep.subr.bf16.mxu0 0
        %1522 = vmatpush1.bf16.msra.mxu0 0
        %1523 = vmatprep.subr.bf16.mxu0 0
        %1524 = vmatpush1.bf16.msra.mxu0 0
        %1525 = vmatprep.subr.bf16.mxu0 %v1509
        %1526 = vmatpush1.bf16.msra.mxu0 %v1506
        %1527 = vmatprep.subr.bf16.mxu0 0
        %1528 = vmatpush2.bf16.msra.mxu0 0
        %1529 = vmatprep.subr.bf16.mxu0 0
        %1530 = vmatpush2.bf16.msra.mxu0 0
        %1531 = vmatprep.subr.bf16.mxu0 0
        %1532 = vmatpush2.bf16.msra.mxu0 0
        %1533 = vmatprep.subr.bf16.mxu0 0
        %1534 = vmatpush2.bf16.msra.mxu0 0
        %1535 = vmatprep.subr.bf16.mxu0 0
        %1536 = vmatpush2.bf16.msra.mxu0 0
        %1537 = vmatprep.subr.bf16.mxu0 0
        %1538 = vmatpush2.bf16.msra.mxu0 0
        %1539 = vmatprep.subr.bf16.mxu0 0
        %1540 = vmatpush2.bf16.msra.mxu0 0
        %1541 = vmatprep.subr.bf16.mxu0 0
        %1542 = vmatpush2.bf16.msra.mxu0 0
        %1543 = vmatprep.mubr.bf16.mxu0 0
        %1544 = vmatmul.mubr.bf16.gmra.mxu0 %v1503
        %v1545 = vpop.f32.mrf.mxu0
        %v1546 = vadd.f32 0.0, %v1545
        %v1547 = vpop.f32.mrf.mxu0
        %v1548 = vadd.f32 0.0, %v1547
        %v1549 = vpop.f32.mrf.mxu0
        %v1550 = vpop.f32.mrf.mxu0
        %1551 = vdwg.mxu0
        %v1552 = vadd.f32 %v1471, %v1546
        %v1553 = vadd.f32 %v1472, %v1548
        %s1554 = scalar_lea.vmem %s1, 68
        %v1555 = vld [vmem:[%s1554] sm:$0xf]
        %v1556 = vld [vmem:[%s195] sm:$0x3f]
        %v1558 = vcombine.high %v1556, %v1556
        %v1560 = vunpack.c.l.s4 1983009808
        %v1561 = vunpack.c.0.s8 %v1560
        %v1562 = vlaneseq
        %v1563 = vshrl.u32 %v1562, 7
        %v1564 = vsub.s32 %v1561, %v1563
        %v1565 = vrot.slane %v1556, %v1564
        %v1567 = vunpack.c.l.s4 1983009808
        %v1568 = vunpack.c.0.s8 %v1567
        %v1569 = vlaneseq
        %v1570 = vshrl.u32 %v1569, 7
        %v1571 = vsub.s32 %v1568, %v1570
        %v1572 = vrot.slane %v1558, %v1571
        %v1573 = vcombine.high %v1565, %v1565
        %1574 = vrot.lane.b32.xlu0 %v1565, 6
        %v1575 = vpop.permute.xlu0 %1574
        %1576 = vrot.lane.b32.xlu0 %v1573, 6
        %v1577 = vpop.permute.xlu0 %1576
        %1578 = vrot.lane.b32.xlu0 %v1572, 6
        %v1579 = vpop.permute.xlu0 %1578
        %vm1580 = vcmask 48128
        %v1581 = vsel %vm1580, %v1575, %v1577
        %v1582 = vsel %vm1580, %v1577, %v1579
        %v1584 = vsel %vm228, %v1555, 0
        %v1587 = vsel %vm232, %v1581, 0
        %v1590 = vsel %vm232, %v1582, 0
        %1592 = vmatprep.subr.bf16.mxu0 0
        %1593 = vmatpush1.bf16.msra.mxu0 0
        %1594 = vmatprep.subr.bf16.mxu0 0
        %1595 = vmatpush1.bf16.msra.mxu0 0
        %1596 = vmatprep.subr.bf16.mxu0 0
        %1597 = vmatpush1.bf16.msra.mxu0 0
        %1598 = vmatprep.subr.bf16.mxu0 0
        %1599 = vmatpush1.bf16.msra.mxu0 0
        %1600 = vmatprep.subr.bf16.mxu0 0
        %1601 = vmatpush1.bf16.msra.mxu0 0
        %1602 = vmatprep.subr.bf16.mxu0 0
        %1603 = vmatpush1.bf16.msra.mxu0 0
        %1604 = vmatprep.subr.bf16.mxu0 0
        %1605 = vmatpush1.bf16.msra.mxu0 0
        %1606 = vmatprep.subr.bf16.mxu0 %v1590
        %1607 = vmatpush1.bf16.msra.mxu0 %v1587
        %1608 = vmatprep.subr.bf16.mxu0 0
        %1609 = vmatpush2.bf16.msra.mxu0 0
        %1610 = vmatprep.subr.bf16.mxu0 0
        %1611 = vmatpush2.bf16.msra.mxu0 0
        %1612 = vmatprep.subr.bf16.mxu0 0
        %1613 = vmatpush2.bf16.msra.mxu0 0
        %1614 = vmatprep.subr.bf16.mxu0 0
        %1615 = vmatpush2.bf16.msra.mxu0 0
        %1616 = vmatprep.subr.bf16.mxu0 0
        %1617 = vmatpush2.bf16.msra.mxu0 0
        %1618 = vmatprep.subr.bf16.mxu0 0
        %1619 = vmatpush2.bf16.msra.mxu0 0
        %1620 = vmatprep.subr.bf16.mxu0 0
        %1621 = vmatpush2.bf16.msra.mxu0 0
        %1622 = vmatprep.subr.bf16.mxu0 0
        %1623 = vmatpush2.bf16.msra.mxu0 0
        %1624 = vmatprep.mubr.bf16.mxu0 0
        %1625 = vmatmul.mubr.bf16.gmra.mxu0 %v1584
        %v1626 = vpop.f32.mrf.mxu0
        %v1627 = vadd.f32 0.0, %v1626
        %v1628 = vpop.f32.mrf.mxu0
        %v1629 = vadd.f32 0.0, %v1628
        %v1630 = vpop.f32.mrf.mxu0
        %v1631 = vpop.f32.mrf.mxu0
        %1632 = vdwg.mxu0
        %v1633 = vadd.f32 %v1552, %v1627
        %v1634 = vadd.f32 %v1553, %v1629
        %s1635 = scalar_lea.vmem %s1, 72
        %v1636 = vld [vmem:[%s1635] sm:$0xf]
        %v1637 = vld [vmem:[%s195 + $0x2] sm:$0x3f]
        %v1639 = vcombine.high %v1637, %v1637
        %v1641 = vunpack.c.l.s4 1983009808
        %v1642 = vunpack.c.0.s8 %v1641
        %v1643 = vlaneseq
        %v1644 = vshrl.u32 %v1643, 7
        %v1645 = vsub.s32 %v1642, %v1644
        %v1646 = vrot.slane %v1637, %v1645
        %v1648 = vunpack.c.l.s4 1983009808
        %v1649 = vunpack.c.0.s8 %v1648
        %v1650 = vlaneseq
        %v1651 = vshrl.u32 %v1650, 7
        %v1652 = vsub.s32 %v1649, %v1651
        %v1653 = vrot.slane %v1639, %v1652
        %v1654 = vcombine.high %v1646, %v1646
        %1655 = vrot.lane.b32.xlu0 %v1646, 56
        %v1656 = vpop.permute.xlu0 %1655
        %1657 = vrot.lane.b32.xlu0 %v1654, 56
        %v1658 = vpop.permute.xlu0 %1657
        %1659 = vrot.lane.b32.xlu0 %v1653, 56
        %v1660 = vpop.permute.xlu0 %1659
        %vm1661 = vcmask 457728
        %v1662 = vsel %vm1661, %v1656, %v1658
        %v1663 = vsel %vm1661, %v1658, %v1660
        %v1665 = vsel %vm228, %v1636, 0
        %v1668 = vsel %vm232, %v1662, 0
        %v1671 = vsel %vm232, %v1663, 0
        %1673 = vmatprep.subr.bf16.mxu0 0
        %1674 = vmatpush1.bf16.msra.mxu0 0
        %1675 = vmatprep.subr.bf16.mxu0 0
        %1676 = vmatpush1.bf16.msra.mxu0 0
        %1677 = vmatprep.subr.bf16.mxu0 0
        %1678 = vmatpush1.bf16.msra.mxu0 0
        %1679 = vmatprep.subr.bf16.mxu0 0
        %1680 = vmatpush1.bf16.msra.mxu0 0
        %1681 = vmatprep.subr.bf16.mxu0 0
        %1682 = vmatpush1.bf16.msra.mxu0 0
        %1683 = vmatprep.subr.bf16.mxu0 0
        %1684 = vmatpush1.bf16.msra.mxu0 0
        %1685 = vmatprep.subr.bf16.mxu0 0
        %1686 = vmatpush1.bf16.msra.mxu0 0
        %1687 = vmatprep.subr.bf16.mxu0 %v1671
        %1688 = vmatpush1.bf16.msra.mxu0 %v1668
        %1689 = vmatprep.subr.bf16.mxu0 0
        %1690 = vmatpush2.bf16.msra.mxu0 0
        %1691 = vmatprep.subr.bf16.mxu0 0
        %1692 = vmatpush2.bf16.msra.mxu0 0
        %1693 = vmatprep.subr.bf16.mxu0 0
        %1694 = vmatpush2.bf16.msra.mxu0 0
        %1695 = vmatprep.subr.bf16.mxu0 0
        %1696 = vmatpush2.bf16.msra.mxu0 0
        %1697 = vmatprep.subr.bf16.mxu0 0
        %1698 = vmatpush2.bf16.msra.mxu0 0
        %1699 = vmatprep.subr.bf16.mxu0 0
        %1700 = vmatpush2.bf16.msra.mxu0 0
        %1701 = vmatprep.subr.bf16.mxu0 0
        %1702 = vmatpush2.bf16.msra.mxu0 0
        %1703 = vmatprep.subr.bf16.mxu0 0
        %1704 = vmatpush2.bf16.msra.mxu0 0
        %1705 = vmatprep.mubr.bf16.mxu0 0
        %1706 = vmatmul.mubr.bf16.gmra.mxu0 %v1665
        %v1707 = vpop.f32.mrf.mxu0
        %v1708 = vadd.f32 0.0, %v1707
        %v1709 = vpop.f32.mrf.mxu0
        %v1710 = vadd.f32 0.0, %v1709
        %v1711 = vpop.f32.mrf.mxu0
        %v1712 = vpop.f32.mrf.mxu0
        %1713 = vdwg.mxu0
        %v1714 = vadd.f32 %v1633, %v1708
        %v1715 = vadd.f32 %v1634, %v1710
        %s1716 = scalar_lea.vmem %s1, 76
        %v1717 = vld [vmem:[%s1716] sm:$0xf]
        %v1718 = vld [vmem:[%s195 + $0x2] sm:$0x3f]
        %v1720 = vcombine.high %v1718, %v1718
        %v1722 = vunpack.c.l.s4 1983009808
        %v1723 = vunpack.c.0.s8 %v1722
        %v1724 = vlaneseq
        %v1725 = vshrl.u32 %v1724, 7
        %v1726 = vsub.s32 %v1723, %v1725
        %v1727 = vrot.slane %v1718, %v1726
        %v1729 = vunpack.c.l.s4 1983009808
        %v1730 = vunpack.c.0.s8 %v1729
        %v1731 = vlaneseq
        %v1732 = vshrl.u32 %v1731, 7
        %v1733 = vsub.s32 %v1730, %v1732
        %v1734 = vrot.slane %v1720, %v1733
        %v1735 = vcombine.high %v1727, %v1727
        %1736 = vrot.lane.b32.xlu0 %v1727, 55
        %v1737 = vpop.permute.xlu0 %1736
        %1738 = vrot.lane.b32.xlu0 %v1735, 55
        %v1739 = vpop.permute.xlu0 %1738
        %1740 = vrot.lane.b32.xlu0 %v1734, 55
        %v1741 = vpop.permute.xlu0 %1740
        %vm1742 = vcmask 449536
        %v1743 = vsel %vm1742, %v1737, %v1739
        %v1744 = vsel %vm1742, %v1739, %v1741
        %v1746 = vsel %vm228, %v1717, 0
        %v1749 = vsel %vm232, %v1743, 0
        %v1752 = vsel %vm232, %v1744, 0
        %1754 = vmatprep.subr.bf16.mxu0 0
        %1755 = vmatpush1.bf16.msra.mxu0 0
        %1756 = vmatprep.subr.bf16.mxu0 0
        %1757 = vmatpush1.bf16.msra.mxu0 0
        %1758 = vmatprep.subr.bf16.mxu0 0
        %1759 = vmatpush1.bf16.msra.mxu0 0
        %1760 = vmatprep.subr.bf16.mxu0 0
        %1761 = vmatpush1.bf16.msra.mxu0 0
        %1762 = vmatprep.subr.bf16.mxu0 0
        %1763 = vmatpush1.bf16.msra.mxu0 0
        %1764 = vmatprep.subr.bf16.mxu0 0
        %1765 = vmatpush1.bf16.msra.mxu0 0
        %1766 = vmatprep.subr.bf16.mxu0 0
        %1767 = vmatpush1.bf16.msra.mxu0 0
        %1768 = vmatprep.subr.bf16.mxu0 %v1752
        %1769 = vmatpush1.bf16.msra.mxu0 %v1749
        %1770 = vmatprep.subr.bf16.mxu0 0
        %1771 = vmatpush2.bf16.msra.mxu0 0
        %1772 = vmatprep.subr.bf16.mxu0 0
        %1773 = vmatpush2.bf16.msra.mxu0 0
        %1774 = vmatprep.subr.bf16.mxu0 0
        %1775 = vmatpush2.bf16.msra.mxu0 0
        %1776 = vmatprep.subr.bf16.mxu0 0
        %1777 = vmatpush2.bf16.msra.mxu0 0
        %1778 = vmatprep.subr.bf16.mxu0 0
        %1779 = vmatpush2.bf16.msra.mxu0 0
        %1780 = vmatprep.subr.bf16.mxu0 0
        %1781 = vmatpush2.bf16.msra.mxu0 0
        %1782 = vmatprep.subr.bf16.mxu0 0
        %1783 = vmatpush2.bf16.msra.mxu0 0
        %1784 = vmatprep.subr.bf16.mxu0 0
        %1785 = vmatpush2.bf16.msra.mxu0 0
        %1786 = vmatprep.mubr.bf16.mxu0 0
        %1787 = vmatmul.mubr.bf16.gmra.mxu0 %v1746
        %v1788 = vpop.f32.mrf.mxu0
        %v1789 = vadd.f32 0.0, %v1788
        %v1790 = vpop.f32.mrf.mxu0
        %v1791 = vadd.f32 0.0, %v1790
        %v1792 = vpop.f32.mrf.mxu0
        %v1793 = vpop.f32.mrf.mxu0
        %1794 = vdwg.mxu0
        %v1795 = vadd.f32 %v1714, %v1789
        %v1796 = vadd.f32 %v1715, %v1791
        %s1797 = scalar_lea.vmem %s1, 80
        %v1798 = vld [vmem:[%s1797] sm:$0xf]
        %v1799 = vld [vmem:[%s195 + $0x2] sm:$0x3f]
        %v1801 = vcombine.high %v1799, %v1799
        %v1803 = vunpack.c.l.s4 1983009808
        %v1804 = vunpack.c.0.s8 %v1803
        %v1805 = vlaneseq
        %v1806 = vshrl.u32 %v1805, 7
        %v1807 = vsub.s32 %v1804, %v1806
        %v1808 = vrot.slane %v1799, %v1807
        %v1810 = vunpack.c.l.s4 1983009808
        %v1811 = vunpack.c.0.s8 %v1810
        %v1812 = vlaneseq
        %v1813 = vshrl.u32 %v1812, 7
        %v1814 = vsub.s32 %v1811, %v1813
        %v1815 = vrot.slane %v1801, %v1814
        %v1816 = vcombine.high %v1808, %v1808
        %1817 = vrot.lane.b32.xlu0 %v1808, 54
        %v1818 = vpop.permute.xlu0 %1817
        %1819 = vrot.lane.b32.xlu0 %v1816, 54
        %v1820 = vpop.permute.xlu0 %1819
        %1821 = vrot.lane.b32.xlu0 %v1815, 54
        %v1822 = vpop.permute.xlu0 %1821
        %vm1823 = vcmask 441344
        %v1824 = vsel %vm1823, %v1818, %v1820
        %v1825 = vsel %vm1823, %v1820, %v1822
        %v1827 = vsel %vm228, %v1798, 0
        %v1830 = vsel %vm232, %v1824, 0
        %v1833 = vsel %vm232, %v1825, 0
        %1835 = vmatprep.subr.bf16.mxu0 0
        %1836 = vmatpush1.bf16.msra.mxu0 0
        %1837 = vmatprep.subr.bf16.mxu0 0
        %1838 = vmatpush1.bf16.msra.mxu0 0
        %1839 = vmatprep.subr.bf16.mxu0 0
        %1840 = vmatpush1.bf16.msra.mxu0 0
        %1841 = vmatprep.subr.bf16.mxu0 0
        %1842 = vmatpush1.bf16.msra.mxu0 0
        %1843 = vmatprep.subr.bf16.mxu0 0
        %1844 = vmatpush1.bf16.msra.mxu0 0
        %1845 = vmatprep.subr.bf16.mxu0 0
        %1846 = vmatpush1.bf16.msra.mxu0 0
        %1847 = vmatprep.subr.bf16.mxu0 0
        %1848 = vmatpush1.bf16.msra.mxu0 0
        %1849 = vmatprep.subr.bf16.mxu0 %v1833
        %1850 = vmatpush1.bf16.msra.mxu0 %v1830
        %1851 = vmatprep.subr.bf16.mxu0 0
        %1852 = vmatpush2.bf16.msra.mxu0 0
        %1853 = vmatprep.subr.bf16.mxu0 0
        %1854 = vmatpush2.bf16.msra.mxu0 0
        %1855 = vmatprep.subr.bf16.mxu0 0
        %1856 = vmatpush2.bf16.msra.mxu0 0
        %1857 = vmatprep.subr.bf16.mxu0 0
        %1858 = vmatpush2.bf16.msra.mxu0 0
        %1859 = vmatprep.subr.bf16.mxu0 0
        %1860 = vmatpush2.bf16.msra.mxu0 0
        %1861 = vmatprep.subr.bf16.mxu0 0
        %1862 = vmatpush2.bf16.msra.mxu0 0
        %1863 = vmatprep.subr.bf16.mxu0 0
        %1864 = vmatpush2.bf16.msra.mxu0 0
        %1865 = vmatprep.subr.bf16.mxu0 0
        %1866 = vmatpush2.bf16.msra.mxu0 0
        %1867 = vmatprep.mubr.bf16.mxu0 0
        %1868 = vmatmul.mubr.bf16.gmra.mxu0 %v1827
        %v1869 = vpop.f32.mrf.mxu0
        %v1870 = vadd.f32 0.0, %v1869
        %v1871 = vpop.f32.mrf.mxu0
        %v1872 = vadd.f32 0.0, %v1871
        %v1873 = vpop.f32.mrf.mxu0
        %v1874 = vpop.f32.mrf.mxu0
        %1875 = vdwg.mxu0
        %v1876 = vadd.f32 %v1795, %v1870
        %v1877 = vadd.f32 %v1796, %v1872
        %s1878 = scalar_lea.vmem %s1, 84
        %v1879 = vld [vmem:[%s1878] sm:$0xf]
        %v1880 = vld [vmem:[%s195 + $0x2] sm:$0x3f]
        %v1882 = vcombine.high %v1880, %v1880
        %v1884 = vunpack.c.l.s4 1983009808
        %v1885 = vunpack.c.0.s8 %v1884
        %v1886 = vlaneseq
        %v1887 = vshrl.u32 %v1886, 7
        %v1888 = vsub.s32 %v1885, %v1887
        %v1889 = vrot.slane %v1880, %v1888
        %v1891 = vunpack.c.l.s4 1983009808
        %v1892 = vunpack.c.0.s8 %v1891
        %v1893 = vlaneseq
        %v1894 = vshrl.u32 %v1893, 7
        %v1895 = vsub.s32 %v1892, %v1894
        %v1896 = vrot.slane %v1882, %v1895
        %v1897 = vcombine.high %v1889, %v1889
        %1898 = vrot.lane.b32.xlu0 %v1889, 46
        %v1899 = vpop.permute.xlu0 %1898
        %1900 = vrot.lane.b32.xlu0 %v1897, 46
        %v1901 = vpop.permute.xlu0 %1900
        %1902 = vrot.lane.b32.xlu0 %v1896, 46
        %v1903 = vpop.permute.xlu0 %1902
        %vm1904 = vcmask 375808
        %v1905 = vsel %vm1904, %v1899, %v1901
        %v1906 = vsel %vm1904, %v1901, %v1903
        %v1908 = vsel %vm228, %v1879, 0
        %v1911 = vsel %vm232, %v1905, 0
        %v1914 = vsel %vm232, %v1906, 0
        %1916 = vmatprep.subr.bf16.mxu0 0
        %1917 = vmatpush1.bf16.msra.mxu0 0
        %1918 = vmatprep.subr.bf16.mxu0 0
        %1919 = vmatpush1.bf16.msra.mxu0 0
        %1920 = vmatprep.subr.bf16.mxu0 0
        %1921 = vmatpush1.bf16.msra.mxu0 0
        %1922 = vmatprep.subr.bf16.mxu0 0
        %1923 = vmatpush1.bf16.msra.mxu0 0
        %1924 = vmatprep.subr.bf16.mxu0 0
        %1925 = vmatpush1.bf16.msra.mxu0 0
        %1926 = vmatprep.subr.bf16.mxu0 0
        %1927 = vmatpush1.bf16.msra.mxu0 0
        %1928 = vmatprep.subr.bf16.mxu0 0
        %1929 = vmatpush1.bf16.msra.mxu0 0
        %1930 = vmatprep.subr.bf16.mxu0 %v1914
        %1931 = vmatpush1.bf16.msra.mxu0 %v1911
        %1932 = vmatprep.subr.bf16.mxu0 0
        %1933 = vmatpush2.bf16.msra.mxu0 0
        %1934 = vmatprep.subr.bf16.mxu0 0
        %1935 = vmatpush2.bf16.msra.mxu0 0
        %1936 = vmatprep.subr.bf16.mxu0 0
        %1937 = vmatpush2.bf16.msra.mxu0 0
        %1938 = vmatprep.subr.bf16.mxu0 0
        %1939 = vmatpush2.bf16.msra.mxu0 0
        %1940 = vmatprep.subr.bf16.mxu0 0
        %1941 = vmatpush2.bf16.msra.mxu0 0
        %1942 = vmatprep.subr.bf16.mxu0 0
        %1943 = vmatpush2.bf16.msra.mxu0 0
        %1944 = vmatprep.subr.bf16.mxu0 0
        %1945 = vmatpush2.bf16.msra.mxu0 0
        %1946 = vmatprep.subr.bf16.mxu0 0
        %1947 = vmatpush2.bf16.msra.mxu0 0
        %1948 = vmatprep.mubr.bf16.mxu0 0
        %1949 = vmatmul.mubr.bf16.gmra.mxu0 %v1908
        %v1950 = vpop.f32.mrf.mxu0
        %v1951 = vadd.f32 0.0, %v1950
        %v1952 = vpop.f32.mrf.mxu0
        %v1953 = vadd.f32 0.0, %v1952
        %v1954 = vpop.f32.mrf.mxu0
        %v1955 = vpop.f32.mrf.mxu0
        %1956 = vdwg.mxu0
        %v1957 = vadd.f32 %v1876, %v1951
        %v1958 = vadd.f32 %v1877, %v1953
        %s1959 = scalar_lea.vmem %s1, 88
        %v1960 = vld [vmem:[%s1959] sm:$0xf]
        %v1961 = vld [vmem:[%s195 + $0x2] sm:$0x3f]
        %v1963 = vcombine.high %v1961, %v1961
        %v1965 = vunpack.c.l.s4 1983009808
        %v1966 = vunpack.c.0.s8 %v1965
        %v1967 = vlaneseq
        %v1968 = vshrl.u32 %v1967, 7
        %v1969 = vsub.s32 %v1966, %v1968
        %v1970 = vrot.slane %v1961, %v1969
        %v1972 = vunpack.c.l.s4 1983009808
        %v1973 = vunpack.c.0.s8 %v1972
        %v1974 = vlaneseq
        %v1975 = vshrl.u32 %v1974, 7
        %v1976 = vsub.s32 %v1973, %v1975
        %v1977 = vrot.slane %v1963, %v1976
        %v1978 = vcombine.high %v1970, %v1970
        %1979 = vrot.lane.b32.xlu0 %v1970, 45
        %v1980 = vpop.permute.xlu0 %1979
        %1981 = vrot.lane.b32.xlu0 %v1978, 45
        %v1982 = vpop.permute.xlu0 %1981
        %1983 = vrot.lane.b32.xlu0 %v1977, 45
        %v1984 = vpop.permute.xlu0 %1983
        %vm1985 = vcmask 367616
        %v1986 = vsel %vm1985, %v1980, %v1982
        %v1987 = vsel %vm1985, %v1982, %v1984
        %v1989 = vsel %vm228, %v1960, 0
        %v1992 = vsel %vm232, %v1986, 0
        %v1995 = vsel %vm232, %v1987, 0
        %1997 = vmatprep.subr.bf16.mxu0 0
        %1998 = vmatpush1.bf16.msra.mxu0 0
        %1999 = vmatprep.subr.bf16.mxu0 0
        %2000 = vmatpush1.bf16.msra.mxu0 0
        %2001 = vmatprep.subr.bf16.mxu0 0
        %2002 = vmatpush1.bf16.msra.mxu0 0
        %2003 = vmatprep.subr.bf16.mxu0 0
        %2004 = vmatpush1.bf16.msra.mxu0 0
        %2005 = vmatprep.subr.bf16.mxu0 0
        %2006 = vmatpush1.bf16.msra.mxu0 0
        %2007 = vmatprep.subr.bf16.mxu0 0
        %2008 = vmatpush1.bf16.msra.mxu0 0
        %2009 = vmatprep.subr.bf16.mxu0 0
        %2010 = vmatpush1.bf16.msra.mxu0 0
        %2011 = vmatprep.subr.bf16.mxu0 %v1995
        %2012 = vmatpush1.bf16.msra.mxu0 %v1992
        %2013 = vmatprep.subr.bf16.mxu0 0
        %2014 = vmatpush2.bf16.msra.mxu0 0
        %2015 = vmatprep.subr.bf16.mxu0 0
        %2016 = vmatpush2.bf16.msra.mxu0 0
        %2017 = vmatprep.subr.bf16.mxu0 0
        %2018 = vmatpush2.bf16.msra.mxu0 0
        %2019 = vmatprep.subr.bf16.mxu0 0
        %2020 = vmatpush2.bf16.msra.mxu0 0
        %2021 = vmatprep.subr.bf16.mxu0 0
        %2022 = vmatpush2.bf16.msra.mxu0 0
        %2023 = vmatprep.subr.bf16.mxu0 0
        %2024 = vmatpush2.bf16.msra.mxu0 0
        %2025 = vmatprep.subr.bf16.mxu0 0
        %2026 = vmatpush2.bf16.msra.mxu0 0
        %2027 = vmatprep.subr.bf16.mxu0 0
        %2028 = vmatpush2.bf16.msra.mxu0 0
        %2029 = vmatprep.mubr.bf16.mxu0 0
        %2030 = vmatmul.mubr.bf16.gmra.mxu0 %v1989
        %v2031 = vpop.f32.mrf.mxu0
        %v2032 = vadd.f32 0.0, %v2031
        %v2033 = vpop.f32.mrf.mxu0
        %v2034 = vadd.f32 0.0, %v2033
        %v2035 = vpop.f32.mrf.mxu0
        %v2036 = vpop.f32.mrf.mxu0
        %2037 = vdwg.mxu0
        %v2038 = vadd.f32 %v1957, %v2032
        %v2039 = vadd.f32 %v1958, %v2034
        %s2040 = scalar_lea.vmem %s1, 92
        %v2041 = vld [vmem:[%s2040] sm:$0xf]
        %v2042 = vld [vmem:[%s195 + $0x2] sm:$0x3f]
        %v2044 = vcombine.high %v2042, %v2042
        %v2046 = vunpack.c.l.s4 1983009808
        %v2047 = vunpack.c.0.s8 %v2046
        %v2048 = vlaneseq
        %v2049 = vshrl.u32 %v2048, 7
        %v2050 = vsub.s32 %v2047, %v2049
        %v2051 = vrot.slane %v2042, %v2050
        %v2053 = vunpack.c.l.s4 1983009808
        %v2054 = vunpack.c.0.s8 %v2053
        %v2055 = vlaneseq
        %v2056 = vshrl.u32 %v2055, 7
        %v2057 = vsub.s32 %v2054, %v2056
        %v2058 = vrot.slane %v2044, %v2057
        %v2059 = vcombine.high %v2051, %v2051
        %2060 = vrot.lane.b32.xlu0 %v2051, 44
        %v2061 = vpop.permute.xlu0 %2060
        %2062 = vrot.lane.b32.xlu0 %v2059, 44
        %v2063 = vpop.permute.xlu0 %2062
        %2064 = vrot.lane.b32.xlu0 %v2058, 44
        %v2065 = vpop.permute.xlu0 %2064
        %vm2066 = vcmask 359424
        %v2067 = vsel %vm2066, %v2061, %v2063
        %v2068 = vsel %vm2066, %v2063, %v2065
        %v2070 = vsel %vm228, %v2041, 0
        %v2073 = vsel %vm232, %v2067, 0
        %v2076 = vsel %vm232, %v2068, 0
        %2078 = vmatprep.subr.bf16.mxu0 0
        %2079 = vmatpush1.bf16.msra.mxu0 0
        %2080 = vmatprep.subr.bf16.mxu0 0
        %2081 = vmatpush1.bf16.msra.mxu0 0
        %2082 = vmatprep.subr.bf16.mxu0 0
        %2083 = vmatpush1.bf16.msra.mxu0 0
        %2084 = vmatprep.subr.bf16.mxu0 0
        %2085 = vmatpush1.bf16.msra.mxu0 0
        %2086 = vmatprep.subr.bf16.mxu0 0
        %2087 = vmatpush1.bf16.msra.mxu0 0
        %2088 = vmatprep.subr.bf16.mxu0 0
        %2089 = vmatpush1.bf16.msra.mxu0 0
        %2090 = vmatprep.subr.bf16.mxu0 0
        %2091 = vmatpush1.bf16.msra.mxu0 0
        %2092 = vmatprep.subr.bf16.mxu0 %v2076
        %2093 = vmatpush1.bf16.msra.mxu0 %v2073
        %2094 = vmatprep.subr.bf16.mxu0 0
        %2095 = vmatpush2.bf16.msra.mxu0 0
        %2096 = vmatprep.subr.bf16.mxu0 0
        %2097 = vmatpush2.bf16.msra.mxu0 0
        %2098 = vmatprep.subr.bf16.mxu0 0
        %2099 = vmatpush2.bf16.msra.mxu0 0
        %2100 = vmatprep.subr.bf16.mxu0 0
        %2101 = vmatpush2.bf16.msra.mxu0 0
        %2102 = vmatprep.subr.bf16.mxu0 0
        %2103 = vmatpush2.bf16.msra.mxu0 0
        %2104 = vmatprep.subr.bf16.mxu0 0
        %2105 = vmatpush2.bf16.msra.mxu0 0
        %2106 = vmatprep.subr.bf16.mxu0 0
        %2107 = vmatpush2.bf16.msra.mxu0 0
        %2108 = vmatprep.subr.bf16.mxu0 0
        %2109 = vmatpush2.bf16.msra.mxu0 0
        %2110 = vmatprep.mubr.bf16.mxu0 0
        %2111 = vmatmul.mubr.bf16.gmra.mxu0 %v2070
        %v2112 = vpop.f32.mrf.mxu0
        %v2113 = vadd.f32 0.0, %v2112
        %v2114 = vpop.f32.mrf.mxu0
        %v2115 = vadd.f32 0.0, %v2114
        %v2116 = vpop.f32.mrf.mxu0
        %v2117 = vpop.f32.mrf.mxu0
        %2118 = vdwg.mxu0
        %v2119 = vadd.f32 %v2038, %v2113
        %v2120 = vadd.f32 %v2039, %v2115
        %s2121 = scalar_lea.vmem %s1, 96
        %v2122 = vld [vmem:[%s2121] sm:$0xf]
        %v2123 = vld [vmem:[%s195 + $0x2] sm:$0x3f]
        %v2125 = vcombine.high %v2123, %v2123
        %v2127 = vunpack.c.l.s4 1983009808
        %v2128 = vunpack.c.0.s8 %v2127
        %v2129 = vlaneseq
        %v2130 = vshrl.u32 %v2129, 7
        %v2131 = vsub.s32 %v2128, %v2130
        %v2132 = vrot.slane %v2123, %v2131
        %v2134 = vunpack.c.l.s4 1983009808
        %v2135 = vunpack.c.0.s8 %v2134
        %v2136 = vlaneseq
        %v2137 = vshrl.u32 %v2136, 7
        %v2138 = vsub.s32 %v2135, %v2137
        %v2139 = vrot.slane %v2125, %v2138
        %v2140 = vcombine.high %v2132, %v2132
        %2141 = vrot.lane.b32.xlu0 %v2132, 36
        %v2142 = vpop.permute.xlu0 %2141
        %2143 = vrot.lane.b32.xlu0 %v2140, 36
        %v2144 = vpop.permute.xlu0 %2143
        %2145 = vrot.lane.b32.xlu0 %v2139, 36
        %v2146 = vpop.permute.xlu0 %2145
        %vm2147 = vcmask 293888
        %v2148 = vsel %vm2147, %v2142, %v2144
        %v2149 = vsel %vm2147, %v2144, %v2146
        %v2151 = vsel %vm228, %v2122, 0
        %v2154 = vsel %vm232, %v2148, 0
        %v2157 = vsel %vm232, %v2149, 0
        %2159 = vmatprep.subr.bf16.mxu0 0
        %2160 = vmatpush1.bf16.msra.mxu0 0
        %2161 = vmatprep.subr.bf16.mxu0 0
        %2162 = vmatpush1.bf16.msra.mxu0 0
        %2163 = vmatprep.subr.bf16.mxu0 0
        %2164 = vmatpush1.bf16.msra.mxu0 0
        %2165 = vmatprep.subr.bf16.mxu0 0
        %2166 = vmatpush1.bf16.msra.mxu0 0
        %2167 = vmatprep.subr.bf16.mxu0 0
        %2168 = vmatpush1.bf16.msra.mxu0 0
        %2169 = vmatprep.subr.bf16.mxu0 0
        %2170 = vmatpush1.bf16.msra.mxu0 0
        %2171 = vmatprep.subr.bf16.mxu0 0
        %2172 = vmatpush1.bf16.msra.mxu0 0
        %2173 = vmatprep.subr.bf16.mxu0 %v2157
        %2174 = vmatpush1.bf16.msra.mxu0 %v2154
        %2175 = vmatprep.subr.bf16.mxu0 0
        %2176 = vmatpush2.bf16.msra.mxu0 0
        %2177 = vmatprep.subr.bf16.mxu0 0
        %2178 = vmatpush2.bf16.msra.mxu0 0
        %2179 = vmatprep.subr.bf16.mxu0 0
        %2180 = vmatpush2.bf16.msra.mxu0 0
        %2181 = vmatprep.subr.bf16.mxu0 0
        %2182 = vmatpush2.bf16.msra.mxu0 0
        %2183 = vmatprep.subr.bf16.mxu0 0
        %2184 = vmatpush2.bf16.msra.mxu0 0
        %2185 = vmatprep.subr.bf16.mxu0 0
        %2186 = vmatpush2.bf16.msra.mxu0 0
        %2187 = vmatprep.subr.bf16.mxu0 0
        %2188 = vmatpush2.bf16.msra.mxu0 0
        %2189 = vmatprep.subr.bf16.mxu0 0
        %2190 = vmatpush2.bf16.msra.mxu0 0
        %2191 = vmatprep.mubr.bf16.mxu0 0
        %2192 = vmatmul.mubr.bf16.gmra.mxu0 %v2151
        %v2193 = vpop.f32.mrf.mxu0
        %v2194 = vadd.f32 0.0, %v2193
        %v2195 = vpop.f32.mrf.mxu0
        %v2196 = vadd.f32 0.0, %v2195
        %v2197 = vpop.f32.mrf.mxu0
        %v2198 = vpop.f32.mrf.mxu0
        %2199 = vdwg.mxu0
        %v2200 = vadd.f32 %v2119, %v2194
        %v2201 = vadd.f32 %v2120, %v2196
        %s2202 = scalar_lea.vmem %s1, 100
        %v2203 = vld [vmem:[%s2202] sm:$0xf]
        %v2204 = vld [vmem:[%s195 + $0x2] sm:$0x3f]
        %v2206 = vcombine.high %v2204, %v2204
        %v2208 = vunpack.c.l.s4 1983009808
        %v2209 = vunpack.c.0.s8 %v2208
        %v2210 = vlaneseq
        %v2211 = vshrl.u32 %v2210, 7
        %v2212 = vsub.s32 %v2209, %v2211
        %v2213 = vrot.slane %v2204, %v2212
        %v2215 = vunpack.c.l.s4 1983009808
        %v2216 = vunpack.c.0.s8 %v2215
        %v2217 = vlaneseq
        %v2218 = vshrl.u32 %v2217, 7
        %v2219 = vsub.s32 %v2216, %v2218
        %v2220 = vrot.slane %v2206, %v2219
        %v2221 = vcombine.high %v2213, %v2213
        %2222 = vrot.lane.b32.xlu0 %v2213, 35
        %v2223 = vpop.permute.xlu0 %2222
        %2224 = vrot.lane.b32.xlu0 %v2221, 35
        %v2225 = vpop.permute.xlu0 %2224
        %2226 = vrot.lane.b32.xlu0 %v2220, 35
        %v2227 = vpop.permute.xlu0 %2226
        %vm2228 = vcmask 285696
        %v2229 = vsel %vm2228, %v2223, %v2225
        %v2230 = vsel %vm2228, %v2225, %v2227
        %v2232 = vsel %vm228, %v2203, 0
        %v2235 = vsel %vm232, %v2229, 0
        %v2238 = vsel %vm232, %v2230, 0
        %2240 = vmatprep.subr.bf16.mxu0 0
        %2241 = vmatpush1.bf16.msra.mxu0 0
        %2242 = vmatprep.subr.bf16.mxu0 0
        %2243 = vmatpush1.bf16.msra.mxu0 0
        %2244 = vmatprep.subr.bf16.mxu0 0
        %2245 = vmatpush1.bf16.msra.mxu0 0
        %2246 = vmatprep.subr.bf16.mxu0 0
        %2247 = vmatpush1.bf16.msra.mxu0 0
        %2248 = vmatprep.subr.bf16.mxu0 0
        %2249 = vmatpush1.bf16.msra.mxu0 0
        %2250 = vmatprep.subr.bf16.mxu0 0
        %2251 = vmatpush1.bf16.msra.mxu0 0
        %2252 = vmatprep.subr.bf16.mxu0 0
        %2253 = vmatpush1.bf16.msra.mxu0 0
        %2254 = vmatprep.subr.bf16.mxu0 %v2238
        %2255 = vmatpush1.bf16.msra.mxu0 %v2235
        %2256 = vmatprep.subr.bf16.mxu0 0
        %2257 = vmatpush2.bf16.msra.mxu0 0
        %2258 = vmatprep.subr.bf16.mxu0 0
        %2259 = vmatpush2.bf16.msra.mxu0 0
        %2260 = vmatprep.subr.bf16.mxu0 0
        %2261 = vmatpush2.bf16.msra.mxu0 0
        %2262 = vmatprep.subr.bf16.mxu0 0
        %2263 = vmatpush2.bf16.msra.mxu0 0
        %2264 = vmatprep.subr.bf16.mxu0 0
        %2265 = vmatpush2.bf16.msra.mxu0 0
        %2266 = vmatprep.subr.bf16.mxu0 0
        %2267 = vmatpush2.bf16.msra.mxu0 0
        %2268 = vmatprep.subr.bf16.mxu0 0
        %2269 = vmatpush2.bf16.msra.mxu0 0
        %2270 = vmatprep.subr.bf16.mxu0 0
        %2271 = vmatpush2.bf16.msra.mxu0 0
        %2272 = vmatprep.mubr.bf16.mxu0 0
        %2273 = vmatmul.mubr.bf16.gmra.mxu0 %v2232
        %v2274 = vpop.f32.mrf.mxu0
        %v2275 = vadd.f32 0.0, %v2274
        %v2276 = vpop.f32.mrf.mxu0
        %v2277 = vadd.f32 0.0, %v2276
        %v2278 = vpop.f32.mrf.mxu0
        %v2279 = vpop.f32.mrf.mxu0
        %2280 = vdwg.mxu0
        %v2281 = vadd.f32 %v2200, %v2275
        %v2282 = vadd.f32 %v2201, %v2277
        %s2283 = scalar_lea.vmem %s1, 104
        %v2284 = vld [vmem:[%s2283] sm:$0xf]
        %v2285 = vld [vmem:[%s195 + $0x2] sm:$0x3f]
        %v2287 = vcombine.high %v2285, %v2285
        %v2289 = vunpack.c.l.s4 1983009808
        %v2290 = vunpack.c.0.s8 %v2289
        %v2291 = vlaneseq
        %v2292 = vshrl.u32 %v2291, 7
        %v2293 = vsub.s32 %v2290, %v2292
        %v2294 = vrot.slane %v2285, %v2293
        %v2296 = vunpack.c.l.s4 1983009808
        %v2297 = vunpack.c.0.s8 %v2296
        %v2298 = vlaneseq
        %v2299 = vshrl.u32 %v2298, 7
        %v2300 = vsub.s32 %v2297, %v2299
        %v2301 = vrot.slane %v2287, %v2300
        %v2302 = vcombine.high %v2294, %v2294
        %2303 = vrot.lane.b32.xlu0 %v2294, 34
        %v2304 = vpop.permute.xlu0 %2303
        %2305 = vrot.lane.b32.xlu0 %v2302, 34
        %v2306 = vpop.permute.xlu0 %2305
        %2307 = vrot.lane.b32.xlu0 %v2301, 34
        %v2308 = vpop.permute.xlu0 %2307
        %vm2309 = vcmask 277504
        %v2310 = vsel %vm2309, %v2304, %v2306
        %v2311 = vsel %vm2309, %v2306, %v2308
        %v2313 = vsel %vm228, %v2284, 0
        %v2316 = vsel %vm232, %v2310, 0
        %v2319 = vsel %vm232, %v2311, 0
        %2321 = vmatprep.subr.bf16.mxu0 0
        %2322 = vmatpush1.bf16.msra.mxu0 0
        %2323 = vmatprep.subr.bf16.mxu0 0
        %2324 = vmatpush1.bf16.msra.mxu0 0
        %2325 = vmatprep.subr.bf16.mxu0 0
        %2326 = vmatpush1.bf16.msra.mxu0 0
        %2327 = vmatprep.subr.bf16.mxu0 0
        %2328 = vmatpush1.bf16.msra.mxu0 0
        %2329 = vmatprep.subr.bf16.mxu0 0
        %2330 = vmatpush1.bf16.msra.mxu0 0
        %2331 = vmatprep.subr.bf16.mxu0 0
        %2332 = vmatpush1.bf16.msra.mxu0 0
        %2333 = vmatprep.subr.bf16.mxu0 0
        %2334 = vmatpush1.bf16.msra.mxu0 0
        %2335 = vmatprep.subr.bf16.mxu0 %v2319
        %2336 = vmatpush1.bf16.msra.mxu0 %v2316
        %2337 = vmatprep.subr.bf16.mxu0 0
        %2338 = vmatpush2.bf16.msra.mxu0 0
        %2339 = vmatprep.subr.bf16.mxu0 0
        %2340 = vmatpush2.bf16.msra.mxu0 0
        %2341 = vmatprep.subr.bf16.mxu0 0
        %2342 = vmatpush2.bf16.msra.mxu0 0
        %2343 = vmatprep.subr.bf16.mxu0 0
        %2344 = vmatpush2.bf16.msra.mxu0 0
        %2345 = vmatprep.subr.bf16.mxu0 0
        %2346 = vmatpush2.bf16.msra.mxu0 0
        %2347 = vmatprep.subr.bf16.mxu0 0
        %2348 = vmatpush2.bf16.msra.mxu0 0
        %2349 = vmatprep.subr.bf16.mxu0 0
        %2350 = vmatpush2.bf16.msra.mxu0 0
        %2351 = vmatprep.subr.bf16.mxu0 0
        %2352 = vmatpush2.bf16.msra.mxu0 0
        %2353 = vmatprep.mubr.bf16.mxu0 0
        %2354 = vmatmul.mubr.bf16.gmra.mxu0 %v2313
        %v2355 = vpop.f32.mrf.mxu0
        %v2356 = vadd.f32 0.0, %v2355
        %v2357 = vpop.f32.mrf.mxu0
        %v2358 = vadd.f32 0.0, %v2357
        %v2359 = vpop.f32.mrf.mxu0
        %v2360 = vpop.f32.mrf.mxu0
        %2361 = vdwg.mxu0
        %v2362 = vadd.f32 %v2281, %v2356
        %v2363 = vadd.f32 %v2282, %v2358
        %v2364 = vld [vmem:[%s3] sm:$0x3]
        %v2365 = vunpack.c.l.bf16 %v2364
        %v2367 = vlaneseq
        %v2368 = vshrl.u32 %v2367, 7
        %v2369 = vsub.s32 0, %v2368
        %v2370 = vrot.slane %v2365, %v2369
        %v2371 = vlaneseq
        %v2372 = vshrl.u32 %v2371, 7
        %v2373 = vsub.s32 2, %v2372
        %v2374 = vrot.slane %v2365, %v2373
        %v2377 = vlaneseq
        %v2378 = vshrl.u32 %v2377, 7
        %v2379 = vsub.s32 0, %v2378
        %v2380 = vrot.slane %v2370, %v2379
        %v2381 = vlaneseq
        %v2382 = vshrl.u32 %v2381, 7
        %v2383 = vsub.s32 0, %v2382
        %v2384 = vrot.slane %v2374, %v2383
        %v2385 = vmul.f32 %v2362, %v2380
        %v2386 = vmul.f32 %v2363, %v2384
        %v2387 = vadd.f32 %v2385, %v2386
        %2388 = vadd.xlane.f32.xlu0 %v2387
        %v2389 = vpop.xlane.xlu0 %2388
        %v2390 = vadd.f32 %v2389, 0.0
        %v2391 = vmul.f32 %v2385, %v2362
        %v2392 = vmul.f32 %v2386, %v2363
        %v2393 = vadd.f32 %v2391, %v2392
        %2394 = vadd.xlane.f32.xlu0 %v2393
        %v2395 = vpop.xlane.xlu0 %2394
        %v2396 = vadd.f32 %v2395, 0.0
        %v2397 = vpack.c.bf16 %v2362, %v2362
        %v2398 = vpack.c.bf16 %v2363, %v2363
        %v2401 = vunpack.c.l.b16 %v2397
        %v2402 = vunpack.c.l.b16 %v2398
        %v2403 = vpack.c.b16 %v2402, %v2401
        %2405 = vst [vmem:[%s190] sm:$0xff] %v2403
        %v2406 = vld [vmem:[%s1] sm:$0xf]
        %v2407 = vld [vmem:[%s195 + $0x4] sm:$0xf]
        %v2408 = vld [vmem:[%s199] sm:$0xf]
        %v2409 = vld [vmem:[%s195 + $0x4] sm:$0x3f]
        %v2411 = vcombine.high %v2409, %v2409
        %v2413 = vunpack.c.l.s4 1983009808
        %v2414 = vunpack.c.0.s8 %v2413
        %v2415 = vlaneseq
        %v2416 = vshrl.u32 %v2415, 7
        %v2417 = vsub.s32 %v2414, %v2416
        %v2418 = vrot.slane %v2409, %v2417
        %v2420 = vunpack.c.l.s4 1983009808
        %v2421 = vunpack.c.0.s8 %v2420
        %v2422 = vlaneseq
        %v2423 = vshrl.u32 %v2422, 7
        %v2424 = vsub.s32 %v2421, %v2423
        %v2425 = vrot.slane %v2411, %v2424
        %v2426 = vcombine.high %v2418, %v2418
        %2427 = vrot.lane.b32.xlu0 %v2418, 127
        %v2428 = vpop.permute.xlu0 %2427
        %2429 = vrot.lane.b32.xlu0 %v2426, 127
        %v2430 = vpop.permute.xlu0 %2429
        %2431 = vrot.lane.b32.xlu0 %v2425, 127
        %v2432 = vpop.permute.xlu0 %2431
        %v2433 = vsel %vm225, %v2428, %v2430
        %v2434 = vsel %vm225, %v2430, %v2432
        %v2436 = vsel %vm228, %v2408, 0
        %v2439 = vsel %vm232, %v2433, 0
        %v2442 = vsel %vm232, %v2434, 0
        %2444 = vmatprep.subr.bf16.mxu0 0
        %2445 = vmatpush1.bf16.msra.mxu0 0
        %2446 = vmatprep.subr.bf16.mxu0 0
        %2447 = vmatpush1.bf16.msra.mxu0 0
        %2448 = vmatprep.subr.bf16.mxu0 0
        %2449 = vmatpush1.bf16.msra.mxu0 0
        %2450 = vmatprep.subr.bf16.mxu0 0
        %2451 = vmatpush1.bf16.msra.mxu0 0
        %2452 = vmatprep.subr.bf16.mxu0 0
        %2453 = vmatpush1.bf16.msra.mxu0 0
        %2454 = vmatprep.subr.bf16.mxu0 0
        %2455 = vmatpush1.bf16.msra.mxu0 0
        %2456 = vmatprep.subr.bf16.mxu0 0
        %2457 = vmatpush1.bf16.msra.mxu0 0
        %2458 = vmatprep.subr.bf16.mxu0 %v2442
        %2459 = vmatpush1.bf16.msra.mxu0 %v2439
        %2460 = vmatprep.subr.bf16.mxu0 0
        %2461 = vmatpush2.bf16.msra.mxu0 0
        %2462 = vmatprep.subr.bf16.mxu0 0
        %2463 = vmatpush2.bf16.msra.mxu0 0
        %2464 = vmatprep.subr.bf16.mxu0 0
        %2465 = vmatpush2.bf16.msra.mxu0 0
        %2466 = vmatprep.subr.bf16.mxu0 0
        %2467 = vmatpush2.bf16.msra.mxu0 0
        %2468 = vmatprep.subr.bf16.mxu0 0
        %2469 = vmatpush2.bf16.msra.mxu0 0
        %2470 = vmatprep.subr.bf16.mxu0 0
        %2471 = vmatpush2.bf16.msra.mxu0 0
        %2472 = vmatprep.subr.bf16.mxu0 0
        %2473 = vmatpush2.bf16.msra.mxu0 0
        %2474 = vmatprep.subr.bf16.mxu0 0
        %2475 = vmatpush2.bf16.msra.mxu0 0
        %2476 = vmatprep.mubr.bf16.mxu0 0
        %2477 = vmatmul.mubr.bf16.gmra.mxu0 %v2436
        %v2478 = vpop.f32.mrf.mxu0
        %v2479 = vadd.f32 0.0, %v2478
        %v2480 = vpop.f32.mrf.mxu0
        %v2481 = vadd.f32 0.0, %v2480
        %v2482 = vpop.f32.mrf.mxu0
        %v2483 = vpop.f32.mrf.mxu0
        %2484 = vdwg.mxu0
        %v2487 = vunpack.c.l.s4 1983009808
        %v2488 = vunpack.c.0.s8 %v2487
        %v2489 = vlaneseq
        %v2490 = vshrl.u32 %v2489, 7
        %v2491 = vsub.s32 %v2488, %v2490
        %v2492 = vrot.slane %v2407, %v2491
        %v2493 = vcombine.high %v2492, %v2492
        %v2495 = vsel %vm228, %v2406, 0
        %v2498 = vsel %vm232, %v2492, 0
        %v2501 = vsel %vm232, %v2493, 0
        %2503 = vmatprep.subr.bf16.mxu0 0
        %2504 = vmatpush1.bf16.msra.mxu0 0
        %2505 = vmatprep.subr.bf16.mxu0 0
        %2506 = vmatpush1.bf16.msra.mxu0 0
        %2507 = vmatprep.subr.bf16.mxu0 0
        %2508 = vmatpush1.bf16.msra.mxu0 0
        %2509 = vmatprep.subr.bf16.mxu0 0
        %2510 = vmatpush1.bf16.msra.mxu0 0
        %2511 = vmatprep.subr.bf16.mxu0 0
        %2512 = vmatpush1.bf16.msra.mxu0 0
        %2513 = vmatprep.subr.bf16.mxu0 0
        %2514 = vmatpush1.bf16.msra.mxu0 0
        %2515 = vmatprep.subr.bf16.mxu0 0
        %2516 = vmatpush1.bf16.msra.mxu0 0
        %2517 = vmatprep.subr.bf16.mxu0 %v2501
        %2518 = vmatpush1.bf16.msra.mxu0 %v2498
        %2519 = vmatprep.subr.bf16.mxu0 0
        %2520 = vmatpush2.bf16.msra.mxu0 0
        %2521 = vmatprep.subr.bf16.mxu0 0
        %2522 = vmatpush2.bf16.msra.mxu0 0
        %2523 = vmatprep.subr.bf16.mxu0 0
        %2524 = vmatpush2.bf16.msra.mxu0 0
        %2525 = vmatprep.subr.bf16.mxu0 0
        %2526 = vmatpush2.bf16.msra.mxu0 0
        %2527 = vmatprep.subr.bf16.mxu0 0
        %2528 = vmatpush2.bf16.msra.mxu0 0
        %2529 = vmatprep.subr.bf16.mxu0 0
        %2530 = vmatpush2.bf16.msra.mxu0 0
        %2531 = vmatprep.subr.bf16.mxu0 0
        %2532 = vmatpush2.bf16.msra.mxu0 0
        %2533 = vmatprep.subr.bf16.mxu0 0
        %2534 = vmatpush2.bf16.msra.mxu0 0
        %2535 = vmatprep.mubr.bf16.mxu0 0
        %2536 = vmatmul.mubr.bf16.gmra.mxu0 %v2495
        %v2537 = vpop.f32.mrf.mxu0
        %v2538 = vadd.f32 %v2479, %v2537
        %v2539 = vpop.f32.mrf.mxu0
        %v2540 = vadd.f32 %v2481, %v2539
        %v2541 = vpop.f32.mrf.mxu0
        %v2542 = vpop.f32.mrf.mxu0
        %2543 = vdwg.mxu0
        %v2544 = vld [vmem:[%s339] sm:$0xf]
        %v2545 = vld [vmem:[%s195 + $0x4] sm:$0x3f]
        %v2547 = vcombine.high %v2545, %v2545
        %v2549 = vunpack.c.l.s4 1983009808
        %v2550 = vunpack.c.0.s8 %v2549
        %v2551 = vlaneseq
        %v2552 = vshrl.u32 %v2551, 7
        %v2553 = vsub.s32 %v2550, %v2552
        %v2554 = vrot.slane %v2545, %v2553
        %v2556 = vunpack.c.l.s4 1983009808
        %v2557 = vunpack.c.0.s8 %v2556
        %v2558 = vlaneseq
        %v2559 = vshrl.u32 %v2558, 7
        %v2560 = vsub.s32 %v2557, %v2559
        %v2561 = vrot.slane %v2547, %v2560
        %v2562 = vcombine.high %v2554, %v2554
        %2563 = vrot.lane.b32.xlu0 %v2554, 126
        %v2564 = vpop.permute.xlu0 %2563
        %2565 = vrot.lane.b32.xlu0 %v2562, 126
        %v2566 = vpop.permute.xlu0 %2565
        %2567 = vrot.lane.b32.xlu0 %v2561, 126
        %v2568 = vpop.permute.xlu0 %2567
        %v2569 = vsel %vm365, %v2564, %v2566
        %v2570 = vsel %vm365, %v2566, %v2568
        %v2572 = vsel %vm228, %v2544, 0
        %v2575 = vsel %vm232, %v2569, 0
        %v2578 = vsel %vm232, %v2570, 0
        %2580 = vmatprep.subr.bf16.mxu0 0
        %2581 = vmatpush1.bf16.msra.mxu0 0
        %2582 = vmatprep.subr.bf16.mxu0 0
        %2583 = vmatpush1.bf16.msra.mxu0 0
        %2584 = vmatprep.subr.bf16.mxu0 0
        %2585 = vmatpush1.bf16.msra.mxu0 0
        %2586 = vmatprep.subr.bf16.mxu0 0
        %2587 = vmatpush1.bf16.msra.mxu0 0
        %2588 = vmatprep.subr.bf16.mxu0 0
        %2589 = vmatpush1.bf16.msra.mxu0 0
        %2590 = vmatprep.subr.bf16.mxu0 0
        %2591 = vmatpush1.bf16.msra.mxu0 0
        %2592 = vmatprep.subr.bf16.mxu0 0
        %2593 = vmatpush1.bf16.msra.mxu0 0
        %2594 = vmatprep.subr.bf16.mxu0 %v2578
        %2595 = vmatpush1.bf16.msra.mxu0 %v2575
        %2596 = vmatprep.subr.bf16.mxu0 0
        %2597 = vmatpush2.bf16.msra.mxu0 0
        %2598 = vmatprep.subr.bf16.mxu0 0
        %2599 = vmatpush2.bf16.msra.mxu0 0
        %2600 = vmatprep.subr.bf16.mxu0 0
        %2601 = vmatpush2.bf16.msra.mxu0 0
        %2602 = vmatprep.subr.bf16.mxu0 0
        %2603 = vmatpush2.bf16.msra.mxu0 0
        %2604 = vmatprep.subr.bf16.mxu0 0
        %2605 = vmatpush2.bf16.msra.mxu0 0
        %2606 = vmatprep.subr.bf16.mxu0 0
        %2607 = vmatpush2.bf16.msra.mxu0 0
        %2608 = vmatprep.subr.bf16.mxu0 0
        %2609 = vmatpush2.bf16.msra.mxu0 0
        %2610 = vmatprep.subr.bf16.mxu0 0
        %2611 = vmatpush2.bf16.msra.mxu0 0
        %2612 = vmatprep.mubr.bf16.mxu0 0
        %2613 = vmatmul.mubr.bf16.gmra.mxu0 %v2572
        %v2614 = vpop.f32.mrf.mxu0
        %v2615 = vadd.f32 0.0, %v2614
        %v2616 = vpop.f32.mrf.mxu0
        %v2617 = vadd.f32 0.0, %v2616
        %v2618 = vpop.f32.mrf.mxu0
        %v2619 = vpop.f32.mrf.mxu0
        %2620 = vdwg.mxu0
        %v2621 = vadd.f32 %v2538, %v2615
        %v2622 = vadd.f32 %v2540, %v2617
        %v2623 = vld [vmem:[%s420] sm:$0xf]
        %v2624 = vld [vmem:[%s195 + $0x4] sm:$0x3f]
        %v2626 = vcombine.high %v2624, %v2624
        %v2628 = vunpack.c.l.s4 1983009808
        %v2629 = vunpack.c.0.s8 %v2628
        %v2630 = vlaneseq
        %v2631 = vshrl.u32 %v2630, 7
        %v2632 = vsub.s32 %v2629, %v2631
        %v2633 = vrot.slane %v2624, %v2632
        %v2635 = vunpack.c.l.s4 1983009808
        %v2636 = vunpack.c.0.s8 %v2635
        %v2637 = vlaneseq
        %v2638 = vshrl.u32 %v2637, 7
        %v2639 = vsub.s32 %v2636, %v2638
        %v2640 = vrot.slane %v2626, %v2639
        %v2641 = vcombine.high %v2633, %v2633
        %2642 = vrot.lane.b32.xlu0 %v2633, 118
        %v2643 = vpop.permute.xlu0 %2642
        %2644 = vrot.lane.b32.xlu0 %v2641, 118
        %v2645 = vpop.permute.xlu0 %2644
        %2646 = vrot.lane.b32.xlu0 %v2640, 118
        %v2647 = vpop.permute.xlu0 %2646
        %v2648 = vsel %vm446, %v2643, %v2645
        %v2649 = vsel %vm446, %v2645, %v2647
        %v2651 = vsel %vm228, %v2623, 0
        %v2654 = vsel %vm232, %v2648, 0
        %v2657 = vsel %vm232, %v2649, 0
        %2659 = vmatprep.subr.bf16.mxu0 0
        %2660 = vmatpush1.bf16.msra.mxu0 0
        %2661 = vmatprep.subr.bf16.mxu0 0
        %2662 = vmatpush1.bf16.msra.mxu0 0
        %2663 = vmatprep.subr.bf16.mxu0 0
        %2664 = vmatpush1.bf16.msra.mxu0 0
        %2665 = vmatprep.subr.bf16.mxu0 0
        %2666 = vmatpush1.bf16.msra.mxu0 0
        %2667 = vmatprep.subr.bf16.mxu0 0
        %2668 = vmatpush1.bf16.msra.mxu0 0
        %2669 = vmatprep.subr.bf16.mxu0 0
        %2670 = vmatpush1.bf16.msra.mxu0 0
        %2671 = vmatprep.subr.bf16.mxu0 0
        %2672 = vmatpush1.bf16.msra.mxu0 0
        %2673 = vmatprep.subr.bf16.mxu0 %v2657
        %2674 = vmatpush1.bf16.msra.mxu0 %v2654
        %2675 = vmatprep.subr.bf16.mxu0 0
        %2676 = vmatpush2.bf16.msra.mxu0 0
        %2677 = vmatprep.subr.bf16.mxu0 0
        %2678 = vmatpush2.bf16.msra.mxu0 0
        %2679 = vmatprep.subr.bf16.mxu0 0
        %2680 = vmatpush2.bf16.msra.mxu0 0
        %2681 = vmatprep.subr.bf16.mxu0 0
        %2682 = vmatpush2.bf16.msra.mxu0 0
        %2683 = vmatprep.subr.bf16.mxu0 0
        %2684 = vmatpush2.bf16.msra.mxu0 0
        %2685 = vmatprep.subr.bf16.mxu0 0
        %2686 = vmatpush2.bf16.msra.mxu0 0
        %2687 = vmatprep.subr.bf16.mxu0 0
        %2688 = vmatpush2.bf16.msra.mxu0 0
        %2689 = vmatprep.subr.bf16.mxu0 0
        %2690 = vmatpush2.bf16.msra.mxu0 0
        %2691 = vmatprep.mubr.bf16.mxu0 0
        %2692 = vmatmul.mubr.bf16.gmra.mxu0 %v2651
        %v2693 = vpop.f32.mrf.mxu0
        %v2694 = vadd.f32 0.0, %v2693
        %v2695 = vpop.f32.mrf.mxu0
        %v2696 = vadd.f32 0.0, %v2695
        %v2697 = vpop.f32.mrf.mxu0
        %v2698 = vpop.f32.mrf.mxu0
        %2699 = vdwg.mxu0
        %v2700 = vadd.f32 %v2621, %v2694
        %v2701 = vadd.f32 %v2622, %v2696
        %v2702 = vld [vmem:[%s501] sm:$0xf]
        %v2703 = vld [vmem:[%s195 + $0x4] sm:$0x3f]
        %v2705 = vcombine.high %v2703, %v2703
        %v2707 = vunpack.c.l.s4 1983009808
        %v2708 = vunpack.c.0.s8 %v2707
        %v2709 = vlaneseq
        %v2710 = vshrl.u32 %v2709, 7
        %v2711 = vsub.s32 %v2708, %v2710
        %v2712 = vrot.slane %v2703, %v2711
        %v2714 = vunpack.c.l.s4 1983009808
        %v2715 = vunpack.c.0.s8 %v2714
        %v2716 = vlaneseq
        %v2717 = vshrl.u32 %v2716, 7
        %v2718 = vsub.s32 %v2715, %v2717
        %v2719 = vrot.slane %v2705, %v2718
        %v2720 = vcombine.high %v2712, %v2712
        %2721 = vrot.lane.b32.xlu0 %v2712, 117
        %v2722 = vpop.permute.xlu0 %2721
        %2723 = vrot.lane.b32.xlu0 %v2720, 117
        %v2724 = vpop.permute.xlu0 %2723
        %2725 = vrot.lane.b32.xlu0 %v2719, 117
        %v2726 = vpop.permute.xlu0 %2725
        %v2727 = vsel %vm527, %v2722, %v2724
        %v2728 = vsel %vm527, %v2724, %v2726
        %v2730 = vsel %vm228, %v2702, 0
        %v2733 = vsel %vm232, %v2727, 0
        %v2736 = vsel %vm232, %v2728, 0
        %2738 = vmatprep.subr.bf16.mxu0 0
        %2739 = vmatpush1.bf16.msra.mxu0 0
        %2740 = vmatprep.subr.bf16.mxu0 0
        %2741 = vmatpush1.bf16.msra.mxu0 0
        %2742 = vmatprep.subr.bf16.mxu0 0
        %2743 = vmatpush1.bf16.msra.mxu0 0
        %2744 = vmatprep.subr.bf16.mxu0 0
        %2745 = vmatpush1.bf16.msra.mxu0 0
        %2746 = vmatprep.subr.bf16.mxu0 0
        %2747 = vmatpush1.bf16.msra.mxu0 0
        %2748 = vmatprep.subr.bf16.mxu0 0
        %2749 = vmatpush1.bf16.msra.mxu0 0
        %2750 = vmatprep.subr.bf16.mxu0 0
        %2751 = vmatpush1.bf16.msra.mxu0 0
        %2752 = vmatprep.subr.bf16.mxu0 %v2736
        %2753 = vmatpush1.bf16.msra.mxu0 %v2733
        %2754 = vmatprep.subr.bf16.mxu0 0
        %2755 = vmatpush2.bf16.msra.mxu0 0
        %2756 = vmatprep.subr.bf16.mxu0 0
        %2757 = vmatpush2.bf16.msra.mxu0 0
        %2758 = vmatprep.subr.bf16.mxu0 0
        %2759 = vmatpush2.bf16.msra.mxu0 0
        %2760 = vmatprep.subr.bf16.mxu0 0
        %2761 = vmatpush2.bf16.msra.mxu0 0
        %2762 = vmatprep.subr.bf16.mxu0 0
        %2763 = vmatpush2.bf16.msra.mxu0 0
        %2764 = vmatprep.subr.bf16.mxu0 0
        %2765 = vmatpush2.bf16.msra.mxu0 0
        %2766 = vmatprep.subr.bf16.mxu0 0
        %2767 = vmatpush2.bf16.msra.mxu0 0
        %2768 = vmatprep.subr.bf16.mxu0 0
        %2769 = vmatpush2.bf16.msra.mxu0 0
        %2770 = vmatprep.mubr.bf16.mxu0 0
        %2771 = vmatmul.mubr.bf16.gmra.mxu0 %v2730
        %v2772 = vpop.f32.mrf.mxu0
        %v2773 = vadd.f32 0.0, %v2772
        %v2774 = vpop.f32.mrf.mxu0
        %v2775 = vadd.f32 0.0, %v2774
        %v2776 = vpop.f32.mrf.mxu0
        %v2777 = vpop.f32.mrf.mxu0
        %2778 = vdwg.mxu0
        %v2779 = vadd.f32 %v2700, %v2773
        %v2780 = vadd.f32 %v2701, %v2775
        %v2781 = vld [vmem:[%s582] sm:$0xf]
        %v2782 = vld [vmem:[%s195 + $0x4] sm:$0x3f]
        %v2784 = vcombine.high %v2782, %v2782
        %v2786 = vunpack.c.l.s4 1983009808
        %v2787 = vunpack.c.0.s8 %v2786
        %v2788 = vlaneseq
        %v2789 = vshrl.u32 %v2788, 7
        %v2790 = vsub.s32 %v2787, %v2789
        %v2791 = vrot.slane %v2782, %v2790
        %v2793 = vunpack.c.l.s4 1983009808
        %v2794 = vunpack.c.0.s8 %v2793
        %v2795 = vlaneseq
        %v2796 = vshrl.u32 %v2795, 7
        %v2797 = vsub.s32 %v2794, %v2796
        %v2798 = vrot.slane %v2784, %v2797
        %v2799 = vcombine.high %v2791, %v2791
        %2800 = vrot.lane.b32.xlu0 %v2791, 116
        %v2801 = vpop.permute.xlu0 %2800
        %2802 = vrot.lane.b32.xlu0 %v2799, 116
        %v2803 = vpop.permute.xlu0 %2802
        %2804 = vrot.lane.b32.xlu0 %v2798, 116
        %v2805 = vpop.permute.xlu0 %2804
        %v2806 = vsel %vm608, %v2801, %v2803
        %v2807 = vsel %vm608, %v2803, %v2805
        %v2809 = vsel %vm228, %v2781, 0
        %v2812 = vsel %vm232, %v2806, 0
        %v2815 = vsel %vm232, %v2807, 0
        %2817 = vmatprep.subr.bf16.mxu0 0
        %2818 = vmatpush1.bf16.msra.mxu0 0
        %2819 = vmatprep.subr.bf16.mxu0 0
        %2820 = vmatpush1.bf16.msra.mxu0 0
        %2821 = vmatprep.subr.bf16.mxu0 0
        %2822 = vmatpush1.bf16.msra.mxu0 0
        %2823 = vmatprep.subr.bf16.mxu0 0
        %2824 = vmatpush1.bf16.msra.mxu0 0
        %2825 = vmatprep.subr.bf16.mxu0 0
        %2826 = vmatpush1.bf16.msra.mxu0 0
        %2827 = vmatprep.subr.bf16.mxu0 0
        %2828 = vmatpush1.bf16.msra.mxu0 0
        %2829 = vmatprep.subr.bf16.mxu0 0
        %2830 = vmatpush1.bf16.msra.mxu0 0
        %2831 = vmatprep.subr.bf16.mxu0 %v2815
        %2832 = vmatpush1.bf16.msra.mxu0 %v2812
        %2833 = vmatprep.subr.bf16.mxu0 0
        %2834 = vmatpush2.bf16.msra.mxu0 0
        %2835 = vmatprep.subr.bf16.mxu0 0
        %2836 = vmatpush2.bf16.msra.mxu0 0
        %2837 = vmatprep.subr.bf16.mxu0 0
        %2838 = vmatpush2.bf16.msra.mxu0 0
        %2839 = vmatprep.subr.bf16.mxu0 0
        %2840 = vmatpush2.bf16.msra.mxu0 0
        %2841 = vmatprep.subr.bf16.mxu0 0
        %2842 = vmatpush2.bf16.msra.mxu0 0
        %2843 = vmatprep.subr.bf16.mxu0 0
        %2844 = vmatpush2.bf16.msra.mxu0 0
        %2845 = vmatprep.subr.bf16.mxu0 0
        %2846 = vmatpush2.bf16.msra.mxu0 0
        %2847 = vmatprep.subr.bf16.mxu0 0
        %2848 = vmatpush2.bf16.msra.mxu0 0
        %2849 = vmatprep.mubr.bf16.mxu0 0
        %2850 = vmatmul.mubr.bf16.gmra.mxu0 %v2809
        %v2851 = vpop.f32.mrf.mxu0
        %v2852 = vadd.f32 0.0, %v2851
        %v2853 = vpop.f32.mrf.mxu0
        %v2854 = vadd.f32 0.0, %v2853
        %v2855 = vpop.f32.mrf.mxu0
        %v2856 = vpop.f32.mrf.mxu0
        %2857 = vdwg.mxu0
        %v2858 = vadd.f32 %v2779, %v2852
        %v2859 = vadd.f32 %v2780, %v2854
        %v2860 = vld [vmem:[%s663] sm:$0xf]
        %v2861 = vld [vmem:[%s195 + $0x4] sm:$0x3f]
        %v2863 = vcombine.high %v2861, %v2861
        %v2865 = vunpack.c.l.s4 1983009808
        %v2866 = vunpack.c.0.s8 %v2865
        %v2867 = vlaneseq
        %v2868 = vshrl.u32 %v2867, 7
        %v2869 = vsub.s32 %v2866, %v2868
        %v2870 = vrot.slane %v2861, %v2869
        %v2872 = vunpack.c.l.s4 1983009808
        %v2873 = vunpack.c.0.s8 %v2872
        %v2874 = vlaneseq
        %v2875 = vshrl.u32 %v2874, 7
        %v2876 = vsub.s32 %v2873, %v2875
        %v2877 = vrot.slane %v2863, %v2876
        %v2878 = vcombine.high %v2870, %v2870
        %2879 = vrot.lane.b32.xlu0 %v2870, 108
        %v2880 = vpop.permute.xlu0 %2879
        %2881 = vrot.lane.b32.xlu0 %v2878, 108
        %v2882 = vpop.permute.xlu0 %2881
        %2883 = vrot.lane.b32.xlu0 %v2877, 108
        %v2884 = vpop.permute.xlu0 %2883
        %v2885 = vsel %vm689, %v2880, %v2882
        %v2886 = vsel %vm689, %v2882, %v2884
        %v2888 = vsel %vm228, %v2860, 0
        %v2891 = vsel %vm232, %v2885, 0
        %v2894 = vsel %vm232, %v2886, 0
        %2896 = vmatprep.subr.bf16.mxu0 0
        %2897 = vmatpush1.bf16.msra.mxu0 0
        %2898 = vmatprep.subr.bf16.mxu0 0
        %2899 = vmatpush1.bf16.msra.mxu0 0
        %2900 = vmatprep.subr.bf16.mxu0 0
        %2901 = vmatpush1.bf16.msra.mxu0 0
        %2902 = vmatprep.subr.bf16.mxu0 0
        %2903 = vmatpush1.bf16.msra.mxu0 0
        %2904 = vmatprep.subr.bf16.mxu0 0
        %2905 = vmatpush1.bf16.msra.mxu0 0
        %2906 = vmatprep.subr.bf16.mxu0 0
        %2907 = vmatpush1.bf16.msra.mxu0 0
        %2908 = vmatprep.subr.bf16.mxu0 0
        %2909 = vmatpush1.bf16.msra.mxu0 0
        %2910 = vmatprep.subr.bf16.mxu0 %v2894
        %2911 = vmatpush1.bf16.msra.mxu0 %v2891
        %2912 = vmatprep.subr.bf16.mxu0 0
        %2913 = vmatpush2.bf16.msra.mxu0 0
        %2914 = vmatprep.subr.bf16.mxu0 0
        %2915 = vmatpush2.bf16.msra.mxu0 0
        %2916 = vmatprep.subr.bf16.mxu0 0
        %2917 = vmatpush2.bf16.msra.mxu0 0
        %2918 = vmatprep.subr.bf16.mxu0 0
        %2919 = vmatpush2.bf16.msra.mxu0 0
        %2920 = vmatprep.subr.bf16.mxu0 0
        %2921 = vmatpush2.bf16.msra.mxu0 0
        %2922 = vmatprep.subr.bf16.mxu0 0
        %2923 = vmatpush2.bf16.msra.mxu0 0
        %2924 = vmatprep.subr.bf16.mxu0 0
        %2925 = vmatpush2.bf16.msra.mxu0 0
        %2926 = vmatprep.subr.bf16.mxu0 0
        %2927 = vmatpush2.bf16.msra.mxu0 0
        %2928 = vmatprep.mubr.bf16.mxu0 0
        %2929 = vmatmul.mubr.bf16.gmra.mxu0 %v2888
        %v2930 = vpop.f32.mrf.mxu0
        %v2931 = vadd.f32 0.0, %v2930
        %v2932 = vpop.f32.mrf.mxu0
        %v2933 = vadd.f32 0.0, %v2932
        %v2934 = vpop.f32.mrf.mxu0
        %v2935 = vpop.f32.mrf.mxu0
        %2936 = vdwg.mxu0
        %v2937 = vadd.f32 %v2858, %v2931
        %v2938 = vadd.f32 %v2859, %v2933
        %v2939 = vld [vmem:[%s744] sm:$0xf]
        %v2940 = vld [vmem:[%s195 + $0x4] sm:$0x3f]
        %v2942 = vcombine.high %v2940, %v2940
        %v2944 = vunpack.c.l.s4 1983009808
        %v2945 = vunpack.c.0.s8 %v2944
        %v2946 = vlaneseq
        %v2947 = vshrl.u32 %v2946, 7
        %v2948 = vsub.s32 %v2945, %v2947
        %v2949 = vrot.slane %v2940, %v2948
        %v2951 = vunpack.c.l.s4 1983009808
        %v2952 = vunpack.c.0.s8 %v2951
        %v2953 = vlaneseq
        %v2954 = vshrl.u32 %v2953, 7
        %v2955 = vsub.s32 %v2952, %v2954
        %v2956 = vrot.slane %v2942, %v2955
        %v2957 = vcombine.high %v2949, %v2949
        %2958 = vrot.lane.b32.xlu0 %v2949, 107
        %v2959 = vpop.permute.xlu0 %2958
        %2960 = vrot.lane.b32.xlu0 %v2957, 107
        %v2961 = vpop.permute.xlu0 %2960
        %2962 = vrot.lane.b32.xlu0 %v2956, 107
        %v2963 = vpop.permute.xlu0 %2962
        %v2964 = vsel %vm770, %v2959, %v2961
        %v2965 = vsel %vm770, %v2961, %v2963
        %v2967 = vsel %vm228, %v2939, 0
        %v2970 = vsel %vm232, %v2964, 0
        %v2973 = vsel %vm232, %v2965, 0
        %2975 = vmatprep.subr.bf16.mxu0 0
        %2976 = vmatpush1.bf16.msra.mxu0 0
        %2977 = vmatprep.subr.bf16.mxu0 0
        %2978 = vmatpush1.bf16.msra.mxu0 0
        %2979 = vmatprep.subr.bf16.mxu0 0
        %2980 = vmatpush1.bf16.msra.mxu0 0
        %2981 = vmatprep.subr.bf16.mxu0 0
        %2982 = vmatpush1.bf16.msra.mxu0 0
        %2983 = vmatprep.subr.bf16.mxu0 0
        %2984 = vmatpush1.bf16.msra.mxu0 0
        %2985 = vmatprep.subr.bf16.mxu0 0
        %2986 = vmatpush1.bf16.msra.mxu0 0
        %2987 = vmatprep.subr.bf16.mxu0 0
        %2988 = vmatpush1.bf16.msra.mxu0 0
        %2989 = vmatprep.subr.bf16.mxu0 %v2973
        %2990 = vmatpush1.bf16.msra.mxu0 %v2970
        %2991 = vmatprep.subr.bf16.mxu0 0
        %2992 = vmatpush2.bf16.msra.mxu0 0
        %2993 = vmatprep.subr.bf16.mxu0 0
        %2994 = vmatpush2.bf16.msra.mxu0 0
        %2995 = vmatprep.subr.bf16.mxu0 0
        %2996 = vmatpush2.bf16.msra.mxu0 0
        %2997 = vmatprep.subr.bf16.mxu0 0
        %2998 = vmatpush2.bf16.msra.mxu0 0
        %2999 = vmatprep.subr.bf16.mxu0 0
        %3000 = vmatpush2.bf16.msra.mxu0 0
        %3001 = vmatprep.subr.bf16.mxu0 0
        %3002 = vmatpush2.bf16.msra.mxu0 0
        %3003 = vmatprep.subr.bf16.mxu0 0
        %3004 = vmatpush2.bf16.msra.mxu0 0
        %3005 = vmatprep.subr.bf16.mxu0 0
        %3006 = vmatpush2.bf16.msra.mxu0 0
        %3007 = vmatprep.mubr.bf16.mxu0 0
        %3008 = vmatmul.mubr.bf16.gmra.mxu0 %v2967
        %v3009 = vpop.f32.mrf.mxu0
        %v3010 = vadd.f32 0.0, %v3009
        %v3011 = vpop.f32.mrf.mxu0
        %v3012 = vadd.f32 0.0, %v3011
        %v3013 = vpop.f32.mrf.mxu0
        %v3014 = vpop.f32.mrf.mxu0
        %3015 = vdwg.mxu0
        %v3016 = vadd.f32 %v2937, %v3010
        %v3017 = vadd.f32 %v2938, %v3012
        %v3018 = vld [vmem:[%s825] sm:$0xf]
        %v3019 = vld [vmem:[%s195 + $0x4] sm:$0x3f]
        %v3021 = vcombine.high %v3019, %v3019
        %v3023 = vunpack.c.l.s4 1983009808
        %v3024 = vunpack.c.0.s8 %v3023
        %v3025 = vlaneseq
        %v3026 = vshrl.u32 %v3025, 7
        %v3027 = vsub.s32 %v3024, %v3026
        %v3028 = vrot.slane %v3019, %v3027
        %v3030 = vunpack.c.l.s4 1983009808
        %v3031 = vunpack.c.0.s8 %v3030
        %v3032 = vlaneseq
        %v3033 = vshrl.u32 %v3032, 7
        %v3034 = vsub.s32 %v3031, %v3033
        %v3035 = vrot.slane %v3021, %v3034
        %v3036 = vcombine.high %v3028, %v3028
        %3037 = vrot.lane.b32.xlu0 %v3028, 106
        %v3038 = vpop.permute.xlu0 %3037
        %3039 = vrot.lane.b32.xlu0 %v3036, 106
        %v3040 = vpop.permute.xlu0 %3039
        %3041 = vrot.lane.b32.xlu0 %v3035, 106
        %v3042 = vpop.permute.xlu0 %3041
        %v3043 = vsel %vm851, %v3038, %v3040
        %v3044 = vsel %vm851, %v3040, %v3042
        %v3046 = vsel %vm228, %v3018, 0
        %v3049 = vsel %vm232, %v3043, 0
        %v3052 = vsel %vm232, %v3044, 0
        %3054 = vmatprep.subr.bf16.mxu0 0
        %3055 = vmatpush1.bf16.msra.mxu0 0
        %3056 = vmatprep.subr.bf16.mxu0 0
        %3057 = vmatpush1.bf16.msra.mxu0 0
        %3058 = vmatprep.subr.bf16.mxu0 0
        %3059 = vmatpush1.bf16.msra.mxu0 0
        %3060 = vmatprep.subr.bf16.mxu0 0
        %3061 = vmatpush1.bf16.msra.mxu0 0
        %3062 = vmatprep.subr.bf16.mxu0 0
        %3063 = vmatpush1.bf16.msra.mxu0 0
        %3064 = vmatprep.subr.bf16.mxu0 0
        %3065 = vmatpush1.bf16.msra.mxu0 0
        %3066 = vmatprep.subr.bf16.mxu0 0
        %3067 = vmatpush1.bf16.msra.mxu0 0
        %3068 = vmatprep.subr.bf16.mxu0 %v3052
        %3069 = vmatpush1.bf16.msra.mxu0 %v3049
        %3070 = vmatprep.subr.bf16.mxu0 0
        %3071 = vmatpush2.bf16.msra.mxu0 0
        %3072 = vmatprep.subr.bf16.mxu0 0
        %3073 = vmatpush2.bf16.msra.mxu0 0
        %3074 = vmatprep.subr.bf16.mxu0 0
        %3075 = vmatpush2.bf16.msra.mxu0 0
        %3076 = vmatprep.subr.bf16.mxu0 0
        %3077 = vmatpush2.bf16.msra.mxu0 0
        %3078 = vmatprep.subr.bf16.mxu0 0
        %3079 = vmatpush2.bf16.msra.mxu0 0
        %3080 = vmatprep.subr.bf16.mxu0 0
        %3081 = vmatpush2.bf16.msra.mxu0 0
        %3082 = vmatprep.subr.bf16.mxu0 0
        %3083 = vmatpush2.bf16.msra.mxu0 0
        %3084 = vmatprep.subr.bf16.mxu0 0
        %3085 = vmatpush2.bf16.msra.mxu0 0
        %3086 = vmatprep.mubr.bf16.mxu0 0
        %3087 = vmatmul.mubr.bf16.gmra.mxu0 %v3046
        %v3088 = vpop.f32.mrf.mxu0
        %v3089 = vadd.f32 0.0, %v3088
        %v3090 = vpop.f32.mrf.mxu0
        %v3091 = vadd.f32 0.0, %v3090
        %v3092 = vpop.f32.mrf.mxu0
        %v3093 = vpop.f32.mrf.mxu0
        %3094 = vdwg.mxu0
        %v3095 = vadd.f32 %v3016, %v3089
        %v3096 = vadd.f32 %v3017, %v3091
        %v3097 = vld [vmem:[%s906] sm:$0xf]
        %v3098 = vld [vmem:[%s195 + $0x4] sm:$0x3f]
        %v3100 = vcombine.high %v3098, %v3098
        %v3102 = vunpack.c.l.s4 1983009808
        %v3103 = vunpack.c.0.s8 %v3102
        %v3104 = vlaneseq
        %v3105 = vshrl.u32 %v3104, 7
        %v3106 = vsub.s32 %v3103, %v3105
        %v3107 = vrot.slane %v3098, %v3106
        %v3109 = vunpack.c.l.s4 1983009808
        %v3110 = vunpack.c.0.s8 %v3109
        %v3111 = vlaneseq
        %v3112 = vshrl.u32 %v3111, 7
        %v3113 = vsub.s32 %v3110, %v3112
        %v3114 = vrot.slane %v3100, %v3113
        %v3115 = vcombine.high %v3107, %v3107
        %3116 = vrot.lane.b32.xlu0 %v3107, 28
        %v3117 = vpop.permute.xlu0 %3116
        %3118 = vrot.lane.b32.xlu0 %v3115, 28
        %v3119 = vpop.permute.xlu0 %3118
        %3120 = vrot.lane.b32.xlu0 %v3114, 28
        %v3121 = vpop.permute.xlu0 %3120
        %v3122 = vsel %vm932, %v3117, %v3119
        %v3123 = vsel %vm932, %v3119, %v3121
        %v3125 = vsel %vm228, %v3097, 0
        %v3128 = vsel %vm232, %v3122, 0
        %v3131 = vsel %vm232, %v3123, 0
        %3133 = vmatprep.subr.bf16.mxu0 0
        %3134 = vmatpush1.bf16.msra.mxu0 0
        %3135 = vmatprep.subr.bf16.mxu0 0
        %3136 = vmatpush1.bf16.msra.mxu0 0
        %3137 = vmatprep.subr.bf16.mxu0 0
        %3138 = vmatpush1.bf16.msra.mxu0 0
        %3139 = vmatprep.subr.bf16.mxu0 0
        %3140 = vmatpush1.bf16.msra.mxu0 0
        %3141 = vmatprep.subr.bf16.mxu0 0
        %3142 = vmatpush1.bf16.msra.mxu0 0
        %3143 = vmatprep.subr.bf16.mxu0 0
        %3144 = vmatpush1.bf16.msra.mxu0 0
        %3145 = vmatprep.subr.bf16.mxu0 0
        %3146 = vmatpush1.bf16.msra.mxu0 0
        %3147 = vmatprep.subr.bf16.mxu0 %v3131
        %3148 = vmatpush1.bf16.msra.mxu0 %v3128
        %3149 = vmatprep.subr.bf16.mxu0 0
        %3150 = vmatpush2.bf16.msra.mxu0 0
        %3151 = vmatprep.subr.bf16.mxu0 0
        %3152 = vmatpush2.bf16.msra.mxu0 0
        %3153 = vmatprep.subr.bf16.mxu0 0
        %3154 = vmatpush2.bf16.msra.mxu0 0
        %3155 = vmatprep.subr.bf16.mxu0 0
        %3156 = vmatpush2.bf16.msra.mxu0 0
        %3157 = vmatprep.subr.bf16.mxu0 0
        %3158 = vmatpush2.bf16.msra.mxu0 0
        %3159 = vmatprep.subr.bf16.mxu0 0
        %3160 = vmatpush2.bf16.msra.mxu0 0
        %3161 = vmatprep.subr.bf16.mxu0 0
        %3162 = vmatpush2.bf16.msra.mxu0 0
        %3163 = vmatprep.subr.bf16.mxu0 0
        %3164 = vmatpush2.bf16.msra.mxu0 0
        %3165 = vmatprep.mubr.bf16.mxu0 0
        %3166 = vmatmul.mubr.bf16.gmra.mxu0 %v3125
        %v3167 = vpop.f32.mrf.mxu0
        %v3168 = vadd.f32 0.0, %v3167
        %v3169 = vpop.f32.mrf.mxu0
        %v3170 = vadd.f32 0.0, %v3169
        %v3171 = vpop.f32.mrf.mxu0
        %v3172 = vpop.f32.mrf.mxu0
        %3173 = vdwg.mxu0
        %v3174 = vadd.f32 %v3095, %v3168
        %v3175 = vadd.f32 %v3096, %v3170
        %v3176 = vld [vmem:[%s987] sm:$0xf]
        %v3177 = vld [vmem:[%s195 + $0x4] sm:$0x3f]
        %v3179 = vcombine.high %v3177, %v3177
        %v3181 = vunpack.c.l.s4 1983009808
        %v3182 = vunpack.c.0.s8 %v3181
        %v3183 = vlaneseq
        %v3184 = vshrl.u32 %v3183, 7
        %v3185 = vsub.s32 %v3182, %v3184
        %v3186 = vrot.slane %v3177, %v3185
        %v3188 = vunpack.c.l.s4 1983009808
        %v3189 = vunpack.c.0.s8 %v3188
        %v3190 = vlaneseq
        %v3191 = vshrl.u32 %v3190, 7
        %v3192 = vsub.s32 %v3189, %v3191
        %v3193 = vrot.slane %v3179, %v3192
        %v3194 = vcombine.high %v3186, %v3186
        %3195 = vrot.lane.b32.xlu0 %v3186, 27
        %v3196 = vpop.permute.xlu0 %3195
        %3197 = vrot.lane.b32.xlu0 %v3194, 27
        %v3198 = vpop.permute.xlu0 %3197
        %3199 = vrot.lane.b32.xlu0 %v3193, 27
        %v3200 = vpop.permute.xlu0 %3199
        %v3201 = vsel %vm1013, %v3196, %v3198
        %v3202 = vsel %vm1013, %v3198, %v3200
        %v3204 = vsel %vm228, %v3176, 0
        %v3207 = vsel %vm232, %v3201, 0
        %v3210 = vsel %vm232, %v3202, 0
        %3212 = vmatprep.subr.bf16.mxu0 0
        %3213 = vmatpush1.bf16.msra.mxu0 0
        %3214 = vmatprep.subr.bf16.mxu0 0
        %3215 = vmatpush1.bf16.msra.mxu0 0
        %3216 = vmatprep.subr.bf16.mxu0 0
        %3217 = vmatpush1.bf16.msra.mxu0 0
        %3218 = vmatprep.subr.bf16.mxu0 0
        %3219 = vmatpush1.bf16.msra.mxu0 0
        %3220 = vmatprep.subr.bf16.mxu0 0
        %3221 = vmatpush1.bf16.msra.mxu0 0
        %3222 = vmatprep.subr.bf16.mxu0 0
        %3223 = vmatpush1.bf16.msra.mxu0 0
        %3224 = vmatprep.subr.bf16.mxu0 0
        %3225 = vmatpush1.bf16.msra.mxu0 0
        %3226 = vmatprep.subr.bf16.mxu0 %v3210
        %3227 = vmatpush1.bf16.msra.mxu0 %v3207
        %3228 = vmatprep.subr.bf16.mxu0 0
        %3229 = vmatpush2.bf16.msra.mxu0 0
        %3230 = vmatprep.subr.bf16.mxu0 0
        %3231 = vmatpush2.bf16.msra.mxu0 0
        %3232 = vmatprep.subr.bf16.mxu0 0
        %3233 = vmatpush2.bf16.msra.mxu0 0
        %3234 = vmatprep.subr.bf16.mxu0 0
        %3235 = vmatpush2.bf16.msra.mxu0 0
        %3236 = vmatprep.subr.bf16.mxu0 0
        %3237 = vmatpush2.bf16.msra.mxu0 0
        %3238 = vmatprep.subr.bf16.mxu0 0
        %3239 = vmatpush2.bf16.msra.mxu0 0
        %3240 = vmatprep.subr.bf16.mxu0 0
        %3241 = vmatpush2.bf16.msra.mxu0 0
        %3242 = vmatprep.subr.bf16.mxu0 0
        %3243 = vmatpush2.bf16.msra.mxu0 0
        %3244 = vmatprep.mubr.bf16.mxu0 0
        %3245 = vmatmul.mubr.bf16.gmra.mxu0 %v3204
        %v3246 = vpop.f32.mrf.mxu0
        %v3247 = vadd.f32 0.0, %v3246
        %v3248 = vpop.f32.mrf.mxu0
        %v3249 = vadd.f32 0.0, %v3248
        %v3250 = vpop.f32.mrf.mxu0
        %v3251 = vpop.f32.mrf.mxu0
        %3252 = vdwg.mxu0
        %v3253 = vadd.f32 %v3174, %v3247
        %v3254 = vadd.f32 %v3175, %v3249
        %v3255 = vld [vmem:[%s1068] sm:$0xf]
        %v3256 = vld [vmem:[%s195 + $0x4] sm:$0x3f]
        %v3258 = vcombine.high %v3256, %v3256
        %v3260 = vunpack.c.l.s4 1983009808
        %v3261 = vunpack.c.0.s8 %v3260
        %v3262 = vlaneseq
        %v3263 = vshrl.u32 %v3262, 7
        %v3264 = vsub.s32 %v3261, %v3263
        %v3265 = vrot.slane %v3256, %v3264
        %v3267 = vunpack.c.l.s4 1983009808
        %v3268 = vunpack.c.0.s8 %v3267
        %v3269 = vlaneseq
        %v3270 = vshrl.u32 %v3269, 7
        %v3271 = vsub.s32 %v3268, %v3270
        %v3272 = vrot.slane %v3258, %v3271
        %v3273 = vcombine.high %v3265, %v3265
        %3274 = vrot.lane.b32.xlu0 %v3265, 26
        %v3275 = vpop.permute.xlu0 %3274
        %3276 = vrot.lane.b32.xlu0 %v3273, 26
        %v3277 = vpop.permute.xlu0 %3276
        %3278 = vrot.lane.b32.xlu0 %v3272, 26
        %v3279 = vpop.permute.xlu0 %3278
        %v3280 = vsel %vm1094, %v3275, %v3277
        %v3281 = vsel %vm1094, %v3277, %v3279
        %v3283 = vsel %vm228, %v3255, 0
        %v3286 = vsel %vm232, %v3280, 0
        %v3289 = vsel %vm232, %v3281, 0
        %3291 = vmatprep.subr.bf16.mxu0 0
        %3292 = vmatpush1.bf16.msra.mxu0 0
        %3293 = vmatprep.subr.bf16.mxu0 0
        %3294 = vmatpush1.bf16.msra.mxu0 0
        %3295 = vmatprep.subr.bf16.mxu0 0
        %3296 = vmatpush1.bf16.msra.mxu0 0
        %3297 = vmatprep.subr.bf16.mxu0 0
        %3298 = vmatpush1.bf16.msra.mxu0 0
        %3299 = vmatprep.subr.bf16.mxu0 0
        %3300 = vmatpush1.bf16.msra.mxu0 0
        %3301 = vmatprep.subr.bf16.mxu0 0
        %3302 = vmatpush1.bf16.msra.mxu0 0
        %3303 = vmatprep.subr.bf16.mxu0 0
        %3304 = vmatpush1.bf16.msra.mxu0 0
        %3305 = vmatprep.subr.bf16.mxu0 %v3289
        %3306 = vmatpush1.bf16.msra.mxu0 %v3286
        %3307 = vmatprep.subr.bf16.mxu0 0
        %3308 = vmatpush2.bf16.msra.mxu0 0
        %3309 = vmatprep.subr.bf16.mxu0 0
        %3310 = vmatpush2.bf16.msra.mxu0 0
        %3311 = vmatprep.subr.bf16.mxu0 0
        %3312 = vmatpush2.bf16.msra.mxu0 0
        %3313 = vmatprep.subr.bf16.mxu0 0
        %3314 = vmatpush2.bf16.msra.mxu0 0
        %3315 = vmatprep.subr.bf16.mxu0 0
        %3316 = vmatpush2.bf16.msra.mxu0 0
        %3317 = vmatprep.subr.bf16.mxu0 0
        %3318 = vmatpush2.bf16.msra.mxu0 0
        %3319 = vmatprep.subr.bf16.mxu0 0
        %3320 = vmatpush2.bf16.msra.mxu0 0
        %3321 = vmatprep.subr.bf16.mxu0 0
        %3322 = vmatpush2.bf16.msra.mxu0 0
        %3323 = vmatprep.mubr.bf16.mxu0 0
        %3324 = vmatmul.mubr.bf16.gmra.mxu0 %v3283
        %v3325 = vpop.f32.mrf.mxu0
        %v3326 = vadd.f32 0.0, %v3325
        %v3327 = vpop.f32.mrf.mxu0
        %v3328 = vadd.f32 0.0, %v3327
        %v3329 = vpop.f32.mrf.mxu0
        %v3330 = vpop.f32.mrf.mxu0
        %3331 = vdwg.mxu0
        %v3332 = vadd.f32 %v3253, %v3326
        %v3333 = vadd.f32 %v3254, %v3328
        %v3334 = vld [vmem:[%s1149] sm:$0xf]
        %v3335 = vld [vmem:[%s195 + $0x4] sm:$0x3f]
        %v3337 = vcombine.high %v3335, %v3335
        %v3339 = vunpack.c.l.s4 1983009808
        %v3340 = vunpack.c.0.s8 %v3339
        %v3341 = vlaneseq
        %v3342 = vshrl.u32 %v3341, 7
        %v3343 = vsub.s32 %v3340, %v3342
        %v3344 = vrot.slane %v3335, %v3343
        %v3346 = vunpack.c.l.s4 1983009808
        %v3347 = vunpack.c.0.s8 %v3346
        %v3348 = vlaneseq
        %v3349 = vshrl.u32 %v3348, 7
        %v3350 = vsub.s32 %v3347, %v3349
        %v3351 = vrot.slane %v3337, %v3350
        %v3352 = vcombine.high %v3344, %v3344
        %3353 = vrot.lane.b32.xlu0 %v3344, 18
        %v3354 = vpop.permute.xlu0 %3353
        %3355 = vrot.lane.b32.xlu0 %v3352, 18
        %v3356 = vpop.permute.xlu0 %3355
        %3357 = vrot.lane.b32.xlu0 %v3351, 18
        %v3358 = vpop.permute.xlu0 %3357
        %v3359 = vsel %vm1175, %v3354, %v3356
        %v3360 = vsel %vm1175, %v3356, %v3358
        %v3362 = vsel %vm228, %v3334, 0
        %v3365 = vsel %vm232, %v3359, 0
        %v3368 = vsel %vm232, %v3360, 0
        %3370 = vmatprep.subr.bf16.mxu0 0
        %3371 = vmatpush1.bf16.msra.mxu0 0
        %3372 = vmatprep.subr.bf16.mxu0 0
        %3373 = vmatpush1.bf16.msra.mxu0 0
        %3374 = vmatprep.subr.bf16.mxu0 0
        %3375 = vmatpush1.bf16.msra.mxu0 0
        %3376 = vmatprep.subr.bf16.mxu0 0
        %3377 = vmatpush1.bf16.msra.mxu0 0
        %3378 = vmatprep.subr.bf16.mxu0 0
        %3379 = vmatpush1.bf16.msra.mxu0 0
        %3380 = vmatprep.subr.bf16.mxu0 0
        %3381 = vmatpush1.bf16.msra.mxu0 0
        %3382 = vmatprep.subr.bf16.mxu0 0
        %3383 = vmatpush1.bf16.msra.mxu0 0
        %3384 = vmatprep.subr.bf16.mxu0 %v3368
        %3385 = vmatpush1.bf16.msra.mxu0 %v3365
        %3386 = vmatprep.subr.bf16.mxu0 0
        %3387 = vmatpush2.bf16.msra.mxu0 0
        %3388 = vmatprep.subr.bf16.mxu0 0
        %3389 = vmatpush2.bf16.msra.mxu0 0
        %3390 = vmatprep.subr.bf16.mxu0 0
        %3391 = vmatpush2.bf16.msra.mxu0 0
        %3392 = vmatprep.subr.bf16.mxu0 0
        %3393 = vmatpush2.bf16.msra.mxu0 0
        %3394 = vmatprep.subr.bf16.mxu0 0
        %3395 = vmatpush2.bf16.msra.mxu0 0
        %3396 = vmatprep.subr.bf16.mxu0 0
        %3397 = vmatpush2.bf16.msra.mxu0 0
        %3398 = vmatprep.subr.bf16.mxu0 0
        %3399 = vmatpush2.bf16.msra.mxu0 0
        %3400 = vmatprep.subr.bf16.mxu0 0
        %3401 = vmatpush2.bf16.msra.mxu0 0
        %3402 = vmatprep.mubr.bf16.mxu0 0
        %3403 = vmatmul.mubr.bf16.gmra.mxu0 %v3362
        %v3404 = vpop.f32.mrf.mxu0
        %v3405 = vadd.f32 0.0, %v3404
        %v3406 = vpop.f32.mrf.mxu0
        %v3407 = vadd.f32 0.0, %v3406
        %v3408 = vpop.f32.mrf.mxu0
        %v3409 = vpop.f32.mrf.mxu0
        %3410 = vdwg.mxu0
        %v3411 = vadd.f32 %v3332, %v3405
        %v3412 = vadd.f32 %v3333, %v3407
        %v3413 = vld [vmem:[%s1230] sm:$0xf]
        %v3414 = vld [vmem:[%s195 + $0x4] sm:$0x3f]
        %v3416 = vcombine.high %v3414, %v3414
        %v3418 = vunpack.c.l.s4 1983009808
        %v3419 = vunpack.c.0.s8 %v3418
        %v3420 = vlaneseq
        %v3421 = vshrl.u32 %v3420, 7
        %v3422 = vsub.s32 %v3419, %v3421
        %v3423 = vrot.slane %v3414, %v3422
        %v3425 = vunpack.c.l.s4 1983009808
        %v3426 = vunpack.c.0.s8 %v3425
        %v3427 = vlaneseq
        %v3428 = vshrl.u32 %v3427, 7
        %v3429 = vsub.s32 %v3426, %v3428
        %v3430 = vrot.slane %v3416, %v3429
        %v3431 = vcombine.high %v3423, %v3423
        %3432 = vrot.lane.b32.xlu0 %v3423, 17
        %v3433 = vpop.permute.xlu0 %3432
        %3434 = vrot.lane.b32.xlu0 %v3431, 17
        %v3435 = vpop.permute.xlu0 %3434
        %3436 = vrot.lane.b32.xlu0 %v3430, 17
        %v3437 = vpop.permute.xlu0 %3436
        %v3438 = vsel %vm1256, %v3433, %v3435
        %v3439 = vsel %vm1256, %v3435, %v3437
        %v3441 = vsel %vm228, %v3413, 0
        %v3444 = vsel %vm232, %v3438, 0
        %v3447 = vsel %vm232, %v3439, 0
        %3449 = vmatprep.subr.bf16.mxu0 0
        %3450 = vmatpush1.bf16.msra.mxu0 0
        %3451 = vmatprep.subr.bf16.mxu0 0
        %3452 = vmatpush1.bf16.msra.mxu0 0
        %3453 = vmatprep.subr.bf16.mxu0 0
        %3454 = vmatpush1.bf16.msra.mxu0 0
        %3455 = vmatprep.subr.bf16.mxu0 0
        %3456 = vmatpush1.bf16.msra.mxu0 0
        %3457 = vmatprep.subr.bf16.mxu0 0
        %3458 = vmatpush1.bf16.msra.mxu0 0
        %3459 = vmatprep.subr.bf16.mxu0 0
        %3460 = vmatpush1.bf16.msra.mxu0 0
        %3461 = vmatprep.subr.bf16.mxu0 0
        %3462 = vmatpush1.bf16.msra.mxu0 0
        %3463 = vmatprep.subr.bf16.mxu0 %v3447
        %3464 = vmatpush1.bf16.msra.mxu0 %v3444
        %3465 = vmatprep.subr.bf16.mxu0 0
        %3466 = vmatpush2.bf16.msra.mxu0 0
        %3467 = vmatprep.subr.bf16.mxu0 0
        %3468 = vmatpush2.bf16.msra.mxu0 0
        %3469 = vmatprep.subr.bf16.mxu0 0
        %3470 = vmatpush2.bf16.msra.mxu0 0
        %3471 = vmatprep.subr.bf16.mxu0 0
        %3472 = vmatpush2.bf16.msra.mxu0 0
        %3473 = vmatprep.subr.bf16.mxu0 0
        %3474 = vmatpush2.bf16.msra.mxu0 0
        %3475 = vmatprep.subr.bf16.mxu0 0
        %3476 = vmatpush2.bf16.msra.mxu0 0
        %3477 = vmatprep.subr.bf16.mxu0 0
        %3478 = vmatpush2.bf16.msra.mxu0 0
        %3479 = vmatprep.subr.bf16.mxu0 0
        %3480 = vmatpush2.bf16.msra.mxu0 0
        %3481 = vmatprep.mubr.bf16.mxu0 0
        %3482 = vmatmul.mubr.bf16.gmra.mxu0 %v3441
        %v3483 = vpop.f32.mrf.mxu0
        %v3484 = vadd.f32 0.0, %v3483
        %v3485 = vpop.f32.mrf.mxu0
        %v3486 = vadd.f32 0.0, %v3485
        %v3487 = vpop.f32.mrf.mxu0
        %v3488 = vpop.f32.mrf.mxu0
        %3489 = vdwg.mxu0
        %v3490 = vadd.f32 %v3411, %v3484
        %v3491 = vadd.f32 %v3412, %v3486
        %v3492 = vld [vmem:[%s1311] sm:$0xf]
        %v3493 = vld [vmem:[%s195 + $0x4] sm:$0x3f]
        %v3495 = vcombine.high %v3493, %v3493
        %v3497 = vunpack.c.l.s4 1983009808
        %v3498 = vunpack.c.0.s8 %v3497
        %v3499 = vlaneseq
        %v3500 = vshrl.u32 %v3499, 7
        %v3501 = vsub.s32 %v3498, %v3500
        %v3502 = vrot.slane %v3493, %v3501
        %v3504 = vunpack.c.l.s4 1983009808
        %v3505 = vunpack.c.0.s8 %v3504
        %v3506 = vlaneseq
        %v3507 = vshrl.u32 %v3506, 7
        %v3508 = vsub.s32 %v3505, %v3507
        %v3509 = vrot.slane %v3495, %v3508
        %v3510 = vcombine.high %v3502, %v3502
        %3511 = vrot.lane.b32.xlu0 %v3502, 16
        %v3512 = vpop.permute.xlu0 %3511
        %3513 = vrot.lane.b32.xlu0 %v3510, 16
        %v3514 = vpop.permute.xlu0 %3513
        %3515 = vrot.lane.b32.xlu0 %v3509, 16
        %v3516 = vpop.permute.xlu0 %3515
        %v3517 = vsel %vm1337, %v3512, %v3514
        %v3518 = vsel %vm1337, %v3514, %v3516
        %v3520 = vsel %vm228, %v3492, 0
        %v3523 = vsel %vm232, %v3517, 0
        %v3526 = vsel %vm232, %v3518, 0
        %3528 = vmatprep.subr.bf16.mxu0 0
        %3529 = vmatpush1.bf16.msra.mxu0 0
        %3530 = vmatprep.subr.bf16.mxu0 0
        %3531 = vmatpush1.bf16.msra.mxu0 0
        %3532 = vmatprep.subr.bf16.mxu0 0
        %3533 = vmatpush1.bf16.msra.mxu0 0
        %3534 = vmatprep.subr.bf16.mxu0 0
        %3535 = vmatpush1.bf16.msra.mxu0 0
        %3536 = vmatprep.subr.bf16.mxu0 0
        %3537 = vmatpush1.bf16.msra.mxu0 0
        %3538 = vmatprep.subr.bf16.mxu0 0
        %3539 = vmatpush1.bf16.msra.mxu0 0
        %3540 = vmatprep.subr.bf16.mxu0 0
        %3541 = vmatpush1.bf16.msra.mxu0 0
        %3542 = vmatprep.subr.bf16.mxu0 %v3526
        %3543 = vmatpush1.bf16.msra.mxu0 %v3523
        %3544 = vmatprep.subr.bf16.mxu0 0
        %3545 = vmatpush2.bf16.msra.mxu0 0
        %3546 = vmatprep.subr.bf16.mxu0 0
        %3547 = vmatpush2.bf16.msra.mxu0 0
        %3548 = vmatprep.subr.bf16.mxu0 0
        %3549 = vmatpush2.bf16.msra.mxu0 0
        %3550 = vmatprep.subr.bf16.mxu0 0
        %3551 = vmatpush2.bf16.msra.mxu0 0
        %3552 = vmatprep.subr.bf16.mxu0 0
        %3553 = vmatpush2.bf16.msra.mxu0 0
        %3554 = vmatprep.subr.bf16.mxu0 0
        %3555 = vmatpush2.bf16.msra.mxu0 0
        %3556 = vmatprep.subr.bf16.mxu0 0
        %3557 = vmatpush2.bf16.msra.mxu0 0
        %3558 = vmatprep.subr.bf16.mxu0 0
        %3559 = vmatpush2.bf16.msra.mxu0 0
        %3560 = vmatprep.mubr.bf16.mxu0 0
        %3561 = vmatmul.mubr.bf16.gmra.mxu0 %v3520
        %v3562 = vpop.f32.mrf.mxu0
        %v3563 = vadd.f32 0.0, %v3562
        %v3564 = vpop.f32.mrf.mxu0
        %v3565 = vadd.f32 0.0, %v3564
        %v3566 = vpop.f32.mrf.mxu0
        %v3567 = vpop.f32.mrf.mxu0
        %3568 = vdwg.mxu0
        %v3569 = vadd.f32 %v3490, %v3563
        %v3570 = vadd.f32 %v3491, %v3565
        %v3571 = vld [vmem:[%s1392] sm:$0xf]
        %v3572 = vld [vmem:[%s195 + $0x4] sm:$0x3f]
        %v3574 = vcombine.high %v3572, %v3572
        %v3576 = vunpack.c.l.s4 1983009808
        %v3577 = vunpack.c.0.s8 %v3576
        %v3578 = vlaneseq
        %v3579 = vshrl.u32 %v3578, 7
        %v3580 = vsub.s32 %v3577, %v3579
        %v3581 = vrot.slane %v3572, %v3580
        %v3583 = vunpack.c.l.s4 1983009808
        %v3584 = vunpack.c.0.s8 %v3583
        %v3585 = vlaneseq
        %v3586 = vshrl.u32 %v3585, 7
        %v3587 = vsub.s32 %v3584, %v3586
        %v3588 = vrot.slane %v3574, %v3587
        %v3589 = vcombine.high %v3581, %v3581
        %3590 = vrot.lane.b32.xlu0 %v3581, 8
        %v3591 = vpop.permute.xlu0 %3590
        %3592 = vrot.lane.b32.xlu0 %v3589, 8
        %v3593 = vpop.permute.xlu0 %3592
        %3594 = vrot.lane.b32.xlu0 %v3588, 8
        %v3595 = vpop.permute.xlu0 %3594
        %v3596 = vsel %vm1418, %v3591, %v3593
        %v3597 = vsel %vm1418, %v3593, %v3595
        %v3599 = vsel %vm228, %v3571, 0
        %v3602 = vsel %vm232, %v3596, 0
        %v3605 = vsel %vm232, %v3597, 0
        %3607 = vmatprep.subr.bf16.mxu0 0
        %3608 = vmatpush1.bf16.msra.mxu0 0
        %3609 = vmatprep.subr.bf16.mxu0 0
        %3610 = vmatpush1.bf16.msra.mxu0 0
        %3611 = vmatprep.subr.bf16.mxu0 0
        %3612 = vmatpush1.bf16.msra.mxu0 0
        %3613 = vmatprep.subr.bf16.mxu0 0
        %3614 = vmatpush1.bf16.msra.mxu0 0
        %3615 = vmatprep.subr.bf16.mxu0 0
        %3616 = vmatpush1.bf16.msra.mxu0 0
        %3617 = vmatprep.subr.bf16.mxu0 0
        %3618 = vmatpush1.bf16.msra.mxu0 0
        %3619 = vmatprep.subr.bf16.mxu0 0
        %3620 = vmatpush1.bf16.msra.mxu0 0
        %3621 = vmatprep.subr.bf16.mxu0 %v3605
        %3622 = vmatpush1.bf16.msra.mxu0 %v3602
        %3623 = vmatprep.subr.bf16.mxu0 0
        %3624 = vmatpush2.bf16.msra.mxu0 0
        %3625 = vmatprep.subr.bf16.mxu0 0
        %3626 = vmatpush2.bf16.msra.mxu0 0
        %3627 = vmatprep.subr.bf16.mxu0 0
        %3628 = vmatpush2.bf16.msra.mxu0 0
        %3629 = vmatprep.subr.bf16.mxu0 0
        %3630 = vmatpush2.bf16.msra.mxu0 0
        %3631 = vmatprep.subr.bf16.mxu0 0
        %3632 = vmatpush2.bf16.msra.mxu0 0
        %3633 = vmatprep.subr.bf16.mxu0 0
        %3634 = vmatpush2.bf16.msra.mxu0 0
        %3635 = vmatprep.subr.bf16.mxu0 0
        %3636 = vmatpush2.bf16.msra.mxu0 0
        %3637 = vmatprep.subr.bf16.mxu0 0
        %3638 = vmatpush2.bf16.msra.mxu0 0
        %3639 = vmatprep.mubr.bf16.mxu0 0
        %3640 = vmatmul.mubr.bf16.gmra.mxu0 %v3599
        %v3641 = vpop.f32.mrf.mxu0
        %v3642 = vadd.f32 0.0, %v3641
        %v3643 = vpop.f32.mrf.mxu0
        %v3644 = vadd.f32 0.0, %v3643
        %v3645 = vpop.f32.mrf.mxu0
        %v3646 = vpop.f32.mrf.mxu0
        %3647 = vdwg.mxu0
        %v3648 = vadd.f32 %v3569, %v3642
        %v3649 = vadd.f32 %v3570, %v3644
        %v3650 = vld [vmem:[%s1473] sm:$0xf]
        %v3651 = vld [vmem:[%s195 + $0x4] sm:$0x3f]
        %v3653 = vcombine.high %v3651, %v3651
        %v3655 = vunpack.c.l.s4 1983009808
        %v3656 = vunpack.c.0.s8 %v3655
        %v3657 = vlaneseq
        %v3658 = vshrl.u32 %v3657, 7
        %v3659 = vsub.s32 %v3656, %v3658
        %v3660 = vrot.slane %v3651, %v3659
        %v3662 = vunpack.c.l.s4 1983009808
        %v3663 = vunpack.c.0.s8 %v3662
        %v3664 = vlaneseq
        %v3665 = vshrl.u32 %v3664, 7
        %v3666 = vsub.s32 %v3663, %v3665
        %v3667 = vrot.slane %v3653, %v3666
        %v3668 = vcombine.high %v3660, %v3660
        %3669 = vrot.lane.b32.xlu0 %v3660, 7
        %v3670 = vpop.permute.xlu0 %3669
        %3671 = vrot.lane.b32.xlu0 %v3668, 7
        %v3672 = vpop.permute.xlu0 %3671
        %3673 = vrot.lane.b32.xlu0 %v3667, 7
        %v3674 = vpop.permute.xlu0 %3673
        %v3675 = vsel %vm1499, %v3670, %v3672
        %v3676 = vsel %vm1499, %v3672, %v3674
        %v3678 = vsel %vm228, %v3650, 0
        %v3681 = vsel %vm232, %v3675, 0
        %v3684 = vsel %vm232, %v3676, 0
        %3686 = vmatprep.subr.bf16.mxu0 0
        %3687 = vmatpush1.bf16.msra.mxu0 0
        %3688 = vmatprep.subr.bf16.mxu0 0
        %3689 = vmatpush1.bf16.msra.mxu0 0
        %3690 = vmatprep.subr.bf16.mxu0 0
        %3691 = vmatpush1.bf16.msra.mxu0 0
        %3692 = vmatprep.subr.bf16.mxu0 0
        %3693 = vmatpush1.bf16.msra.mxu0 0
        %3694 = vmatprep.subr.bf16.mxu0 0
        %3695 = vmatpush1.bf16.msra.mxu0 0
        %3696 = vmatprep.subr.bf16.mxu0 0
        %3697 = vmatpush1.bf16.msra.mxu0 0
        %3698 = vmatprep.subr.bf16.mxu0 0
        %3699 = vmatpush1.bf16.msra.mxu0 0
        %3700 = vmatprep.subr.bf16.mxu0 %v3684
        %3701 = vmatpush1.bf16.msra.mxu0 %v3681
        %3702 = vmatprep.subr.bf16.mxu0 0
        %3703 = vmatpush2.bf16.msra.mxu0 0
        %3704 = vmatprep.subr.bf16.mxu0 0
        %3705 = vmatpush2.bf16.msra.mxu0 0
        %3706 = vmatprep.subr.bf16.mxu0 0
        %3707 = vmatpush2.bf16.msra.mxu0 0
        %3708 = vmatprep.subr.bf16.mxu0 0
        %3709 = vmatpush2.bf16.msra.mxu0 0
        %3710 = vmatprep.subr.bf16.mxu0 0
        %3711 = vmatpush2.bf16.msra.mxu0 0
        %3712 = vmatprep.subr.bf16.mxu0 0
        %3713 = vmatpush2.bf16.msra.mxu0 0
        %3714 = vmatprep.subr.bf16.mxu0 0
        %3715 = vmatpush2.bf16.msra.mxu0 0
        %3716 = vmatprep.subr.bf16.mxu0 0
        %3717 = vmatpush2.bf16.msra.mxu0 0
        %3718 = vmatprep.mubr.bf16.mxu0 0
        %3719 = vmatmul.mubr.bf16.gmra.mxu0 %v3678
        %v3720 = vpop.f32.mrf.mxu0
        %v3721 = vadd.f32 0.0, %v3720
        %v3722 = vpop.f32.mrf.mxu0
        %v3723 = vadd.f32 0.0, %v3722
        %v3724 = vpop.f32.mrf.mxu0
        %v3725 = vpop.f32.mrf.mxu0
        %3726 = vdwg.mxu0
        %v3727 = vadd.f32 %v3648, %v3721
        %v3728 = vadd.f32 %v3649, %v3723
        %v3729 = vld [vmem:[%s1554] sm:$0xf]
        %v3730 = vld [vmem:[%s195 + $0x4] sm:$0x3f]
        %v3732 = vcombine.high %v3730, %v3730
        %v3734 = vunpack.c.l.s4 1983009808
        %v3735 = vunpack.c.0.s8 %v3734
        %v3736 = vlaneseq
        %v3737 = vshrl.u32 %v3736, 7
        %v3738 = vsub.s32 %v3735, %v3737
        %v3739 = vrot.slane %v3730, %v3738
        %v3741 = vunpack.c.l.s4 1983009808
        %v3742 = vunpack.c.0.s8 %v3741
        %v3743 = vlaneseq
        %v3744 = vshrl.u32 %v3743, 7
        %v3745 = vsub.s32 %v3742, %v3744
        %v3746 = vrot.slane %v3732, %v3745
        %v3747 = vcombine.high %v3739, %v3739
        %3748 = vrot.lane.b32.xlu0 %v3739, 6
        %v3749 = vpop.permute.xlu0 %3748
        %3750 = vrot.lane.b32.xlu0 %v3747, 6
        %v3751 = vpop.permute.xlu0 %3750
        %3752 = vrot.lane.b32.xlu0 %v3746, 6
        %v3753 = vpop.permute.xlu0 %3752
        %v3754 = vsel %vm1580, %v3749, %v3751
        %v3755 = vsel %vm1580, %v3751, %v3753
        %v3757 = vsel %vm228, %v3729, 0
        %v3760 = vsel %vm232, %v3754, 0
        %v3763 = vsel %vm232, %v3755, 0
        %3765 = vmatprep.subr.bf16.mxu0 0
        %3766 = vmatpush1.bf16.msra.mxu0 0
        %3767 = vmatprep.subr.bf16.mxu0 0
        %3768 = vmatpush1.bf16.msra.mxu0 0
        %3769 = vmatprep.subr.bf16.mxu0 0
        %3770 = vmatpush1.bf16.msra.mxu0 0
        %3771 = vmatprep.subr.bf16.mxu0 0
        %3772 = vmatpush1.bf16.msra.mxu0 0
        %3773 = vmatprep.subr.bf16.mxu0 0
        %3774 = vmatpush1.bf16.msra.mxu0 0
        %3775 = vmatprep.subr.bf16.mxu0 0
        %3776 = vmatpush1.bf16.msra.mxu0 0
        %3777 = vmatprep.subr.bf16.mxu0 0
        %3778 = vmatpush1.bf16.msra.mxu0 0
        %3779 = vmatprep.subr.bf16.mxu0 %v3763
        %3780 = vmatpush1.bf16.msra.mxu0 %v3760
        %3781 = vmatprep.subr.bf16.mxu0 0
        %3782 = vmatpush2.bf16.msra.mxu0 0
        %3783 = vmatprep.subr.bf16.mxu0 0
        %3784 = vmatpush2.bf16.msra.mxu0 0
        %3785 = vmatprep.subr.bf16.mxu0 0
        %3786 = vmatpush2.bf16.msra.mxu0 0
        %3787 = vmatprep.subr.bf16.mxu0 0
        %3788 = vmatpush2.bf16.msra.mxu0 0
        %3789 = vmatprep.subr.bf16.mxu0 0
        %3790 = vmatpush2.bf16.msra.mxu0 0
        %3791 = vmatprep.subr.bf16.mxu0 0
        %3792 = vmatpush2.bf16.msra.mxu0 0
        %3793 = vmatprep.subr.bf16.mxu0 0
        %3794 = vmatpush2.bf16.msra.mxu0 0
        %3795 = vmatprep.subr.bf16.mxu0 0
        %3796 = vmatpush2.bf16.msra.mxu0 0
        %3797 = vmatprep.mubr.bf16.mxu0 0
        %3798 = vmatmul.mubr.bf16.gmra.mxu0 %v3757
        %v3799 = vpop.f32.mrf.mxu0
        %v3800 = vadd.f32 0.0, %v3799
        %v3801 = vpop.f32.mrf.mxu0
        %v3802 = vadd.f32 0.0, %v3801
        %v3803 = vpop.f32.mrf.mxu0
        %v3804 = vpop.f32.mrf.mxu0
        %3805 = vdwg.mxu0
        %v3806 = vadd.f32 %v3727, %v3800
        %v3807 = vadd.f32 %v3728, %v3802
        %v3808 = vld [vmem:[%s1635] sm:$0xf]
        %v3809 = vld [vmem:[%s195 + $0x6] sm:$0x3f]
        %v3811 = vcombine.high %v3809, %v3809
        %v3813 = vunpack.c.l.s4 1983009808
        %v3814 = vunpack.c.0.s8 %v3813
        %v3815 = vlaneseq
        %v3816 = vshrl.u32 %v3815, 7
        %v3817 = vsub.s32 %v3814, %v3816
        %v3818 = vrot.slane %v3809, %v3817
        %v3820 = vunpack.c.l.s4 1983009808
        %v3821 = vunpack.c.0.s8 %v3820
        %v3822 = vlaneseq
        %v3823 = vshrl.u32 %v3822, 7
        %v3824 = vsub.s32 %v3821, %v3823
        %v3825 = vrot.slane %v3811, %v3824
        %v3826 = vcombine.high %v3818, %v3818
        %3827 = vrot.lane.b32.xlu0 %v3818, 56
        %v3828 = vpop.permute.xlu0 %3827
        %3829 = vrot.lane.b32.xlu0 %v3826, 56
        %v3830 = vpop.permute.xlu0 %3829
        %3831 = vrot.lane.b32.xlu0 %v3825, 56
        %v3832 = vpop.permute.xlu0 %3831
        %v3833 = vsel %vm1661, %v3828, %v3830
        %v3834 = vsel %vm1661, %v3830, %v3832
        %v3836 = vsel %vm228, %v3808, 0
        %v3839 = vsel %vm232, %v3833, 0
        %v3842 = vsel %vm232, %v3834, 0
        %3844 = vmatprep.subr.bf16.mxu0 0
        %3845 = vmatpush1.bf16.msra.mxu0 0
        %3846 = vmatprep.subr.bf16.mxu0 0
        %3847 = vmatpush1.bf16.msra.mxu0 0
        %3848 = vmatprep.subr.bf16.mxu0 0
        %3849 = vmatpush1.bf16.msra.mxu0 0
        %3850 = vmatprep.subr.bf16.mxu0 0
        %3851 = vmatpush1.bf16.msra.mxu0 0
        %3852 = vmatprep.subr.bf16.mxu0 0
        %3853 = vmatpush1.bf16.msra.mxu0 0
        %3854 = vmatprep.subr.bf16.mxu0 0
        %3855 = vmatpush1.bf16.msra.mxu0 0
        %3856 = vmatprep.subr.bf16.mxu0 0
        %3857 = vmatpush1.bf16.msra.mxu0 0
        %3858 = vmatprep.subr.bf16.mxu0 %v3842
        %3859 = vmatpush1.bf16.msra.mxu0 %v3839
        %3860 = vmatprep.subr.bf16.mxu0 0
        %3861 = vmatpush2.bf16.msra.mxu0 0
        %3862 = vmatprep.subr.bf16.mxu0 0
        %3863 = vmatpush2.bf16.msra.mxu0 0
        %3864 = vmatprep.subr.bf16.mxu0 0
        %3865 = vmatpush2.bf16.msra.mxu0 0
        %3866 = vmatprep.subr.bf16.mxu0 0
        %3867 = vmatpush2.bf16.msra.mxu0 0
        %3868 = vmatprep.subr.bf16.mxu0 0
        %3869 = vmatpush2.bf16.msra.mxu0 0
        %3870 = vmatprep.subr.bf16.mxu0 0
        %3871 = vmatpush2.bf16.msra.mxu0 0
        %3872 = vmatprep.subr.bf16.mxu0 0
        %3873 = vmatpush2.bf16.msra.mxu0 0
        %3874 = vmatprep.subr.bf16.mxu0 0
        %3875 = vmatpush2.bf16.msra.mxu0 0
        %3876 = vmatprep.mubr.bf16.mxu0 0
        %3877 = vmatmul.mubr.bf16.gmra.mxu0 %v3836
        %v3878 = vpop.f32.mrf.mxu0
        %v3879 = vadd.f32 0.0, %v3878
        %v3880 = vpop.f32.mrf.mxu0
        %v3881 = vadd.f32 0.0, %v3880
        %v3882 = vpop.f32.mrf.mxu0
        %v3883 = vpop.f32.mrf.mxu0
        %3884 = vdwg.mxu0
        %v3885 = vadd.f32 %v3806, %v3879
        %v3886 = vadd.f32 %v3807, %v3881
        %v3887 = vld [vmem:[%s1716] sm:$0xf]
        %v3888 = vld [vmem:[%s195 + $0x6] sm:$0x3f]
        %v3890 = vcombine.high %v3888, %v3888
        %v3892 = vunpack.c.l.s4 1983009808
        %v3893 = vunpack.c.0.s8 %v3892
        %v3894 = vlaneseq
        %v3895 = vshrl.u32 %v3894, 7
        %v3896 = vsub.s32 %v3893, %v3895
        %v3897 = vrot.slane %v3888, %v3896
        %v3899 = vunpack.c.l.s4 1983009808
        %v3900 = vunpack.c.0.s8 %v3899
        %v3901 = vlaneseq
        %v3902 = vshrl.u32 %v3901, 7
        %v3903 = vsub.s32 %v3900, %v3902
        %v3904 = vrot.slane %v3890, %v3903
        %v3905 = vcombine.high %v3897, %v3897
        %3906 = vrot.lane.b32.xlu0 %v3897, 55
        %v3907 = vpop.permute.xlu0 %3906
        %3908 = vrot.lane.b32.xlu0 %v3905, 55
        %v3909 = vpop.permute.xlu0 %3908
        %3910 = vrot.lane.b32.xlu0 %v3904, 55
        %v3911 = vpop.permute.xlu0 %3910
        %v3912 = vsel %vm1742, %v3907, %v3909
        %v3913 = vsel %vm1742, %v3909, %v3911
        %v3915 = vsel %vm228, %v3887, 0
        %v3918 = vsel %vm232, %v3912, 0
        %v3921 = vsel %vm232, %v3913, 0
        %3923 = vmatprep.subr.bf16.mxu0 0
        %3924 = vmatpush1.bf16.msra.mxu0 0
        %3925 = vmatprep.subr.bf16.mxu0 0
        %3926 = vmatpush1.bf16.msra.mxu0 0
        %3927 = vmatprep.subr.bf16.mxu0 0
        %3928 = vmatpush1.bf16.msra.mxu0 0
        %3929 = vmatprep.subr.bf16.mxu0 0
        %3930 = vmatpush1.bf16.msra.mxu0 0
        %3931 = vmatprep.subr.bf16.mxu0 0
        %3932 = vmatpush1.bf16.msra.mxu0 0
        %3933 = vmatprep.subr.bf16.mxu0 0
        %3934 = vmatpush1.bf16.msra.mxu0 0
        %3935 = vmatprep.subr.bf16.mxu0 0
        %3936 = vmatpush1.bf16.msra.mxu0 0
        %3937 = vmatprep.subr.bf16.mxu0 %v3921
        %3938 = vmatpush1.bf16.msra.mxu0 %v3918
        %3939 = vmatprep.subr.bf16.mxu0 0
        %3940 = vmatpush2.bf16.msra.mxu0 0
        %3941 = vmatprep.subr.bf16.mxu0 0
        %3942 = vmatpush2.bf16.msra.mxu0 0
        %3943 = vmatprep.subr.bf16.mxu0 0
        %3944 = vmatpush2.bf16.msra.mxu0 0
        %3945 = vmatprep.subr.bf16.mxu0 0
        %3946 = vmatpush2.bf16.msra.mxu0 0
        %3947 = vmatprep.subr.bf16.mxu0 0
        %3948 = vmatpush2.bf16.msra.mxu0 0
        %3949 = vmatprep.subr.bf16.mxu0 0
        %3950 = vmatpush2.bf16.msra.mxu0 0
        %3951 = vmatprep.subr.bf16.mxu0 0
        %3952 = vmatpush2.bf16.msra.mxu0 0
        %3953 = vmatprep.subr.bf16.mxu0 0
        %3954 = vmatpush2.bf16.msra.mxu0 0
        %3955 = vmatprep.mubr.bf16.mxu0 0
        %3956 = vmatmul.mubr.bf16.gmra.mxu0 %v3915
        %v3957 = vpop.f32.mrf.mxu0
        %v3958 = vadd.f32 0.0, %v3957
        %v3959 = vpop.f32.mrf.mxu0
        %v3960 = vadd.f32 0.0, %v3959
        %v3961 = vpop.f32.mrf.mxu0
        %v3962 = vpop.f32.mrf.mxu0
        %3963 = vdwg.mxu0
        %v3964 = vadd.f32 %v3885, %v3958
        %v3965 = vadd.f32 %v3886, %v3960
        %v3966 = vld [vmem:[%s1797] sm:$0xf]
        %v3967 = vld [vmem:[%s195 + $0x6] sm:$0x3f]
        %v3969 = vcombine.high %v3967, %v3967
        %v3971 = vunpack.c.l.s4 1983009808
        %v3972 = vunpack.c.0.s8 %v3971
        %v3973 = vlaneseq
        %v3974 = vshrl.u32 %v3973, 7
        %v3975 = vsub.s32 %v3972, %v3974
        %v3976 = vrot.slane %v3967, %v3975
        %v3978 = vunpack.c.l.s4 1983009808
        %v3979 = vunpack.c.0.s8 %v3978
        %v3980 = vlaneseq
        %v3981 = vshrl.u32 %v3980, 7
        %v3982 = vsub.s32 %v3979, %v3981
        %v3983 = vrot.slane %v3969, %v3982
        %v3984 = vcombine.high %v3976, %v3976
        %3985 = vrot.lane.b32.xlu0 %v3976, 54
        %v3986 = vpop.permute.xlu0 %3985
        %3987 = vrot.lane.b32.xlu0 %v3984, 54
        %v3988 = vpop.permute.xlu0 %3987
        %3989 = vrot.lane.b32.xlu0 %v3983, 54
        %v3990 = vpop.permute.xlu0 %3989
        %v3991 = vsel %vm1823, %v3986, %v3988
        %v3992 = vsel %vm1823, %v3988, %v3990
        %v3994 = vsel %vm228, %v3966, 0
        %v3997 = vsel %vm232, %v3991, 0
        %v4000 = vsel %vm232, %v3992, 0
        %4002 = vmatprep.subr.bf16.mxu0 0
        %4003 = vmatpush1.bf16.msra.mxu0 0
        %4004 = vmatprep.subr.bf16.mxu0 0
        %4005 = vmatpush1.bf16.msra.mxu0 0
        %4006 = vmatprep.subr.bf16.mxu0 0
        %4007 = vmatpush1.bf16.msra.mxu0 0
        %4008 = vmatprep.subr.bf16.mxu0 0
        %4009 = vmatpush1.bf16.msra.mxu0 0
        %4010 = vmatprep.subr.bf16.mxu0 0
        %4011 = vmatpush1.bf16.msra.mxu0 0
        %4012 = vmatprep.subr.bf16.mxu0 0
        %4013 = vmatpush1.bf16.msra.mxu0 0
        %4014 = vmatprep.subr.bf16.mxu0 0
        %4015 = vmatpush1.bf16.msra.mxu0 0
        %4016 = vmatprep.subr.bf16.mxu0 %v4000
        %4017 = vmatpush1.bf16.msra.mxu0 %v3997
        %4018 = vmatprep.subr.bf16.mxu0 0
        %4019 = vmatpush2.bf16.msra.mxu0 0
        %4020 = vmatprep.subr.bf16.mxu0 0
        %4021 = vmatpush2.bf16.msra.mxu0 0
        %4022 = vmatprep.subr.bf16.mxu0 0
        %4023 = vmatpush2.bf16.msra.mxu0 0
        %4024 = vmatprep.subr.bf16.mxu0 0
        %4025 = vmatpush2.bf16.msra.mxu0 0
        %4026 = vmatprep.subr.bf16.mxu0 0
        %4027 = vmatpush2.bf16.msra.mxu0 0
        %4028 = vmatprep.subr.bf16.mxu0 0
        %4029 = vmatpush2.bf16.msra.mxu0 0
        %4030 = vmatprep.subr.bf16.mxu0 0
        %4031 = vmatpush2.bf16.msra.mxu0 0
        %4032 = vmatprep.subr.bf16.mxu0 0
        %4033 = vmatpush2.bf16.msra.mxu0 0
        %4034 = vmatprep.mubr.bf16.mxu0 0
        %4035 = vmatmul.mubr.bf16.gmra.mxu0 %v3994
        %v4036 = vpop.f32.mrf.mxu0
        %v4037 = vadd.f32 0.0, %v4036
        %v4038 = vpop.f32.mrf.mxu0
        %v4039 = vadd.f32 0.0, %v4038
        %v4040 = vpop.f32.mrf.mxu0
        %v4041 = vpop.f32.mrf.mxu0
        %4042 = vdwg.mxu0
        %v4043 = vadd.f32 %v3964, %v4037
        %v4044 = vadd.f32 %v3965, %v4039
        %v4045 = vld [vmem:[%s1878] sm:$0xf]
        %v4046 = vld [vmem:[%s195 + $0x6] sm:$0x3f]
        %v4048 = vcombine.high %v4046, %v4046
        %v4050 = vunpack.c.l.s4 1983009808
        %v4051 = vunpack.c.0.s8 %v4050
        %v4052 = vlaneseq
        %v4053 = vshrl.u32 %v4052, 7
        %v4054 = vsub.s32 %v4051, %v4053
        %v4055 = vrot.slane %v4046, %v4054
        %v4057 = vunpack.c.l.s4 1983009808
        %v4058 = vunpack.c.0.s8 %v4057
        %v4059 = vlaneseq
        %v4060 = vshrl.u32 %v4059, 7
        %v4061 = vsub.s32 %v4058, %v4060
        %v4062 = vrot.slane %v4048, %v4061
        %v4063 = vcombine.high %v4055, %v4055
        %4064 = vrot.lane.b32.xlu0 %v4055, 46
        %v4065 = vpop.permute.xlu0 %4064
        %4066 = vrot.lane.b32.xlu0 %v4063, 46
        %v4067 = vpop.permute.xlu0 %4066
        %4068 = vrot.lane.b32.xlu0 %v4062, 46
        %v4069 = vpop.permute.xlu0 %4068
        %v4070 = vsel %vm1904, %v4065, %v4067
        %v4071 = vsel %vm1904, %v4067, %v4069
        %v4073 = vsel %vm228, %v4045, 0
        %v4076 = vsel %vm232, %v4070, 0
        %v4079 = vsel %vm232, %v4071, 0
        %4081 = vmatprep.subr.bf16.mxu0 0
        %4082 = vmatpush1.bf16.msra.mxu0 0
        %4083 = vmatprep.subr.bf16.mxu0 0
        %4084 = vmatpush1.bf16.msra.mxu0 0
        %4085 = vmatprep.subr.bf16.mxu0 0
        %4086 = vmatpush1.bf16.msra.mxu0 0
        %4087 = vmatprep.subr.bf16.mxu0 0
        %4088 = vmatpush1.bf16.msra.mxu0 0
        %4089 = vmatprep.subr.bf16.mxu0 0
        %4090 = vmatpush1.bf16.msra.mxu0 0
        %4091 = vmatprep.subr.bf16.mxu0 0
        %4092 = vmatpush1.bf16.msra.mxu0 0
        %4093 = vmatprep.subr.bf16.mxu0 0
        %4094 = vmatpush1.bf16.msra.mxu0 0
        %4095 = vmatprep.subr.bf16.mxu0 %v4079
        %4096 = vmatpush1.bf16.msra.mxu0 %v4076
        %4097 = vmatprep.subr.bf16.mxu0 0
        %4098 = vmatpush2.bf16.msra.mxu0 0
        %4099 = vmatprep.subr.bf16.mxu0 0
        %4100 = vmatpush2.bf16.msra.mxu0 0
        %4101 = vmatprep.subr.bf16.mxu0 0
        %4102 = vmatpush2.bf16.msra.mxu0 0
        %4103 = vmatprep.subr.bf16.mxu0 0
        %4104 = vmatpush2.bf16.msra.mxu0 0
        %4105 = vmatprep.subr.bf16.mxu0 0
        %4106 = vmatpush2.bf16.msra.mxu0 0
        %4107 = vmatprep.subr.bf16.mxu0 0
        %4108 = vmatpush2.bf16.msra.mxu0 0
        %4109 = vmatprep.subr.bf16.mxu0 0
        %4110 = vmatpush2.bf16.msra.mxu0 0
        %4111 = vmatprep.subr.bf16.mxu0 0
        %4112 = vmatpush2.bf16.msra.mxu0 0
        %4113 = vmatprep.mubr.bf16.mxu0 0
        %4114 = vmatmul.mubr.bf16.gmra.mxu0 %v4073
        %v4115 = vpop.f32.mrf.mxu0
        %v4116 = vadd.f32 0.0, %v4115
        %v4117 = vpop.f32.mrf.mxu0
        %v4118 = vadd.f32 0.0, %v4117
        %v4119 = vpop.f32.mrf.mxu0
        %v4120 = vpop.f32.mrf.mxu0
        %4121 = vdwg.mxu0
        %v4122 = vadd.f32 %v4043, %v4116
        %v4123 = vadd.f32 %v4044, %v4118
        %v4124 = vld [vmem:[%s1959] sm:$0xf]
        %v4125 = vld [vmem:[%s195 + $0x6] sm:$0x3f]
        %v4127 = vcombine.high %v4125, %v4125
        %v4129 = vunpack.c.l.s4 1983009808
        %v4130 = vunpack.c.0.s8 %v4129
        %v4131 = vlaneseq
        %v4132 = vshrl.u32 %v4131, 7
        %v4133 = vsub.s32 %v4130, %v4132
        %v4134 = vrot.slane %v4125, %v4133
        %v4136 = vunpack.c.l.s4 1983009808
        %v4137 = vunpack.c.0.s8 %v4136
        %v4138 = vlaneseq
        %v4139 = vshrl.u32 %v4138, 7
        %v4140 = vsub.s32 %v4137, %v4139
        %v4141 = vrot.slane %v4127, %v4140
        %v4142 = vcombine.high %v4134, %v4134
        %4143 = vrot.lane.b32.xlu0 %v4134, 45
        %v4144 = vpop.permute.xlu0 %4143
        %4145 = vrot.lane.b32.xlu0 %v4142, 45
        %v4146 = vpop.permute.xlu0 %4145
        %4147 = vrot.lane.b32.xlu0 %v4141, 45
        %v4148 = vpop.permute.xlu0 %4147
        %v4149 = vsel %vm1985, %v4144, %v4146
        %v4150 = vsel %vm1985, %v4146, %v4148
        %v4152 = vsel %vm228, %v4124, 0
        %v4155 = vsel %vm232, %v4149, 0
        %v4158 = vsel %vm232, %v4150, 0
        %4160 = vmatprep.subr.bf16.mxu0 0
        %4161 = vmatpush1.bf16.msra.mxu0 0
        %4162 = vmatprep.subr.bf16.mxu0 0
        %4163 = vmatpush1.bf16.msra.mxu0 0
        %4164 = vmatprep.subr.bf16.mxu0 0
        %4165 = vmatpush1.bf16.msra.mxu0 0
        %4166 = vmatprep.subr.bf16.mxu0 0
        %4167 = vmatpush1.bf16.msra.mxu0 0
        %4168 = vmatprep.subr.bf16.mxu0 0
        %4169 = vmatpush1.bf16.msra.mxu0 0
        %4170 = vmatprep.subr.bf16.mxu0 0
        %4171 = vmatpush1.bf16.msra.mxu0 0
        %4172 = vmatprep.subr.bf16.mxu0 0
        %4173 = vmatpush1.bf16.msra.mxu0 0
        %4174 = vmatprep.subr.bf16.mxu0 %v4158
        %4175 = vmatpush1.bf16.msra.mxu0 %v4155
        %4176 = vmatprep.subr.bf16.mxu0 0
        %4177 = vmatpush2.bf16.msra.mxu0 0
        %4178 = vmatprep.subr.bf16.mxu0 0
        %4179 = vmatpush2.bf16.msra.mxu0 0
        %4180 = vmatprep.subr.bf16.mxu0 0
        %4181 = vmatpush2.bf16.msra.mxu0 0
        %4182 = vmatprep.subr.bf16.mxu0 0
        %4183 = vmatpush2.bf16.msra.mxu0 0
        %4184 = vmatprep.subr.bf16.mxu0 0
        %4185 = vmatpush2.bf16.msra.mxu0 0
        %4186 = vmatprep.subr.bf16.mxu0 0
        %4187 = vmatpush2.bf16.msra.mxu0 0
        %4188 = vmatprep.subr.bf16.mxu0 0
        %4189 = vmatpush2.bf16.msra.mxu0 0
        %4190 = vmatprep.subr.bf16.mxu0 0
        %4191 = vmatpush2.bf16.msra.mxu0 0
        %4192 = vmatprep.mubr.bf16.mxu0 0
        %4193 = vmatmul.mubr.bf16.gmra.mxu0 %v4152
        %v4194 = vpop.f32.mrf.mxu0
        %v4195 = vadd.f32 0.0, %v4194
        %v4196 = vpop.f32.mrf.mxu0
        %v4197 = vadd.f32 0.0, %v4196
        %v4198 = vpop.f32.mrf.mxu0
        %v4199 = vpop.f32.mrf.mxu0
        %4200 = vdwg.mxu0
        %v4201 = vadd.f32 %v4122, %v4195
        %v4202 = vadd.f32 %v4123, %v4197
        %v4203 = vld [vmem:[%s2040] sm:$0xf]
        %v4204 = vld [vmem:[%s195 + $0x6] sm:$0x3f]
        %v4206 = vcombine.high %v4204, %v4204
        %v4208 = vunpack.c.l.s4 1983009808
        %v4209 = vunpack.c.0.s8 %v4208
        %v4210 = vlaneseq
        %v4211 = vshrl.u32 %v4210, 7
        %v4212 = vsub.s32 %v4209, %v4211
        %v4213 = vrot.slane %v4204, %v4212
        %v4215 = vunpack.c.l.s4 1983009808
        %v4216 = vunpack.c.0.s8 %v4215
        %v4217 = vlaneseq
        %v4218 = vshrl.u32 %v4217, 7
        %v4219 = vsub.s32 %v4216, %v4218
        %v4220 = vrot.slane %v4206, %v4219
        %v4221 = vcombine.high %v4213, %v4213
        %4222 = vrot.lane.b32.xlu0 %v4213, 44
        %v4223 = vpop.permute.xlu0 %4222
        %4224 = vrot.lane.b32.xlu0 %v4221, 44
        %v4225 = vpop.permute.xlu0 %4224
        %4226 = vrot.lane.b32.xlu0 %v4220, 44
        %v4227 = vpop.permute.xlu0 %4226
        %v4228 = vsel %vm2066, %v4223, %v4225
        %v4229 = vsel %vm2066, %v4225, %v4227
        %v4231 = vsel %vm228, %v4203, 0
        %v4234 = vsel %vm232, %v4228, 0
        %v4237 = vsel %vm232, %v4229, 0
        %4239 = vmatprep.subr.bf16.mxu0 0
        %4240 = vmatpush1.bf16.msra.mxu0 0
        %4241 = vmatprep.subr.bf16.mxu0 0
        %4242 = vmatpush1.bf16.msra.mxu0 0
        %4243 = vmatprep.subr.bf16.mxu0 0
        %4244 = vmatpush1.bf16.msra.mxu0 0
        %4245 = vmatprep.subr.bf16.mxu0 0
        %4246 = vmatpush1.bf16.msra.mxu0 0
        %4247 = vmatprep.subr.bf16.mxu0 0
        %4248 = vmatpush1.bf16.msra.mxu0 0
        %4249 = vmatprep.subr.bf16.mxu0 0
        %4250 = vmatpush1.bf16.msra.mxu0 0
        %4251 = vmatprep.subr.bf16.mxu0 0
        %4252 = vmatpush1.bf16.msra.mxu0 0
        %4253 = vmatprep.subr.bf16.mxu0 %v4237
        %4254 = vmatpush1.bf16.msra.mxu0 %v4234
        %4255 = vmatprep.subr.bf16.mxu0 0
        %4256 = vmatpush2.bf16.msra.mxu0 0
        %4257 = vmatprep.subr.bf16.mxu0 0
        %4258 = vmatpush2.bf16.msra.mxu0 0
        %4259 = vmatprep.subr.bf16.mxu0 0
        %4260 = vmatpush2.bf16.msra.mxu0 0
        %4261 = vmatprep.subr.bf16.mxu0 0
        %4262 = vmatpush2.bf16.msra.mxu0 0
        %4263 = vmatprep.subr.bf16.mxu0 0
        %4264 = vmatpush2.bf16.msra.mxu0 0
        %4265 = vmatprep.subr.bf16.mxu0 0
        %4266 = vmatpush2.bf16.msra.mxu0 0
        %4267 = vmatprep.subr.bf16.mxu0 0
        %4268 = vmatpush2.bf16.msra.mxu0 0
        %4269 = vmatprep.subr.bf16.mxu0 0
        %4270 = vmatpush2.bf16.msra.mxu0 0
        %4271 = vmatprep.mubr.bf16.mxu0 0
        %4272 = vmatmul.mubr.bf16.gmra.mxu0 %v4231
        %v4273 = vpop.f32.mrf.mxu0
        %v4274 = vadd.f32 0.0, %v4273
        %v4275 = vpop.f32.mrf.mxu0
        %v4276 = vadd.f32 0.0, %v4275
        %v4277 = vpop.f32.mrf.mxu0
        %v4278 = vpop.f32.mrf.mxu0
        %4279 = vdwg.mxu0
        %v4280 = vadd.f32 %v4201, %v4274
        %v4281 = vadd.f32 %v4202, %v4276
        %v4282 = vld [vmem:[%s2121] sm:$0xf]
        %v4283 = vld [vmem:[%s195 + $0x6] sm:$0x3f]
        %v4285 = vcombine.high %v4283, %v4283
        %v4287 = vunpack.c.l.s4 1983009808
        %v4288 = vunpack.c.0.s8 %v4287
        %v4289 = vlaneseq
        %v4290 = vshrl.u32 %v4289, 7
        %v4291 = vsub.s32 %v4288, %v4290
        %v4292 = vrot.slane %v4283, %v4291
        %v4294 = vunpack.c.l.s4 1983009808
        %v4295 = vunpack.c.0.s8 %v4294
        %v4296 = vlaneseq
        %v4297 = vshrl.u32 %v4296, 7
        %v4298 = vsub.s32 %v4295, %v4297
        %v4299 = vrot.slane %v4285, %v4298
        %v4300 = vcombine.high %v4292, %v4292
        %4301 = vrot.lane.b32.xlu0 %v4292, 36
        %v4302 = vpop.permute.xlu0 %4301
        %4303 = vrot.lane.b32.xlu0 %v4300, 36
        %v4304 = vpop.permute.xlu0 %4303
        %4305 = vrot.lane.b32.xlu0 %v4299, 36
        %v4306 = vpop.permute.xlu0 %4305
        %v4307 = vsel %vm2147, %v4302, %v4304
        %v4308 = vsel %vm2147, %v4304, %v4306
        %v4310 = vsel %vm228, %v4282, 0
        %v4313 = vsel %vm232, %v4307, 0
        %v4316 = vsel %vm232, %v4308, 0
        %4318 = vmatprep.subr.bf16.mxu0 0
        %4319 = vmatpush1.bf16.msra.mxu0 0
        %4320 = vmatprep.subr.bf16.mxu0 0
        %4321 = vmatpush1.bf16.msra.mxu0 0
        %4322 = vmatprep.subr.bf16.mxu0 0
        %4323 = vmatpush1.bf16.msra.mxu0 0
        %4324 = vmatprep.subr.bf16.mxu0 0
        %4325 = vmatpush1.bf16.msra.mxu0 0
        %4326 = vmatprep.subr.bf16.mxu0 0
        %4327 = vmatpush1.bf16.msra.mxu0 0
        %4328 = vmatprep.subr.bf16.mxu0 0
        %4329 = vmatpush1.bf16.msra.mxu0 0
        %4330 = vmatprep.subr.bf16.mxu0 0
        %4331 = vmatpush1.bf16.msra.mxu0 0
        %4332 = vmatprep.subr.bf16.mxu0 %v4316
        %4333 = vmatpush1.bf16.msra.mxu0 %v4313
        %4334 = vmatprep.subr.bf16.mxu0 0
        %4335 = vmatpush2.bf16.msra.mxu0 0
        %4336 = vmatprep.subr.bf16.mxu0 0
        %4337 = vmatpush2.bf16.msra.mxu0 0
        %4338 = vmatprep.subr.bf16.mxu0 0
        %4339 = vmatpush2.bf16.msra.mxu0 0
        %4340 = vmatprep.subr.bf16.mxu0 0
        %4341 = vmatpush2.bf16.msra.mxu0 0
        %4342 = vmatprep.subr.bf16.mxu0 0
        %4343 = vmatpush2.bf16.msra.mxu0 0
        %4344 = vmatprep.subr.bf16.mxu0 0
        %4345 = vmatpush2.bf16.msra.mxu0 0
        %4346 = vmatprep.subr.bf16.mxu0 0
        %4347 = vmatpush2.bf16.msra.mxu0 0
        %4348 = vmatprep.subr.bf16.mxu0 0
        %4349 = vmatpush2.bf16.msra.mxu0 0
        %4350 = vmatprep.mubr.bf16.mxu0 0
        %4351 = vmatmul.mubr.bf16.gmra.mxu0 %v4310
        %v4352 = vpop.f32.mrf.mxu0
        %v4353 = vadd.f32 0.0, %v4352
        %v4354 = vpop.f32.mrf.mxu0
        %v4355 = vadd.f32 0.0, %v4354
        %v4356 = vpop.f32.mrf.mxu0
        %v4357 = vpop.f32.mrf.mxu0
        %4358 = vdwg.mxu0
        %v4359 = vadd.f32 %v4280, %v4353
        %v4360 = vadd.f32 %v4281, %v4355
        %v4361 = vld [vmem:[%s2202] sm:$0xf]
        %v4362 = vld [vmem:[%s195 + $0x6] sm:$0x3f]
        %v4364 = vcombine.high %v4362, %v4362
        %v4366 = vunpack.c.l.s4 1983009808
        %v4367 = vunpack.c.0.s8 %v4366
        %v4368 = vlaneseq
        %v4369 = vshrl.u32 %v4368, 7
        %v4370 = vsub.s32 %v4367, %v4369
        %v4371 = vrot.slane %v4362, %v4370
        %v4373 = vunpack.c.l.s4 1983009808
        %v4374 = vunpack.c.0.s8 %v4373
        %v4375 = vlaneseq
        %v4376 = vshrl.u32 %v4375, 7
        %v4377 = vsub.s32 %v4374, %v4376
        %v4378 = vrot.slane %v4364, %v4377
        %v4379 = vcombine.high %v4371, %v4371
        %4380 = vrot.lane.b32.xlu0 %v4371, 35
        %v4381 = vpop.permute.xlu0 %4380
        %4382 = vrot.lane.b32.xlu0 %v4379, 35
        %v4383 = vpop.permute.xlu0 %4382
        %4384 = vrot.lane.b32.xlu0 %v4378, 35
        %v4385 = vpop.permute.xlu0 %4384
        %v4386 = vsel %vm2228, %v4381, %v4383
        %v4387 = vsel %vm2228, %v4383, %v4385
        %v4389 = vsel %vm228, %v4361, 0
        %v4392 = vsel %vm232, %v4386, 0
        %v4395 = vsel %vm232, %v4387, 0
        %4397 = vmatprep.subr.bf16.mxu0 0
        %4398 = vmatpush1.bf16.msra.mxu0 0
        %4399 = vmatprep.subr.bf16.mxu0 0
        %4400 = vmatpush1.bf16.msra.mxu0 0
        %4401 = vmatprep.subr.bf16.mxu0 0
        %4402 = vmatpush1.bf16.msra.mxu0 0
        %4403 = vmatprep.subr.bf16.mxu0 0
        %4404 = vmatpush1.bf16.msra.mxu0 0
        %4405 = vmatprep.subr.bf16.mxu0 0
        %4406 = vmatpush1.bf16.msra.mxu0 0
        %4407 = vmatprep.subr.bf16.mxu0 0
        %4408 = vmatpush1.bf16.msra.mxu0 0
        %4409 = vmatprep.subr.bf16.mxu0 0
        %4410 = vmatpush1.bf16.msra.mxu0 0
        %4411 = vmatprep.subr.bf16.mxu0 %v4395
        %4412 = vmatpush1.bf16.msra.mxu0 %v4392
        %4413 = vmatprep.subr.bf16.mxu0 0
        %4414 = vmatpush2.bf16.msra.mxu0 0
        %4415 = vmatprep.subr.bf16.mxu0 0
        %4416 = vmatpush2.bf16.msra.mxu0 0
        %4417 = vmatprep.subr.bf16.mxu0 0
        %4418 = vmatpush2.bf16.msra.mxu0 0
        %4419 = vmatprep.subr.bf16.mxu0 0
        %4420 = vmatpush2.bf16.msra.mxu0 0
        %4421 = vmatprep.subr.bf16.mxu0 0
        %4422 = vmatpush2.bf16.msra.mxu0 0
        %4423 = vmatprep.subr.bf16.mxu0 0
        %4424 = vmatpush2.bf16.msra.mxu0 0
        %4425 = vmatprep.subr.bf16.mxu0 0
        %4426 = vmatpush2.bf16.msra.mxu0 0
        %4427 = vmatprep.subr.bf16.mxu0 0
        %4428 = vmatpush2.bf16.msra.mxu0 0
        %4429 = vmatprep.mubr.bf16.mxu0 0
        %4430 = vmatmul.mubr.bf16.gmra.mxu0 %v4389
        %v4431 = vpop.f32.mrf.mxu0
        %v4432 = vadd.f32 0.0, %v4431
        %v4433 = vpop.f32.mrf.mxu0
        %v4434 = vadd.f32 0.0, %v4433
        %v4435 = vpop.f32.mrf.mxu0
        %v4436 = vpop.f32.mrf.mxu0
        %4437 = vdwg.mxu0
        %v4438 = vadd.f32 %v4359, %v4432
        %v4439 = vadd.f32 %v4360, %v4434
        %v4440 = vld [vmem:[%s2283] sm:$0xf]
        %v4441 = vld [vmem:[%s195 + $0x6] sm:$0x3f]
        %v4443 = vcombine.high %v4441, %v4441
        %v4445 = vunpack.c.l.s4 1983009808
        %v4446 = vunpack.c.0.s8 %v4445
        %v4447 = vlaneseq
        %v4448 = vshrl.u32 %v4447, 7
        %v4449 = vsub.s32 %v4446, %v4448
        %v4450 = vrot.slane %v4441, %v4449
        %v4452 = vunpack.c.l.s4 1983009808
        %v4453 = vunpack.c.0.s8 %v4452
        %v4454 = vlaneseq
        %v4455 = vshrl.u32 %v4454, 7
        %v4456 = vsub.s32 %v4453, %v4455
        %v4457 = vrot.slane %v4443, %v4456
        %v4458 = vcombine.high %v4450, %v4450
        %4459 = vrot.lane.b32.xlu0 %v4450, 34
        %v4460 = vpop.permute.xlu0 %4459
        %4461 = vrot.lane.b32.xlu0 %v4458, 34
        %v4462 = vpop.permute.xlu0 %4461
        %4463 = vrot.lane.b32.xlu0 %v4457, 34
        %v4464 = vpop.permute.xlu0 %4463
        %v4465 = vsel %vm2309, %v4460, %v4462
        %v4466 = vsel %vm2309, %v4462, %v4464
        %v4468 = vsel %vm228, %v4440, 0
        %v4471 = vsel %vm232, %v4465, 0
        %v4474 = vsel %vm232, %v4466, 0
        %4476 = vmatprep.subr.bf16.mxu0 0
        %4477 = vmatpush1.bf16.msra.mxu0 0
        %4478 = vmatprep.subr.bf16.mxu0 0
        %4479 = vmatpush1.bf16.msra.mxu0 0
        %4480 = vmatprep.subr.bf16.mxu0 0
        %4481 = vmatpush1.bf16.msra.mxu0 0
        %4482 = vmatprep.subr.bf16.mxu0 0
        %4483 = vmatpush1.bf16.msra.mxu0 0
        %4484 = vmatprep.subr.bf16.mxu0 0
        %4485 = vmatpush1.bf16.msra.mxu0 0
        %4486 = vmatprep.subr.bf16.mxu0 0
        %4487 = vmatpush1.bf16.msra.mxu0 0
        %4488 = vmatprep.subr.bf16.mxu0 0
        %4489 = vmatpush1.bf16.msra.mxu0 0
        %4490 = vmatprep.subr.bf16.mxu0 %v4474
        %4491 = vmatpush1.bf16.msra.mxu0 %v4471
        %4492 = vmatprep.subr.bf16.mxu0 0
        %4493 = vmatpush2.bf16.msra.mxu0 0
        %4494 = vmatprep.subr.bf16.mxu0 0
        %4495 = vmatpush2.bf16.msra.mxu0 0
        %4496 = vmatprep.subr.bf16.mxu0 0
        %4497 = vmatpush2.bf16.msra.mxu0 0
        %4498 = vmatprep.subr.bf16.mxu0 0
        %4499 = vmatpush2.bf16.msra.mxu0 0
        %4500 = vmatprep.subr.bf16.mxu0 0
        %4501 = vmatpush2.bf16.msra.mxu0 0
        %4502 = vmatprep.subr.bf16.mxu0 0
        %4503 = vmatpush2.bf16.msra.mxu0 0
        %4504 = vmatprep.subr.bf16.mxu0 0
        %4505 = vmatpush2.bf16.msra.mxu0 0
        %4506 = vmatprep.subr.bf16.mxu0 0
        %4507 = vmatpush2.bf16.msra.mxu0 0
        %4508 = vmatprep.mubr.bf16.mxu0 0
        %4509 = vmatmul.mubr.bf16.gmra.mxu0 %v4468
        %v4510 = vpop.f32.mrf.mxu0
        %v4511 = vadd.f32 0.0, %v4510
        %v4512 = vpop.f32.mrf.mxu0
        %v4513 = vadd.f32 0.0, %v4512
        %v4514 = vpop.f32.mrf.mxu0
        %v4515 = vpop.f32.mrf.mxu0
        %4516 = vdwg.mxu0
        %v4517 = vadd.f32 %v4438, %v4511
        %v4518 = vadd.f32 %v4439, %v4513
        %v4519 = vld [vmem:[%s3 + $0x2] sm:$0x3]
        %v4520 = vunpack.c.l.bf16 %v4519
        %v4522 = vlaneseq
        %v4523 = vshrl.u32 %v4522, 7
        %v4524 = vsub.s32 0, %v4523
        %v4525 = vrot.slane %v4520, %v4524
        %v4526 = vlaneseq
        %v4527 = vshrl.u32 %v4526, 7
        %v4528 = vsub.s32 2, %v4527
        %v4529 = vrot.slane %v4520, %v4528
        %v4532 = vlaneseq
        %v4533 = vshrl.u32 %v4532, 7
        %v4534 = vsub.s32 0, %v4533
        %v4535 = vrot.slane %v4525, %v4534
        %v4536 = vlaneseq
        %v4537 = vshrl.u32 %v4536, 7
        %v4538 = vsub.s32 0, %v4537
        %v4539 = vrot.slane %v4529, %v4538
        %v4540 = vmul.f32 %v4517, %v4535
        %v4541 = vmul.f32 %v4518, %v4539
        %v4542 = vadd.f32 %v4540, %v4541
        %4543 = vadd.xlane.f32.xlu0 %v4542
        %v4544 = vpop.xlane.xlu0 %4543
        %v4545 = vadd.f32 %v2390, %v4544
        %v4546 = vmul.f32 %v4540, %v4517
        %v4547 = vmul.f32 %v4541, %v4518
        %v4548 = vadd.f32 %v4546, %v4547
        %4549 = vadd.xlane.f32.xlu0 %v4548
        %v4550 = vpop.xlane.xlu0 %4549
        %v4551 = vadd.f32 %v2396, %v4550
        %v4552 = vpack.c.bf16 %v4517, %v4517
        %v4553 = vpack.c.bf16 %v4518, %v4518
        %v4556 = vunpack.c.l.b16 %v4552
        %v4557 = vunpack.c.l.b16 %v4553
        %v4558 = vpack.c.b16 %v4557, %v4556
        %4560 = vst [vmem:[%s190 + $0x8] sm:$0xff] %v4558
        %v4561 = vld [vmem:[%s1] sm:$0xf]
        %v4562 = vld [vmem:[%s195 + $0x8] sm:$0xf]
        %v4563 = vld [vmem:[%s199] sm:$0xf]
        %v4564 = vld [vmem:[%s195 + $0x8] sm:$0x3f]
        %v4566 = vcombine.high %v4564, %v4564
        %v4568 = vunpack.c.l.s4 1983009808
        %v4569 = vunpack.c.0.s8 %v4568
        %v4570 = vlaneseq
        %v4571 = vshrl.u32 %v4570, 7
        %v4572 = vsub.s32 %v4569, %v4571
        %v4573 = vrot.slane %v4564, %v4572
        %v4575 = vunpack.c.l.s4 1983009808
        %v4576 = vunpack.c.0.s8 %v4575
        %v4577 = vlaneseq
        %v4578 = vshrl.u32 %v4577, 7
        %v4579 = vsub.s32 %v4576, %v4578
        %v4580 = vrot.slane %v4566, %v4579
        %v4581 = vcombine.high %v4573, %v4573
        %4582 = vrot.lane.b32.xlu0 %v4573, 127
        %v4583 = vpop.permute.xlu0 %4582
        %4584 = vrot.lane.b32.xlu0 %v4581, 127
        %v4585 = vpop.permute.xlu0 %4584
        %4586 = vrot.lane.b32.xlu0 %v4580, 127
        %v4587 = vpop.permute.xlu0 %4586
        %v4588 = vsel %vm225, %v4583, %v4585
        %v4589 = vsel %vm225, %v4585, %v4587
        %v4591 = vsel %vm228, %v4563, 0
        %v4594 = vsel %vm232, %v4588, 0
        %v4597 = vsel %vm232, %v4589, 0
        %4599 = vmatprep.subr.bf16.mxu0 0
        %4600 = vmatpush1.bf16.msra.mxu0 0
        %4601 = vmatprep.subr.bf16.mxu0 0
        %4602 = vmatpush1.bf16.msra.mxu0 0
        %4603 = vmatprep.subr.bf16.mxu0 0
        %4604 = vmatpush1.bf16.msra.mxu0 0
        %4605 = vmatprep.subr.bf16.mxu0 0
        %4606 = vmatpush1.bf16.msra.mxu0 0
        %4607 = vmatprep.subr.bf16.mxu0 0
        %4608 = vmatpush1.bf16.msra.mxu0 0
        %4609 = vmatprep.subr.bf16.mxu0 0
        %4610 = vmatpush1.bf16.msra.mxu0 0
        %4611 = vmatprep.subr.bf16.mxu0 0
        %4612 = vmatpush1.bf16.msra.mxu0 0
        %4613 = vmatprep.subr.bf16.mxu0 %v4597
        %4614 = vmatpush1.bf16.msra.mxu0 %v4594
        %4615 = vmatprep.subr.bf16.mxu0 0
        %4616 = vmatpush2.bf16.msra.mxu0 0
        %4617 = vmatprep.subr.bf16.mxu0 0
        %4618 = vmatpush2.bf16.msra.mxu0 0
        %4619 = vmatprep.subr.bf16.mxu0 0
        %4620 = vmatpush2.bf16.msra.mxu0 0
        %4621 = vmatprep.subr.bf16.mxu0 0
        %4622 = vmatpush2.bf16.msra.mxu0 0
        %4623 = vmatprep.subr.bf16.mxu0 0
        %4624 = vmatpush2.bf16.msra.mxu0 0
        %4625 = vmatprep.subr.bf16.mxu0 0
        %4626 = vmatpush2.bf16.msra.mxu0 0
        %4627 = vmatprep.subr.bf16.mxu0 0
        %4628 = vmatpush2.bf16.msra.mxu0 0
        %4629 = vmatprep.subr.bf16.mxu0 0
        %4630 = vmatpush2.bf16.msra.mxu0 0
        %4631 = vmatprep.mubr.bf16.mxu0 0
        %4632 = vmatmul.mubr.bf16.gmra.mxu0 %v4591
        %v4633 = vpop.f32.mrf.mxu0
        %v4634 = vadd.f32 0.0, %v4633
        %v4635 = vpop.f32.mrf.mxu0
        %v4636 = vadd.f32 0.0, %v4635
        %v4637 = vpop.f32.mrf.mxu0
        %v4638 = vpop.f32.mrf.mxu0
        %4639 = vdwg.mxu0
        %v4642 = vunpack.c.l.s4 1983009808
        %v4643 = vunpack.c.0.s8 %v4642
        %v4644 = vlaneseq
        %v4645 = vshrl.u32 %v4644, 7
        %v4646 = vsub.s32 %v4643, %v4645
        %v4647 = vrot.slane %v4562, %v4646
        %v4648 = vcombine.high %v4647, %v4647
        %v4650 = vsel %vm228, %v4561, 0
        %v4653 = vsel %vm232, %v4647, 0
        %v4656 = vsel %vm232, %v4648, 0
        %4658 = vmatprep.subr.bf16.mxu0 0
        %4659 = vmatpush1.bf16.msra.mxu0 0
        %4660 = vmatprep.subr.bf16.mxu0 0
        %4661 = vmatpush1.bf16.msra.mxu0 0
        %4662 = vmatprep.subr.bf16.mxu0 0
        %4663 = vmatpush1.bf16.msra.mxu0 0
        %4664 = vmatprep.subr.bf16.mxu0 0
        %4665 = vmatpush1.bf16.msra.mxu0 0
        %4666 = vmatprep.subr.bf16.mxu0 0
        %4667 = vmatpush1.bf16.msra.mxu0 0
        %4668 = vmatprep.subr.bf16.mxu0 0
        %4669 = vmatpush1.bf16.msra.mxu0 0
        %4670 = vmatprep.subr.bf16.mxu0 0
        %4671 = vmatpush1.bf16.msra.mxu0 0
        %4672 = vmatprep.subr.bf16.mxu0 %v4656
        %4673 = vmatpush1.bf16.msra.mxu0 %v4653
        %4674 = vmatprep.subr.bf16.mxu0 0
        %4675 = vmatpush2.bf16.msra.mxu0 0
        %4676 = vmatprep.subr.bf16.mxu0 0
        %4677 = vmatpush2.bf16.msra.mxu0 0
        %4678 = vmatprep.subr.bf16.mxu0 0
        %4679 = vmatpush2.bf16.msra.mxu0 0
        %4680 = vmatprep.subr.bf16.mxu0 0
        %4681 = vmatpush2.bf16.msra.mxu0 0
        %4682 = vmatprep.subr.bf16.mxu0 0
        %4683 = vmatpush2.bf16.msra.mxu0 0
        %4684 = vmatprep.subr.bf16.mxu0 0
        %4685 = vmatpush2.bf16.msra.mxu0 0
        %4686 = vmatprep.subr.bf16.mxu0 0
        %4687 = vmatpush2.bf16.msra.mxu0 0
        %4688 = vmatprep.subr.bf16.mxu0 0
        %4689 = vmatpush2.bf16.msra.mxu0 0
        %4690 = vmatprep.mubr.bf16.mxu0 0
        %4691 = vmatmul.mubr.bf16.gmra.mxu0 %v4650
        %v4692 = vpop.f32.mrf.mxu0
        %v4693 = vadd.f32 %v4634, %v4692
        %v4694 = vpop.f32.mrf.mxu0
        %v4695 = vadd.f32 %v4636, %v4694
        %v4696 = vpop.f32.mrf.mxu0
        %v4697 = vpop.f32.mrf.mxu0
        %4698 = vdwg.mxu0
        %v4699 = vld [vmem:[%s339] sm:$0xf]
        %v4700 = vld [vmem:[%s195 + $0x8] sm:$0x3f]
        %v4702 = vcombine.high %v4700, %v4700
        %v4704 = vunpack.c.l.s4 1983009808
        %v4705 = vunpack.c.0.s8 %v4704
        %v4706 = vlaneseq
        %v4707 = vshrl.u32 %v4706, 7
        %v4708 = vsub.s32 %v4705, %v4707
        %v4709 = vrot.slane %v4700, %v4708
        %v4711 = vunpack.c.l.s4 1983009808
        %v4712 = vunpack.c.0.s8 %v4711
        %v4713 = vlaneseq
        %v4714 = vshrl.u32 %v4713, 7
        %v4715 = vsub.s32 %v4712, %v4714
        %v4716 = vrot.slane %v4702, %v4715
        %v4717 = vcombine.high %v4709, %v4709
        %4718 = vrot.lane.b32.xlu0 %v4709, 126
        %v4719 = vpop.permute.xlu0 %4718
        %4720 = vrot.lane.b32.xlu0 %v4717, 126
        %v4721 = vpop.permute.xlu0 %4720
        %4722 = vrot.lane.b32.xlu0 %v4716, 126
        %v4723 = vpop.permute.xlu0 %4722
        %v4724 = vsel %vm365, %v4719, %v4721
        %v4725 = vsel %vm365, %v4721, %v4723
        %v4727 = vsel %vm228, %v4699, 0
        %v4730 = vsel %vm232, %v4724, 0
        %v4733 = vsel %vm232, %v4725, 0
        %4735 = vmatprep.subr.bf16.mxu0 0
        %4736 = vmatpush1.bf16.msra.mxu0 0
        %4737 = vmatprep.subr.bf16.mxu0 0
        %4738 = vmatpush1.bf16.msra.mxu0 0
        %4739 = vmatprep.subr.bf16.mxu0 0
        %4740 = vmatpush1.bf16.msra.mxu0 0
        %4741 = vmatprep.subr.bf16.mxu0 0
        %4742 = vmatpush1.bf16.msra.mxu0 0
        %4743 = vmatprep.subr.bf16.mxu0 0
        %4744 = vmatpush1.bf16.msra.mxu0 0
        %4745 = vmatprep.subr.bf16.mxu0 0
        %4746 = vmatpush1.bf16.msra.mxu0 0
        %4747 = vmatprep.subr.bf16.mxu0 0
        %4748 = vmatpush1.bf16.msra.mxu0 0
        %4749 = vmatprep.subr.bf16.mxu0 %v4733
        %4750 = vmatpush1.bf16.msra.mxu0 %v4730
        %4751 = vmatprep.subr.bf16.mxu0 0
        %4752 = vmatpush2.bf16.msra.mxu0 0
        %4753 = vmatprep.subr.bf16.mxu0 0
        %4754 = vmatpush2.bf16.msra.mxu0 0
        %4755 = vmatprep.subr.bf16.mxu0 0
        %4756 = vmatpush2.bf16.msra.mxu0 0
        %4757 = vmatprep.subr.bf16.mxu0 0
        %4758 = vmatpush2.bf16.msra.mxu0 0
        %4759 = vmatprep.subr.bf16.mxu0 0
        %4760 = vmatpush2.bf16.msra.mxu0 0
        %4761 = vmatprep.subr.bf16.mxu0 0
        %4762 = vmatpush2.bf16.msra.mxu0 0
        %4763 = vmatprep.subr.bf16.mxu0 0
        %4764 = vmatpush2.bf16.msra.mxu0 0
        %4765 = vmatprep.subr.bf16.mxu0 0
        %4766 = vmatpush2.bf16.msra.mxu0 0
        %4767 = vmatprep.mubr.bf16.mxu0 0
        %4768 = vmatmul.mubr.bf16.gmra.mxu0 %v4727
        %v4769 = vpop.f32.mrf.mxu0
        %v4770 = vadd.f32 0.0, %v4769
        %v4771 = vpop.f32.mrf.mxu0
        %v4772 = vadd.f32 0.0, %v4771
        %v4773 = vpop.f32.mrf.mxu0
        %v4774 = vpop.f32.mrf.mxu0
        %4775 = vdwg.mxu0
        %v4776 = vadd.f32 %v4693, %v4770
        %v4777 = vadd.f32 %v4695, %v4772
        %v4778 = vld [vmem:[%s420] sm:$0xf]
        %v4779 = vld [vmem:[%s195 + $0x8] sm:$0x3f]
        %v4781 = vcombine.high %v4779, %v4779
        %v4783 = vunpack.c.l.s4 1983009808
        %v4784 = vunpack.c.0.s8 %v4783
        %v4785 = vlaneseq
        %v4786 = vshrl.u32 %v4785, 7
        %v4787 = vsub.s32 %v4784, %v4786
        %v4788 = vrot.slane %v4779, %v4787
        %v4790 = vunpack.c.l.s4 1983009808
        %v4791 = vunpack.c.0.s8 %v4790
        %v4792 = vlaneseq
        %v4793 = vshrl.u32 %v4792, 7
        %v4794 = vsub.s32 %v4791, %v4793
        %v4795 = vrot.slane %v4781, %v4794
        %v4796 = vcombine.high %v4788, %v4788
        %4797 = vrot.lane.b32.xlu0 %v4788, 118
        %v4798 = vpop.permute.xlu0 %4797
        %4799 = vrot.lane.b32.xlu0 %v4796, 118
        %v4800 = vpop.permute.xlu0 %4799
        %4801 = vrot.lane.b32.xlu0 %v4795, 118
        %v4802 = vpop.permute.xlu0 %4801
        %v4803 = vsel %vm446, %v4798, %v4800
        %v4804 = vsel %vm446, %v4800, %v4802
        %v4806 = vsel %vm228, %v4778, 0
        %v4809 = vsel %vm232, %v4803, 0
        %v4812 = vsel %vm232, %v4804, 0
        %4814 = vmatprep.subr.bf16.mxu0 0
        %4815 = vmatpush1.bf16.msra.mxu0 0
        %4816 = vmatprep.subr.bf16.mxu0 0
        %4817 = vmatpush1.bf16.msra.mxu0 0
        %4818 = vmatprep.subr.bf16.mxu0 0
        %4819 = vmatpush1.bf16.msra.mxu0 0
        %4820 = vmatprep.subr.bf16.mxu0 0
        %4821 = vmatpush1.bf16.msra.mxu0 0
        %4822 = vmatprep.subr.bf16.mxu0 0
        %4823 = vmatpush1.bf16.msra.mxu0 0
        %4824 = vmatprep.subr.bf16.mxu0 0
        %4825 = vmatpush1.bf16.msra.mxu0 0
        %4826 = vmatprep.subr.bf16.mxu0 0
        %4827 = vmatpush1.bf16.msra.mxu0 0
        %4828 = vmatprep.subr.bf16.mxu0 %v4812
        %4829 = vmatpush1.bf16.msra.mxu0 %v4809
        %4830 = vmatprep.subr.bf16.mxu0 0
        %4831 = vmatpush2.bf16.msra.mxu0 0
        %4832 = vmatprep.subr.bf16.mxu0 0
        %4833 = vmatpush2.bf16.msra.mxu0 0
        %4834 = vmatprep.subr.bf16.mxu0 0
        %4835 = vmatpush2.bf16.msra.mxu0 0
        %4836 = vmatprep.subr.bf16.mxu0 0
        %4837 = vmatpush2.bf16.msra.mxu0 0
        %4838 = vmatprep.subr.bf16.mxu0 0
        %4839 = vmatpush2.bf16.msra.mxu0 0
        %4840 = vmatprep.subr.bf16.mxu0 0
        %4841 = vmatpush2.bf16.msra.mxu0 0
        %4842 = vmatprep.subr.bf16.mxu0 0
        %4843 = vmatpush2.bf16.msra.mxu0 0
        %4844 = vmatprep.subr.bf16.mxu0 0
        %4845 = vmatpush2.bf16.msra.mxu0 0
        %4846 = vmatprep.mubr.bf16.mxu0 0
        %4847 = vmatmul.mubr.bf16.gmra.mxu0 %v4806
        %v4848 = vpop.f32.mrf.mxu0
        %v4849 = vadd.f32 0.0, %v4848
        %v4850 = vpop.f32.mrf.mxu0
        %v4851 = vadd.f32 0.0, %v4850
        %v4852 = vpop.f32.mrf.mxu0
        %v4853 = vpop.f32.mrf.mxu0
        %4854 = vdwg.mxu0
        %v4855 = vadd.f32 %v4776, %v4849
        %v4856 = vadd.f32 %v4777, %v4851
        %v4857 = vld [vmem:[%s501] sm:$0xf]
        %v4858 = vld [vmem:[%s195 + $0x8] sm:$0x3f]
        %v4860 = vcombine.high %v4858, %v4858
        %v4862 = vunpack.c.l.s4 1983009808
        %v4863 = vunpack.c.0.s8 %v4862
        %v4864 = vlaneseq
        %v4865 = vshrl.u32 %v4864, 7
        %v4866 = vsub.s32 %v4863, %v4865
        %v4867 = vrot.slane %v4858, %v4866
        %v4869 = vunpack.c.l.s4 1983009808
        %v4870 = vunpack.c.0.s8 %v4869
        %v4871 = vlaneseq
        %v4872 = vshrl.u32 %v4871, 7
        %v4873 = vsub.s32 %v4870, %v4872
        %v4874 = vrot.slane %v4860, %v4873
        %v4875 = vcombine.high %v4867, %v4867
        %4876 = vrot.lane.b32.xlu0 %v4867, 117
        %v4877 = vpop.permute.xlu0 %4876
        %4878 = vrot.lane.b32.xlu0 %v4875, 117
        %v4879 = vpop.permute.xlu0 %4878
        %4880 = vrot.lane.b32.xlu0 %v4874, 117
        %v4881 = vpop.permute.xlu0 %4880
        %v4882 = vsel %vm527, %v4877, %v4879
        %v4883 = vsel %vm527, %v4879, %v4881
        %v4885 = vsel %vm228, %v4857, 0
        %v4888 = vsel %vm232, %v4882, 0
        %v4891 = vsel %vm232, %v4883, 0
        %4893 = vmatprep.subr.bf16.mxu0 0
        %4894 = vmatpush1.bf16.msra.mxu0 0
        %4895 = vmatprep.subr.bf16.mxu0 0
        %4896 = vmatpush1.bf16.msra.mxu0 0
        %4897 = vmatprep.subr.bf16.mxu0 0
        %4898 = vmatpush1.bf16.msra.mxu0 0
        %4899 = vmatprep.subr.bf16.mxu0 0
        %4900 = vmatpush1.bf16.msra.mxu0 0
        %4901 = vmatprep.subr.bf16.mxu0 0
        %4902 = vmatpush1.bf16.msra.mxu0 0
        %4903 = vmatprep.subr.bf16.mxu0 0
        %4904 = vmatpush1.bf16.msra.mxu0 0
        %4905 = vmatprep.subr.bf16.mxu0 0
        %4906 = vmatpush1.bf16.msra.mxu0 0
        %4907 = vmatprep.subr.bf16.mxu0 %v4891
        %4908 = vmatpush1.bf16.msra.mxu0 %v4888
        %4909 = vmatprep.subr.bf16.mxu0 0
        %4910 = vmatpush2.bf16.msra.mxu0 0
        %4911 = vmatprep.subr.bf16.mxu0 0
        %4912 = vmatpush2.bf16.msra.mxu0 0
        %4913 = vmatprep.subr.bf16.mxu0 0
        %4914 = vmatpush2.bf16.msra.mxu0 0
        %4915 = vmatprep.subr.bf16.mxu0 0
        %4916 = vmatpush2.bf16.msra.mxu0 0
        %4917 = vmatprep.subr.bf16.mxu0 0
        %4918 = vmatpush2.bf16.msra.mxu0 0
        %4919 = vmatprep.subr.bf16.mxu0 0
        %4920 = vmatpush2.bf16.msra.mxu0 0
        %4921 = vmatprep.subr.bf16.mxu0 0
        %4922 = vmatpush2.bf16.msra.mxu0 0
        %4923 = vmatprep.subr.bf16.mxu0 0
        %4924 = vmatpush2.bf16.msra.mxu0 0
        %4925 = vmatprep.mubr.bf16.mxu0 0
        %4926 = vmatmul.mubr.bf16.gmra.mxu0 %v4885
        %v4927 = vpop.f32.mrf.mxu0
        %v4928 = vadd.f32 0.0, %v4927
        %v4929 = vpop.f32.mrf.mxu0
        %v4930 = vadd.f32 0.0, %v4929
        %v4931 = vpop.f32.mrf.mxu0
        %v4932 = vpop.f32.mrf.mxu0
        %4933 = vdwg.mxu0
        %v4934 = vadd.f32 %v4855, %v4928
        %v4935 = vadd.f32 %v4856, %v4930
        %v4936 = vld [vmem:[%s582] sm:$0xf]
        %v4937 = vld [vmem:[%s195 + $0x8] sm:$0x3f]
        %v4939 = vcombine.high %v4937, %v4937
        %v4941 = vunpack.c.l.s4 1983009808
        %v4942 = vunpack.c.0.s8 %v4941
        %v4943 = vlaneseq
        %v4944 = vshrl.u32 %v4943, 7
        %v4945 = vsub.s32 %v4942, %v4944
        %v4946 = vrot.slane %v4937, %v4945
        %v4948 = vunpack.c.l.s4 1983009808
        %v4949 = vunpack.c.0.s8 %v4948
        %v4950 = vlaneseq
        %v4951 = vshrl.u32 %v4950, 7
        %v4952 = vsub.s32 %v4949, %v4951
        %v4953 = vrot.slane %v4939, %v4952
        %v4954 = vcombine.high %v4946, %v4946
        %4955 = vrot.lane.b32.xlu0 %v4946, 116
        %v4956 = vpop.permute.xlu0 %4955
        %4957 = vrot.lane.b32.xlu0 %v4954, 116
        %v4958 = vpop.permute.xlu0 %4957
        %4959 = vrot.lane.b32.xlu0 %v4953, 116
        %v4960 = vpop.permute.xlu0 %4959
        %v4961 = vsel %vm608, %v4956, %v4958
        %v4962 = vsel %vm608, %v4958, %v4960
        %v4964 = vsel %vm228, %v4936, 0
        %v4967 = vsel %vm232, %v4961, 0
        %v4970 = vsel %vm232, %v4962, 0
        %4972 = vmatprep.subr.bf16.mxu0 0
        %4973 = vmatpush1.bf16.msra.mxu0 0
        %4974 = vmatprep.subr.bf16.mxu0 0
        %4975 = vmatpush1.bf16.msra.mxu0 0
        %4976 = vmatprep.subr.bf16.mxu0 0
        %4977 = vmatpush1.bf16.msra.mxu0 0
        %4978 = vmatprep.subr.bf16.mxu0 0
        %4979 = vmatpush1.bf16.msra.mxu0 0
        %4980 = vmatprep.subr.bf16.mxu0 0
        %4981 = vmatpush1.bf16.msra.mxu0 0
        %4982 = vmatprep.subr.bf16.mxu0 0
        %4983 = vmatpush1.bf16.msra.mxu0 0
        %4984 = vmatprep.subr.bf16.mxu0 0
        %4985 = vmatpush1.bf16.msra.mxu0 0
        %4986 = vmatprep.subr.bf16.mxu0 %v4970
        %4987 = vmatpush1.bf16.msra.mxu0 %v4967
        %4988 = vmatprep.subr.bf16.mxu0 0
        %4989 = vmatpush2.bf16.msra.mxu0 0
        %4990 = vmatprep.subr.bf16.mxu0 0
        %4991 = vmatpush2.bf16.msra.mxu0 0
        %4992 = vmatprep.subr.bf16.mxu0 0
        %4993 = vmatpush2.bf16.msra.mxu0 0
        %4994 = vmatprep.subr.bf16.mxu0 0
        %4995 = vmatpush2.bf16.msra.mxu0 0
        %4996 = vmatprep.subr.bf16.mxu0 0
        %4997 = vmatpush2.bf16.msra.mxu0 0
        %4998 = vmatprep.subr.bf16.mxu0 0
        %4999 = vmatpush2.bf16.msra.mxu0 0
        %5000 = vmatprep.subr.bf16.mxu0 0
        %5001 = vmatpush2.bf16.msra.mxu0 0
        %5002 = vmatprep.subr.bf16.mxu0 0
        %5003 = vmatpush2.bf16.msra.mxu0 0
        %5004 = vmatprep.mubr.bf16.mxu0 0
        %5005 = vmatmul.mubr.bf16.gmra.mxu0 %v4964
        %v5006 = vpop.f32.mrf.mxu0
        %v5007 = vadd.f32 0.0, %v5006
        %v5008 = vpop.f32.mrf.mxu0
        %v5009 = vadd.f32 0.0, %v5008
        %v5010 = vpop.f32.mrf.mxu0
        %v5011 = vpop.f32.mrf.mxu0
        %5012 = vdwg.mxu0
        %v5013 = vadd.f32 %v4934, %v5007
        %v5014 = vadd.f32 %v4935, %v5009
        %v5015 = vld [vmem:[%s663] sm:$0xf]
        %v5016 = vld [vmem:[%s195 + $0x8] sm:$0x3f]
        %v5018 = vcombine.high %v5016, %v5016
        %v5020 = vunpack.c.l.s4 1983009808
        %v5021 = vunpack.c.0.s8 %v5020
        %v5022 = vlaneseq
        %v5023 = vshrl.u32 %v5022, 7
        %v5024 = vsub.s32 %v5021, %v5023
        %v5025 = vrot.slane %v5016, %v5024
        %v5027 = vunpack.c.l.s4 1983009808
        %v5028 = vunpack.c.0.s8 %v5027
        %v5029 = vlaneseq
        %v5030 = vshrl.u32 %v5029, 7
        %v5031 = vsub.s32 %v5028, %v5030
        %v5032 = vrot.slane %v5018, %v5031
        %v5033 = vcombine.high %v5025, %v5025
        %5034 = vrot.lane.b32.xlu0 %v5025, 108
        %v5035 = vpop.permute.xlu0 %5034
        %5036 = vrot.lane.b32.xlu0 %v5033, 108
        %v5037 = vpop.permute.xlu0 %5036
        %5038 = vrot.lane.b32.xlu0 %v5032, 108
        %v5039 = vpop.permute.xlu0 %5038
        %v5040 = vsel %vm689, %v5035, %v5037
        %v5041 = vsel %vm689, %v5037, %v5039
        %v5043 = vsel %vm228, %v5015, 0
        %v5046 = vsel %vm232, %v5040, 0
        %v5049 = vsel %vm232, %v5041, 0
        %5051 = vmatprep.subr.bf16.mxu0 0
        %5052 = vmatpush1.bf16.msra.mxu0 0
        %5053 = vmatprep.subr.bf16.mxu0 0
        %5054 = vmatpush1.bf16.msra.mxu0 0
        %5055 = vmatprep.subr.bf16.mxu0 0
        %5056 = vmatpush1.bf16.msra.mxu0 0
        %5057 = vmatprep.subr.bf16.mxu0 0
        %5058 = vmatpush1.bf16.msra.mxu0 0
        %5059 = vmatprep.subr.bf16.mxu0 0
        %5060 = vmatpush1.bf16.msra.mxu0 0
        %5061 = vmatprep.subr.bf16.mxu0 0
        %5062 = vmatpush1.bf16.msra.mxu0 0
        %5063 = vmatprep.subr.bf16.mxu0 0
        %5064 = vmatpush1.bf16.msra.mxu0 0
        %5065 = vmatprep.subr.bf16.mxu0 %v5049
        %5066 = vmatpush1.bf16.msra.mxu0 %v5046
        %5067 = vmatprep.subr.bf16.mxu0 0
        %5068 = vmatpush2.bf16.msra.mxu0 0
        %5069 = vmatprep.subr.bf16.mxu0 0
        %5070 = vmatpush2.bf16.msra.mxu0 0
        %5071 = vmatprep.subr.bf16.mxu0 0
        %5072 = vmatpush2.bf16.msra.mxu0 0
        %5073 = vmatprep.subr.bf16.mxu0 0
        %5074 = vmatpush2.bf16.msra.mxu0 0
        %5075 = vmatprep.subr.bf16.mxu0 0
        %5076 = vmatpush2.bf16.msra.mxu0 0
        %5077 = vmatprep.subr.bf16.mxu0 0
        %5078 = vmatpush2.bf16.msra.mxu0 0
        %5079 = vmatprep.subr.bf16.mxu0 0
        %5080 = vmatpush2.bf16.msra.mxu0 0
        %5081 = vmatprep.subr.bf16.mxu0 0
        %5082 = vmatpush2.bf16.msra.mxu0 0
        %5083 = vmatprep.mubr.bf16.mxu0 0
        %5084 = vmatmul.mubr.bf16.gmra.mxu0 %v5043
        %v5085 = vpop.f32.mrf.mxu0
        %v5086 = vadd.f32 0.0, %v5085
        %v5087 = vpop.f32.mrf.mxu0
        %v5088 = vadd.f32 0.0, %v5087
        %v5089 = vpop.f32.mrf.mxu0
        %v5090 = vpop.f32.mrf.mxu0
        %5091 = vdwg.mxu0
        %v5092 = vadd.f32 %v5013, %v5086
        %v5093 = vadd.f32 %v5014, %v5088
        %v5094 = vld [vmem:[%s744] sm:$0xf]
        %v5095 = vld [vmem:[%s195 + $0x8] sm:$0x3f]
        %v5097 = vcombine.high %v5095, %v5095
        %v5099 = vunpack.c.l.s4 1983009808
        %v5100 = vunpack.c.0.s8 %v5099
        %v5101 = vlaneseq
        %v5102 = vshrl.u32 %v5101, 7
        %v5103 = vsub.s32 %v5100, %v5102
        %v5104 = vrot.slane %v5095, %v5103
        %v5106 = vunpack.c.l.s4 1983009808
        %v5107 = vunpack.c.0.s8 %v5106
        %v5108 = vlaneseq
        %v5109 = vshrl.u32 %v5108, 7
        %v5110 = vsub.s32 %v5107, %v5109
        %v5111 = vrot.slane %v5097, %v5110
        %v5112 = vcombine.high %v5104, %v5104
        %5113 = vrot.lane.b32.xlu0 %v5104, 107
        %v5114 = vpop.permute.xlu0 %5113
        %5115 = vrot.lane.b32.xlu0 %v5112, 107
        %v5116 = vpop.permute.xlu0 %5115
        %5117 = vrot.lane.b32.xlu0 %v5111, 107
        %v5118 = vpop.permute.xlu0 %5117
        %v5119 = vsel %vm770, %v5114, %v5116
        %v5120 = vsel %vm770, %v5116, %v5118
        %v5122 = vsel %vm228, %v5094, 0
        %v5125 = vsel %vm232, %v5119, 0
        %v5128 = vsel %vm232, %v5120, 0
        %5130 = vmatprep.subr.bf16.mxu0 0
        %5131 = vmatpush1.bf16.msra.mxu0 0
        %5132 = vmatprep.subr.bf16.mxu0 0
        %5133 = vmatpush1.bf16.msra.mxu0 0
        %5134 = vmatprep.subr.bf16.mxu0 0
        %5135 = vmatpush1.bf16.msra.mxu0 0
        %5136 = vmatprep.subr.bf16.mxu0 0
        %5137 = vmatpush1.bf16.msra.mxu0 0
        %5138 = vmatprep.subr.bf16.mxu0 0
        %5139 = vmatpush1.bf16.msra.mxu0 0
        %5140 = vmatprep.subr.bf16.mxu0 0
        %5141 = vmatpush1.bf16.msra.mxu0 0
        %5142 = vmatprep.subr.bf16.mxu0 0
        %5143 = vmatpush1.bf16.msra.mxu0 0
        %5144 = vmatprep.subr.bf16.mxu0 %v5128
        %5145 = vmatpush1.bf16.msra.mxu0 %v5125
        %5146 = vmatprep.subr.bf16.mxu0 0
        %5147 = vmatpush2.bf16.msra.mxu0 0
        %5148 = vmatprep.subr.bf16.mxu0 0
        %5149 = vmatpush2.bf16.msra.mxu0 0
        %5150 = vmatprep.subr.bf16.mxu0 0
        %5151 = vmatpush2.bf16.msra.mxu0 0
        %5152 = vmatprep.subr.bf16.mxu0 0
        %5153 = vmatpush2.bf16.msra.mxu0 0
        %5154 = vmatprep.subr.bf16.mxu0 0
        %5155 = vmatpush2.bf16.msra.mxu0 0
        %5156 = vmatprep.subr.bf16.mxu0 0
        %5157 = vmatpush2.bf16.msra.mxu0 0
        %5158 = vmatprep.subr.bf16.mxu0 0
        %5159 = vmatpush2.bf16.msra.mxu0 0
        %5160 = vmatprep.subr.bf16.mxu0 0
        %5161 = vmatpush2.bf16.msra.mxu0 0
        %5162 = vmatprep.mubr.bf16.mxu0 0
        %5163 = vmatmul.mubr.bf16.gmra.mxu0 %v5122
        %v5164 = vpop.f32.mrf.mxu0
        %v5165 = vadd.f32 0.0, %v5164
        %v5166 = vpop.f32.mrf.mxu0
        %v5167 = vadd.f32 0.0, %v5166
        %v5168 = vpop.f32.mrf.mxu0
        %v5169 = vpop.f32.mrf.mxu0
        %5170 = vdwg.mxu0
        %v5171 = vadd.f32 %v5092, %v5165
        %v5172 = vadd.f32 %v5093, %v5167
        %v5173 = vld [vmem:[%s825] sm:$0xf]
        %v5174 = vld [vmem:[%s195 + $0x8] sm:$0x3f]
        %v5176 = vcombine.high %v5174, %v5174
        %v5178 = vunpack.c.l.s4 1983009808
        %v5179 = vunpack.c.0.s8 %v5178
        %v5180 = vlaneseq
        %v5181 = vshrl.u32 %v5180, 7
        %v5182 = vsub.s32 %v5179, %v5181
        %v5183 = vrot.slane %v5174, %v5182
        %v5185 = vunpack.c.l.s4 1983009808
        %v5186 = vunpack.c.0.s8 %v5185
        %v5187 = vlaneseq
        %v5188 = vshrl.u32 %v5187, 7
        %v5189 = vsub.s32 %v5186, %v5188
        %v5190 = vrot.slane %v5176, %v5189
        %v5191 = vcombine.high %v5183, %v5183
        %5192 = vrot.lane.b32.xlu0 %v5183, 106
        %v5193 = vpop.permute.xlu0 %5192
        %5194 = vrot.lane.b32.xlu0 %v5191, 106
        %v5195 = vpop.permute.xlu0 %5194
        %5196 = vrot.lane.b32.xlu0 %v5190, 106
        %v5197 = vpop.permute.xlu0 %5196
        %v5198 = vsel %vm851, %v5193, %v5195
        %v5199 = vsel %vm851, %v5195, %v5197
        %v5201 = vsel %vm228, %v5173, 0
        %v5204 = vsel %vm232, %v5198, 0
        %v5207 = vsel %vm232, %v5199, 0
        %5209 = vmatprep.subr.bf16.mxu0 0
        %5210 = vmatpush1.bf16.msra.mxu0 0
        %5211 = vmatprep.subr.bf16.mxu0 0
        %5212 = vmatpush1.bf16.msra.mxu0 0
        %5213 = vmatprep.subr.bf16.mxu0 0
        %5214 = vmatpush1.bf16.msra.mxu0 0
        %5215 = vmatprep.subr.bf16.mxu0 0
        %5216 = vmatpush1.bf16.msra.mxu0 0
        %5217 = vmatprep.subr.bf16.mxu0 0
        %5218 = vmatpush1.bf16.msra.mxu0 0
        %5219 = vmatprep.subr.bf16.mxu0 0
        %5220 = vmatpush1.bf16.msra.mxu0 0
        %5221 = vmatprep.subr.bf16.mxu0 0
        %5222 = vmatpush1.bf16.msra.mxu0 0
        %5223 = vmatprep.subr.bf16.mxu0 %v5207
        %5224 = vmatpush1.bf16.msra.mxu0 %v5204
        %5225 = vmatprep.subr.bf16.mxu0 0
        %5226 = vmatpush2.bf16.msra.mxu0 0
        %5227 = vmatprep.subr.bf16.mxu0 0
        %5228 = vmatpush2.bf16.msra.mxu0 0
        %5229 = vmatprep.subr.bf16.mxu0 0
        %5230 = vmatpush2.bf16.msra.mxu0 0
        %5231 = vmatprep.subr.bf16.mxu0 0
        %5232 = vmatpush2.bf16.msra.mxu0 0
        %5233 = vmatprep.subr.bf16.mxu0 0
        %5234 = vmatpush2.bf16.msra.mxu0 0
        %5235 = vmatprep.subr.bf16.mxu0 0
        %5236 = vmatpush2.bf16.msra.mxu0 0
        %5237 = vmatprep.subr.bf16.mxu0 0
        %5238 = vmatpush2.bf16.msra.mxu0 0
        %5239 = vmatprep.subr.bf16.mxu0 0
        %5240 = vmatpush2.bf16.msra.mxu0 0
        %5241 = vmatprep.mubr.bf16.mxu0 0
        %5242 = vmatmul.mubr.bf16.gmra.mxu0 %v5201
        %v5243 = vpop.f32.mrf.mxu0
        %v5244 = vadd.f32 0.0, %v5243
        %v5245 = vpop.f32.mrf.mxu0
        %v5246 = vadd.f32 0.0, %v5245
        %v5247 = vpop.f32.mrf.mxu0
        %v5248 = vpop.f32.mrf.mxu0
        %5249 = vdwg.mxu0
        %v5250 = vadd.f32 %v5171, %v5244
        %v5251 = vadd.f32 %v5172, %v5246
        %v5252 = vld [vmem:[%s906] sm:$0xf]
        %v5253 = vld [vmem:[%s195 + $0x8] sm:$0x3f]
        %v5255 = vcombine.high %v5253, %v5253
        %v5257 = vunpack.c.l.s4 1983009808
        %v5258 = vunpack.c.0.s8 %v5257
        %v5259 = vlaneseq
        %v5260 = vshrl.u32 %v5259, 7
        %v5261 = vsub.s32 %v5258, %v5260
        %v5262 = vrot.slane %v5253, %v5261
        %v5264 = vunpack.c.l.s4 1983009808
        %v5265 = vunpack.c.0.s8 %v5264
        %v5266 = vlaneseq
        %v5267 = vshrl.u32 %v5266, 7
        %v5268 = vsub.s32 %v5265, %v5267
        %v5269 = vrot.slane %v5255, %v5268
        %v5270 = vcombine.high %v5262, %v5262
        %5271 = vrot.lane.b32.xlu0 %v5262, 28
        %v5272 = vpop.permute.xlu0 %5271
        %5273 = vrot.lane.b32.xlu0 %v5270, 28
        %v5274 = vpop.permute.xlu0 %5273
        %5275 = vrot.lane.b32.xlu0 %v5269, 28
        %v5276 = vpop.permute.xlu0 %5275
        %v5277 = vsel %vm932, %v5272, %v5274
        %v5278 = vsel %vm932, %v5274, %v5276
        %v5280 = vsel %vm228, %v5252, 0
        %v5283 = vsel %vm232, %v5277, 0
        %v5286 = vsel %vm232, %v5278, 0
        %5288 = vmatprep.subr.bf16.mxu0 0
        %5289 = vmatpush1.bf16.msra.mxu0 0
        %5290 = vmatprep.subr.bf16.mxu0 0
        %5291 = vmatpush1.bf16.msra.mxu0 0
        %5292 = vmatprep.subr.bf16.mxu0 0
        %5293 = vmatpush1.bf16.msra.mxu0 0
        %5294 = vmatprep.subr.bf16.mxu0 0
        %5295 = vmatpush1.bf16.msra.mxu0 0
        %5296 = vmatprep.subr.bf16.mxu0 0
        %5297 = vmatpush1.bf16.msra.mxu0 0
        %5298 = vmatprep.subr.bf16.mxu0 0
        %5299 = vmatpush1.bf16.msra.mxu0 0
        %5300 = vmatprep.subr.bf16.mxu0 0
        %5301 = vmatpush1.bf16.msra.mxu0 0
        %5302 = vmatprep.subr.bf16.mxu0 %v5286
        %5303 = vmatpush1.bf16.msra.mxu0 %v5283
        %5304 = vmatprep.subr.bf16.mxu0 0
        %5305 = vmatpush2.bf16.msra.mxu0 0
        %5306 = vmatprep.subr.bf16.mxu0 0
        %5307 = vmatpush2.bf16.msra.mxu0 0
        %5308 = vmatprep.subr.bf16.mxu0 0
        %5309 = vmatpush2.bf16.msra.mxu0 0
        %5310 = vmatprep.subr.bf16.mxu0 0
        %5311 = vmatpush2.bf16.msra.mxu0 0
        %5312 = vmatprep.subr.bf16.mxu0 0
        %5313 = vmatpush2.bf16.msra.mxu0 0
        %5314 = vmatprep.subr.bf16.mxu0 0
        %5315 = vmatpush2.bf16.msra.mxu0 0
        %5316 = vmatprep.subr.bf16.mxu0 0
        %5317 = vmatpush2.bf16.msra.mxu0 0
        %5318 = vmatprep.subr.bf16.mxu0 0
        %5319 = vmatpush2.bf16.msra.mxu0 0
        %5320 = vmatprep.mubr.bf16.mxu0 0
        %5321 = vmatmul.mubr.bf16.gmra.mxu0 %v5280
        %v5322 = vpop.f32.mrf.mxu0
        %v5323 = vadd.f32 0.0, %v5322
        %v5324 = vpop.f32.mrf.mxu0
        %v5325 = vadd.f32 0.0, %v5324
        %v5326 = vpop.f32.mrf.mxu0
        %v5327 = vpop.f32.mrf.mxu0
        %5328 = vdwg.mxu0
        %v5329 = vadd.f32 %v5250, %v5323
        %v5330 = vadd.f32 %v5251, %v5325
        %v5331 = vld [vmem:[%s987] sm:$0xf]
        %v5332 = vld [vmem:[%s195 + $0x8] sm:$0x3f]
        %v5334 = vcombine.high %v5332, %v5332
        %v5336 = vunpack.c.l.s4 1983009808
        %v5337 = vunpack.c.0.s8 %v5336
        %v5338 = vlaneseq
        %v5339 = vshrl.u32 %v5338, 7
        %v5340 = vsub.s32 %v5337, %v5339
        %v5341 = vrot.slane %v5332, %v5340
        %v5343 = vunpack.c.l.s4 1983009808
        %v5344 = vunpack.c.0.s8 %v5343
        %v5345 = vlaneseq
        %v5346 = vshrl.u32 %v5345, 7
        %v5347 = vsub.s32 %v5344, %v5346
        %v5348 = vrot.slane %v5334, %v5347
        %v5349 = vcombine.high %v5341, %v5341
        %5350 = vrot.lane.b32.xlu0 %v5341, 27
        %v5351 = vpop.permute.xlu0 %5350
        %5352 = vrot.lane.b32.xlu0 %v5349, 27
        %v5353 = vpop.permute.xlu0 %5352
        %5354 = vrot.lane.b32.xlu0 %v5348, 27
        %v5355 = vpop.permute.xlu0 %5354
        %v5356 = vsel %vm1013, %v5351, %v5353
        %v5357 = vsel %vm1013, %v5353, %v5355
        %v5359 = vsel %vm228, %v5331, 0
        %v5362 = vsel %vm232, %v5356, 0
        %v5365 = vsel %vm232, %v5357, 0
        %5367 = vmatprep.subr.bf16.mxu0 0
        %5368 = vmatpush1.bf16.msra.mxu0 0
        %5369 = vmatprep.subr.bf16.mxu0 0
        %5370 = vmatpush1.bf16.msra.mxu0 0
        %5371 = vmatprep.subr.bf16.mxu0 0
        %5372 = vmatpush1.bf16.msra.mxu0 0
        %5373 = vmatprep.subr.bf16.mxu0 0
        %5374 = vmatpush1.bf16.msra.mxu0 0
        %5375 = vmatprep.subr.bf16.mxu0 0
        %5376 = vmatpush1.bf16.msra.mxu0 0
        %5377 = vmatprep.subr.bf16.mxu0 0
        %5378 = vmatpush1.bf16.msra.mxu0 0
        %5379 = vmatprep.subr.bf16.mxu0 0
        %5380 = vmatpush1.bf16.msra.mxu0 0
        %5381 = vmatprep.subr.bf16.mxu0 %v5365
        %5382 = vmatpush1.bf16.msra.mxu0 %v5362
        %5383 = vmatprep.subr.bf16.mxu0 0
        %5384 = vmatpush2.bf16.msra.mxu0 0
        %5385 = vmatprep.subr.bf16.mxu0 0
        %5386 = vmatpush2.bf16.msra.mxu0 0
        %5387 = vmatprep.subr.bf16.mxu0 0
        %5388 = vmatpush2.bf16.msra.mxu0 0
        %5389 = vmatprep.subr.bf16.mxu0 0
        %5390 = vmatpush2.bf16.msra.mxu0 0
        %5391 = vmatprep.subr.bf16.mxu0 0
        %5392 = vmatpush2.bf16.msra.mxu0 0
        %5393 = vmatprep.subr.bf16.mxu0 0
        %5394 = vmatpush2.bf16.msra.mxu0 0
        %5395 = vmatprep.subr.bf16.mxu0 0
        %5396 = vmatpush2.bf16.msra.mxu0 0
        %5397 = vmatprep.subr.bf16.mxu0 0
        %5398 = vmatpush2.bf16.msra.mxu0 0
        %5399 = vmatprep.mubr.bf16.mxu0 0
        %5400 = vmatmul.mubr.bf16.gmra.mxu0 %v5359
        %v5401 = vpop.f32.mrf.mxu0
        %v5402 = vadd.f32 0.0, %v5401
        %v5403 = vpop.f32.mrf.mxu0
        %v5404 = vadd.f32 0.0, %v5403
        %v5405 = vpop.f32.mrf.mxu0
        %v5406 = vpop.f32.mrf.mxu0
        %5407 = vdwg.mxu0
        %v5408 = vadd.f32 %v5329, %v5402
        %v5409 = vadd.f32 %v5330, %v5404
        %v5410 = vld [vmem:[%s1068] sm:$0xf]
        %v5411 = vld [vmem:[%s195 + $0x8] sm:$0x3f]
        %v5413 = vcombine.high %v5411, %v5411
        %v5415 = vunpack.c.l.s4 1983009808
        %v5416 = vunpack.c.0.s8 %v5415
        %v5417 = vlaneseq
        %v5418 = vshrl.u32 %v5417, 7
        %v5419 = vsub.s32 %v5416, %v5418
        %v5420 = vrot.slane %v5411, %v5419
        %v5422 = vunpack.c.l.s4 1983009808
        %v5423 = vunpack.c.0.s8 %v5422
        %v5424 = vlaneseq
        %v5425 = vshrl.u32 %v5424, 7
        %v5426 = vsub.s32 %v5423, %v5425
        %v5427 = vrot.slane %v5413, %v5426
        %v5428 = vcombine.high %v5420, %v5420
        %5429 = vrot.lane.b32.xlu0 %v5420, 26
        %v5430 = vpop.permute.xlu0 %5429
        %5431 = vrot.lane.b32.xlu0 %v5428, 26
        %v5432 = vpop.permute.xlu0 %5431
        %5433 = vrot.lane.b32.xlu0 %v5427, 26
        %v5434 = vpop.permute.xlu0 %5433
        %v5435 = vsel %vm1094, %v5430, %v5432
        %v5436 = vsel %vm1094, %v5432, %v5434
        %v5438 = vsel %vm228, %v5410, 0
        %v5441 = vsel %vm232, %v5435, 0
        %v5444 = vsel %vm232, %v5436, 0
        %5446 = vmatprep.subr.bf16.mxu0 0
        %5447 = vmatpush1.bf16.msra.mxu0 0
        %5448 = vmatprep.subr.bf16.mxu0 0
        %5449 = vmatpush1.bf16.msra.mxu0 0
        %5450 = vmatprep.subr.bf16.mxu0 0
        %5451 = vmatpush1.bf16.msra.mxu0 0
        %5452 = vmatprep.subr.bf16.mxu0 0
        %5453 = vmatpush1.bf16.msra.mxu0 0
        %5454 = vmatprep.subr.bf16.mxu0 0
        %5455 = vmatpush1.bf16.msra.mxu0 0
        %5456 = vmatprep.subr.bf16.mxu0 0
        %5457 = vmatpush1.bf16.msra.mxu0 0
        %5458 = vmatprep.subr.bf16.mxu0 0
        %5459 = vmatpush1.bf16.msra.mxu0 0
        %5460 = vmatprep.subr.bf16.mxu0 %v5444
        %5461 = vmatpush1.bf16.msra.mxu0 %v5441
        %5462 = vmatprep.subr.bf16.mxu0 0
        %5463 = vmatpush2.bf16.msra.mxu0 0
        %5464 = vmatprep.subr.bf16.mxu0 0
        %5465 = vmatpush2.bf16.msra.mxu0 0
        %5466 = vmatprep.subr.bf16.mxu0 0
        %5467 = vmatpush2.bf16.msra.mxu0 0
        %5468 = vmatprep.subr.bf16.mxu0 0
        %5469 = vmatpush2.bf16.msra.mxu0 0
        %5470 = vmatprep.subr.bf16.mxu0 0
        %5471 = vmatpush2.bf16.msra.mxu0 0
        %5472 = vmatprep.subr.bf16.mxu0 0
        %5473 = vmatpush2.bf16.msra.mxu0 0
        %5474 = vmatprep.subr.bf16.mxu0 0
        %5475 = vmatpush2.bf16.msra.mxu0 0
        %5476 = vmatprep.subr.bf16.mxu0 0
        %5477 = vmatpush2.bf16.msra.mxu0 0
        %5478 = vmatprep.mubr.bf16.mxu0 0
        %5479 = vmatmul.mubr.bf16.gmra.mxu0 %v5438
        %v5480 = vpop.f32.mrf.mxu0
        %v5481 = vadd.f32 0.0, %v5480
        %v5482 = vpop.f32.mrf.mxu0
        %v5483 = vadd.f32 0.0, %v5482
        %v5484 = vpop.f32.mrf.mxu0
        %v5485 = vpop.f32.mrf.mxu0
        %5486 = vdwg.mxu0
        %v5487 = vadd.f32 %v5408, %v5481
        %v5488 = vadd.f32 %v5409, %v5483
        %v5489 = vld [vmem:[%s1149] sm:$0xf]
        %v5490 = vld [vmem:[%s195 + $0x8] sm:$0x3f]
        %v5492 = vcombine.high %v5490, %v5490
        %v5494 = vunpack.c.l.s4 1983009808
        %v5495 = vunpack.c.0.s8 %v5494
        %v5496 = vlaneseq
        %v5497 = vshrl.u32 %v5496, 7
        %v5498 = vsub.s32 %v5495, %v5497
        %v5499 = vrot.slane %v5490, %v5498
        %v5501 = vunpack.c.l.s4 1983009808
        %v5502 = vunpack.c.0.s8 %v5501
        %v5503 = vlaneseq
        %v5504 = vshrl.u32 %v5503, 7
        %v5505 = vsub.s32 %v5502, %v5504
        %v5506 = vrot.slane %v5492, %v5505
        %v5507 = vcombine.high %v5499, %v5499
        %5508 = vrot.lane.b32.xlu0 %v5499, 18
        %v5509 = vpop.permute.xlu0 %5508
        %5510 = vrot.lane.b32.xlu0 %v5507, 18
        %v5511 = vpop.permute.xlu0 %5510
        %5512 = vrot.lane.b32.xlu0 %v5506, 18
        %v5513 = vpop.permute.xlu0 %5512
        %v5514 = vsel %vm1175, %v5509, %v5511
        %v5515 = vsel %vm1175, %v5511, %v5513
        %v5517 = vsel %vm228, %v5489, 0
        %v5520 = vsel %vm232, %v5514, 0
        %v5523 = vsel %vm232, %v5515, 0
        %5525 = vmatprep.subr.bf16.mxu0 0
        %5526 = vmatpush1.bf16.msra.mxu0 0
        %5527 = vmatprep.subr.bf16.mxu0 0
        %5528 = vmatpush1.bf16.msra.mxu0 0
        %5529 = vmatprep.subr.bf16.mxu0 0
        %5530 = vmatpush1.bf16.msra.mxu0 0
        %5531 = vmatprep.subr.bf16.mxu0 0
        %5532 = vmatpush1.bf16.msra.mxu0 0
        %5533 = vmatprep.subr.bf16.mxu0 0
        %5534 = vmatpush1.bf16.msra.mxu0 0
        %5535 = vmatprep.subr.bf16.mxu0 0
        %5536 = vmatpush1.bf16.msra.mxu0 0
        %5537 = vmatprep.subr.bf16.mxu0 0
        %5538 = vmatpush1.bf16.msra.mxu0 0
        %5539 = vmatprep.subr.bf16.mxu0 %v5523
        %5540 = vmatpush1.bf16.msra.mxu0 %v5520
        %5541 = vmatprep.subr.bf16.mxu0 0
        %5542 = vmatpush2.bf16.msra.mxu0 0
        %5543 = vmatprep.subr.bf16.mxu0 0
        %5544 = vmatpush2.bf16.msra.mxu0 0
        %5545 = vmatprep.subr.bf16.mxu0 0
        %5546 = vmatpush2.bf16.msra.mxu0 0
        %5547 = vmatprep.subr.bf16.mxu0 0
        %5548 = vmatpush2.bf16.msra.mxu0 0
        %5549 = vmatprep.subr.bf16.mxu0 0
        %5550 = vmatpush2.bf16.msra.mxu0 0
        %5551 = vmatprep.subr.bf16.mxu0 0
        %5552 = vmatpush2.bf16.msra.mxu0 0
        %5553 = vmatprep.subr.bf16.mxu0 0
        %5554 = vmatpush2.bf16.msra.mxu0 0
        %5555 = vmatprep.subr.bf16.mxu0 0
        %5556 = vmatpush2.bf16.msra.mxu0 0
        %5557 = vmatprep.mubr.bf16.mxu0 0
        %5558 = vmatmul.mubr.bf16.gmra.mxu0 %v5517
        %v5559 = vpop.f32.mrf.mxu0
        %v5560 = vadd.f32 0.0, %v5559
        %v5561 = vpop.f32.mrf.mxu0
        %v5562 = vadd.f32 0.0, %v5561
        %v5563 = vpop.f32.mrf.mxu0
        %v5564 = vpop.f32.mrf.mxu0
        %5565 = vdwg.mxu0
        %v5566 = vadd.f32 %v5487, %v5560
        %v5567 = vadd.f32 %v5488, %v5562
        %v5568 = vld [vmem:[%s1230] sm:$0xf]
        %v5569 = vld [vmem:[%s195 + $0x8] sm:$0x3f]
        %v5571 = vcombine.high %v5569, %v5569
        %v5573 = vunpack.c.l.s4 1983009808
        %v5574 = vunpack.c.0.s8 %v5573
        %v5575 = vlaneseq
        %v5576 = vshrl.u32 %v5575, 7
        %v5577 = vsub.s32 %v5574, %v5576
        %v5578 = vrot.slane %v5569, %v5577
        %v5580 = vunpack.c.l.s4 1983009808
        %v5581 = vunpack.c.0.s8 %v5580
        %v5582 = vlaneseq
        %v5583 = vshrl.u32 %v5582, 7
        %v5584 = vsub.s32 %v5581, %v5583
        %v5585 = vrot.slane %v5571, %v5584
        %v5586 = vcombine.high %v5578, %v5578
        %5587 = vrot.lane.b32.xlu0 %v5578, 17
        %v5588 = vpop.permute.xlu0 %5587
        %5589 = vrot.lane.b32.xlu0 %v5586, 17
        %v5590 = vpop.permute.xlu0 %5589
        %5591 = vrot.lane.b32.xlu0 %v5585, 17
        %v5592 = vpop.permute.xlu0 %5591
        %v5593 = vsel %vm1256, %v5588, %v5590
        %v5594 = vsel %vm1256, %v5590, %v5592
        %v5596 = vsel %vm228, %v5568, 0
        %v5599 = vsel %vm232, %v5593, 0
        %v5602 = vsel %vm232, %v5594, 0
        %5604 = vmatprep.subr.bf16.mxu0 0
        %5605 = vmatpush1.bf16.msra.mxu0 0
        %5606 = vmatprep.subr.bf16.mxu0 0
        %5607 = vmatpush1.bf16.msra.mxu0 0
        %5608 = vmatprep.subr.bf16.mxu0 0
        %5609 = vmatpush1.bf16.msra.mxu0 0
        %5610 = vmatprep.subr.bf16.mxu0 0
        %5611 = vmatpush1.bf16.msra.mxu0 0
        %5612 = vmatprep.subr.bf16.mxu0 0
        %5613 = vmatpush1.bf16.msra.mxu0 0
        %5614 = vmatprep.subr.bf16.mxu0 0
        %5615 = vmatpush1.bf16.msra.mxu0 0
        %5616 = vmatprep.subr.bf16.mxu0 0
        %5617 = vmatpush1.bf16.msra.mxu0 0
        %5618 = vmatprep.subr.bf16.mxu0 %v5602
        %5619 = vmatpush1.bf16.msra.mxu0 %v5599
        %5620 = vmatprep.subr.bf16.mxu0 0
        %5621 = vmatpush2.bf16.msra.mxu0 0
        %5622 = vmatprep.subr.bf16.mxu0 0
        %5623 = vmatpush2.bf16.msra.mxu0 0
        %5624 = vmatprep.subr.bf16.mxu0 0
        %5625 = vmatpush2.bf16.msra.mxu0 0
        %5626 = vmatprep.subr.bf16.mxu0 0
        %5627 = vmatpush2.bf16.msra.mxu0 0
        %5628 = vmatprep.subr.bf16.mxu0 0
        %5629 = vmatpush2.bf16.msra.mxu0 0
        %5630 = vmatprep.subr.bf16.mxu0 0
        %5631 = vmatpush2.bf16.msra.mxu0 0
        %5632 = vmatprep.subr.bf16.mxu0 0
        %5633 = vmatpush2.bf16.msra.mxu0 0
        %5634 = vmatprep.subr.bf16.mxu0 0
        %5635 = vmatpush2.bf16.msra.mxu0 0
        %5636 = vmatprep.mubr.bf16.mxu0 0
        %5637 = vmatmul.mubr.bf16.gmra.mxu0 %v5596
        %v5638 = vpop.f32.mrf.mxu0
        %v5639 = vadd.f32 0.0, %v5638
        %v5640 = vpop.f32.mrf.mxu0
        %v5641 = vadd.f32 0.0, %v5640
        %v5642 = vpop.f32.mrf.mxu0
        %v5643 = vpop.f32.mrf.mxu0
        %5644 = vdwg.mxu0
        %v5645 = vadd.f32 %v5566, %v5639
        %v5646 = vadd.f32 %v5567, %v5641
        %v5647 = vld [vmem:[%s1311] sm:$0xf]
        %v5648 = vld [vmem:[%s195 + $0x8] sm:$0x3f]
        %v5650 = vcombine.high %v5648, %v5648
        %v5652 = vunpack.c.l.s4 1983009808
        %v5653 = vunpack.c.0.s8 %v5652
        %v5654 = vlaneseq
        %v5655 = vshrl.u32 %v5654, 7
        %v5656 = vsub.s32 %v5653, %v5655
        %v5657 = vrot.slane %v5648, %v5656
        %v5659 = vunpack.c.l.s4 1983009808
        %v5660 = vunpack.c.0.s8 %v5659
        %v5661 = vlaneseq
        %v5662 = vshrl.u32 %v5661, 7
        %v5663 = vsub.s32 %v5660, %v5662
        %v5664 = vrot.slane %v5650, %v5663
        %v5665 = vcombine.high %v5657, %v5657
        %5666 = vrot.lane.b32.xlu0 %v5657, 16
        %v5667 = vpop.permute.xlu0 %5666
        %5668 = vrot.lane.b32.xlu0 %v5665, 16
        %v5669 = vpop.permute.xlu0 %5668
        %5670 = vrot.lane.b32.xlu0 %v5664, 16
        %v5671 = vpop.permute.xlu0 %5670
        %v5672 = vsel %vm1337, %v5667, %v5669
        %v5673 = vsel %vm1337, %v5669, %v5671
        %v5675 = vsel %vm228, %v5647, 0
        %v5678 = vsel %vm232, %v5672, 0
        %v5681 = vsel %vm232, %v5673, 0
        %5683 = vmatprep.subr.bf16.mxu0 0
        %5684 = vmatpush1.bf16.msra.mxu0 0
        %5685 = vmatprep.subr.bf16.mxu0 0
        %5686 = vmatpush1.bf16.msra.mxu0 0
        %5687 = vmatprep.subr.bf16.mxu0 0
        %5688 = vmatpush1.bf16.msra.mxu0 0
        %5689 = vmatprep.subr.bf16.mxu0 0
        %5690 = vmatpush1.bf16.msra.mxu0 0
        %5691 = vmatprep.subr.bf16.mxu0 0
        %5692 = vmatpush1.bf16.msra.mxu0 0
        %5693 = vmatprep.subr.bf16.mxu0 0
        %5694 = vmatpush1.bf16.msra.mxu0 0
        %5695 = vmatprep.subr.bf16.mxu0 0
        %5696 = vmatpush1.bf16.msra.mxu0 0
        %5697 = vmatprep.subr.bf16.mxu0 %v5681
        %5698 = vmatpush1.bf16.msra.mxu0 %v5678
        %5699 = vmatprep.subr.bf16.mxu0 0
        %5700 = vmatpush2.bf16.msra.mxu0 0
        %5701 = vmatprep.subr.bf16.mxu0 0
        %5702 = vmatpush2.bf16.msra.mxu0 0
        %5703 = vmatprep.subr.bf16.mxu0 0
        %5704 = vmatpush2.bf16.msra.mxu0 0
        %5705 = vmatprep.subr.bf16.mxu0 0
        %5706 = vmatpush2.bf16.msra.mxu0 0
        %5707 = vmatprep.subr.bf16.mxu0 0
        %5708 = vmatpush2.bf16.msra.mxu0 0
        %5709 = vmatprep.subr.bf16.mxu0 0
        %5710 = vmatpush2.bf16.msra.mxu0 0
        %5711 = vmatprep.subr.bf16.mxu0 0
        %5712 = vmatpush2.bf16.msra.mxu0 0
        %5713 = vmatprep.subr.bf16.mxu0 0
        %5714 = vmatpush2.bf16.msra.mxu0 0
        %5715 = vmatprep.mubr.bf16.mxu0 0
        %5716 = vmatmul.mubr.bf16.gmra.mxu0 %v5675
        %v5717 = vpop.f32.mrf.mxu0
        %v5718 = vadd.f32 0.0, %v5717
        %v5719 = vpop.f32.mrf.mxu0
        %v5720 = vadd.f32 0.0, %v5719
        %v5721 = vpop.f32.mrf.mxu0
        %v5722 = vpop.f32.mrf.mxu0
        %5723 = vdwg.mxu0
        %v5724 = vadd.f32 %v5645, %v5718
        %v5725 = vadd.f32 %v5646, %v5720
        %v5726 = vld [vmem:[%s1392] sm:$0xf]
        %v5727 = vld [vmem:[%s195 + $0x8] sm:$0x3f]
        %v5729 = vcombine.high %v5727, %v5727
        %v5731 = vunpack.c.l.s4 1983009808
        %v5732 = vunpack.c.0.s8 %v5731
        %v5733 = vlaneseq
        %v5734 = vshrl.u32 %v5733, 7
        %v5735 = vsub.s32 %v5732, %v5734
        %v5736 = vrot.slane %v5727, %v5735
        %v5738 = vunpack.c.l.s4 1983009808
        %v5739 = vunpack.c.0.s8 %v5738
        %v5740 = vlaneseq
        %v5741 = vshrl.u32 %v5740, 7
        %v5742 = vsub.s32 %v5739, %v5741
        %v5743 = vrot.slane %v5729, %v5742
        %v5744 = vcombine.high %v5736, %v5736
        %5745 = vrot.lane.b32.xlu0 %v5736, 8
        %v5746 = vpop.permute.xlu0 %5745
        %5747 = vrot.lane.b32.xlu0 %v5744, 8
        %v5748 = vpop.permute.xlu0 %5747
        %5749 = vrot.lane.b32.xlu0 %v5743, 8
        %v5750 = vpop.permute.xlu0 %5749
        %v5751 = vsel %vm1418, %v5746, %v5748
        %v5752 = vsel %vm1418, %v5748, %v5750
        %v5754 = vsel %vm228, %v5726, 0
        %v5757 = vsel %vm232, %v5751, 0
        %v5760 = vsel %vm232, %v5752, 0
        %5762 = vmatprep.subr.bf16.mxu0 0
        %5763 = vmatpush1.bf16.msra.mxu0 0
        %5764 = vmatprep.subr.bf16.mxu0 0
        %5765 = vmatpush1.bf16.msra.mxu0 0
        %5766 = vmatprep.subr.bf16.mxu0 0
        %5767 = vmatpush1.bf16.msra.mxu0 0
        %5768 = vmatprep.subr.bf16.mxu0 0
        %5769 = vmatpush1.bf16.msra.mxu0 0
        %5770 = vmatprep.subr.bf16.mxu0 0
        %5771 = vmatpush1.bf16.msra.mxu0 0
        %5772 = vmatprep.subr.bf16.mxu0 0
        %5773 = vmatpush1.bf16.msra.mxu0 0
        %5774 = vmatprep.subr.bf16.mxu0 0
        %5775 = vmatpush1.bf16.msra.mxu0 0
        %5776 = vmatprep.subr.bf16.mxu0 %v5760
        %5777 = vmatpush1.bf16.msra.mxu0 %v5757
        %5778 = vmatprep.subr.bf16.mxu0 0
        %5779 = vmatpush2.bf16.msra.mxu0 0
        %5780 = vmatprep.subr.bf16.mxu0 0
        %5781 = vmatpush2.bf16.msra.mxu0 0
        %5782 = vmatprep.subr.bf16.mxu0 0
        %5783 = vmatpush2.bf16.msra.mxu0 0
        %5784 = vmatprep.subr.bf16.mxu0 0
        %5785 = vmatpush2.bf16.msra.mxu0 0
        %5786 = vmatprep.subr.bf16.mxu0 0
        %5787 = vmatpush2.bf16.msra.mxu0 0
        %5788 = vmatprep.subr.bf16.mxu0 0
        %5789 = vmatpush2.bf16.msra.mxu0 0
        %5790 = vmatprep.subr.bf16.mxu0 0
        %5791 = vmatpush2.bf16.msra.mxu0 0
        %5792 = vmatprep.subr.bf16.mxu0 0
        %5793 = vmatpush2.bf16.msra.mxu0 0
        %5794 = vmatprep.mubr.bf16.mxu0 0
        %5795 = vmatmul.mubr.bf16.gmra.mxu0 %v5754
        %v5796 = vpop.f32.mrf.mxu0
        %v5797 = vadd.f32 0.0, %v5796
        %v5798 = vpop.f32.mrf.mxu0
        %v5799 = vadd.f32 0.0, %v5798
        %v5800 = vpop.f32.mrf.mxu0
        %v5801 = vpop.f32.mrf.mxu0
        %5802 = vdwg.mxu0
        %v5803 = vadd.f32 %v5724, %v5797
        %v5804 = vadd.f32 %v5725, %v5799
        %v5805 = vld [vmem:[%s1473] sm:$0xf]
        %v5806 = vld [vmem:[%s195 + $0x8] sm:$0x3f]
        %v5808 = vcombine.high %v5806, %v5806
        %v5810 = vunpack.c.l.s4 1983009808
        %v5811 = vunpack.c.0.s8 %v5810
        %v5812 = vlaneseq
        %v5813 = vshrl.u32 %v5812, 7
        %v5814 = vsub.s32 %v5811, %v5813
        %v5815 = vrot.slane %v5806, %v5814
        %v5817 = vunpack.c.l.s4 1983009808
        %v5818 = vunpack.c.0.s8 %v5817
        %v5819 = vlaneseq
        %v5820 = vshrl.u32 %v5819, 7
        %v5821 = vsub.s32 %v5818, %v5820
        %v5822 = vrot.slane %v5808, %v5821
        %v5823 = vcombine.high %v5815, %v5815
        %5824 = vrot.lane.b32.xlu0 %v5815, 7
        %v5825 = vpop.permute.xlu0 %5824
        %5826 = vrot.lane.b32.xlu0 %v5823, 7
        %v5827 = vpop.permute.xlu0 %5826
        %5828 = vrot.lane.b32.xlu0 %v5822, 7
        %v5829 = vpop.permute.xlu0 %5828
        %v5830 = vsel %vm1499, %v5825, %v5827
        %v5831 = vsel %vm1499, %v5827, %v5829
        %v5833 = vsel %vm228, %v5805, 0
        %v5836 = vsel %vm232, %v5830, 0
        %v5839 = vsel %vm232, %v5831, 0
        %5841 = vmatprep.subr.bf16.mxu0 0
        %5842 = vmatpush1.bf16.msra.mxu0 0
        %5843 = vmatprep.subr.bf16.mxu0 0
        %5844 = vmatpush1.bf16.msra.mxu0 0
        %5845 = vmatprep.subr.bf16.mxu0 0
        %5846 = vmatpush1.bf16.msra.mxu0 0
        %5847 = vmatprep.subr.bf16.mxu0 0
        %5848 = vmatpush1.bf16.msra.mxu0 0
        %5849 = vmatprep.subr.bf16.mxu0 0
        %5850 = vmatpush1.bf16.msra.mxu0 0
        %5851 = vmatprep.subr.bf16.mxu0 0
        %5852 = vmatpush1.bf16.msra.mxu0 0
        %5853 = vmatprep.subr.bf16.mxu0 0
        %5854 = vmatpush1.bf16.msra.mxu0 0
        %5855 = vmatprep.subr.bf16.mxu0 %v5839
        %5856 = vmatpush1.bf16.msra.mxu0 %v5836
        %5857 = vmatprep.subr.bf16.mxu0 0
        %5858 = vmatpush2.bf16.msra.mxu0 0
        %5859 = vmatprep.subr.bf16.mxu0 0
        %5860 = vmatpush2.bf16.msra.mxu0 0
        %5861 = vmatprep.subr.bf16.mxu0 0
        %5862 = vmatpush2.bf16.msra.mxu0 0
        %5863 = vmatprep.subr.bf16.mxu0 0
        %5864 = vmatpush2.bf16.msra.mxu0 0
        %5865 = vmatprep.subr.bf16.mxu0 0
        %5866 = vmatpush2.bf16.msra.mxu0 0
        %5867 = vmatprep.subr.bf16.mxu0 0
        %5868 = vmatpush2.bf16.msra.mxu0 0
        %5869 = vmatprep.subr.bf16.mxu0 0
        %5870 = vmatpush2.bf16.msra.mxu0 0
        %5871 = vmatprep.subr.bf16.mxu0 0
        %5872 = vmatpush2.bf16.msra.mxu0 0
        %5873 = vmatprep.mubr.bf16.mxu0 0
        %5874 = vmatmul.mubr.bf16.gmra.mxu0 %v5833
        %v5875 = vpop.f32.mrf.mxu0
        %v5876 = vadd.f32 0.0, %v5875
        %v5877 = vpop.f32.mrf.mxu0
        %v5878 = vadd.f32 0.0, %v5877
        %v5879 = vpop.f32.mrf.mxu0
        %v5880 = vpop.f32.mrf.mxu0
        %5881 = vdwg.mxu0
        %v5882 = vadd.f32 %v5803, %v5876
        %v5883 = vadd.f32 %v5804, %v5878
        %v5884 = vld [vmem:[%s1554] sm:$0xf]
        %v5885 = vld [vmem:[%s195 + $0x8] sm:$0x3f]
        %v5887 = vcombine.high %v5885, %v5885
        %v5889 = vunpack.c.l.s4 1983009808
        %v5890 = vunpack.c.0.s8 %v5889
        %v5891 = vlaneseq
        %v5892 = vshrl.u32 %v5891, 7
        %v5893 = vsub.s32 %v5890, %v5892
        %v5894 = vrot.slane %v5885, %v5893
        %v5896 = vunpack.c.l.s4 1983009808
        %v5897 = vunpack.c.0.s8 %v5896
        %v5898 = vlaneseq
        %v5899 = vshrl.u32 %v5898, 7
        %v5900 = vsub.s32 %v5897, %v5899
        %v5901 = vrot.slane %v5887, %v5900
        %v5902 = vcombine.high %v5894, %v5894
        %5903 = vrot.lane.b32.xlu0 %v5894, 6
        %v5904 = vpop.permute.xlu0 %5903
        %5905 = vrot.lane.b32.xlu0 %v5902, 6
        %v5906 = vpop.permute.xlu0 %5905
        %5907 = vrot.lane.b32.xlu0 %v5901, 6
        %v5908 = vpop.permute.xlu0 %5907
        %v5909 = vsel %vm1580, %v5904, %v5906
        %v5910 = vsel %vm1580, %v5906, %v5908
        %v5912 = vsel %vm228, %v5884, 0
        %v5915 = vsel %vm232, %v5909, 0
        %v5918 = vsel %vm232, %v5910, 0
        %5920 = vmatprep.subr.bf16.mxu0 0
        %5921 = vmatpush1.bf16.msra.mxu0 0
        %5922 = vmatprep.subr.bf16.mxu0 0
        %5923 = vmatpush1.bf16.msra.mxu0 0
        %5924 = vmatprep.subr.bf16.mxu0 0
        %5925 = vmatpush1.bf16.msra.mxu0 0
        %5926 = vmatprep.subr.bf16.mxu0 0
        %5927 = vmatpush1.bf16.msra.mxu0 0
        %5928 = vmatprep.subr.bf16.mxu0 0
        %5929 = vmatpush1.bf16.msra.mxu0 0
        %5930 = vmatprep.subr.bf16.mxu0 0
        %5931 = vmatpush1.bf16.msra.mxu0 0
        %5932 = vmatprep.subr.bf16.mxu0 0
        %5933 = vmatpush1.bf16.msra.mxu0 0
        %5934 = vmatprep.subr.bf16.mxu0 %v5918
        %5935 = vmatpush1.bf16.msra.mxu0 %v5915
        %5936 = vmatprep.subr.bf16.mxu0 0
        %5937 = vmatpush2.bf16.msra.mxu0 0
        %5938 = vmatprep.subr.bf16.mxu0 0
        %5939 = vmatpush2.bf16.msra.mxu0 0
        %5940 = vmatprep.subr.bf16.mxu0 0
        %5941 = vmatpush2.bf16.msra.mxu0 0
        %5942 = vmatprep.subr.bf16.mxu0 0
        %5943 = vmatpush2.bf16.msra.mxu0 0
        %5944 = vmatprep.subr.bf16.mxu0 0
        %5945 = vmatpush2.bf16.msra.mxu0 0
        %5946 = vmatprep.subr.bf16.mxu0 0
        %5947 = vmatpush2.bf16.msra.mxu0 0
        %5948 = vmatprep.subr.bf16.mxu0 0
        %5949 = vmatpush2.bf16.msra.mxu0 0
        %5950 = vmatprep.subr.bf16.mxu0 0
        %5951 = vmatpush2.bf16.msra.mxu0 0
        %5952 = vmatprep.mubr.bf16.mxu0 0
        %5953 = vmatmul.mubr.bf16.gmra.mxu0 %v5912
        %v5954 = vpop.f32.mrf.mxu0
        %v5955 = vadd.f32 0.0, %v5954
        %v5956 = vpop.f32.mrf.mxu0
        %v5957 = vadd.f32 0.0, %v5956
        %v5958 = vpop.f32.mrf.mxu0
        %v5959 = vpop.f32.mrf.mxu0
        %5960 = vdwg.mxu0
        %v5961 = vadd.f32 %v5882, %v5955
        %v5962 = vadd.f32 %v5883, %v5957
        %v5963 = vld [vmem:[%s1635] sm:$0xf]
        %v5964 = vld [vmem:[%s195 + $0xa] sm:$0x3f]
        %v5966 = vcombine.high %v5964, %v5964
        %v5968 = vunpack.c.l.s4 1983009808
        %v5969 = vunpack.c.0.s8 %v5968
        %v5970 = vlaneseq
        %v5971 = vshrl.u32 %v5970, 7
        %v5972 = vsub.s32 %v5969, %v5971
        %v5973 = vrot.slane %v5964, %v5972
        %v5975 = vunpack.c.l.s4 1983009808
        %v5976 = vunpack.c.0.s8 %v5975
        %v5977 = vlaneseq
        %v5978 = vshrl.u32 %v5977, 7
        %v5979 = vsub.s32 %v5976, %v5978
        %v5980 = vrot.slane %v5966, %v5979
        %v5981 = vcombine.high %v5973, %v5973
        %5982 = vrot.lane.b32.xlu0 %v5973, 56
        %v5983 = vpop.permute.xlu0 %5982
        %5984 = vrot.lane.b32.xlu0 %v5981, 56
        %v5985 = vpop.permute.xlu0 %5984
        %5986 = vrot.lane.b32.xlu0 %v5980, 56
        %v5987 = vpop.permute.xlu0 %5986
        %v5988 = vsel %vm1661, %v5983, %v5985
        %v5989 = vsel %vm1661, %v5985, %v5987
        %v5991 = vsel %vm228, %v5963, 0
        %v5994 = vsel %vm232, %v5988, 0
        %v5997 = vsel %vm232, %v5989, 0
        %5999 = vmatprep.subr.bf16.mxu0 0
        %6000 = vmatpush1.bf16.msra.mxu0 0
        %6001 = vmatprep.subr.bf16.mxu0 0
        %6002 = vmatpush1.bf16.msra.mxu0 0
        %6003 = vmatprep.subr.bf16.mxu0 0
        %6004 = vmatpush1.bf16.msra.mxu0 0
        %6005 = vmatprep.subr.bf16.mxu0 0
        %6006 = vmatpush1.bf16.msra.mxu0 0
        %6007 = vmatprep.subr.bf16.mxu0 0
        %6008 = vmatpush1.bf16.msra.mxu0 0
        %6009 = vmatprep.subr.bf16.mxu0 0
        %6010 = vmatpush1.bf16.msra.mxu0 0
        %6011 = vmatprep.subr.bf16.mxu0 0
        %6012 = vmatpush1.bf16.msra.mxu0 0
        %6013 = vmatprep.subr.bf16.mxu0 %v5997
        %6014 = vmatpush1.bf16.msra.mxu0 %v5994
        %6015 = vmatprep.subr.bf16.mxu0 0
        %6016 = vmatpush2.bf16.msra.mxu0 0
        %6017 = vmatprep.subr.bf16.mxu0 0
        %6018 = vmatpush2.bf16.msra.mxu0 0
        %6019 = vmatprep.subr.bf16.mxu0 0
        %6020 = vmatpush2.bf16.msra.mxu0 0
        %6021 = vmatprep.subr.bf16.mxu0 0
        %6022 = vmatpush2.bf16.msra.mxu0 0
        %6023 = vmatprep.subr.bf16.mxu0 0
        %6024 = vmatpush2.bf16.msra.mxu0 0
        %6025 = vmatprep.subr.bf16.mxu0 0
        %6026 = vmatpush2.bf16.msra.mxu0 0
        %6027 = vmatprep.subr.bf16.mxu0 0
        %6028 = vmatpush2.bf16.msra.mxu0 0
        %6029 = vmatprep.subr.bf16.mxu0 0
        %6030 = vmatpush2.bf16.msra.mxu0 0
        %6031 = vmatprep.mubr.bf16.mxu0 0
        %6032 = vmatmul.mubr.bf16.gmra.mxu0 %v5991
        %v6033 = vpop.f32.mrf.mxu0
        %v6034 = vadd.f32 0.0, %v6033
        %v6035 = vpop.f32.mrf.mxu0
        %v6036 = vadd.f32 0.0, %v6035
        %v6037 = vpop.f32.mrf.mxu0
        %v6038 = vpop.f32.mrf.mxu0
        %6039 = vdwg.mxu0
        %v6040 = vadd.f32 %v5961, %v6034
        %v6041 = vadd.f32 %v5962, %v6036
        %v6042 = vld [vmem:[%s1716] sm:$0xf]
        %v6043 = vld [vmem:[%s195 + $0xa] sm:$0x3f]
        %v6045 = vcombine.high %v6043, %v6043
        %v6047 = vunpack.c.l.s4 1983009808
        %v6048 = vunpack.c.0.s8 %v6047
        %v6049 = vlaneseq
        %v6050 = vshrl.u32 %v6049, 7
        %v6051 = vsub.s32 %v6048, %v6050
        %v6052 = vrot.slane %v6043, %v6051
        %v6054 = vunpack.c.l.s4 1983009808
        %v6055 = vunpack.c.0.s8 %v6054
        %v6056 = vlaneseq
        %v6057 = vshrl.u32 %v6056, 7
        %v6058 = vsub.s32 %v6055, %v6057
        %v6059 = vrot.slane %v6045, %v6058
        %v6060 = vcombine.high %v6052, %v6052
        %6061 = vrot.lane.b32.xlu0 %v6052, 55
        %v6062 = vpop.permute.xlu0 %6061
        %6063 = vrot.lane.b32.xlu0 %v6060, 55
        %v6064 = vpop.permute.xlu0 %6063
        %6065 = vrot.lane.b32.xlu0 %v6059, 55
        %v6066 = vpop.permute.xlu0 %6065
        %v6067 = vsel %vm1742, %v6062, %v6064
        %v6068 = vsel %vm1742, %v6064, %v6066
        %v6070 = vsel %vm228, %v6042, 0
        %v6073 = vsel %vm232, %v6067, 0
        %v6076 = vsel %vm232, %v6068, 0
        %6078 = vmatprep.subr.bf16.mxu0 0
        %6079 = vmatpush1.bf16.msra.mxu0 0
        %6080 = vmatprep.subr.bf16.mxu0 0
        %6081 = vmatpush1.bf16.msra.mxu0 0
        %6082 = vmatprep.subr.bf16.mxu0 0
        %6083 = vmatpush1.bf16.msra.mxu0 0
        %6084 = vmatprep.subr.bf16.mxu0 0
        %6085 = vmatpush1.bf16.msra.mxu0 0
        %6086 = vmatprep.subr.bf16.mxu0 0
        %6087 = vmatpush1.bf16.msra.mxu0 0
        %6088 = vmatprep.subr.bf16.mxu0 0
        %6089 = vmatpush1.bf16.msra.mxu0 0
        %6090 = vmatprep.subr.bf16.mxu0 0
        %6091 = vmatpush1.bf16.msra.mxu0 0
        %6092 = vmatprep.subr.bf16.mxu0 %v6076
        %6093 = vmatpush1.bf16.msra.mxu0 %v6073
        %6094 = vmatprep.subr.bf16.mxu0 0
        %6095 = vmatpush2.bf16.msra.mxu0 0
        %6096 = vmatprep.subr.bf16.mxu0 0
        %6097 = vmatpush2.bf16.msra.mxu0 0
        %6098 = vmatprep.subr.bf16.mxu0 0
        %6099 = vmatpush2.bf16.msra.mxu0 0
        %6100 = vmatprep.subr.bf16.mxu0 0
        %6101 = vmatpush2.bf16.msra.mxu0 0
        %6102 = vmatprep.subr.bf16.mxu0 0
        %6103 = vmatpush2.bf16.msra.mxu0 0
        %6104 = vmatprep.subr.bf16.mxu0 0
        %6105 = vmatpush2.bf16.msra.mxu0 0
        %6106 = vmatprep.subr.bf16.mxu0 0
        %6107 = vmatpush2.bf16.msra.mxu0 0
        %6108 = vmatprep.subr.bf16.mxu0 0
        %6109 = vmatpush2.bf16.msra.mxu0 0
        %6110 = vmatprep.mubr.bf16.mxu0 0
        %6111 = vmatmul.mubr.bf16.gmra.mxu0 %v6070
        %v6112 = vpop.f32.mrf.mxu0
        %v6113 = vadd.f32 0.0, %v6112
        %v6114 = vpop.f32.mrf.mxu0
        %v6115 = vadd.f32 0.0, %v6114
        %v6116 = vpop.f32.mrf.mxu0
        %v6117 = vpop.f32.mrf.mxu0
        %6118 = vdwg.mxu0
        %v6119 = vadd.f32 %v6040, %v6113
        %v6120 = vadd.f32 %v6041, %v6115
        %v6121 = vld [vmem:[%s1797] sm:$0xf]
        %v6122 = vld [vmem:[%s195 + $0xa] sm:$0x3f]
        %v6124 = vcombine.high %v6122, %v6122
        %v6126 = vunpack.c.l.s4 1983009808
        %v6127 = vunpack.c.0.s8 %v6126
        %v6128 = vlaneseq
        %v6129 = vshrl.u32 %v6128, 7
        %v6130 = vsub.s32 %v6127, %v6129
        %v6131 = vrot.slane %v6122, %v6130
        %v6133 = vunpack.c.l.s4 1983009808
        %v6134 = vunpack.c.0.s8 %v6133
        %v6135 = vlaneseq
        %v6136 = vshrl.u32 %v6135, 7
        %v6137 = vsub.s32 %v6134, %v6136
        %v6138 = vrot.slane %v6124, %v6137
        %v6139 = vcombine.high %v6131, %v6131
        %6140 = vrot.lane.b32.xlu0 %v6131, 54
        %v6141 = vpop.permute.xlu0 %6140
        %6142 = vrot.lane.b32.xlu0 %v6139, 54
        %v6143 = vpop.permute.xlu0 %6142
        %6144 = vrot.lane.b32.xlu0 %v6138, 54
        %v6145 = vpop.permute.xlu0 %6144
        %v6146 = vsel %vm1823, %v6141, %v6143
        %v6147 = vsel %vm1823, %v6143, %v6145
        %v6149 = vsel %vm228, %v6121, 0
        %v6152 = vsel %vm232, %v6146, 0
        %v6155 = vsel %vm232, %v6147, 0
        %6157 = vmatprep.subr.bf16.mxu0 0
        %6158 = vmatpush1.bf16.msra.mxu0 0
        %6159 = vmatprep.subr.bf16.mxu0 0
        %6160 = vmatpush1.bf16.msra.mxu0 0
        %6161 = vmatprep.subr.bf16.mxu0 0
        %6162 = vmatpush1.bf16.msra.mxu0 0
        %6163 = vmatprep.subr.bf16.mxu0 0
        %6164 = vmatpush1.bf16.msra.mxu0 0
        %6165 = vmatprep.subr.bf16.mxu0 0
        %6166 = vmatpush1.bf16.msra.mxu0 0
        %6167 = vmatprep.subr.bf16.mxu0 0
        %6168 = vmatpush1.bf16.msra.mxu0 0
        %6169 = vmatprep.subr.bf16.mxu0 0
        %6170 = vmatpush1.bf16.msra.mxu0 0
        %6171 = vmatprep.subr.bf16.mxu0 %v6155
        %6172 = vmatpush1.bf16.msra.mxu0 %v6152
        %6173 = vmatprep.subr.bf16.mxu0 0
        %6174 = vmatpush2.bf16.msra.mxu0 0
        %6175 = vmatprep.subr.bf16.mxu0 0
        %6176 = vmatpush2.bf16.msra.mxu0 0
        %6177 = vmatprep.subr.bf16.mxu0 0
        %6178 = vmatpush2.bf16.msra.mxu0 0
        %6179 = vmatprep.subr.bf16.mxu0 0
        %6180 = vmatpush2.bf16.msra.mxu0 0
        %6181 = vmatprep.subr.bf16.mxu0 0
        %6182 = vmatpush2.bf16.msra.mxu0 0
        %6183 = vmatprep.subr.bf16.mxu0 0
        %6184 = vmatpush2.bf16.msra.mxu0 0
        %6185 = vmatprep.subr.bf16.mxu0 0
        %6186 = vmatpush2.bf16.msra.mxu0 0
        %6187 = vmatprep.subr.bf16.mxu0 0
        %6188 = vmatpush2.bf16.msra.mxu0 0
        %6189 = vmatprep.mubr.bf16.mxu0 0
        %6190 = vmatmul.mubr.bf16.gmra.mxu0 %v6149
        %v6191 = vpop.f32.mrf.mxu0
        %v6192 = vadd.f32 0.0, %v6191
        %v6193 = vpop.f32.mrf.mxu0
        %v6194 = vadd.f32 0.0, %v6193
        %v6195 = vpop.f32.mrf.mxu0
        %v6196 = vpop.f32.mrf.mxu0
        %6197 = vdwg.mxu0
        %v6198 = vadd.f32 %v6119, %v6192
        %v6199 = vadd.f32 %v6120, %v6194
        %v6200 = vld [vmem:[%s1878] sm:$0xf]
        %v6201 = vld [vmem:[%s195 + $0xa] sm:$0x3f]
        %v6203 = vcombine.high %v6201, %v6201
        %v6205 = vunpack.c.l.s4 1983009808
        %v6206 = vunpack.c.0.s8 %v6205
        %v6207 = vlaneseq
        %v6208 = vshrl.u32 %v6207, 7
        %v6209 = vsub.s32 %v6206, %v6208
        %v6210 = vrot.slane %v6201, %v6209
        %v6212 = vunpack.c.l.s4 1983009808
        %v6213 = vunpack.c.0.s8 %v6212
        %v6214 = vlaneseq
        %v6215 = vshrl.u32 %v6214, 7
        %v6216 = vsub.s32 %v6213, %v6215
        %v6217 = vrot.slane %v6203, %v6216
        %v6218 = vcombine.high %v6210, %v6210
        %6219 = vrot.lane.b32.xlu0 %v6210, 46
        %v6220 = vpop.permute.xlu0 %6219
        %6221 = vrot.lane.b32.xlu0 %v6218, 46
        %v6222 = vpop.permute.xlu0 %6221
        %6223 = vrot.lane.b32.xlu0 %v6217, 46
        %v6224 = vpop.permute.xlu0 %6223
        %v6225 = vsel %vm1904, %v6220, %v6222
        %v6226 = vsel %vm1904, %v6222, %v6224
        %v6228 = vsel %vm228, %v6200, 0
        %v6231 = vsel %vm232, %v6225, 0
        %v6234 = vsel %vm232, %v6226, 0
        %6236 = vmatprep.subr.bf16.mxu0 0
        %6237 = vmatpush1.bf16.msra.mxu0 0
        %6238 = vmatprep.subr.bf16.mxu0 0
        %6239 = vmatpush1.bf16.msra.mxu0 0
        %6240 = vmatprep.subr.bf16.mxu0 0
        %6241 = vmatpush1.bf16.msra.mxu0 0
        %6242 = vmatprep.subr.bf16.mxu0 0
        %6243 = vmatpush1.bf16.msra.mxu0 0
        %6244 = vmatprep.subr.bf16.mxu0 0
        %6245 = vmatpush1.bf16.msra.mxu0 0
        %6246 = vmatprep.subr.bf16.mxu0 0
        %6247 = vmatpush1.bf16.msra.mxu0 0
        %6248 = vmatprep.subr.bf16.mxu0 0
        %6249 = vmatpush1.bf16.msra.mxu0 0
        %6250 = vmatprep.subr.bf16.mxu0 %v6234
        %6251 = vmatpush1.bf16.msra.mxu0 %v6231
        %6252 = vmatprep.subr.bf16.mxu0 0
        %6253 = vmatpush2.bf16.msra.mxu0 0
        %6254 = vmatprep.subr.bf16.mxu0 0
        %6255 = vmatpush2.bf16.msra.mxu0 0
        %6256 = vmatprep.subr.bf16.mxu0 0
        %6257 = vmatpush2.bf16.msra.mxu0 0
        %6258 = vmatprep.subr.bf16.mxu0 0
        %6259 = vmatpush2.bf16.msra.mxu0 0
        %6260 = vmatprep.subr.bf16.mxu0 0
        %6261 = vmatpush2.bf16.msra.mxu0 0
        %6262 = vmatprep.subr.bf16.mxu0 0
        %6263 = vmatpush2.bf16.msra.mxu0 0
        %6264 = vmatprep.subr.bf16.mxu0 0
        %6265 = vmatpush2.bf16.msra.mxu0 0
        %6266 = vmatprep.subr.bf16.mxu0 0
        %6267 = vmatpush2.bf16.msra.mxu0 0
        %6268 = vmatprep.mubr.bf16.mxu0 0
        %6269 = vmatmul.mubr.bf16.gmra.mxu0 %v6228
        %v6270 = vpop.f32.mrf.mxu0
        %v6271 = vadd.f32 0.0, %v6270
        %v6272 = vpop.f32.mrf.mxu0
        %v6273 = vadd.f32 0.0, %v6272
        %v6274 = vpop.f32.mrf.mxu0
        %v6275 = vpop.f32.mrf.mxu0
        %6276 = vdwg.mxu0
        %v6277 = vadd.f32 %v6198, %v6271
        %v6278 = vadd.f32 %v6199, %v6273
        %v6279 = vld [vmem:[%s1959] sm:$0xf]
        %v6280 = vld [vmem:[%s195 + $0xa] sm:$0x3f]
        %v6282 = vcombine.high %v6280, %v6280
        %v6284 = vunpack.c.l.s4 1983009808
        %v6285 = vunpack.c.0.s8 %v6284
        %v6286 = vlaneseq
        %v6287 = vshrl.u32 %v6286, 7
        %v6288 = vsub.s32 %v6285, %v6287
        %v6289 = vrot.slane %v6280, %v6288
        %v6291 = vunpack.c.l.s4 1983009808
        %v6292 = vunpack.c.0.s8 %v6291
        %v6293 = vlaneseq
        %v6294 = vshrl.u32 %v6293, 7
        %v6295 = vsub.s32 %v6292, %v6294
        %v6296 = vrot.slane %v6282, %v6295
        %v6297 = vcombine.high %v6289, %v6289
        %6298 = vrot.lane.b32.xlu0 %v6289, 45
        %v6299 = vpop.permute.xlu0 %6298
        %6300 = vrot.lane.b32.xlu0 %v6297, 45
        %v6301 = vpop.permute.xlu0 %6300
        %6302 = vrot.lane.b32.xlu0 %v6296, 45
        %v6303 = vpop.permute.xlu0 %6302
        %v6304 = vsel %vm1985, %v6299, %v6301
        %v6305 = vsel %vm1985, %v6301, %v6303
        %v6307 = vsel %vm228, %v6279, 0
        %v6310 = vsel %vm232, %v6304, 0
        %v6313 = vsel %vm232, %v6305, 0
        %6315 = vmatprep.subr.bf16.mxu0 0
        %6316 = vmatpush1.bf16.msra.mxu0 0
        %6317 = vmatprep.subr.bf16.mxu0 0
        %6318 = vmatpush1.bf16.msra.mxu0 0
        %6319 = vmatprep.subr.bf16.mxu0 0
        %6320 = vmatpush1.bf16.msra.mxu0 0
        %6321 = vmatprep.subr.bf16.mxu0 0
        %6322 = vmatpush1.bf16.msra.mxu0 0
        %6323 = vmatprep.subr.bf16.mxu0 0
        %6324 = vmatpush1.bf16.msra.mxu0 0
        %6325 = vmatprep.subr.bf16.mxu0 0
        %6326 = vmatpush1.bf16.msra.mxu0 0
        %6327 = vmatprep.subr.bf16.mxu0 0
        %6328 = vmatpush1.bf16.msra.mxu0 0
        %6329 = vmatprep.subr.bf16.mxu0 %v6313
        %6330 = vmatpush1.bf16.msra.mxu0 %v6310
        %6331 = vmatprep.subr.bf16.mxu0 0
        %6332 = vmatpush2.bf16.msra.mxu0 0
        %6333 = vmatprep.subr.bf16.mxu0 0
        %6334 = vmatpush2.bf16.msra.mxu0 0
        %6335 = vmatprep.subr.bf16.mxu0 0
        %6336 = vmatpush2.bf16.msra.mxu0 0
        %6337 = vmatprep.subr.bf16.mxu0 0
        %6338 = vmatpush2.bf16.msra.mxu0 0
        %6339 = vmatprep.subr.bf16.mxu0 0
        %6340 = vmatpush2.bf16.msra.mxu0 0
        %6341 = vmatprep.subr.bf16.mxu0 0
        %6342 = vmatpush2.bf16.msra.mxu0 0
        %6343 = vmatprep.subr.bf16.mxu0 0
        %6344 = vmatpush2.bf16.msra.mxu0 0
        %6345 = vmatprep.subr.bf16.mxu0 0
        %6346 = vmatpush2.bf16.msra.mxu0 0
        %6347 = vmatprep.mubr.bf16.mxu0 0
        %6348 = vmatmul.mubr.bf16.gmra.mxu0 %v6307
        %v6349 = vpop.f32.mrf.mxu0
        %v6350 = vadd.f32 0.0, %v6349
        %v6351 = vpop.f32.mrf.mxu0
        %v6352 = vadd.f32 0.0, %v6351
        %v6353 = vpop.f32.mrf.mxu0
        %v6354 = vpop.f32.mrf.mxu0
        %6355 = vdwg.mxu0
        %v6356 = vadd.f32 %v6277, %v6350
        %v6357 = vadd.f32 %v6278, %v6352
        %v6358 = vld [vmem:[%s2040] sm:$0xf]
        %v6359 = vld [vmem:[%s195 + $0xa] sm:$0x3f]
        %v6361 = vcombine.high %v6359, %v6359
        %v6363 = vunpack.c.l.s4 1983009808
        %v6364 = vunpack.c.0.s8 %v6363
        %v6365 = vlaneseq
        %v6366 = vshrl.u32 %v6365, 7
        %v6367 = vsub.s32 %v6364, %v6366
        %v6368 = vrot.slane %v6359, %v6367
        %v6370 = vunpack.c.l.s4 1983009808
        %v6371 = vunpack.c.0.s8 %v6370
        %v6372 = vlaneseq
        %v6373 = vshrl.u32 %v6372, 7
        %v6374 = vsub.s32 %v6371, %v6373
        %v6375 = vrot.slane %v6361, %v6374
        %v6376 = vcombine.high %v6368, %v6368
        %6377 = vrot.lane.b32.xlu0 %v6368, 44
        %v6378 = vpop.permute.xlu0 %6377
        %6379 = vrot.lane.b32.xlu0 %v6376, 44
        %v6380 = vpop.permute.xlu0 %6379
        %6381 = vrot.lane.b32.xlu0 %v6375, 44
        %v6382 = vpop.permute.xlu0 %6381
        %v6383 = vsel %vm2066, %v6378, %v6380
        %v6384 = vsel %vm2066, %v6380, %v6382
        %v6386 = vsel %vm228, %v6358, 0
        %v6389 = vsel %vm232, %v6383, 0
        %v6392 = vsel %vm232, %v6384, 0
        %6394 = vmatprep.subr.bf16.mxu0 0
        %6395 = vmatpush1.bf16.msra.mxu0 0
        %6396 = vmatprep.subr.bf16.mxu0 0
        %6397 = vmatpush1.bf16.msra.mxu0 0
        %6398 = vmatprep.subr.bf16.mxu0 0
        %6399 = vmatpush1.bf16.msra.mxu0 0
        %6400 = vmatprep.subr.bf16.mxu0 0
        %6401 = vmatpush1.bf16.msra.mxu0 0
        %6402 = vmatprep.subr.bf16.mxu0 0
        %6403 = vmatpush1.bf16.msra.mxu0 0
        %6404 = vmatprep.subr.bf16.mxu0 0
        %6405 = vmatpush1.bf16.msra.mxu0 0
        %6406 = vmatprep.subr.bf16.mxu0 0
        %6407 = vmatpush1.bf16.msra.mxu0 0
        %6408 = vmatprep.subr.bf16.mxu0 %v6392
        %6409 = vmatpush1.bf16.msra.mxu0 %v6389
        %6410 = vmatprep.subr.bf16.mxu0 0
        %6411 = vmatpush2.bf16.msra.mxu0 0
        %6412 = vmatprep.subr.bf16.mxu0 0
        %6413 = vmatpush2.bf16.msra.mxu0 0
        %6414 = vmatprep.subr.bf16.mxu0 0
        %6415 = vmatpush2.bf16.msra.mxu0 0
        %6416 = vmatprep.subr.bf16.mxu0 0
        %6417 = vmatpush2.bf16.msra.mxu0 0
        %6418 = vmatprep.subr.bf16.mxu0 0
        %6419 = vmatpush2.bf16.msra.mxu0 0
        %6420 = vmatprep.subr.bf16.mxu0 0
        %6421 = vmatpush2.bf16.msra.mxu0 0
        %6422 = vmatprep.subr.bf16.mxu0 0
        %6423 = vmatpush2.bf16.msra.mxu0 0
        %6424 = vmatprep.subr.bf16.mxu0 0
        %6425 = vmatpush2.bf16.msra.mxu0 0
        %6426 = vmatprep.mubr.bf16.mxu0 0
        %6427 = vmatmul.mubr.bf16.gmra.mxu0 %v6386
        %v6428 = vpop.f32.mrf.mxu0
        %v6429 = vadd.f32 0.0, %v6428
        %v6430 = vpop.f32.mrf.mxu0
        %v6431 = vadd.f32 0.0, %v6430
        %v6432 = vpop.f32.mrf.mxu0
        %v6433 = vpop.f32.mrf.mxu0
        %6434 = vdwg.mxu0
        %v6435 = vadd.f32 %v6356, %v6429
        %v6436 = vadd.f32 %v6357, %v6431
        %v6437 = vld [vmem:[%s2121] sm:$0xf]
        %v6438 = vld [vmem:[%s195 + $0xa] sm:$0x3f]
        %v6440 = vcombine.high %v6438, %v6438
        %v6442 = vunpack.c.l.s4 1983009808
        %v6443 = vunpack.c.0.s8 %v6442
        %v6444 = vlaneseq
        %v6445 = vshrl.u32 %v6444, 7
        %v6446 = vsub.s32 %v6443, %v6445
        %v6447 = vrot.slane %v6438, %v6446
        %v6449 = vunpack.c.l.s4 1983009808
        %v6450 = vunpack.c.0.s8 %v6449
        %v6451 = vlaneseq
        %v6452 = vshrl.u32 %v6451, 7
        %v6453 = vsub.s32 %v6450, %v6452
        %v6454 = vrot.slane %v6440, %v6453
        %v6455 = vcombine.high %v6447, %v6447
        %6456 = vrot.lane.b32.xlu0 %v6447, 36
        %v6457 = vpop.permute.xlu0 %6456
        %6458 = vrot.lane.b32.xlu0 %v6455, 36
        %v6459 = vpop.permute.xlu0 %6458
        %6460 = vrot.lane.b32.xlu0 %v6454, 36
        %v6461 = vpop.permute.xlu0 %6460
        %v6462 = vsel %vm2147, %v6457, %v6459
        %v6463 = vsel %vm2147, %v6459, %v6461
        %v6465 = vsel %vm228, %v6437, 0
        %v6468 = vsel %vm232, %v6462, 0
        %v6471 = vsel %vm232, %v6463, 0
        %6473 = vmatprep.subr.bf16.mxu0 0
        %6474 = vmatpush1.bf16.msra.mxu0 0
        %6475 = vmatprep.subr.bf16.mxu0 0
        %6476 = vmatpush1.bf16.msra.mxu0 0
        %6477 = vmatprep.subr.bf16.mxu0 0
        %6478 = vmatpush1.bf16.msra.mxu0 0
        %6479 = vmatprep.subr.bf16.mxu0 0
        %6480 = vmatpush1.bf16.msra.mxu0 0
        %6481 = vmatprep.subr.bf16.mxu0 0
        %6482 = vmatpush1.bf16.msra.mxu0 0
        %6483 = vmatprep.subr.bf16.mxu0 0
        %6484 = vmatpush1.bf16.msra.mxu0 0
        %6485 = vmatprep.subr.bf16.mxu0 0
        %6486 = vmatpush1.bf16.msra.mxu0 0
        %6487 = vmatprep.subr.bf16.mxu0 %v6471
        %6488 = vmatpush1.bf16.msra.mxu0 %v6468
        %6489 = vmatprep.subr.bf16.mxu0 0
        %6490 = vmatpush2.bf16.msra.mxu0 0
        %6491 = vmatprep.subr.bf16.mxu0 0
        %6492 = vmatpush2.bf16.msra.mxu0 0
        %6493 = vmatprep.subr.bf16.mxu0 0
        %6494 = vmatpush2.bf16.msra.mxu0 0
        %6495 = vmatprep.subr.bf16.mxu0 0
        %6496 = vmatpush2.bf16.msra.mxu0 0
        %6497 = vmatprep.subr.bf16.mxu0 0
        %6498 = vmatpush2.bf16.msra.mxu0 0
        %6499 = vmatprep.subr.bf16.mxu0 0
        %6500 = vmatpush2.bf16.msra.mxu0 0
        %6501 = vmatprep.subr.bf16.mxu0 0
        %6502 = vmatpush2.bf16.msra.mxu0 0
        %6503 = vmatprep.subr.bf16.mxu0 0
        %6504 = vmatpush2.bf16.msra.mxu0 0
        %6505 = vmatprep.mubr.bf16.mxu0 0
        %6506 = vmatmul.mubr.bf16.gmra.mxu0 %v6465
        %v6507 = vpop.f32.mrf.mxu0
        %v6508 = vadd.f32 0.0, %v6507
        %v6509 = vpop.f32.mrf.mxu0
        %v6510 = vadd.f32 0.0, %v6509
        %v6511 = vpop.f32.mrf.mxu0
        %v6512 = vpop.f32.mrf.mxu0
        %6513 = vdwg.mxu0
        %v6514 = vadd.f32 %v6435, %v6508
        %v6515 = vadd.f32 %v6436, %v6510
        %v6516 = vld [vmem:[%s2202] sm:$0xf]
        %v6517 = vld [vmem:[%s195 + $0xa] sm:$0x3f]
        %v6519 = vcombine.high %v6517, %v6517
        %v6521 = vunpack.c.l.s4 1983009808
        %v6522 = vunpack.c.0.s8 %v6521
        %v6523 = vlaneseq
        %v6524 = vshrl.u32 %v6523, 7
        %v6525 = vsub.s32 %v6522, %v6524
        %v6526 = vrot.slane %v6517, %v6525
        %v6528 = vunpack.c.l.s4 1983009808
        %v6529 = vunpack.c.0.s8 %v6528
        %v6530 = vlaneseq
        %v6531 = vshrl.u32 %v6530, 7
        %v6532 = vsub.s32 %v6529, %v6531
        %v6533 = vrot.slane %v6519, %v6532
        %v6534 = vcombine.high %v6526, %v6526
        %6535 = vrot.lane.b32.xlu0 %v6526, 35
        %v6536 = vpop.permute.xlu0 %6535
        %6537 = vrot.lane.b32.xlu0 %v6534, 35
        %v6538 = vpop.permute.xlu0 %6537
        %6539 = vrot.lane.b32.xlu0 %v6533, 35
        %v6540 = vpop.permute.xlu0 %6539
        %v6541 = vsel %vm2228, %v6536, %v6538
        %v6542 = vsel %vm2228, %v6538, %v6540
        %v6544 = vsel %vm228, %v6516, 0
        %v6547 = vsel %vm232, %v6541, 0
        %v6550 = vsel %vm232, %v6542, 0
        %6552 = vmatprep.subr.bf16.mxu0 0
        %6553 = vmatpush1.bf16.msra.mxu0 0
        %6554 = vmatprep.subr.bf16.mxu0 0
        %6555 = vmatpush1.bf16.msra.mxu0 0
        %6556 = vmatprep.subr.bf16.mxu0 0
        %6557 = vmatpush1.bf16.msra.mxu0 0
        %6558 = vmatprep.subr.bf16.mxu0 0
        %6559 = vmatpush1.bf16.msra.mxu0 0
        %6560 = vmatprep.subr.bf16.mxu0 0
        %6561 = vmatpush1.bf16.msra.mxu0 0
        %6562 = vmatprep.subr.bf16.mxu0 0
        %6563 = vmatpush1.bf16.msra.mxu0 0
        %6564 = vmatprep.subr.bf16.mxu0 0
        %6565 = vmatpush1.bf16.msra.mxu0 0
        %6566 = vmatprep.subr.bf16.mxu0 %v6550
        %6567 = vmatpush1.bf16.msra.mxu0 %v6547
        %6568 = vmatprep.subr.bf16.mxu0 0
        %6569 = vmatpush2.bf16.msra.mxu0 0
        %6570 = vmatprep.subr.bf16.mxu0 0
        %6571 = vmatpush2.bf16.msra.mxu0 0
        %6572 = vmatprep.subr.bf16.mxu0 0
        %6573 = vmatpush2.bf16.msra.mxu0 0
        %6574 = vmatprep.subr.bf16.mxu0 0
        %6575 = vmatpush2.bf16.msra.mxu0 0
        %6576 = vmatprep.subr.bf16.mxu0 0
        %6577 = vmatpush2.bf16.msra.mxu0 0
        %6578 = vmatprep.subr.bf16.mxu0 0
        %6579 = vmatpush2.bf16.msra.mxu0 0
        %6580 = vmatprep.subr.bf16.mxu0 0
        %6581 = vmatpush2.bf16.msra.mxu0 0
        %6582 = vmatprep.subr.bf16.mxu0 0
        %6583 = vmatpush2.bf16.msra.mxu0 0
        %6584 = vmatprep.mubr.bf16.mxu0 0
        %6585 = vmatmul.mubr.bf16.gmra.mxu0 %v6544
        %v6586 = vpop.f32.mrf.mxu0
        %v6587 = vadd.f32 0.0, %v6586
        %v6588 = vpop.f32.mrf.mxu0
        %v6589 = vadd.f32 0.0, %v6588
        %v6590 = vpop.f32.mrf.mxu0
        %v6591 = vpop.f32.mrf.mxu0
        %6592 = vdwg.mxu0
        %v6593 = vadd.f32 %v6514, %v6587
        %v6594 = vadd.f32 %v6515, %v6589
        %v6595 = vld [vmem:[%s2283] sm:$0xf]
        %v6596 = vld [vmem:[%s195 + $0xa] sm:$0x3f]
        %v6598 = vcombine.high %v6596, %v6596
        %v6600 = vunpack.c.l.s4 1983009808
        %v6601 = vunpack.c.0.s8 %v6600
        %v6602 = vlaneseq
        %v6603 = vshrl.u32 %v6602, 7
        %v6604 = vsub.s32 %v6601, %v6603
        %v6605 = vrot.slane %v6596, %v6604
        %v6607 = vunpack.c.l.s4 1983009808
        %v6608 = vunpack.c.0.s8 %v6607
        %v6609 = vlaneseq
        %v6610 = vshrl.u32 %v6609, 7
        %v6611 = vsub.s32 %v6608, %v6610
        %v6612 = vrot.slane %v6598, %v6611
        %v6613 = vcombine.high %v6605, %v6605
        %6614 = vrot.lane.b32.xlu0 %v6605, 34
        %v6615 = vpop.permute.xlu0 %6614
        %6616 = vrot.lane.b32.xlu0 %v6613, 34
        %v6617 = vpop.permute.xlu0 %6616
        %6618 = vrot.lane.b32.xlu0 %v6612, 34
        %v6619 = vpop.permute.xlu0 %6618
        %v6620 = vsel %vm2309, %v6615, %v6617
        %v6621 = vsel %vm2309, %v6617, %v6619
        %v6623 = vsel %vm228, %v6595, 0
        %v6626 = vsel %vm232, %v6620, 0
        %v6629 = vsel %vm232, %v6621, 0
        %6631 = vmatprep.subr.bf16.mxu0 0
        %6632 = vmatpush1.bf16.msra.mxu0 0
        %6633 = vmatprep.subr.bf16.mxu0 0
        %6634 = vmatpush1.bf16.msra.mxu0 0
        %6635 = vmatprep.subr.bf16.mxu0 0
        %6636 = vmatpush1.bf16.msra.mxu0 0
        %6637 = vmatprep.subr.bf16.mxu0 0
        %6638 = vmatpush1.bf16.msra.mxu0 0
        %6639 = vmatprep.subr.bf16.mxu0 0
        %6640 = vmatpush1.bf16.msra.mxu0 0
        %6641 = vmatprep.subr.bf16.mxu0 0
        %6642 = vmatpush1.bf16.msra.mxu0 0
        %6643 = vmatprep.subr.bf16.mxu0 0
        %6644 = vmatpush1.bf16.msra.mxu0 0
        %6645 = vmatprep.subr.bf16.mxu0 %v6629
        %6646 = vmatpush1.bf16.msra.mxu0 %v6626
        %6647 = vmatprep.subr.bf16.mxu0 0
        %6648 = vmatpush2.bf16.msra.mxu0 0
        %6649 = vmatprep.subr.bf16.mxu0 0
        %6650 = vmatpush2.bf16.msra.mxu0 0
        %6651 = vmatprep.subr.bf16.mxu0 0
        %6652 = vmatpush2.bf16.msra.mxu0 0
        %6653 = vmatprep.subr.bf16.mxu0 0
        %6654 = vmatpush2.bf16.msra.mxu0 0
        %6655 = vmatprep.subr.bf16.mxu0 0
        %6656 = vmatpush2.bf16.msra.mxu0 0
        %6657 = vmatprep.subr.bf16.mxu0 0
        %6658 = vmatpush2.bf16.msra.mxu0 0
        %6659 = vmatprep.subr.bf16.mxu0 0
        %6660 = vmatpush2.bf16.msra.mxu0 0
        %6661 = vmatprep.subr.bf16.mxu0 0
        %6662 = vmatpush2.bf16.msra.mxu0 0
        %6663 = vmatprep.mubr.bf16.mxu0 0
        %6664 = vmatmul.mubr.bf16.gmra.mxu0 %v6623
        %v6665 = vpop.f32.mrf.mxu0
        %v6666 = vadd.f32 0.0, %v6665
        %v6667 = vpop.f32.mrf.mxu0
        %v6668 = vadd.f32 0.0, %v6667
        %v6669 = vpop.f32.mrf.mxu0
        %v6670 = vpop.f32.mrf.mxu0
        %6671 = vdwg.mxu0
        %v6672 = vadd.f32 %v6593, %v6666
        %v6673 = vadd.f32 %v6594, %v6668
        %v6674 = vld [vmem:[%s3 + $0x4] sm:$0x3]
        %v6675 = vunpack.c.l.bf16 %v6674
        %v6677 = vlaneseq
        %v6678 = vshrl.u32 %v6677, 7
        %v6679 = vsub.s32 0, %v6678
        %v6680 = vrot.slane %v6675, %v6679
        %v6681 = vlaneseq
        %v6682 = vshrl.u32 %v6681, 7
        %v6683 = vsub.s32 2, %v6682
        %v6684 = vrot.slane %v6675, %v6683
        %v6687 = vlaneseq
        %v6688 = vshrl.u32 %v6687, 7
        %v6689 = vsub.s32 0, %v6688
        %v6690 = vrot.slane %v6680, %v6689
        %v6691 = vlaneseq
        %v6692 = vshrl.u32 %v6691, 7
        %v6693 = vsub.s32 0, %v6692
        %v6694 = vrot.slane %v6684, %v6693
        %v6695 = vmul.f32 %v6672, %v6690
        %v6696 = vmul.f32 %v6673, %v6694
        %v6697 = vadd.f32 %v6695, %v6696
        %6698 = vadd.xlane.f32.xlu0 %v6697
        %v6699 = vpop.xlane.xlu0 %6698
        %v6700 = vadd.f32 %v4545, %v6699
        %v6701 = vmul.f32 %v6695, %v6672
        %v6702 = vmul.f32 %v6696, %v6673
        %v6703 = vadd.f32 %v6701, %v6702
        %6704 = vadd.xlane.f32.xlu0 %v6703
        %v6705 = vpop.xlane.xlu0 %6704
        %v6706 = vadd.f32 %v4551, %v6705
        %v6707 = vpack.c.bf16 %v6672, %v6672
        %v6708 = vpack.c.bf16 %v6673, %v6673
        %v6711 = vunpack.c.l.b16 %v6707
        %v6712 = vunpack.c.l.b16 %v6708
        %v6713 = vpack.c.b16 %v6712, %v6711
        %6715 = vst [vmem:[%s190 + $0x10] sm:$0xff] %v6713
        %v6716 = vld [vmem:[%s1] sm:$0xf]
        %v6717 = vld [vmem:[%s195 + $0xc] sm:$0x3]
        %v6718 = vld [vmem:[%s199] sm:$0xf]
        %v6719 = vld [vmem:[%s195 + $0xc] sm:$0xf]
        %v6722 = vunpack.c.l.s4 1983009808
        %v6723 = vunpack.c.0.s8 %v6722
        %v6724 = vlaneseq
        %v6725 = vshrl.u32 %v6724, 7
        %v6726 = vsub.s32 %v6723, %v6725
        %v6727 = vrot.slane %v6719, %v6726
        %v6728 = vcombine.high %v6727, %v6727
        %6729 = vrot.lane.b32.xlu0 %v6727, 127
        %v6730 = vpop.permute.xlu0 %6729
        %6731 = vrot.lane.b32.xlu0 %v6728, 127
        %v6732 = vpop.permute.xlu0 %6731
        %v6733 = vsel %vm225, %v6730, %v6732
        %v6735 = vsel %vm228, %v6718, 0
        %v6738 = vsel %vm232, %v6733, 0
        %6740 = vmatprep.subr.bf16.mxu0 0
        %6741 = vmatpush1.bf16.msra.mxu0 0
        %6742 = vmatprep.subr.bf16.mxu0 0
        %6743 = vmatpush1.bf16.msra.mxu0 0
        %6744 = vmatprep.subr.bf16.mxu0 0
        %6745 = vmatpush1.bf16.msra.mxu0 0
        %6746 = vmatprep.subr.bf16.mxu0 0
        %6747 = vmatpush1.bf16.msra.mxu0 0
        %6748 = vmatprep.subr.bf16.mxu0 0
        %6749 = vmatpush1.bf16.msra.mxu0 0
        %6750 = vmatprep.subr.bf16.mxu0 0
        %6751 = vmatpush1.bf16.msra.mxu0 0
        %6752 = vmatprep.subr.bf16.mxu0 0
        %6753 = vmatpush1.bf16.msra.mxu0 0
        %6754 = vmatprep.subr.bf16.mxu0 0
        %6755 = vmatpush1.bf16.msra.mxu0 %v6738
        %6756 = vmatprep.subr.bf16.mxu0 0
        %6757 = vmatpush2.bf16.msra.mxu0 0
        %6758 = vmatprep.subr.bf16.mxu0 0
        %6759 = vmatpush2.bf16.msra.mxu0 0
        %6760 = vmatprep.subr.bf16.mxu0 0
        %6761 = vmatpush2.bf16.msra.mxu0 0
        %6762 = vmatprep.subr.bf16.mxu0 0
        %6763 = vmatpush2.bf16.msra.mxu0 0
        %6764 = vmatprep.subr.bf16.mxu0 0
        %6765 = vmatpush2.bf16.msra.mxu0 0
        %6766 = vmatprep.subr.bf16.mxu0 0
        %6767 = vmatpush2.bf16.msra.mxu0 0
        %6768 = vmatprep.subr.bf16.mxu0 0
        %6769 = vmatpush2.bf16.msra.mxu0 0
        %6770 = vmatprep.subr.bf16.mxu0 0
        %6771 = vmatpush2.bf16.msra.mxu0 0
        %6772 = vmatprep.mubr.bf16.mxu0 0
        %6773 = vmatmul.mubr.bf16.gmra.mxu0 %v6735
        %v6774 = vpop.f32.mrf.mxu0
        %v6775 = vadd.f32 0.0, %v6774
        %v6776 = vpop.f32.mrf.mxu0
        %v6777 = vpop.f32.mrf.mxu0
        %v6778 = vpop.f32.mrf.mxu0
        %6779 = vdwg.mxu0
        %v6781 = vsel %vm228, %v6716, 0
        %v6784 = vsel %vm232, %v6717, 0
        %6786 = vmatprep.subr.bf16.mxu0 0
        %6787 = vmatpush1.bf16.msra.mxu0 0
        %6788 = vmatprep.subr.bf16.mxu0 0
        %6789 = vmatpush1.bf16.msra.mxu0 0
        %6790 = vmatprep.subr.bf16.mxu0 0
        %6791 = vmatpush1.bf16.msra.mxu0 0
        %6792 = vmatprep.subr.bf16.mxu0 0
        %6793 = vmatpush1.bf16.msra.mxu0 0
        %6794 = vmatprep.subr.bf16.mxu0 0
        %6795 = vmatpush1.bf16.msra.mxu0 0
        %6796 = vmatprep.subr.bf16.mxu0 0
        %6797 = vmatpush1.bf16.msra.mxu0 0
        %6798 = vmatprep.subr.bf16.mxu0 0
        %6799 = vmatpush1.bf16.msra.mxu0 0
        %6800 = vmatprep.subr.bf16.mxu0 0
        %6801 = vmatpush1.bf16.msra.mxu0 %v6784
        %6802 = vmatprep.subr.bf16.mxu0 0
        %6803 = vmatpush2.bf16.msra.mxu0 0
        %6804 = vmatprep.subr.bf16.mxu0 0
        %6805 = vmatpush2.bf16.msra.mxu0 0
        %6806 = vmatprep.subr.bf16.mxu0 0
        %6807 = vmatpush2.bf16.msra.mxu0 0
        %6808 = vmatprep.subr.bf16.mxu0 0
        %6809 = vmatpush2.bf16.msra.mxu0 0
        %6810 = vmatprep.subr.bf16.mxu0 0
        %6811 = vmatpush2.bf16.msra.mxu0 0
        %6812 = vmatprep.subr.bf16.mxu0 0
        %6813 = vmatpush2.bf16.msra.mxu0 0
        %6814 = vmatprep.subr.bf16.mxu0 0
        %6815 = vmatpush2.bf16.msra.mxu0 0
        %6816 = vmatprep.subr.bf16.mxu0 0
        %6817 = vmatpush2.bf16.msra.mxu0 0
        %6818 = vmatprep.mubr.bf16.mxu0 0
        %6819 = vmatmul.mubr.bf16.gmra.mxu0 %v6781
        %v6820 = vpop.f32.mrf.mxu0
        %v6821 = vadd.f32 %v6775, %v6820
        %v6822 = vpop.f32.mrf.mxu0
        %v6823 = vpop.f32.mrf.mxu0
        %v6824 = vpop.f32.mrf.mxu0
        %6825 = vdwg.mxu0
        %v6826 = vld [vmem:[%s339] sm:$0xf]
        %v6827 = vld [vmem:[%s195 + $0xc] sm:$0xf]
        %v6830 = vunpack.c.l.s4 1983009808
        %v6831 = vunpack.c.0.s8 %v6830
        %v6832 = vlaneseq
        %v6833 = vshrl.u32 %v6832, 7
        %v6834 = vsub.s32 %v6831, %v6833
        %v6835 = vrot.slane %v6827, %v6834
        %v6836 = vcombine.high %v6835, %v6835
        %6837 = vrot.lane.b32.xlu0 %v6835, 126
        %v6838 = vpop.permute.xlu0 %6837
        %6839 = vrot.lane.b32.xlu0 %v6836, 126
        %v6840 = vpop.permute.xlu0 %6839
        %v6841 = vsel %vm365, %v6838, %v6840
        %v6843 = vsel %vm228, %v6826, 0
        %v6846 = vsel %vm232, %v6841, 0
        %6848 = vmatprep.subr.bf16.mxu0 0
        %6849 = vmatpush1.bf16.msra.mxu0 0
        %6850 = vmatprep.subr.bf16.mxu0 0
        %6851 = vmatpush1.bf16.msra.mxu0 0
        %6852 = vmatprep.subr.bf16.mxu0 0
        %6853 = vmatpush1.bf16.msra.mxu0 0
        %6854 = vmatprep.subr.bf16.mxu0 0
        %6855 = vmatpush1.bf16.msra.mxu0 0
        %6856 = vmatprep.subr.bf16.mxu0 0
        %6857 = vmatpush1.bf16.msra.mxu0 0
        %6858 = vmatprep.subr.bf16.mxu0 0
        %6859 = vmatpush1.bf16.msra.mxu0 0
        %6860 = vmatprep.subr.bf16.mxu0 0
        %6861 = vmatpush1.bf16.msra.mxu0 0
        %6862 = vmatprep.subr.bf16.mxu0 0
        %6863 = vmatpush1.bf16.msra.mxu0 %v6846
        %6864 = vmatprep.subr.bf16.mxu0 0
        %6865 = vmatpush2.bf16.msra.mxu0 0
        %6866 = vmatprep.subr.bf16.mxu0 0
        %6867 = vmatpush2.bf16.msra.mxu0 0
        %6868 = vmatprep.subr.bf16.mxu0 0
        %6869 = vmatpush2.bf16.msra.mxu0 0
        %6870 = vmatprep.subr.bf16.mxu0 0
        %6871 = vmatpush2.bf16.msra.mxu0 0
        %6872 = vmatprep.subr.bf16.mxu0 0
        %6873 = vmatpush2.bf16.msra.mxu0 0
        %6874 = vmatprep.subr.bf16.mxu0 0
        %6875 = vmatpush2.bf16.msra.mxu0 0
        %6876 = vmatprep.subr.bf16.mxu0 0
        %6877 = vmatpush2.bf16.msra.mxu0 0
        %6878 = vmatprep.subr.bf16.mxu0 0
        %6879 = vmatpush2.bf16.msra.mxu0 0
        %6880 = vmatprep.mubr.bf16.mxu0 0
        %6881 = vmatmul.mubr.bf16.gmra.mxu0 %v6843
        %v6882 = vpop.f32.mrf.mxu0
        %v6883 = vadd.f32 0.0, %v6882
        %v6884 = vpop.f32.mrf.mxu0
        %v6885 = vpop.f32.mrf.mxu0
        %v6886 = vpop.f32.mrf.mxu0
        %6887 = vdwg.mxu0
        %v6888 = vadd.f32 %v6821, %v6883
        %v6889 = vld [vmem:[%s420] sm:$0xf]
        %v6890 = vld [vmem:[%s195 + $0xc] sm:$0xf]
        %v6893 = vunpack.c.l.s4 1983009808
        %v6894 = vunpack.c.0.s8 %v6893
        %v6895 = vlaneseq
        %v6896 = vshrl.u32 %v6895, 7
        %v6897 = vsub.s32 %v6894, %v6896
        %v6898 = vrot.slane %v6890, %v6897
        %v6899 = vcombine.high %v6898, %v6898
        %6900 = vrot.lane.b32.xlu0 %v6898, 118
        %v6901 = vpop.permute.xlu0 %6900
        %6902 = vrot.lane.b32.xlu0 %v6899, 118
        %v6903 = vpop.permute.xlu0 %6902
        %v6904 = vsel %vm446, %v6901, %v6903
        %v6906 = vsel %vm228, %v6889, 0
        %v6909 = vsel %vm232, %v6904, 0
        %6911 = vmatprep.subr.bf16.mxu0 0
        %6912 = vmatpush1.bf16.msra.mxu0 0
        %6913 = vmatprep.subr.bf16.mxu0 0
        %6914 = vmatpush1.bf16.msra.mxu0 0
        %6915 = vmatprep.subr.bf16.mxu0 0
        %6916 = vmatpush1.bf16.msra.mxu0 0
        %6917 = vmatprep.subr.bf16.mxu0 0
        %6918 = vmatpush1.bf16.msra.mxu0 0
        %6919 = vmatprep.subr.bf16.mxu0 0
        %6920 = vmatpush1.bf16.msra.mxu0 0
        %6921 = vmatprep.subr.bf16.mxu0 0
        %6922 = vmatpush1.bf16.msra.mxu0 0
        %6923 = vmatprep.subr.bf16.mxu0 0
        %6924 = vmatpush1.bf16.msra.mxu0 0
        %6925 = vmatprep.subr.bf16.mxu0 0
        %6926 = vmatpush1.bf16.msra.mxu0 %v6909
        %6927 = vmatprep.subr.bf16.mxu0 0
        %6928 = vmatpush2.bf16.msra.mxu0 0
        %6929 = vmatprep.subr.bf16.mxu0 0
        %6930 = vmatpush2.bf16.msra.mxu0 0
        %6931 = vmatprep.subr.bf16.mxu0 0
        %6932 = vmatpush2.bf16.msra.mxu0 0
        %6933 = vmatprep.subr.bf16.mxu0 0
        %6934 = vmatpush2.bf16.msra.mxu0 0
        %6935 = vmatprep.subr.bf16.mxu0 0
        %6936 = vmatpush2.bf16.msra.mxu0 0
        %6937 = vmatprep.subr.bf16.mxu0 0
        %6938 = vmatpush2.bf16.msra.mxu0 0
        %6939 = vmatprep.subr.bf16.mxu0 0
        %6940 = vmatpush2.bf16.msra.mxu0 0
        %6941 = vmatprep.subr.bf16.mxu0 0
        %6942 = vmatpush2.bf16.msra.mxu0 0
        %6943 = vmatprep.mubr.bf16.mxu0 0
        %6944 = vmatmul.mubr.bf16.gmra.mxu0 %v6906
        %v6945 = vpop.f32.mrf.mxu0
        %v6946 = vadd.f32 0.0, %v6945
        %v6947 = vpop.f32.mrf.mxu0
        %v6948 = vpop.f32.mrf.mxu0
        %v6949 = vpop.f32.mrf.mxu0
        %6950 = vdwg.mxu0
        %v6951 = vadd.f32 %v6888, %v6946
        %v6952 = vld [vmem:[%s501] sm:$0xf]
        %v6953 = vld [vmem:[%s195 + $0xc] sm:$0xf]
        %v6956 = vunpack.c.l.s4 1983009808
        %v6957 = vunpack.c.0.s8 %v6956
        %v6958 = vlaneseq
        %v6959 = vshrl.u32 %v6958, 7
        %v6960 = vsub.s32 %v6957, %v6959
        %v6961 = vrot.slane %v6953, %v6960
        %v6962 = vcombine.high %v6961, %v6961
        %6963 = vrot.lane.b32.xlu0 %v6961, 117
        %v6964 = vpop.permute.xlu0 %6963
        %6965 = vrot.lane.b32.xlu0 %v6962, 117
        %v6966 = vpop.permute.xlu0 %6965
        %v6967 = vsel %vm527, %v6964, %v6966
        %v6969 = vsel %vm228, %v6952, 0
        %v6972 = vsel %vm232, %v6967, 0
        %6974 = vmatprep.subr.bf16.mxu0 0
        %6975 = vmatpush1.bf16.msra.mxu0 0
        %6976 = vmatprep.subr.bf16.mxu0 0
        %6977 = vmatpush1.bf16.msra.mxu0 0
        %6978 = vmatprep.subr.bf16.mxu0 0
        %6979 = vmatpush1.bf16.msra.mxu0 0
        %6980 = vmatprep.subr.bf16.mxu0 0
        %6981 = vmatpush1.bf16.msra.mxu0 0
        %6982 = vmatprep.subr.bf16.mxu0 0
        %6983 = vmatpush1.bf16.msra.mxu0 0
        %6984 = vmatprep.subr.bf16.mxu0 0
        %6985 = vmatpush1.bf16.msra.mxu0 0
        %6986 = vmatprep.subr.bf16.mxu0 0
        %6987 = vmatpush1.bf16.msra.mxu0 0
        %6988 = vmatprep.subr.bf16.mxu0 0
        %6989 = vmatpush1.bf16.msra.mxu0 %v6972
        %6990 = vmatprep.subr.bf16.mxu0 0
        %6991 = vmatpush2.bf16.msra.mxu0 0
        %6992 = vmatprep.subr.bf16.mxu0 0
        %6993 = vmatpush2.bf16.msra.mxu0 0
        %6994 = vmatprep.subr.bf16.mxu0 0
        %6995 = vmatpush2.bf16.msra.mxu0 0
        %6996 = vmatprep.subr.bf16.mxu0 0
        %6997 = vmatpush2.bf16.msra.mxu0 0
        %6998 = vmatprep.subr.bf16.mxu0 0
        %6999 = vmatpush2.bf16.msra.mxu0 0
        %7000 = vmatprep.subr.bf16.mxu0 0
        %7001 = vmatpush2.bf16.msra.mxu0 0
        %7002 = vmatprep.subr.bf16.mxu0 0
        %7003 = vmatpush2.bf16.msra.mxu0 0
        %7004 = vmatprep.subr.bf16.mxu0 0
        %7005 = vmatpush2.bf16.msra.mxu0 0
        %7006 = vmatprep.mubr.bf16.mxu0 0
        %7007 = vmatmul.mubr.bf16.gmra.mxu0 %v6969
        %v7008 = vpop.f32.mrf.mxu0
        %v7009 = vadd.f32 0.0, %v7008
        %v7010 = vpop.f32.mrf.mxu0
        %v7011 = vpop.f32.mrf.mxu0
        %v7012 = vpop.f32.mrf.mxu0
        %7013 = vdwg.mxu0
        %v7014 = vadd.f32 %v6951, %v7009
        %v7015 = vld [vmem:[%s582] sm:$0xf]
        %v7016 = vld [vmem:[%s195 + $0xc] sm:$0xf]
        %v7019 = vunpack.c.l.s4 1983009808
        %v7020 = vunpack.c.0.s8 %v7019
        %v7021 = vlaneseq
        %v7022 = vshrl.u32 %v7021, 7
        %v7023 = vsub.s32 %v7020, %v7022
        %v7024 = vrot.slane %v7016, %v7023
        %v7025 = vcombine.high %v7024, %v7024
        %7026 = vrot.lane.b32.xlu0 %v7024, 116
        %v7027 = vpop.permute.xlu0 %7026
        %7028 = vrot.lane.b32.xlu0 %v7025, 116
        %v7029 = vpop.permute.xlu0 %7028
        %v7030 = vsel %vm608, %v7027, %v7029
        %v7032 = vsel %vm228, %v7015, 0
        %v7035 = vsel %vm232, %v7030, 0
        %7037 = vmatprep.subr.bf16.mxu0 0
        %7038 = vmatpush1.bf16.msra.mxu0 0
        %7039 = vmatprep.subr.bf16.mxu0 0
        %7040 = vmatpush1.bf16.msra.mxu0 0
        %7041 = vmatprep.subr.bf16.mxu0 0
        %7042 = vmatpush1.bf16.msra.mxu0 0
        %7043 = vmatprep.subr.bf16.mxu0 0
        %7044 = vmatpush1.bf16.msra.mxu0 0
        %7045 = vmatprep.subr.bf16.mxu0 0
        %7046 = vmatpush1.bf16.msra.mxu0 0
        %7047 = vmatprep.subr.bf16.mxu0 0
        %7048 = vmatpush1.bf16.msra.mxu0 0
        %7049 = vmatprep.subr.bf16.mxu0 0
        %7050 = vmatpush1.bf16.msra.mxu0 0
        %7051 = vmatprep.subr.bf16.mxu0 0
        %7052 = vmatpush1.bf16.msra.mxu0 %v7035
        %7053 = vmatprep.subr.bf16.mxu0 0
        %7054 = vmatpush2.bf16.msra.mxu0 0
        %7055 = vmatprep.subr.bf16.mxu0 0
        %7056 = vmatpush2.bf16.msra.mxu0 0
        %7057 = vmatprep.subr.bf16.mxu0 0
        %7058 = vmatpush2.bf16.msra.mxu0 0
        %7059 = vmatprep.subr.bf16.mxu0 0
        %7060 = vmatpush2.bf16.msra.mxu0 0
        %7061 = vmatprep.subr.bf16.mxu0 0
        %7062 = vmatpush2.bf16.msra.mxu0 0
        %7063 = vmatprep.subr.bf16.mxu0 0
        %7064 = vmatpush2.bf16.msra.mxu0 0
        %7065 = vmatprep.subr.bf16.mxu0 0
        %7066 = vmatpush2.bf16.msra.mxu0 0
        %7067 = vmatprep.subr.bf16.mxu0 0
        %7068 = vmatpush2.bf16.msra.mxu0 0
        %7069 = vmatprep.mubr.bf16.mxu0 0
        %7070 = vmatmul.mubr.bf16.gmra.mxu0 %v7032
        %v7071 = vpop.f32.mrf.mxu0
        %v7072 = vadd.f32 0.0, %v7071
        %v7073 = vpop.f32.mrf.mxu0
        %v7074 = vpop.f32.mrf.mxu0
        %v7075 = vpop.f32.mrf.mxu0
        %7076 = vdwg.mxu0
        %v7077 = vadd.f32 %v7014, %v7072
        %v7078 = vld [vmem:[%s663] sm:$0xf]
        %v7079 = vld [vmem:[%s195 + $0xc] sm:$0xf]
        %v7082 = vunpack.c.l.s4 1983009808
        %v7083 = vunpack.c.0.s8 %v7082
        %v7084 = vlaneseq
        %v7085 = vshrl.u32 %v7084, 7
        %v7086 = vsub.s32 %v7083, %v7085
        %v7087 = vrot.slane %v7079, %v7086
        %v7088 = vcombine.high %v7087, %v7087
        %7089 = vrot.lane.b32.xlu0 %v7087, 108
        %v7090 = vpop.permute.xlu0 %7089
        %7091 = vrot.lane.b32.xlu0 %v7088, 108
        %v7092 = vpop.permute.xlu0 %7091
        %v7093 = vsel %vm689, %v7090, %v7092
        %v7095 = vsel %vm228, %v7078, 0
        %v7098 = vsel %vm232, %v7093, 0
        %7100 = vmatprep.subr.bf16.mxu0 0
        %7101 = vmatpush1.bf16.msra.mxu0 0
        %7102 = vmatprep.subr.bf16.mxu0 0
        %7103 = vmatpush1.bf16.msra.mxu0 0
        %7104 = vmatprep.subr.bf16.mxu0 0
        %7105 = vmatpush1.bf16.msra.mxu0 0
        %7106 = vmatprep.subr.bf16.mxu0 0
        %7107 = vmatpush1.bf16.msra.mxu0 0
        %7108 = vmatprep.subr.bf16.mxu0 0
        %7109 = vmatpush1.bf16.msra.mxu0 0
        %7110 = vmatprep.subr.bf16.mxu0 0
        %7111 = vmatpush1.bf16.msra.mxu0 0
        %7112 = vmatprep.subr.bf16.mxu0 0
        %7113 = vmatpush1.bf16.msra.mxu0 0
        %7114 = vmatprep.subr.bf16.mxu0 0
        %7115 = vmatpush1.bf16.msra.mxu0 %v7098
        %7116 = vmatprep.subr.bf16.mxu0 0
        %7117 = vmatpush2.bf16.msra.mxu0 0
        %7118 = vmatprep.subr.bf16.mxu0 0
        %7119 = vmatpush2.bf16.msra.mxu0 0
        %7120 = vmatprep.subr.bf16.mxu0 0
        %7121 = vmatpush2.bf16.msra.mxu0 0
        %7122 = vmatprep.subr.bf16.mxu0 0
        %7123 = vmatpush2.bf16.msra.mxu0 0
        %7124 = vmatprep.subr.bf16.mxu0 0
        %7125 = vmatpush2.bf16.msra.mxu0 0
        %7126 = vmatprep.subr.bf16.mxu0 0
        %7127 = vmatpush2.bf16.msra.mxu0 0
        %7128 = vmatprep.subr.bf16.mxu0 0
        %7129 = vmatpush2.bf16.msra.mxu0 0
        %7130 = vmatprep.subr.bf16.mxu0 0
        %7131 = vmatpush2.bf16.msra.mxu0 0
        %7132 = vmatprep.mubr.bf16.mxu0 0
        %7133 = vmatmul.mubr.bf16.gmra.mxu0 %v7095
        %v7134 = vpop.f32.mrf.mxu0
        %v7135 = vadd.f32 0.0, %v7134
        %v7136 = vpop.f32.mrf.mxu0
        %v7137 = vpop.f32.mrf.mxu0
        %v7138 = vpop.f32.mrf.mxu0
        %7139 = vdwg.mxu0
        %v7140 = vadd.f32 %v7077, %v7135
        %v7141 = vld [vmem:[%s744] sm:$0xf]
        %v7142 = vld [vmem:[%s195 + $0xc] sm:$0xf]
        %v7145 = vunpack.c.l.s4 1983009808
        %v7146 = vunpack.c.0.s8 %v7145
        %v7147 = vlaneseq
        %v7148 = vshrl.u32 %v7147, 7
        %v7149 = vsub.s32 %v7146, %v7148
        %v7150 = vrot.slane %v7142, %v7149
        %v7151 = vcombine.high %v7150, %v7150
        %7152 = vrot.lane.b32.xlu0 %v7150, 107
        %v7153 = vpop.permute.xlu0 %7152
        %7154 = vrot.lane.b32.xlu0 %v7151, 107
        %v7155 = vpop.permute.xlu0 %7154
        %v7156 = vsel %vm770, %v7153, %v7155
        %v7158 = vsel %vm228, %v7141, 0
        %v7161 = vsel %vm232, %v7156, 0
        %7163 = vmatprep.subr.bf16.mxu0 0
        %7164 = vmatpush1.bf16.msra.mxu0 0
        %7165 = vmatprep.subr.bf16.mxu0 0
        %7166 = vmatpush1.bf16.msra.mxu0 0
        %7167 = vmatprep.subr.bf16.mxu0 0
        %7168 = vmatpush1.bf16.msra.mxu0 0
        %7169 = vmatprep.subr.bf16.mxu0 0
        %7170 = vmatpush1.bf16.msra.mxu0 0
        %7171 = vmatprep.subr.bf16.mxu0 0
        %7172 = vmatpush1.bf16.msra.mxu0 0
        %7173 = vmatprep.subr.bf16.mxu0 0
        %7174 = vmatpush1.bf16.msra.mxu0 0
        %7175 = vmatprep.subr.bf16.mxu0 0
        %7176 = vmatpush1.bf16.msra.mxu0 0
        %7177 = vmatprep.subr.bf16.mxu0 0
        %7178 = vmatpush1.bf16.msra.mxu0 %v7161
        %7179 = vmatprep.subr.bf16.mxu0 0
        %7180 = vmatpush2.bf16.msra.mxu0 0
        %7181 = vmatprep.subr.bf16.mxu0 0
        %7182 = vmatpush2.bf16.msra.mxu0 0
        %7183 = vmatprep.subr.bf16.mxu0 0
        %7184 = vmatpush2.bf16.msra.mxu0 0
        %7185 = vmatprep.subr.bf16.mxu0 0
        %7186 = vmatpush2.bf16.msra.mxu0 0
        %7187 = vmatprep.subr.bf16.mxu0 0
        %7188 = vmatpush2.bf16.msra.mxu0 0
        %7189 = vmatprep.subr.bf16.mxu0 0
        %7190 = vmatpush2.bf16.msra.mxu0 0
        %7191 = vmatprep.subr.bf16.mxu0 0
        %7192 = vmatpush2.bf16.msra.mxu0 0
        %7193 = vmatprep.subr.bf16.mxu0 0
        %7194 = vmatpush2.bf16.msra.mxu0 0
        %7195 = vmatprep.mubr.bf16.mxu0 0
        %7196 = vmatmul.mubr.bf16.gmra.mxu0 %v7158
        %v7197 = vpop.f32.mrf.mxu0
        %v7198 = vadd.f32 0.0, %v7197
        %v7199 = vpop.f32.mrf.mxu0
        %v7200 = vpop.f32.mrf.mxu0
        %v7201 = vpop.f32.mrf.mxu0
        %7202 = vdwg.mxu0
        %v7203 = vadd.f32 %v7140, %v7198
        %v7204 = vld [vmem:[%s825] sm:$0xf]
        %v7205 = vld [vmem:[%s195 + $0xc] sm:$0xf]
        %v7208 = vunpack.c.l.s4 1983009808
        %v7209 = vunpack.c.0.s8 %v7208
        %v7210 = vlaneseq
        %v7211 = vshrl.u32 %v7210, 7
        %v7212 = vsub.s32 %v7209, %v7211
        %v7213 = vrot.slane %v7205, %v7212
        %v7214 = vcombine.high %v7213, %v7213
        %7215 = vrot.lane.b32.xlu0 %v7213, 106
        %v7216 = vpop.permute.xlu0 %7215
        %7217 = vrot.lane.b32.xlu0 %v7214, 106
        %v7218 = vpop.permute.xlu0 %7217
        %v7219 = vsel %vm851, %v7216, %v7218
        %v7221 = vsel %vm228, %v7204, 0
        %v7224 = vsel %vm232, %v7219, 0
        %7226 = vmatprep.subr.bf16.mxu0 0
        %7227 = vmatpush1.bf16.msra.mxu0 0
        %7228 = vmatprep.subr.bf16.mxu0 0
        %7229 = vmatpush1.bf16.msra.mxu0 0
        %7230 = vmatprep.subr.bf16.mxu0 0
        %7231 = vmatpush1.bf16.msra.mxu0 0
        %7232 = vmatprep.subr.bf16.mxu0 0
        %7233 = vmatpush1.bf16.msra.mxu0 0
        %7234 = vmatprep.subr.bf16.mxu0 0
        %7235 = vmatpush1.bf16.msra.mxu0 0
        %7236 = vmatprep.subr.bf16.mxu0 0
        %7237 = vmatpush1.bf16.msra.mxu0 0
        %7238 = vmatprep.subr.bf16.mxu0 0
        %7239 = vmatpush1.bf16.msra.mxu0 0
        %7240 = vmatprep.subr.bf16.mxu0 0
        %7241 = vmatpush1.bf16.msra.mxu0 %v7224
        %7242 = vmatprep.subr.bf16.mxu0 0
        %7243 = vmatpush2.bf16.msra.mxu0 0
        %7244 = vmatprep.subr.bf16.mxu0 0
        %7245 = vmatpush2.bf16.msra.mxu0 0
        %7246 = vmatprep.subr.bf16.mxu0 0
        %7247 = vmatpush2.bf16.msra.mxu0 0
        %7248 = vmatprep.subr.bf16.mxu0 0
        %7249 = vmatpush2.bf16.msra.mxu0 0
        %7250 = vmatprep.subr.bf16.mxu0 0
        %7251 = vmatpush2.bf16.msra.mxu0 0
        %7252 = vmatprep.subr.bf16.mxu0 0
        %7253 = vmatpush2.bf16.msra.mxu0 0
        %7254 = vmatprep.subr.bf16.mxu0 0
        %7255 = vmatpush2.bf16.msra.mxu0 0
        %7256 = vmatprep.subr.bf16.mxu0 0
        %7257 = vmatpush2.bf16.msra.mxu0 0
        %7258 = vmatprep.mubr.bf16.mxu0 0
        %7259 = vmatmul.mubr.bf16.gmra.mxu0 %v7221
        %v7260 = vpop.f32.mrf.mxu0
        %v7261 = vadd.f32 0.0, %v7260
        %v7262 = vpop.f32.mrf.mxu0
        %v7263 = vpop.f32.mrf.mxu0
        %v7264 = vpop.f32.mrf.mxu0
        %7265 = vdwg.mxu0
        %v7266 = vadd.f32 %v7203, %v7261
        %v7267 = vld [vmem:[%s906] sm:$0xf]
        %v7268 = vld [vmem:[%s195 + $0xc] sm:$0xf]
        %v7271 = vunpack.c.l.s4 1983009808
        %v7272 = vunpack.c.0.s8 %v7271
        %v7273 = vlaneseq
        %v7274 = vshrl.u32 %v7273, 7
        %v7275 = vsub.s32 %v7272, %v7274
        %v7276 = vrot.slane %v7268, %v7275
        %v7277 = vcombine.high %v7276, %v7276
        %7278 = vrot.lane.b32.xlu0 %v7276, 28
        %v7279 = vpop.permute.xlu0 %7278
        %7280 = vrot.lane.b32.xlu0 %v7277, 28
        %v7281 = vpop.permute.xlu0 %7280
        %v7282 = vsel %vm932, %v7279, %v7281
        %v7284 = vsel %vm228, %v7267, 0
        %v7287 = vsel %vm232, %v7282, 0
        %7289 = vmatprep.subr.bf16.mxu0 0
        %7290 = vmatpush1.bf16.msra.mxu0 0
        %7291 = vmatprep.subr.bf16.mxu0 0
        %7292 = vmatpush1.bf16.msra.mxu0 0
        %7293 = vmatprep.subr.bf16.mxu0 0
        %7294 = vmatpush1.bf16.msra.mxu0 0
        %7295 = vmatprep.subr.bf16.mxu0 0
        %7296 = vmatpush1.bf16.msra.mxu0 0
        %7297 = vmatprep.subr.bf16.mxu0 0
        %7298 = vmatpush1.bf16.msra.mxu0 0
        %7299 = vmatprep.subr.bf16.mxu0 0
        %7300 = vmatpush1.bf16.msra.mxu0 0
        %7301 = vmatprep.subr.bf16.mxu0 0
        %7302 = vmatpush1.bf16.msra.mxu0 0
        %7303 = vmatprep.subr.bf16.mxu0 0
        %7304 = vmatpush1.bf16.msra.mxu0 %v7287
        %7305 = vmatprep.subr.bf16.mxu0 0
        %7306 = vmatpush2.bf16.msra.mxu0 0
        %7307 = vmatprep.subr.bf16.mxu0 0
        %7308 = vmatpush2.bf16.msra.mxu0 0
        %7309 = vmatprep.subr.bf16.mxu0 0
        %7310 = vmatpush2.bf16.msra.mxu0 0
        %7311 = vmatprep.subr.bf16.mxu0 0
        %7312 = vmatpush2.bf16.msra.mxu0 0
        %7313 = vmatprep.subr.bf16.mxu0 0
        %7314 = vmatpush2.bf16.msra.mxu0 0
        %7315 = vmatprep.subr.bf16.mxu0 0
        %7316 = vmatpush2.bf16.msra.mxu0 0
        %7317 = vmatprep.subr.bf16.mxu0 0
        %7318 = vmatpush2.bf16.msra.mxu0 0
        %7319 = vmatprep.subr.bf16.mxu0 0
        %7320 = vmatpush2.bf16.msra.mxu0 0
        %7321 = vmatprep.mubr.bf16.mxu0 0
        %7322 = vmatmul.mubr.bf16.gmra.mxu0 %v7284
        %v7323 = vpop.f32.mrf.mxu0
        %v7324 = vadd.f32 0.0, %v7323
        %v7325 = vpop.f32.mrf.mxu0
        %v7326 = vpop.f32.mrf.mxu0
        %v7327 = vpop.f32.mrf.mxu0
        %7328 = vdwg.mxu0
        %v7329 = vadd.f32 %v7266, %v7324
        %v7330 = vld [vmem:[%s987] sm:$0xf]
        %v7331 = vld [vmem:[%s195 + $0xc] sm:$0xf]
        %v7334 = vunpack.c.l.s4 1983009808
        %v7335 = vunpack.c.0.s8 %v7334
        %v7336 = vlaneseq
        %v7337 = vshrl.u32 %v7336, 7
        %v7338 = vsub.s32 %v7335, %v7337
        %v7339 = vrot.slane %v7331, %v7338
        %v7340 = vcombine.high %v7339, %v7339
        %7341 = vrot.lane.b32.xlu0 %v7339, 27
        %v7342 = vpop.permute.xlu0 %7341
        %7343 = vrot.lane.b32.xlu0 %v7340, 27
        %v7344 = vpop.permute.xlu0 %7343
        %v7345 = vsel %vm1013, %v7342, %v7344
        %v7347 = vsel %vm228, %v7330, 0
        %v7350 = vsel %vm232, %v7345, 0
        %7352 = vmatprep.subr.bf16.mxu0 0
        %7353 = vmatpush1.bf16.msra.mxu0 0
        %7354 = vmatprep.subr.bf16.mxu0 0
        %7355 = vmatpush1.bf16.msra.mxu0 0
        %7356 = vmatprep.subr.bf16.mxu0 0
        %7357 = vmatpush1.bf16.msra.mxu0 0
        %7358 = vmatprep.subr.bf16.mxu0 0
        %7359 = vmatpush1.bf16.msra.mxu0 0
        %7360 = vmatprep.subr.bf16.mxu0 0
        %7361 = vmatpush1.bf16.msra.mxu0 0
        %7362 = vmatprep.subr.bf16.mxu0 0
        %7363 = vmatpush1.bf16.msra.mxu0 0
        %7364 = vmatprep.subr.bf16.mxu0 0
        %7365 = vmatpush1.bf16.msra.mxu0 0
        %7366 = vmatprep.subr.bf16.mxu0 0
        %7367 = vmatpush1.bf16.msra.mxu0 %v7350
        %7368 = vmatprep.subr.bf16.mxu0 0
        %7369 = vmatpush2.bf16.msra.mxu0 0
        %7370 = vmatprep.subr.bf16.mxu0 0
        %7371 = vmatpush2.bf16.msra.mxu0 0
        %7372 = vmatprep.subr.bf16.mxu0 0
        %7373 = vmatpush2.bf16.msra.mxu0 0
        %7374 = vmatprep.subr.bf16.mxu0 0
        %7375 = vmatpush2.bf16.msra.mxu0 0
        %7376 = vmatprep.subr.bf16.mxu0 0
        %7377 = vmatpush2.bf16.msra.mxu0 0
        %7378 = vmatprep.subr.bf16.mxu0 0
        %7379 = vmatpush2.bf16.msra.mxu0 0
        %7380 = vmatprep.subr.bf16.mxu0 0
        %7381 = vmatpush2.bf16.msra.mxu0 0
        %7382 = vmatprep.subr.bf16.mxu0 0
        %7383 = vmatpush2.bf16.msra.mxu0 0
        %7384 = vmatprep.mubr.bf16.mxu0 0
        %7385 = vmatmul.mubr.bf16.gmra.mxu0 %v7347
        %v7386 = vpop.f32.mrf.mxu0
        %v7387 = vadd.f32 0.0, %v7386
        %v7388 = vpop.f32.mrf.mxu0
        %v7389 = vpop.f32.mrf.mxu0
        %v7390 = vpop.f32.mrf.mxu0
        %7391 = vdwg.mxu0
        %v7392 = vadd.f32 %v7329, %v7387
        %v7393 = vld [vmem:[%s1068] sm:$0xf]
        %v7394 = vld [vmem:[%s195 + $0xc] sm:$0xf]
        %v7397 = vunpack.c.l.s4 1983009808
        %v7398 = vunpack.c.0.s8 %v7397
        %v7399 = vlaneseq
        %v7400 = vshrl.u32 %v7399, 7
        %v7401 = vsub.s32 %v7398, %v7400
        %v7402 = vrot.slane %v7394, %v7401
        %v7403 = vcombine.high %v7402, %v7402
        %7404 = vrot.lane.b32.xlu0 %v7402, 26
        %v7405 = vpop.permute.xlu0 %7404
        %7406 = vrot.lane.b32.xlu0 %v7403, 26
        %v7407 = vpop.permute.xlu0 %7406
        %v7408 = vsel %vm1094, %v7405, %v7407
        %v7410 = vsel %vm228, %v7393, 0
        %v7413 = vsel %vm232, %v7408, 0
        %7415 = vmatprep.subr.bf16.mxu0 0
        %7416 = vmatpush1.bf16.msra.mxu0 0
        %7417 = vmatprep.subr.bf16.mxu0 0
        %7418 = vmatpush1.bf16.msra.mxu0 0
        %7419 = vmatprep.subr.bf16.mxu0 0
        %7420 = vmatpush1.bf16.msra.mxu0 0
        %7421 = vmatprep.subr.bf16.mxu0 0
        %7422 = vmatpush1.bf16.msra.mxu0 0
        %7423 = vmatprep.subr.bf16.mxu0 0
        %7424 = vmatpush1.bf16.msra.mxu0 0
        %7425 = vmatprep.subr.bf16.mxu0 0
        %7426 = vmatpush1.bf16.msra.mxu0 0
        %7427 = vmatprep.subr.bf16.mxu0 0
        %7428 = vmatpush1.bf16.msra.mxu0 0
        %7429 = vmatprep.subr.bf16.mxu0 0
        %7430 = vmatpush1.bf16.msra.mxu0 %v7413
        %7431 = vmatprep.subr.bf16.mxu0 0
        %7432 = vmatpush2.bf16.msra.mxu0 0
        %7433 = vmatprep.subr.bf16.mxu0 0
        %7434 = vmatpush2.bf16.msra.mxu0 0
        %7435 = vmatprep.subr.bf16.mxu0 0
        %7436 = vmatpush2.bf16.msra.mxu0 0
        %7437 = vmatprep.subr.bf16.mxu0 0
        %7438 = vmatpush2.bf16.msra.mxu0 0
        %7439 = vmatprep.subr.bf16.mxu0 0
        %7440 = vmatpush2.bf16.msra.mxu0 0
        %7441 = vmatprep.subr.bf16.mxu0 0
        %7442 = vmatpush2.bf16.msra.mxu0 0
        %7443 = vmatprep.subr.bf16.mxu0 0
        %7444 = vmatpush2.bf16.msra.mxu0 0
        %7445 = vmatprep.subr.bf16.mxu0 0
        %7446 = vmatpush2.bf16.msra.mxu0 0
        %7447 = vmatprep.mubr.bf16.mxu0 0
        %7448 = vmatmul.mubr.bf16.gmra.mxu0 %v7410
        %v7449 = vpop.f32.mrf.mxu0
        %v7450 = vadd.f32 0.0, %v7449
        %v7451 = vpop.f32.mrf.mxu0
        %v7452 = vpop.f32.mrf.mxu0
        %v7453 = vpop.f32.mrf.mxu0
        %7454 = vdwg.mxu0
        %v7455 = vadd.f32 %v7392, %v7450
        %v7456 = vld [vmem:[%s1149] sm:$0xf]
        %v7457 = vld [vmem:[%s195 + $0xc] sm:$0xf]
        %v7460 = vunpack.c.l.s4 1983009808
        %v7461 = vunpack.c.0.s8 %v7460
        %v7462 = vlaneseq
        %v7463 = vshrl.u32 %v7462, 7
        %v7464 = vsub.s32 %v7461, %v7463
        %v7465 = vrot.slane %v7457, %v7464
        %v7466 = vcombine.high %v7465, %v7465
        %7467 = vrot.lane.b32.xlu0 %v7465, 18
        %v7468 = vpop.permute.xlu0 %7467
        %7469 = vrot.lane.b32.xlu0 %v7466, 18
        %v7470 = vpop.permute.xlu0 %7469
        %v7471 = vsel %vm1175, %v7468, %v7470
        %v7473 = vsel %vm228, %v7456, 0
        %v7476 = vsel %vm232, %v7471, 0
        %7478 = vmatprep.subr.bf16.mxu0 0
        %7479 = vmatpush1.bf16.msra.mxu0 0
        %7480 = vmatprep.subr.bf16.mxu0 0
        %7481 = vmatpush1.bf16.msra.mxu0 0
        %7482 = vmatprep.subr.bf16.mxu0 0
        %7483 = vmatpush1.bf16.msra.mxu0 0
        %7484 = vmatprep.subr.bf16.mxu0 0
        %7485 = vmatpush1.bf16.msra.mxu0 0
        %7486 = vmatprep.subr.bf16.mxu0 0
        %7487 = vmatpush1.bf16.msra.mxu0 0
        %7488 = vmatprep.subr.bf16.mxu0 0
        %7489 = vmatpush1.bf16.msra.mxu0 0
        %7490 = vmatprep.subr.bf16.mxu0 0
        %7491 = vmatpush1.bf16.msra.mxu0 0
        %7492 = vmatprep.subr.bf16.mxu0 0
        %7493 = vmatpush1.bf16.msra.mxu0 %v7476
        %7494 = vmatprep.subr.bf16.mxu0 0
        %7495 = vmatpush2.bf16.msra.mxu0 0
        %7496 = vmatprep.subr.bf16.mxu0 0
        %7497 = vmatpush2.bf16.msra.mxu0 0
        %7498 = vmatprep.subr.bf16.mxu0 0
        %7499 = vmatpush2.bf16.msra.mxu0 0
        %7500 = vmatprep.subr.bf16.mxu0 0
        %7501 = vmatpush2.bf16.msra.mxu0 0
        %7502 = vmatprep.subr.bf16.mxu0 0
        %7503 = vmatpush2.bf16.msra.mxu0 0
        %7504 = vmatprep.subr.bf16.mxu0 0
        %7505 = vmatpush2.bf16.msra.mxu0 0
        %7506 = vmatprep.subr.bf16.mxu0 0
        %7507 = vmatpush2.bf16.msra.mxu0 0
        %7508 = vmatprep.subr.bf16.mxu0 0
        %7509 = vmatpush2.bf16.msra.mxu0 0
        %7510 = vmatprep.mubr.bf16.mxu0 0
        %7511 = vmatmul.mubr.bf16.gmra.mxu0 %v7473
        %v7512 = vpop.f32.mrf.mxu0
        %v7513 = vadd.f32 0.0, %v7512
        %v7514 = vpop.f32.mrf.mxu0
        %v7515 = vpop.f32.mrf.mxu0
        %v7516 = vpop.f32.mrf.mxu0
        %7517 = vdwg.mxu0
        %v7518 = vadd.f32 %v7455, %v7513
        %v7519 = vld [vmem:[%s1230] sm:$0xf]
        %v7520 = vld [vmem:[%s195 + $0xc] sm:$0xf]
        %v7523 = vunpack.c.l.s4 1983009808
        %v7524 = vunpack.c.0.s8 %v7523
        %v7525 = vlaneseq
        %v7526 = vshrl.u32 %v7525, 7
        %v7527 = vsub.s32 %v7524, %v7526
        %v7528 = vrot.slane %v7520, %v7527
        %v7529 = vcombine.high %v7528, %v7528
        %7530 = vrot.lane.b32.xlu0 %v7528, 17
        %v7531 = vpop.permute.xlu0 %7530
        %7532 = vrot.lane.b32.xlu0 %v7529, 17
        %v7533 = vpop.permute.xlu0 %7532
        %v7534 = vsel %vm1256, %v7531, %v7533
        %v7536 = vsel %vm228, %v7519, 0
        %v7539 = vsel %vm232, %v7534, 0
        %7541 = vmatprep.subr.bf16.mxu0 0
        %7542 = vmatpush1.bf16.msra.mxu0 0
        %7543 = vmatprep.subr.bf16.mxu0 0
        %7544 = vmatpush1.bf16.msra.mxu0 0
        %7545 = vmatprep.subr.bf16.mxu0 0
        %7546 = vmatpush1.bf16.msra.mxu0 0
        %7547 = vmatprep.subr.bf16.mxu0 0
        %7548 = vmatpush1.bf16.msra.mxu0 0
        %7549 = vmatprep.subr.bf16.mxu0 0
        %7550 = vmatpush1.bf16.msra.mxu0 0
        %7551 = vmatprep.subr.bf16.mxu0 0
        %7552 = vmatpush1.bf16.msra.mxu0 0
        %7553 = vmatprep.subr.bf16.mxu0 0
        %7554 = vmatpush1.bf16.msra.mxu0 0
        %7555 = vmatprep.subr.bf16.mxu0 0
        %7556 = vmatpush1.bf16.msra.mxu0 %v7539
        %7557 = vmatprep.subr.bf16.mxu0 0
        %7558 = vmatpush2.bf16.msra.mxu0 0
        %7559 = vmatprep.subr.bf16.mxu0 0
        %7560 = vmatpush2.bf16.msra.mxu0 0
        %7561 = vmatprep.subr.bf16.mxu0 0
        %7562 = vmatpush2.bf16.msra.mxu0 0
        %7563 = vmatprep.subr.bf16.mxu0 0
        %7564 = vmatpush2.bf16.msra.mxu0 0
        %7565 = vmatprep.subr.bf16.mxu0 0
        %7566 = vmatpush2.bf16.msra.mxu0 0
        %7567 = vmatprep.subr.bf16.mxu0 0
        %7568 = vmatpush2.bf16.msra.mxu0 0
        %7569 = vmatprep.subr.bf16.mxu0 0
        %7570 = vmatpush2.bf16.msra.mxu0 0
        %7571 = vmatprep.subr.bf16.mxu0 0
        %7572 = vmatpush2.bf16.msra.mxu0 0
        %7573 = vmatprep.mubr.bf16.mxu0 0
        %7574 = vmatmul.mubr.bf16.gmra.mxu0 %v7536
        %v7575 = vpop.f32.mrf.mxu0
        %v7576 = vadd.f32 0.0, %v7575
        %v7577 = vpop.f32.mrf.mxu0
        %v7578 = vpop.f32.mrf.mxu0
        %v7579 = vpop.f32.mrf.mxu0
        %7580 = vdwg.mxu0
        %v7581 = vadd.f32 %v7518, %v7576
        %v7582 = vld [vmem:[%s1311] sm:$0xf]
        %v7583 = vld [vmem:[%s195 + $0xc] sm:$0xf]
        %v7586 = vunpack.c.l.s4 1983009808
        %v7587 = vunpack.c.0.s8 %v7586
        %v7588 = vlaneseq
        %v7589 = vshrl.u32 %v7588, 7
        %v7590 = vsub.s32 %v7587, %v7589
        %v7591 = vrot.slane %v7583, %v7590
        %v7592 = vcombine.high %v7591, %v7591
        %7593 = vrot.lane.b32.xlu0 %v7591, 16
        %v7594 = vpop.permute.xlu0 %7593
        %7595 = vrot.lane.b32.xlu0 %v7592, 16
        %v7596 = vpop.permute.xlu0 %7595
        %v7597 = vsel %vm1337, %v7594, %v7596
        %v7599 = vsel %vm228, %v7582, 0
        %v7602 = vsel %vm232, %v7597, 0
        %7604 = vmatprep.subr.bf16.mxu0 0
        %7605 = vmatpush1.bf16.msra.mxu0 0
        %7606 = vmatprep.subr.bf16.mxu0 0
        %7607 = vmatpush1.bf16.msra.mxu0 0
        %7608 = vmatprep.subr.bf16.mxu0 0
        %7609 = vmatpush1.bf16.msra.mxu0 0
        %7610 = vmatprep.subr.bf16.mxu0 0
        %7611 = vmatpush1.bf16.msra.mxu0 0
        %7612 = vmatprep.subr.bf16.mxu0 0
        %7613 = vmatpush1.bf16.msra.mxu0 0
        %7614 = vmatprep.subr.bf16.mxu0 0
        %7615 = vmatpush1.bf16.msra.mxu0 0
        %7616 = vmatprep.subr.bf16.mxu0 0
        %7617 = vmatpush1.bf16.msra.mxu0 0
        %7618 = vmatprep.subr.bf16.mxu0 0
        %7619 = vmatpush1.bf16.msra.mxu0 %v7602
        %7620 = vmatprep.subr.bf16.mxu0 0
        %7621 = vmatpush2.bf16.msra.mxu0 0
        %7622 = vmatprep.subr.bf16.mxu0 0
        %7623 = vmatpush2.bf16.msra.mxu0 0
        %7624 = vmatprep.subr.bf16.mxu0 0
        %7625 = vmatpush2.bf16.msra.mxu0 0
        %7626 = vmatprep.subr.bf16.mxu0 0
        %7627 = vmatpush2.bf16.msra.mxu0 0
        %7628 = vmatprep.subr.bf16.mxu0 0
        %7629 = vmatpush2.bf16.msra.mxu0 0
        %7630 = vmatprep.subr.bf16.mxu0 0
        %7631 = vmatpush2.bf16.msra.mxu0 0
        %7632 = vmatprep.subr.bf16.mxu0 0
        %7633 = vmatpush2.bf16.msra.mxu0 0
        %7634 = vmatprep.subr.bf16.mxu0 0
        %7635 = vmatpush2.bf16.msra.mxu0 0
        %7636 = vmatprep.mubr.bf16.mxu0 0
        %7637 = vmatmul.mubr.bf16.gmra.mxu0 %v7599
        %v7638 = vpop.f32.mrf.mxu0
        %v7639 = vadd.f32 0.0, %v7638
        %v7640 = vpop.f32.mrf.mxu0
        %v7641 = vpop.f32.mrf.mxu0
        %v7642 = vpop.f32.mrf.mxu0
        %7643 = vdwg.mxu0
        %v7644 = vadd.f32 %v7581, %v7639
        %v7645 = vld [vmem:[%s1392] sm:$0xf]
        %v7646 = vld [vmem:[%s195 + $0xc] sm:$0xf]
        %v7649 = vunpack.c.l.s4 1983009808
        %v7650 = vunpack.c.0.s8 %v7649
        %v7651 = vlaneseq
        %v7652 = vshrl.u32 %v7651, 7
        %v7653 = vsub.s32 %v7650, %v7652
        %v7654 = vrot.slane %v7646, %v7653
        %v7655 = vcombine.high %v7654, %v7654
        %7656 = vrot.lane.b32.xlu0 %v7654, 8
        %v7657 = vpop.permute.xlu0 %7656
        %7658 = vrot.lane.b32.xlu0 %v7655, 8
        %v7659 = vpop.permute.xlu0 %7658
        %v7660 = vsel %vm1418, %v7657, %v7659
        %v7662 = vsel %vm228, %v7645, 0
        %v7665 = vsel %vm232, %v7660, 0
        %7667 = vmatprep.subr.bf16.mxu0 0
        %7668 = vmatpush1.bf16.msra.mxu0 0
        %7669 = vmatprep.subr.bf16.mxu0 0
        %7670 = vmatpush1.bf16.msra.mxu0 0
        %7671 = vmatprep.subr.bf16.mxu0 0
        %7672 = vmatpush1.bf16.msra.mxu0 0
        %7673 = vmatprep.subr.bf16.mxu0 0
        %7674 = vmatpush1.bf16.msra.mxu0 0
        %7675 = vmatprep.subr.bf16.mxu0 0
        %7676 = vmatpush1.bf16.msra.mxu0 0
        %7677 = vmatprep.subr.bf16.mxu0 0
        %7678 = vmatpush1.bf16.msra.mxu0 0
        %7679 = vmatprep.subr.bf16.mxu0 0
        %7680 = vmatpush1.bf16.msra.mxu0 0
        %7681 = vmatprep.subr.bf16.mxu0 0
        %7682 = vmatpush1.bf16.msra.mxu0 %v7665
        %7683 = vmatprep.subr.bf16.mxu0 0
        %7684 = vmatpush2.bf16.msra.mxu0 0
        %7685 = vmatprep.subr.bf16.mxu0 0
        %7686 = vmatpush2.bf16.msra.mxu0 0
        %7687 = vmatprep.subr.bf16.mxu0 0
        %7688 = vmatpush2.bf16.msra.mxu0 0
        %7689 = vmatprep.subr.bf16.mxu0 0
        %7690 = vmatpush2.bf16.msra.mxu0 0
        %7691 = vmatprep.subr.bf16.mxu0 0
        %7692 = vmatpush2.bf16.msra.mxu0 0
        %7693 = vmatprep.subr.bf16.mxu0 0
        %7694 = vmatpush2.bf16.msra.mxu0 0
        %7695 = vmatprep.subr.bf16.mxu0 0
        %7696 = vmatpush2.bf16.msra.mxu0 0
        %7697 = vmatprep.subr.bf16.mxu0 0
        %7698 = vmatpush2.bf16.msra.mxu0 0
        %7699 = vmatprep.mubr.bf16.mxu0 0
        %7700 = vmatmul.mubr.bf16.gmra.mxu0 %v7662
        %v7701 = vpop.f32.mrf.mxu0
        %v7702 = vadd.f32 0.0, %v7701
        %v7703 = vpop.f32.mrf.mxu0
        %v7704 = vpop.f32.mrf.mxu0
        %v7705 = vpop.f32.mrf.mxu0
        %7706 = vdwg.mxu0
        %v7707 = vadd.f32 %v7644, %v7702
        %v7708 = vld [vmem:[%s1473] sm:$0xf]
        %v7709 = vld [vmem:[%s195 + $0xc] sm:$0xf]
        %v7712 = vunpack.c.l.s4 1983009808
        %v7713 = vunpack.c.0.s8 %v7712
        %v7714 = vlaneseq
        %v7715 = vshrl.u32 %v7714, 7
        %v7716 = vsub.s32 %v7713, %v7715
        %v7717 = vrot.slane %v7709, %v7716
        %v7718 = vcombine.high %v7717, %v7717
        %7719 = vrot.lane.b32.xlu0 %v7717, 7
        %v7720 = vpop.permute.xlu0 %7719
        %7721 = vrot.lane.b32.xlu0 %v7718, 7
        %v7722 = vpop.permute.xlu0 %7721
        %v7723 = vsel %vm1499, %v7720, %v7722
        %v7725 = vsel %vm228, %v7708, 0
        %v7728 = vsel %vm232, %v7723, 0
        %7730 = vmatprep.subr.bf16.mxu0 0
        %7731 = vmatpush1.bf16.msra.mxu0 0
        %7732 = vmatprep.subr.bf16.mxu0 0
        %7733 = vmatpush1.bf16.msra.mxu0 0
        %7734 = vmatprep.subr.bf16.mxu0 0
        %7735 = vmatpush1.bf16.msra.mxu0 0
        %7736 = vmatprep.subr.bf16.mxu0 0
        %7737 = vmatpush1.bf16.msra.mxu0 0
        %7738 = vmatprep.subr.bf16.mxu0 0
        %7739 = vmatpush1.bf16.msra.mxu0 0
        %7740 = vmatprep.subr.bf16.mxu0 0
        %7741 = vmatpush1.bf16.msra.mxu0 0
        %7742 = vmatprep.subr.bf16.mxu0 0
        %7743 = vmatpush1.bf16.msra.mxu0 0
        %7744 = vmatprep.subr.bf16.mxu0 0
        %7745 = vmatpush1.bf16.msra.mxu0 %v7728
        %7746 = vmatprep.subr.bf16.mxu0 0
        %7747 = vmatpush2.bf16.msra.mxu0 0
        %7748 = vmatprep.subr.bf16.mxu0 0
        %7749 = vmatpush2.bf16.msra.mxu0 0
        %7750 = vmatprep.subr.bf16.mxu0 0
        %7751 = vmatpush2.bf16.msra.mxu0 0
        %7752 = vmatprep.subr.bf16.mxu0 0
        %7753 = vmatpush2.bf16.msra.mxu0 0
        %7754 = vmatprep.subr.bf16.mxu0 0
        %7755 = vmatpush2.bf16.msra.mxu0 0
        %7756 = vmatprep.subr.bf16.mxu0 0
        %7757 = vmatpush2.bf16.msra.mxu0 0
        %7758 = vmatprep.subr.bf16.mxu0 0
        %7759 = vmatpush2.bf16.msra.mxu0 0
        %7760 = vmatprep.subr.bf16.mxu0 0
        %7761 = vmatpush2.bf16.msra.mxu0 0
        %7762 = vmatprep.mubr.bf16.mxu0 0
        %7763 = vmatmul.mubr.bf16.gmra.mxu0 %v7725
        %v7764 = vpop.f32.mrf.mxu0
        %v7765 = vadd.f32 0.0, %v7764
        %v7766 = vpop.f32.mrf.mxu0
        %v7767 = vpop.f32.mrf.mxu0
        %v7768 = vpop.f32.mrf.mxu0
        %7769 = vdwg.mxu0
        %v7770 = vadd.f32 %v7707, %v7765
        %v7771 = vld [vmem:[%s1554] sm:$0xf]
        %v7772 = vld [vmem:[%s195 + $0xc] sm:$0xf]
        %v7775 = vunpack.c.l.s4 1983009808
        %v7776 = vunpack.c.0.s8 %v7775
        %v7777 = vlaneseq
        %v7778 = vshrl.u32 %v7777, 7
        %v7779 = vsub.s32 %v7776, %v7778
        %v7780 = vrot.slane %v7772, %v7779
        %v7781 = vcombine.high %v7780, %v7780
        %7782 = vrot.lane.b32.xlu0 %v7780, 6
        %v7783 = vpop.permute.xlu0 %7782
        %7784 = vrot.lane.b32.xlu0 %v7781, 6
        %v7785 = vpop.permute.xlu0 %7784
        %v7786 = vsel %vm1580, %v7783, %v7785
        %v7788 = vsel %vm228, %v7771, 0
        %v7791 = vsel %vm232, %v7786, 0
        %7793 = vmatprep.subr.bf16.mxu0 0
        %7794 = vmatpush1.bf16.msra.mxu0 0
        %7795 = vmatprep.subr.bf16.mxu0 0
        %7796 = vmatpush1.bf16.msra.mxu0 0
        %7797 = vmatprep.subr.bf16.mxu0 0
        %7798 = vmatpush1.bf16.msra.mxu0 0
        %7799 = vmatprep.subr.bf16.mxu0 0
        %7800 = vmatpush1.bf16.msra.mxu0 0
        %7801 = vmatprep.subr.bf16.mxu0 0
        %7802 = vmatpush1.bf16.msra.mxu0 0
        %7803 = vmatprep.subr.bf16.mxu0 0
        %7804 = vmatpush1.bf16.msra.mxu0 0
        %7805 = vmatprep.subr.bf16.mxu0 0
        %7806 = vmatpush1.bf16.msra.mxu0 0
        %7807 = vmatprep.subr.bf16.mxu0 0
        %7808 = vmatpush1.bf16.msra.mxu0 %v7791
        %7809 = vmatprep.subr.bf16.mxu0 0
        %7810 = vmatpush2.bf16.msra.mxu0 0
        %7811 = vmatprep.subr.bf16.mxu0 0
        %7812 = vmatpush2.bf16.msra.mxu0 0
        %7813 = vmatprep.subr.bf16.mxu0 0
        %7814 = vmatpush2.bf16.msra.mxu0 0
        %7815 = vmatprep.subr.bf16.mxu0 0
        %7816 = vmatpush2.bf16.msra.mxu0 0
        %7817 = vmatprep.subr.bf16.mxu0 0
        %7818 = vmatpush2.bf16.msra.mxu0 0
        %7819 = vmatprep.subr.bf16.mxu0 0
        %7820 = vmatpush2.bf16.msra.mxu0 0
        %7821 = vmatprep.subr.bf16.mxu0 0
        %7822 = vmatpush2.bf16.msra.mxu0 0
        %7823 = vmatprep.subr.bf16.mxu0 0
        %7824 = vmatpush2.bf16.msra.mxu0 0
        %7825 = vmatprep.mubr.bf16.mxu0 0
        %7826 = vmatmul.mubr.bf16.gmra.mxu0 %v7788
        %v7827 = vpop.f32.mrf.mxu0
        %v7828 = vadd.f32 0.0, %v7827
        %v7829 = vpop.f32.mrf.mxu0
        %v7830 = vpop.f32.mrf.mxu0
        %v7831 = vpop.f32.mrf.mxu0
        %7832 = vdwg.mxu0
        %v7833 = vadd.f32 %v7770, %v7828
        %v7834 = vld [vmem:[%s1635] sm:$0xf]
        %v7835 = vld [vmem:[%s195 + $0xe] sm:$0xf]
        %v7838 = vunpack.c.l.s4 1983009808
        %v7839 = vunpack.c.0.s8 %v7838
        %v7840 = vlaneseq
        %v7841 = vshrl.u32 %v7840, 7
        %v7842 = vsub.s32 %v7839, %v7841
        %v7843 = vrot.slane %v7835, %v7842
        %v7844 = vcombine.high %v7843, %v7843
        %7845 = vrot.lane.b32.xlu0 %v7843, 56
        %v7846 = vpop.permute.xlu0 %7845
        %7847 = vrot.lane.b32.xlu0 %v7844, 56
        %v7848 = vpop.permute.xlu0 %7847
        %v7849 = vsel %vm1661, %v7846, %v7848
        %v7851 = vsel %vm228, %v7834, 0
        %v7854 = vsel %vm232, %v7849, 0
        %7856 = vmatprep.subr.bf16.mxu0 0
        %7857 = vmatpush1.bf16.msra.mxu0 0
        %7858 = vmatprep.subr.bf16.mxu0 0
        %7859 = vmatpush1.bf16.msra.mxu0 0
        %7860 = vmatprep.subr.bf16.mxu0 0
        %7861 = vmatpush1.bf16.msra.mxu0 0
        %7862 = vmatprep.subr.bf16.mxu0 0
        %7863 = vmatpush1.bf16.msra.mxu0 0
        %7864 = vmatprep.subr.bf16.mxu0 0
        %7865 = vmatpush1.bf16.msra.mxu0 0
        %7866 = vmatprep.subr.bf16.mxu0 0
        %7867 = vmatpush1.bf16.msra.mxu0 0
        %7868 = vmatprep.subr.bf16.mxu0 0
        %7869 = vmatpush1.bf16.msra.mxu0 0
        %7870 = vmatprep.subr.bf16.mxu0 0
        %7871 = vmatpush1.bf16.msra.mxu0 %v7854
        %7872 = vmatprep.subr.bf16.mxu0 0
        %7873 = vmatpush2.bf16.msra.mxu0 0
        %7874 = vmatprep.subr.bf16.mxu0 0
        %7875 = vmatpush2.bf16.msra.mxu0 0
        %7876 = vmatprep.subr.bf16.mxu0 0
        %7877 = vmatpush2.bf16.msra.mxu0 0
        %7878 = vmatprep.subr.bf16.mxu0 0
        %7879 = vmatpush2.bf16.msra.mxu0 0
        %7880 = vmatprep.subr.bf16.mxu0 0
        %7881 = vmatpush2.bf16.msra.mxu0 0
        %7882 = vmatprep.subr.bf16.mxu0 0
        %7883 = vmatpush2.bf16.msra.mxu0 0
        %7884 = vmatprep.subr.bf16.mxu0 0
        %7885 = vmatpush2.bf16.msra.mxu0 0
        %7886 = vmatprep.subr.bf16.mxu0 0
        %7887 = vmatpush2.bf16.msra.mxu0 0
        %7888 = vmatprep.mubr.bf16.mxu0 0
        %7889 = vmatmul.mubr.bf16.gmra.mxu0 %v7851
        %v7890 = vpop.f32.mrf.mxu0
        %v7891 = vadd.f32 0.0, %v7890
        %v7892 = vpop.f32.mrf.mxu0
        %v7893 = vpop.f32.mrf.mxu0
        %v7894 = vpop.f32.mrf.mxu0
        %7895 = vdwg.mxu0
        %v7896 = vadd.f32 %v7833, %v7891
        %v7897 = vld [vmem:[%s1716] sm:$0xf]
        %v7898 = vld [vmem:[%s195 + $0xe] sm:$0xf]
        %v7901 = vunpack.c.l.s4 1983009808
        %v7902 = vunpack.c.0.s8 %v7901
        %v7903 = vlaneseq
        %v7904 = vshrl.u32 %v7903, 7
        %v7905 = vsub.s32 %v7902, %v7904
        %v7906 = vrot.slane %v7898, %v7905
        %v7907 = vcombine.high %v7906, %v7906
        %7908 = vrot.lane.b32.xlu0 %v7906, 55
        %v7909 = vpop.permute.xlu0 %7908
        %7910 = vrot.lane.b32.xlu0 %v7907, 55
        %v7911 = vpop.permute.xlu0 %7910
        %v7912 = vsel %vm1742, %v7909, %v7911
        %v7914 = vsel %vm228, %v7897, 0
        %v7917 = vsel %vm232, %v7912, 0
        %7919 = vmatprep.subr.bf16.mxu0 0
        %7920 = vmatpush1.bf16.msra.mxu0 0
        %7921 = vmatprep.subr.bf16.mxu0 0
        %7922 = vmatpush1.bf16.msra.mxu0 0
        %7923 = vmatprep.subr.bf16.mxu0 0
        %7924 = vmatpush1.bf16.msra.mxu0 0
        %7925 = vmatprep.subr.bf16.mxu0 0
        %7926 = vmatpush1.bf16.msra.mxu0 0
        %7927 = vmatprep.subr.bf16.mxu0 0
        %7928 = vmatpush1.bf16.msra.mxu0 0
        %7929 = vmatprep.subr.bf16.mxu0 0
        %7930 = vmatpush1.bf16.msra.mxu0 0
        %7931 = vmatprep.subr.bf16.mxu0 0
        %7932 = vmatpush1.bf16.msra.mxu0 0
        %7933 = vmatprep.subr.bf16.mxu0 0
        %7934 = vmatpush1.bf16.msra.mxu0 %v7917
        %7935 = vmatprep.subr.bf16.mxu0 0
        %7936 = vmatpush2.bf16.msra.mxu0 0
        %7937 = vmatprep.subr.bf16.mxu0 0
        %7938 = vmatpush2.bf16.msra.mxu0 0
        %7939 = vmatprep.subr.bf16.mxu0 0
        %7940 = vmatpush2.bf16.msra.mxu0 0
        %7941 = vmatprep.subr.bf16.mxu0 0
        %7942 = vmatpush2.bf16.msra.mxu0 0
        %7943 = vmatprep.subr.bf16.mxu0 0
        %7944 = vmatpush2.bf16.msra.mxu0 0
        %7945 = vmatprep.subr.bf16.mxu0 0
        %7946 = vmatpush2.bf16.msra.mxu0 0
        %7947 = vmatprep.subr.bf16.mxu0 0
        %7948 = vmatpush2.bf16.msra.mxu0 0
        %7949 = vmatprep.subr.bf16.mxu0 0
        %7950 = vmatpush2.bf16.msra.mxu0 0
        %7951 = vmatprep.mubr.bf16.mxu0 0
        %7952 = vmatmul.mubr.bf16.gmra.mxu0 %v7914
        %v7953 = vpop.f32.mrf.mxu0
        %v7954 = vadd.f32 0.0, %v7953
        %v7955 = vpop.f32.mrf.mxu0
        %v7956 = vpop.f32.mrf.mxu0
        %v7957 = vpop.f32.mrf.mxu0
        %7958 = vdwg.mxu0
        %v7959 = vadd.f32 %v7896, %v7954
        %v7960 = vld [vmem:[%s1797] sm:$0xf]
        %v7961 = vld [vmem:[%s195 + $0xe] sm:$0xf]
        %v7964 = vunpack.c.l.s4 1983009808
        %v7965 = vunpack.c.0.s8 %v7964
        %v7966 = vlaneseq
        %v7967 = vshrl.u32 %v7966, 7
        %v7968 = vsub.s32 %v7965, %v7967
        %v7969 = vrot.slane %v7961, %v7968
        %v7970 = vcombine.high %v7969, %v7969
        %7971 = vrot.lane.b32.xlu0 %v7969, 54
        %v7972 = vpop.permute.xlu0 %7971
        %7973 = vrot.lane.b32.xlu0 %v7970, 54
        %v7974 = vpop.permute.xlu0 %7973
        %v7975 = vsel %vm1823, %v7972, %v7974
        %v7977 = vsel %vm228, %v7960, 0
        %v7980 = vsel %vm232, %v7975, 0
        %7982 = vmatprep.subr.bf16.mxu0 0
        %7983 = vmatpush1.bf16.msra.mxu0 0
        %7984 = vmatprep.subr.bf16.mxu0 0
        %7985 = vmatpush1.bf16.msra.mxu0 0
        %7986 = vmatprep.subr.bf16.mxu0 0
        %7987 = vmatpush1.bf16.msra.mxu0 0
        %7988 = vmatprep.subr.bf16.mxu0 0
        %7989 = vmatpush1.bf16.msra.mxu0 0
        %7990 = vmatprep.subr.bf16.mxu0 0
        %7991 = vmatpush1.bf16.msra.mxu0 0
        %7992 = vmatprep.subr.bf16.mxu0 0
        %7993 = vmatpush1.bf16.msra.mxu0 0
        %7994 = vmatprep.subr.bf16.mxu0 0
        %7995 = vmatpush1.bf16.msra.mxu0 0
        %7996 = vmatprep.subr.bf16.mxu0 0
        %7997 = vmatpush1.bf16.msra.mxu0 %v7980
        %7998 = vmatprep.subr.bf16.mxu0 0
        %7999 = vmatpush2.bf16.msra.mxu0 0
        %8000 = vmatprep.subr.bf16.mxu0 0
        %8001 = vmatpush2.bf16.msra.mxu0 0
        %8002 = vmatprep.subr.bf16.mxu0 0
        %8003 = vmatpush2.bf16.msra.mxu0 0
        %8004 = vmatprep.subr.bf16.mxu0 0
        %8005 = vmatpush2.bf16.msra.mxu0 0
        %8006 = vmatprep.subr.bf16.mxu0 0
        %8007 = vmatpush2.bf16.msra.mxu0 0
        %8008 = vmatprep.subr.bf16.mxu0 0
        %8009 = vmatpush2.bf16.msra.mxu0 0
        %8010 = vmatprep.subr.bf16.mxu0 0
        %8011 = vmatpush2.bf16.msra.mxu0 0
        %8012 = vmatprep.subr.bf16.mxu0 0
        %8013 = vmatpush2.bf16.msra.mxu0 0
        %8014 = vmatprep.mubr.bf16.mxu0 0
        %8015 = vmatmul.mubr.bf16.gmra.mxu0 %v7977
        %v8016 = vpop.f32.mrf.mxu0
        %v8017 = vadd.f32 0.0, %v8016
        %v8018 = vpop.f32.mrf.mxu0
        %v8019 = vpop.f32.mrf.mxu0
        %v8020 = vpop.f32.mrf.mxu0
        %8021 = vdwg.mxu0
        %v8022 = vadd.f32 %v7959, %v8017
        %v8023 = vld [vmem:[%s1878] sm:$0xf]
        %v8024 = vld [vmem:[%s195 + $0xe] sm:$0xf]
        %v8027 = vunpack.c.l.s4 1983009808
        %v8028 = vunpack.c.0.s8 %v8027
        %v8029 = vlaneseq
        %v8030 = vshrl.u32 %v8029, 7
        %v8031 = vsub.s32 %v8028, %v8030
        %v8032 = vrot.slane %v8024, %v8031
        %v8033 = vcombine.high %v8032, %v8032
        %8034 = vrot.lane.b32.xlu0 %v8032, 46
        %v8035 = vpop.permute.xlu0 %8034
        %8036 = vrot.lane.b32.xlu0 %v8033, 46
        %v8037 = vpop.permute.xlu0 %8036
        %v8038 = vsel %vm1904, %v8035, %v8037
        %v8040 = vsel %vm228, %v8023, 0
        %v8043 = vsel %vm232, %v8038, 0
        %8045 = vmatprep.subr.bf16.mxu0 0
        %8046 = vmatpush1.bf16.msra.mxu0 0
        %8047 = vmatprep.subr.bf16.mxu0 0
        %8048 = vmatpush1.bf16.msra.mxu0 0
        %8049 = vmatprep.subr.bf16.mxu0 0
        %8050 = vmatpush1.bf16.msra.mxu0 0
        %8051 = vmatprep.subr.bf16.mxu0 0
        %8052 = vmatpush1.bf16.msra.mxu0 0
        %8053 = vmatprep.subr.bf16.mxu0 0
        %8054 = vmatpush1.bf16.msra.mxu0 0
        %8055 = vmatprep.subr.bf16.mxu0 0
        %8056 = vmatpush1.bf16.msra.mxu0 0
        %8057 = vmatprep.subr.bf16.mxu0 0
        %8058 = vmatpush1.bf16.msra.mxu0 0
        %8059 = vmatprep.subr.bf16.mxu0 0
        %8060 = vmatpush1.bf16.msra.mxu0 %v8043
        %8061 = vmatprep.subr.bf16.mxu0 0
        %8062 = vmatpush2.bf16.msra.mxu0 0
        %8063 = vmatprep.subr.bf16.mxu0 0
        %8064 = vmatpush2.bf16.msra.mxu0 0
        %8065 = vmatprep.subr.bf16.mxu0 0
        %8066 = vmatpush2.bf16.msra.mxu0 0
        %8067 = vmatprep.subr.bf16.mxu0 0
        %8068 = vmatpush2.bf16.msra.mxu0 0
        %8069 = vmatprep.subr.bf16.mxu0 0
        %8070 = vmatpush2.bf16.msra.mxu0 0
        %8071 = vmatprep.subr.bf16.mxu0 0
        %8072 = vmatpush2.bf16.msra.mxu0 0
        %8073 = vmatprep.subr.bf16.mxu0 0
        %8074 = vmatpush2.bf16.msra.mxu0 0
        %8075 = vmatprep.subr.bf16.mxu0 0
        %8076 = vmatpush2.bf16.msra.mxu0 0
        %8077 = vmatprep.mubr.bf16.mxu0 0
        %8078 = vmatmul.mubr.bf16.gmra.mxu0 %v8040
        %v8079 = vpop.f32.mrf.mxu0
        %v8080 = vadd.f32 0.0, %v8079
        %v8081 = vpop.f32.mrf.mxu0
        %v8082 = vpop.f32.mrf.mxu0
        %v8083 = vpop.f32.mrf.mxu0
        %8084 = vdwg.mxu0
        %v8085 = vadd.f32 %v8022, %v8080
        %v8086 = vld [vmem:[%s1959] sm:$0xf]
        %v8087 = vld [vmem:[%s195 + $0xe] sm:$0xf]
        %v8090 = vunpack.c.l.s4 1983009808
        %v8091 = vunpack.c.0.s8 %v8090
        %v8092 = vlaneseq
        %v8093 = vshrl.u32 %v8092, 7
        %v8094 = vsub.s32 %v8091, %v8093
        %v8095 = vrot.slane %v8087, %v8094
        %v8096 = vcombine.high %v8095, %v8095
        %8097 = vrot.lane.b32.xlu0 %v8095, 45
        %v8098 = vpop.permute.xlu0 %8097
        %8099 = vrot.lane.b32.xlu0 %v8096, 45
        %v8100 = vpop.permute.xlu0 %8099
        %v8101 = vsel %vm1985, %v8098, %v8100
        %v8103 = vsel %vm228, %v8086, 0
        %v8106 = vsel %vm232, %v8101, 0
        %8108 = vmatprep.subr.bf16.mxu0 0
        %8109 = vmatpush1.bf16.msra.mxu0 0
        %8110 = vmatprep.subr.bf16.mxu0 0
        %8111 = vmatpush1.bf16.msra.mxu0 0
        %8112 = vmatprep.subr.bf16.mxu0 0
        %8113 = vmatpush1.bf16.msra.mxu0 0
        %8114 = vmatprep.subr.bf16.mxu0 0
        %8115 = vmatpush1.bf16.msra.mxu0 0
        %8116 = vmatprep.subr.bf16.mxu0 0
        %8117 = vmatpush1.bf16.msra.mxu0 0
        %8118 = vmatprep.subr.bf16.mxu0 0
        %8119 = vmatpush1.bf16.msra.mxu0 0
        %8120 = vmatprep.subr.bf16.mxu0 0
        %8121 = vmatpush1.bf16.msra.mxu0 0
        %8122 = vmatprep.subr.bf16.mxu0 0
        %8123 = vmatpush1.bf16.msra.mxu0 %v8106
        %8124 = vmatprep.subr.bf16.mxu0 0
        %8125 = vmatpush2.bf16.msra.mxu0 0
        %8126 = vmatprep.subr.bf16.mxu0 0
        %8127 = vmatpush2.bf16.msra.mxu0 0
        %8128 = vmatprep.subr.bf16.mxu0 0
        %8129 = vmatpush2.bf16.msra.mxu0 0
        %8130 = vmatprep.subr.bf16.mxu0 0
        %8131 = vmatpush2.bf16.msra.mxu0 0
        %8132 = vmatprep.subr.bf16.mxu0 0
        %8133 = vmatpush2.bf16.msra.mxu0 0
        %8134 = vmatprep.subr.bf16.mxu0 0
        %8135 = vmatpush2.bf16.msra.mxu0 0
        %8136 = vmatprep.subr.bf16.mxu0 0
        %8137 = vmatpush2.bf16.msra.mxu0 0
        %8138 = vmatprep.subr.bf16.mxu0 0
        %8139 = vmatpush2.bf16.msra.mxu0 0
        %8140 = vmatprep.mubr.bf16.mxu0 0
        %8141 = vmatmul.mubr.bf16.gmra.mxu0 %v8103
        %v8142 = vpop.f32.mrf.mxu0
        %v8143 = vadd.f32 0.0, %v8142
        %v8144 = vpop.f32.mrf.mxu0
        %v8145 = vpop.f32.mrf.mxu0
        %v8146 = vpop.f32.mrf.mxu0
        %8147 = vdwg.mxu0
        %v8148 = vadd.f32 %v8085, %v8143
        %v8149 = vld [vmem:[%s2040] sm:$0xf]
        %v8150 = vld [vmem:[%s195 + $0xe] sm:$0xf]
        %v8153 = vunpack.c.l.s4 1983009808
        %v8154 = vunpack.c.0.s8 %v8153
        %v8155 = vlaneseq
        %v8156 = vshrl.u32 %v8155, 7
        %v8157 = vsub.s32 %v8154, %v8156
        %v8158 = vrot.slane %v8150, %v8157
        %v8159 = vcombine.high %v8158, %v8158
        %8160 = vrot.lane.b32.xlu0 %v8158, 44
        %v8161 = vpop.permute.xlu0 %8160
        %8162 = vrot.lane.b32.xlu0 %v8159, 44
        %v8163 = vpop.permute.xlu0 %8162
        %v8164 = vsel %vm2066, %v8161, %v8163
        %v8166 = vsel %vm228, %v8149, 0
        %v8169 = vsel %vm232, %v8164, 0
        %8171 = vmatprep.subr.bf16.mxu0 0
        %8172 = vmatpush1.bf16.msra.mxu0 0
        %8173 = vmatprep.subr.bf16.mxu0 0
        %8174 = vmatpush1.bf16.msra.mxu0 0
        %8175 = vmatprep.subr.bf16.mxu0 0
        %8176 = vmatpush1.bf16.msra.mxu0 0
        %8177 = vmatprep.subr.bf16.mxu0 0
        %8178 = vmatpush1.bf16.msra.mxu0 0
        %8179 = vmatprep.subr.bf16.mxu0 0
        %8180 = vmatpush1.bf16.msra.mxu0 0
        %8181 = vmatprep.subr.bf16.mxu0 0
        %8182 = vmatpush1.bf16.msra.mxu0 0
        %8183 = vmatprep.subr.bf16.mxu0 0
        %8184 = vmatpush1.bf16.msra.mxu0 0
        %8185 = vmatprep.subr.bf16.mxu0 0
        %8186 = vmatpush1.bf16.msra.mxu0 %v8169
        %8187 = vmatprep.subr.bf16.mxu0 0
        %8188 = vmatpush2.bf16.msra.mxu0 0
        %8189 = vmatprep.subr.bf16.mxu0 0
        %8190 = vmatpush2.bf16.msra.mxu0 0
        %8191 = vmatprep.subr.bf16.mxu0 0
        %8192 = vmatpush2.bf16.msra.mxu0 0
        %8193 = vmatprep.subr.bf16.mxu0 0
        %8194 = vmatpush2.bf16.msra.mxu0 0
        %8195 = vmatprep.subr.bf16.mxu0 0
        %8196 = vmatpush2.bf16.msra.mxu0 0
        %8197 = vmatprep.subr.bf16.mxu0 0
        %8198 = vmatpush2.bf16.msra.mxu0 0
        %8199 = vmatprep.subr.bf16.mxu0 0
        %8200 = vmatpush2.bf16.msra.mxu0 0
        %8201 = vmatprep.subr.bf16.mxu0 0
        %8202 = vmatpush2.bf16.msra.mxu0 0
        %8203 = vmatprep.mubr.bf16.mxu0 0
        %8204 = vmatmul.mubr.bf16.gmra.mxu0 %v8166
        %v8205 = vpop.f32.mrf.mxu0
        %v8206 = vadd.f32 0.0, %v8205
        %v8207 = vpop.f32.mrf.mxu0
        %v8208 = vpop.f32.mrf.mxu0
        %v8209 = vpop.f32.mrf.mxu0
        %8210 = vdwg.mxu0
        %v8211 = vadd.f32 %v8148, %v8206
        %v8212 = vld [vmem:[%s2121] sm:$0xf]
        %v8213 = vld [vmem:[%s195 + $0xe] sm:$0xf]
        %v8216 = vunpack.c.l.s4 1983009808
        %v8217 = vunpack.c.0.s8 %v8216
        %v8218 = vlaneseq
        %v8219 = vshrl.u32 %v8218, 7
        %v8220 = vsub.s32 %v8217, %v8219
        %v8221 = vrot.slane %v8213, %v8220
        %v8222 = vcombine.high %v8221, %v8221
        %8223 = vrot.lane.b32.xlu0 %v8221, 36
        %v8224 = vpop.permute.xlu0 %8223
        %8225 = vrot.lane.b32.xlu0 %v8222, 36
        %v8226 = vpop.permute.xlu0 %8225
        %v8227 = vsel %vm2147, %v8224, %v8226
        %v8229 = vsel %vm228, %v8212, 0
        %v8232 = vsel %vm232, %v8227, 0
        %8234 = vmatprep.subr.bf16.mxu0 0
        %8235 = vmatpush1.bf16.msra.mxu0 0
        %8236 = vmatprep.subr.bf16.mxu0 0
        %8237 = vmatpush1.bf16.msra.mxu0 0
        %8238 = vmatprep.subr.bf16.mxu0 0
        %8239 = vmatpush1.bf16.msra.mxu0 0
        %8240 = vmatprep.subr.bf16.mxu0 0
        %8241 = vmatpush1.bf16.msra.mxu0 0
        %8242 = vmatprep.subr.bf16.mxu0 0
        %8243 = vmatpush1.bf16.msra.mxu0 0
        %8244 = vmatprep.subr.bf16.mxu0 0
        %8245 = vmatpush1.bf16.msra.mxu0 0
        %8246 = vmatprep.subr.bf16.mxu0 0
        %8247 = vmatpush1.bf16.msra.mxu0 0
        %8248 = vmatprep.subr.bf16.mxu0 0
        %8249 = vmatpush1.bf16.msra.mxu0 %v8232
        %8250 = vmatprep.subr.bf16.mxu0 0
        %8251 = vmatpush2.bf16.msra.mxu0 0
        %8252 = vmatprep.subr.bf16.mxu0 0
        %8253 = vmatpush2.bf16.msra.mxu0 0
        %8254 = vmatprep.subr.bf16.mxu0 0
        %8255 = vmatpush2.bf16.msra.mxu0 0
        %8256 = vmatprep.subr.bf16.mxu0 0
        %8257 = vmatpush2.bf16.msra.mxu0 0
        %8258 = vmatprep.subr.bf16.mxu0 0
        %8259 = vmatpush2.bf16.msra.mxu0 0
        %8260 = vmatprep.subr.bf16.mxu0 0
        %8261 = vmatpush2.bf16.msra.mxu0 0
        %8262 = vmatprep.subr.bf16.mxu0 0
        %8263 = vmatpush2.bf16.msra.mxu0 0
        %8264 = vmatprep.subr.bf16.mxu0 0
        %8265 = vmatpush2.bf16.msra.mxu0 0
        %8266 = vmatprep.mubr.bf16.mxu0 0
        %8267 = vmatmul.mubr.bf16.gmra.mxu0 %v8229
        %v8268 = vpop.f32.mrf.mxu0
        %v8269 = vadd.f32 0.0, %v8268
        %v8270 = vpop.f32.mrf.mxu0
        %v8271 = vpop.f32.mrf.mxu0
        %v8272 = vpop.f32.mrf.mxu0
        %8273 = vdwg.mxu0
        %v8274 = vadd.f32 %v8211, %v8269
        %v8275 = vld [vmem:[%s2202] sm:$0xf]
        %v8276 = vld [vmem:[%s195 + $0xe] sm:$0xf]
        %v8279 = vunpack.c.l.s4 1983009808
        %v8280 = vunpack.c.0.s8 %v8279
        %v8281 = vlaneseq
        %v8282 = vshrl.u32 %v8281, 7
        %v8283 = vsub.s32 %v8280, %v8282
        %v8284 = vrot.slane %v8276, %v8283
        %v8285 = vcombine.high %v8284, %v8284
        %8286 = vrot.lane.b32.xlu0 %v8284, 35
        %v8287 = vpop.permute.xlu0 %8286
        %8288 = vrot.lane.b32.xlu0 %v8285, 35
        %v8289 = vpop.permute.xlu0 %8288
        %v8290 = vsel %vm2228, %v8287, %v8289
        %v8292 = vsel %vm228, %v8275, 0
        %v8295 = vsel %vm232, %v8290, 0
        %8297 = vmatprep.subr.bf16.mxu0 0
        %8298 = vmatpush1.bf16.msra.mxu0 0
        %8299 = vmatprep.subr.bf16.mxu0 0
        %8300 = vmatpush1.bf16.msra.mxu0 0
        %8301 = vmatprep.subr.bf16.mxu0 0
        %8302 = vmatpush1.bf16.msra.mxu0 0
        %8303 = vmatprep.subr.bf16.mxu0 0
        %8304 = vmatpush1.bf16.msra.mxu0 0
        %8305 = vmatprep.subr.bf16.mxu0 0
        %8306 = vmatpush1.bf16.msra.mxu0 0
        %8307 = vmatprep.subr.bf16.mxu0 0
        %8308 = vmatpush1.bf16.msra.mxu0 0
        %8309 = vmatprep.subr.bf16.mxu0 0
        %8310 = vmatpush1.bf16.msra.mxu0 0
        %8311 = vmatprep.subr.bf16.mxu0 0
        %8312 = vmatpush1.bf16.msra.mxu0 %v8295
        %8313 = vmatprep.subr.bf16.mxu0 0
        %8314 = vmatpush2.bf16.msra.mxu0 0
        %8315 = vmatprep.subr.bf16.mxu0 0
        %8316 = vmatpush2.bf16.msra.mxu0 0
        %8317 = vmatprep.subr.bf16.mxu0 0
        %8318 = vmatpush2.bf16.msra.mxu0 0
        %8319 = vmatprep.subr.bf16.mxu0 0
        %8320 = vmatpush2.bf16.msra.mxu0 0
        %8321 = vmatprep.subr.bf16.mxu0 0
        %8322 = vmatpush2.bf16.msra.mxu0 0
        %8323 = vmatprep.subr.bf16.mxu0 0
        %8324 = vmatpush2.bf16.msra.mxu0 0
        %8325 = vmatprep.subr.bf16.mxu0 0
        %8326 = vmatpush2.bf16.msra.mxu0 0
        %8327 = vmatprep.subr.bf16.mxu0 0
        %8328 = vmatpush2.bf16.msra.mxu0 0
        %8329 = vmatprep.mubr.bf16.mxu0 0
        %8330 = vmatmul.mubr.bf16.gmra.mxu0 %v8292
        %v8331 = vpop.f32.mrf.mxu0
        %v8332 = vadd.f32 0.0, %v8331
        %v8333 = vpop.f32.mrf.mxu0
        %v8334 = vpop.f32.mrf.mxu0
        %v8335 = vpop.f32.mrf.mxu0
        %8336 = vdwg.mxu0
        %v8337 = vadd.f32 %v8274, %v8332
        %v8338 = vld [vmem:[%s2283] sm:$0xf]
        %v8339 = vld [vmem:[%s195 + $0xe] sm:$0xf]
        %v8342 = vunpack.c.l.s4 1983009808
        %v8343 = vunpack.c.0.s8 %v8342
        %v8344 = vlaneseq
        %v8345 = vshrl.u32 %v8344, 7
        %v8346 = vsub.s32 %v8343, %v8345
        %v8347 = vrot.slane %v8339, %v8346
        %v8348 = vcombine.high %v8347, %v8347
        %8349 = vrot.lane.b32.xlu0 %v8347, 34
        %v8350 = vpop.permute.xlu0 %8349
        %8351 = vrot.lane.b32.xlu0 %v8348, 34
        %v8352 = vpop.permute.xlu0 %8351
        %v8353 = vsel %vm2309, %v8350, %v8352
        %v8355 = vsel %vm228, %v8338, 0
        %v8358 = vsel %vm232, %v8353, 0
        %8360 = vmatprep.subr.bf16.mxu0 0
        %8361 = vmatpush1.bf16.msra.mxu0 0
        %8362 = vmatprep.subr.bf16.mxu0 0
        %8363 = vmatpush1.bf16.msra.mxu0 0
        %8364 = vmatprep.subr.bf16.mxu0 0
        %8365 = vmatpush1.bf16.msra.mxu0 0
        %8366 = vmatprep.subr.bf16.mxu0 0
        %8367 = vmatpush1.bf16.msra.mxu0 0
        %8368 = vmatprep.subr.bf16.mxu0 0
        %8369 = vmatpush1.bf16.msra.mxu0 0
        %8370 = vmatprep.subr.bf16.mxu0 0
        %8371 = vmatpush1.bf16.msra.mxu0 0
        %8372 = vmatprep.subr.bf16.mxu0 0
        %8373 = vmatpush1.bf16.msra.mxu0 0
        %8374 = vmatprep.subr.bf16.mxu0 0
        %8375 = vmatpush1.bf16.msra.mxu0 %v8358
        %8376 = vmatprep.subr.bf16.mxu0 0
        %8377 = vmatpush2.bf16.msra.mxu0 0
        %8378 = vmatprep.subr.bf16.mxu0 0
        %8379 = vmatpush2.bf16.msra.mxu0 0
        %8380 = vmatprep.subr.bf16.mxu0 0
        %8381 = vmatpush2.bf16.msra.mxu0 0
        %8382 = vmatprep.subr.bf16.mxu0 0
        %8383 = vmatpush2.bf16.msra.mxu0 0
        %8384 = vmatprep.subr.bf16.mxu0 0
        %8385 = vmatpush2.bf16.msra.mxu0 0
        %8386 = vmatprep.subr.bf16.mxu0 0
        %8387 = vmatpush2.bf16.msra.mxu0 0
        %8388 = vmatprep.subr.bf16.mxu0 0
        %8389 = vmatpush2.bf16.msra.mxu0 0
        %8390 = vmatprep.subr.bf16.mxu0 0
        %8391 = vmatpush2.bf16.msra.mxu0 0
        %8392 = vmatprep.mubr.bf16.mxu0 0
        %8393 = vmatmul.mubr.bf16.gmra.mxu0 %v8355
        %v8394 = vpop.f32.mrf.mxu0
        %v8395 = vadd.f32 0.0, %v8394
        %v8396 = vpop.f32.mrf.mxu0
        %v8397 = vpop.f32.mrf.mxu0
        %v8398 = vpop.f32.mrf.mxu0
        %8399 = vdwg.mxu0
        %v8400 = vadd.f32 %v8337, %v8395
        %v8401 = vld [vmem:[%s3 + $0x6] sm:$0x1]
        %v8402 = vunpack.c.l.bf16 %v8401
        %v8403 = vlaneseq
        %v8404 = vshrl.u32 %v8403, 7
        %v8405 = vsub.s32 0, %v8404
        %v8406 = vrot.slane %v8402, %v8405
        %v8407 = vmul.f32 %v8400, %v8406
        %8408 = vadd.xlane.f32.xlu0 %v8407
        %v8409 = vpop.xlane.xlu0 %8408
        %v8410 = vadd.f32 %v6700, %v8409
        %v8411 = vmul.f32 %v8407, %v8400
        %8412 = vadd.xlane.f32.xlu0 %v8411
        %v8413 = vpop.xlane.xlu0 %8412
        %v8414 = vadd.f32 %v6706, %v8413
        %v8415 = vpack.c.bf16 %v8400, %v8400
        %8416 = vst [vmem:[%s190 + $0x18] sm:$0xf] %v8415
        %v8417 = vmul.f32 %v8410, 0.001953125
        %v8418 = vmul.f32 %v8414, 0.001953125
        %v8419 = vmul.f32 %v8417, %v8417
        %v8420 = vsub.f32 %v8418, %v8419
        %v8421 = vmax.f32 %v8420, 0.0
        %v8422 = vld [vmem:[%s2] sm:$0xff]
        %v8423 = vadd.f32 %v8421, 1e-05
        %v8424 = vrsqrt.pop %v8423
        %v8425 = vmul.f32 %v8422, %v8424
        %v8426 = vmul.f32 %v8417, %v8425
        %8428 = vrot.lane.b32.xlu0 %v8426, 1
        %v8429 = vpop.permute.xlu0 %8428
        %v8431 = vsub.f32 %v8422, %v8429
        %v8432 = vpack.c.bf16 %v8425, %v8425
        %v8433 = vpack.c.bf16 %v8431, %v8431
        %v8434 = vpack.c.bf16 %v8422, %v8422
        %v8435 = vld [vmem:[%s190] sm:$0xff]
        %8437 = vset.pattern.permute.xlu0 0
        %8438 = vperm.xlu0 %8437, %v8432
        %v8439 = vpop.permute.xlu0 %8438
        %v8442 = vunpack.c.l.s4 839922192
        %v8443 = vunpack.c.0.s8 %v8442
        %v8444 = vlaneseq
        %v8445 = vshrl.u32 %v8444, 7
        %v8446 = vsub.s32 %v8443, %v8445
        %v8447 = vrot.slane %v8439, %v8446
        %v8449 = vmul.bf16 %v8435, %v8447
        %8451 = vset.pattern.permute.xlu0 1
        %8452 = vperm.xlu0 %8451, %v8433
        %v8453 = vpop.permute.xlu0 %8452
        %v8456 = vunpack.c.l.s4 839922192
        %v8457 = vunpack.c.0.s8 %v8456
        %v8458 = vlaneseq
        %v8459 = vshrl.u32 %v8458, 7
        %v8460 = vsub.s32 %v8457, %v8459
        %v8461 = vrot.slane %v8453, %v8460
        %v8463 = vadd.bf16 %v8449, %v8461
        %vm8464 = vcmp.ge.bf16.partialorder %v8463, 0
        %8466 = vset.pattern.permute.xlu0 2
        %8467 = vperm.xlu0 %8466, %v8434
        %v8468 = vpop.permute.xlu0 %8467
        %v8471 = vunpack.c.l.b16 %v8463
        %v8472 = vunpack.c.h.b16 %v8463
        %v8473 = vpack.c.b16 %v8471, %v8471
        %v8474 = vpack.c.b16 %v8472, %v8472
        %v8477 = vmul.bf16 %v8468, %v8473
        %v8478 = vmul.bf16 %v8468, %v8474
        %v8481 = vunpack.c.l.b16 %v8477
        %v8482 = vunpack.c.l.b16 %v8478
        %v8483 = vpack.c.b16 %v8482, %v8481
        %v8485 = vsel %vm8464, %v8463, %v8483
        %8486 = vst [vmem:[%s190] sm:$0xff] %v8485
        %v8487 = vld [vmem:[%s190 + $0x8] sm:$0xff]
        %v8488 = vmul.bf16 %v8487, %v8447
        %v8489 = vadd.bf16 %v8488, %v8461
        %vm8490 = vcmp.ge.bf16.partialorder %v8489, 0
        %v8492 = vunpack.c.l.b16 %v8489
        %v8493 = vunpack.c.h.b16 %v8489
        %v8494 = vpack.c.b16 %v8492, %v8492
        %v8495 = vpack.c.b16 %v8493, %v8493
        %v8498 = vmul.bf16 %v8468, %v8494
        %v8499 = vmul.bf16 %v8468, %v8495
        %v8502 = vunpack.c.l.b16 %v8498
        %v8503 = vunpack.c.l.b16 %v8499
        %v8504 = vpack.c.b16 %v8503, %v8502
        %v8506 = vsel %vm8490, %v8489, %v8504
        %8507 = vst [vmem:[%s190 + $0x8] sm:$0xff] %v8506
        %v8508 = vld [vmem:[%s190 + $0x10] sm:$0xff]
        %v8509 = vmul.bf16 %v8508, %v8447
        %v8510 = vadd.bf16 %v8509, %v8461
        %vm8511 = vcmp.ge.bf16.partialorder %v8510, 0
        %v8513 = vunpack.c.l.b16 %v8510
        %v8514 = vunpack.c.h.b16 %v8510
        %v8515 = vpack.c.b16 %v8513, %v8513
        %v8516 = vpack.c.b16 %v8514, %v8514
        %v8519 = vmul.bf16 %v8468, %v8515
        %v8520 = vmul.bf16 %v8468, %v8516
        %v8523 = vunpack.c.l.b16 %v8519
        %v8524 = vunpack.c.l.b16 %v8520
        %v8525 = vpack.c.b16 %v8524, %v8523
        %v8527 = vsel %vm8511, %v8510, %v8525
        %8528 = vst [vmem:[%s190 + $0x10] sm:$0xff] %v8527
        %v8529 = vld [vmem:[%s190 + $0x18] sm:$0xf]
        %v8531 = vmul.bf16 %v8529, %v8439
        %v8533 = vadd.bf16 %v8531, %v8453
        %vm8534 = vcmp.ge.bf16.partialorder %v8533, 0
        %v8535 = vmul.bf16 %v8468, %v8533
        %v8536 = vsel %vm8534, %v8533, %v8535
        %8537 = vst [vmem:[%s190 + $0x18] sm:$0xf] %v8536
        %s8538 = sand.u32 %s115, 1
        %s8539 = scalar_lea.sflag [#allocation3], %s8538
        %s8540 = sand.u32 %s115, 1
        %s8541 = smul.addr %s8540, 28
        %s8542 = scalar_lea.vmem [#allocation2], %s8541
        // Predicated region
        $region37: #{tpu_custom_call.1} parent=35 // pred_check
          %p8543 = pneg %p125
        $region38: #{tpu_custom_call.1} parent=35 // pred_check_branch
          %8545 = sbr.rel (%p8543) target = $region40
        $region39: #{tpu_custom_call.1} parent=35 // pred_region
          %s8547 = ssub.s32 448, 448
          %8548 = vsyncadd %s8539, %s8547
          %s8549 = smul.addr %s18, 7
          %s8550 = smul.addr %s8549, 64
          %s8551 = scalar_lea.hbm %s4, %s8550
          %s8553 = sshll.u32 %s8542, 4
          %s8554 = int_to_ptr.vmem [resolvable:$true] %s8553
          %8556 = dma.vmem_to_hbm [thread:$0]  %s8554, 448, %s8551, %s8539
        $region40: #{tpu_custom_call.1} parent=35 // pred_fallthru
          _
      $region36: #{tpu_custom_call.1} parent=5 // pred_fallthru
        _
      %p8557 = scmp.le.s32.totalorder 2, %s13
      // Predicated region
      $region41: #{tpu_custom_call.1} parent=5 // pred_check
        %p8558 = pneg %p8557
      $region42: #{tpu_custom_call.1} parent=5 // pred_check_branch
        %8560 = sbr.rel (%p8558) target = $region44
      $region43: #{tpu_custom_call.1} parent=5 // pred_region
        %s8561 = ssub.s32 %s13, 2
        // Predicated region
        $region45: #{tpu_custom_call.1} parent=43 // pred_check
          %p8562 = pneg %p131
        $region46: #{tpu_custom_call.1} parent=43 // pred_check_branch
          %8564 = sbr.rel (%p8562) target = $region48
        $region47: #{tpu_custom_call.1} parent=43 // pred_region
          %s8565 = sand.u32 %s116, 1
          %s8566 = scalar_lea.sflag [#allocation3], %s8565
          %s8567 = sand.u32 %s116, 1
          %s8568 = smul.addr %s8567, 28
          %s8569 = scalar_lea.vmem [#allocation2], %s8568
          %8570 = dma.done %s8566, 448
        $region48: #{tpu_custom_call.1} parent=43 // pred_fallthru
          _
      $region44: #{tpu_custom_call.1} parent=5 // pred_fallthru
        _
    $region6: #{tpu_custom_call.1} parent=1 // loop_footer
      %s17 = sadd.s32 1, %s13
    $region7: #{tpu_custom_call.1} parent=1 // loop_footer_branch
      %12 = sbr.rel target = $region3
    $region8: #{tpu_custom_call.1} parent=1 // loop_exit
      _
    %8571 = vsyncpa [#allocation3], 1
    %s8572 = scalar_lea.sflag [#allocation3], 1
    %8573 = vsyncpa %s8572, 1

</llo_original>
